<compile_context>
chip_gen: v7x
topology: tpu7x:2x2x1
jax: 0.10.0
libtpu: 0.0.40
codegen_flags: <defaults>
</compile_context>

<pallas_src>
import functools
import math

import jax
import jax.numpy as jnp
from jax.experimental import pallas as pl
from jax.experimental.pallas import tpu as pltpu

MAX_HIS = 20          # module-level constant in the reference code
MAX_LAST_ACTION = 15  # module-level constant in the reference code
PADDED_HIDDEN = 128   # hidden_dim=100, zero-padded per gate to lane-aligned 128


def _round_up(x, m):
    return ((x + m - 1) // m) * m


# ----------------------------- Pallas kernels ------------------------------

def _linear_kernel(x_ref, w_ref, b_ref, o_ref, *, apply_relu):
    y = jnp.dot(x_ref[...], w_ref[...], preferred_element_type=jnp.float32)
    y = y + b_ref[...]
    if apply_relu:
        y = jnp.maximum(y, 0.0)
    o_ref[...] = y.astype(o_ref.dtype)


def pallas_linear(x, w, b, *, relu, out_dtype=jnp.float32, block_m=512):
    """y = relu?(x @ w + b); M tiled with a 'parallel' grid (pipelined DMA)."""
    M, K = x.shape
    K2, N = w.shape
    assert K == K2
    if M <= block_m or M % block_m != 0:
        block_m = M                      # full block (always layout-legal)
    grid = (M // block_m,)
    kernel = functools.partial(_linear_kernel, apply_relu=relu)
    return pl.pallas_call(
        kernel,
        out_shape=jax.ShapeDtypeStruct((M, N), out_dtype),
        grid=grid,
        in_specs=[pl.BlockSpec((block_m, K), lambda i: (i, 0)),
                  pl.BlockSpec((K, N), lambda i: (0, 0)),
                  pl.BlockSpec((1, N), lambda i: (0, 0))],
        out_specs=pl.BlockSpec((block_m, N), lambda i: (i, 0)),
        compiler_params=pltpu.CompilerParams(
            dimension_semantics=("parallel",)),
    )(x, w, b.reshape(1, N))


def _mlp2_kernel(x_ref, w1_ref, b1_ref, w2_ref, b2_ref, o_ref):
    """Fused Linear -> ReLU -> Linear; the intermediate never leaves VMEM."""
    h = jnp.dot(x_ref[...], w1_ref[...], preferred_element_type=jnp.float32)
    h = jnp.maximum(h + b1_ref[...], 0.0).astype(w2_ref.dtype)
    y = jnp.dot(h, w2_ref[...], preferred_element_type=jnp.float32) + b2_ref[...]
    o_ref[...] = y.astype(o_ref.dtype)


def pallas_mlp2(x, w1, b1, w2, b2, *, out_dtype):
    M = x.shape[0]
    N = w2.shape[1]
    vmem = pl.BlockSpec(memory_space=pltpu.MemorySpace.VMEM)
    return pl.pallas_call(
        _mlp2_kernel,
        out_shape=jax.ShapeDtypeStruct((M, N), out_dtype),
        in_specs=[vmem] * 5,
        out_specs=vmem,
    )(x, w1, b1.reshape(1, -1), w2, b2.reshape(1, -1))


def _lstm_pair_kernel(gx_ref, whh_ref, hout_ref):
    """One LSTM recurrence per grid point over precomputed input gates.

    gx_ref:  (t_len, B, 4H) f32 — X @ W_ih + b for this LSTM (already hoisted).
    whh_ref: (H, 4H)        f32 — recurrent weights (PyTorch gate order i,f,g,o).
    hout_ref:(1, B, H)      f32 — final hidden state (== out[:, -1, :]).
    """
    t_len, batch, _ = gx_ref.shape
    hdim = whh_ref.shape[0]
    whh = whh_ref[...]

    def step(t, carry):
        h, c = carry
        gates = gx_ref[t] + jnp.dot(h, whh, preferred_element_type=jnp.float32)
        i_g = jax.nn.sigmoid(gates[:, 0 * hdim:1 * hdim])
        f_g = jax.nn.sigmoid(gates[:, 1 * hdim:2 * hdim])
        g_g = jnp.tanh(gates[:, 2 * hdim:3 * hdim])
        o_g = jax.nn.sigmoid(gates[:, 3 * hdim:4 * hdim])
        c_new = f_g * c + i_g * g_g
        h_new = o_g * jnp.tanh(c_new)
        return h_new, c_new

    h0 = jnp.zeros((batch, hdim), jnp.float32)   # h0 = c0 = 0, as in the module
    c0 = jnp.zeros((batch, hdim), jnp.float32)
    h_last, _ = jax.lax.fori_loop(0, t_len, step, (h0, c0), unroll=True)
    hout_ref[0, :, :] = h_last


def pallas_lstm_pair(gx_stacked, whh_both, *, t_len):
    """Runs both LSTM recurrences in one call; grid=(2,) 'parallel' (2 TCs on v7x)."""
    two_t, batch, h4 = gx_stacked.shape
    assert two_t == 2 * t_len
    hdim = h4 // 4
    return pl.pallas_call(
        _lstm_pair_kernel,
        out_shape=jax.ShapeDtypeStruct((2, batch, hdim), jnp.float32),
        grid=(2,),
        in_specs=[pl.BlockSpec((t_len, batch, h4), lambda r: (r, 0, 0)),
                  pl.BlockSpec((hdim, h4), lambda r: (r, 0))],
        out_specs=pl.BlockSpec((1, batch, hdim), lambda r: (r, 0, 0)),
        compiler_params=pltpu.CompilerParams(
            dimension_semantics=("parallel",)),
    )(gx_stacked, whh_both)


# ------------------------------ conv as matmul ------------------------------

def _im2col(x_nhwc, k, s):
    """Valid-padding patch extraction (XLA slicing glue, bf16)."""
    N, H, W, C = x_nhwc.shape
    OH = (H - k) // s + 1
    OW = (W - k) // s + 1
    cols = []
    for kh in range(k):
        for kw in range(k):
            cols.append(x_nhwc[:, kh:kh + s * OH:s, kw:kw + s * OW:s, :])
    patches = jnp.stack(cols, axis=3)            # (N, OH, OW, k*k, C), (kh,kw) order
    return patches.reshape(N * OH * OW, k * k * C), OH, OW


def conv2d_relu(x_nhwc, w_hwio, b, *, stride):
    # TODO(synk): extract patches inside the kernel from a VMEM-resident input
    # tile to avoid the HBM round-trip of the im2col tensor (small at these sizes).
    k, _, cin, cout = w_hwio.shape
    patches, OH, OW = _im2col(x_nhwc, k, stride)
    wmat = w_hwio.reshape(k * k * cin, cout)     # (kh, kw, cin) flatten — matches patches
    y = pallas_linear(patches, wmat, b, relu=True, out_dtype=jnp.bfloat16)
    return y.reshape(x_nhwc.shape[0], OH, OW, cout)


# ------------------------------ forward pass --------------------------------

def nature_cnn_forward(params, observations, data, *, output_dim):
    # observations: (B, T, C, H, W) f32 ; data: (B, T, data_size + 9*max_last_action)
    B, T, C, H, W = observations.shape
    x = observations.reshape(B * T, C, H, W).transpose(0, 2, 3, 1)   # -> NHWC
    x = x.astype(jnp.bfloat16)                                       # bf16 MXU operands

    # self.cnn
    x = conv2d_relu(x, params['c1_w'], params['c1_b'], stride=4)
    x = conv2d_relu(x, params['c2_w'], params['c2_b'], stride=2)
    x = conv2d_relu(x, params['c3_w'], params['c3_b'], stride=1)
    c_out = x.reshape(B * T, -1)                                     # (B*T, n_flatten)

    # self.linear_stack (fused 2-layer kernel, K padded 151 -> 256)
    d = data.reshape(B * T, -1).astype(jnp.bfloat16)
    d = jnp.pad(d, ((0, 0), (0, params['d1_w'].shape[0] - d.shape[1])))
    d_out = pallas_mlp2(d, params['d1_w'], params['d1_b'],
                        params['d2_w'], params['d2_b'],
                        out_dtype=jnp.bfloat16)                      # (B*T, 512)

    # r_in = cat(cnn, data), then time-major for the hoisted gate projection
    r_in = jnp.concatenate([c_out.reshape(B, T, -1),
                            d_out.reshape(B, T, -1)], axis=-1)
    r_tb = jnp.transpose(r_in, (1, 0, 2)).reshape(T * B, -1)         # (T*B, I)

    # Hoisted input projection for BOTH LSTMs in one matmul:
    # cols [:4H] = rnn gates, cols [4H:] = rnn_s gates (each 4x128, zero-padded).
    gx = pallas_linear(r_tb, params['wih_both'], params['b_both'],
                       relu=False, out_dtype=jnp.float32)            # (T*B, 2*4H)
    Hp4 = 4 * PADDED_HIDDEN
    gx = gx.reshape(T, B, 2, Hp4)

    split = MAX_HIS // 2
    assert T == MAX_HIS, "forward assumes T == max_his (both LSTM halves non-empty)"
    gx_stacked = jnp.concatenate([gx[:split, :, 0, :],               # rnn   : t in [0, 10)
                                  gx[split:, :, 1, :]], axis=0)      # rnn_s : t in [10, 20)

    # Both recurrences in one kernel; only out[:, -1, :] of each is needed.
    h_pair = pallas_lstm_pair(gx_stacked, params['whh_both'], t_len=split)  # (2, B, 128)

    # self.fc (fused 2-layer kernel; padded hidden lanes are exactly zero)
    out_in = jnp.concatenate([h_pair[0], h_pair[1]], axis=-1).astype(jnp.bfloat16)
    y = pallas_mlp2(out_in, params['f1_w'], params['f1_b'],
                    params['f2_w'], params['f2_b'],
                    out_dtype=jnp.float32)                           # (B, 128) lane-dense
    return y[:, :output_dim]                                         # (B, output_dim)


# --------------------------- deterministic params ---------------------------

def _pad_gate_cols(w, hdim, hpad):
    """(..., 4*hdim) -> (..., 4*hpad): zero-pad each gate block to hpad columns."""
    lead = w.shape[:-1]
    w4 = w.reshape(lead + (4, hdim))
    pad = [(0, 0)] * (w4.ndim - 1) + [(0, hpad - hdim)]
    return jnp.pad(w4, pad).reshape(lead + (4 * hpad,))


def init_params(key, in_channels, data_in, output_dim, n_flatten, hidden_dim):
    ks = jax.random.split(key, 12)

    def nrm(k, shape, fan_in):
        return jax.random.normal(k, shape, jnp.float32) / math.sqrt(fan_in)

    Hp = PADDED_HIDDEN
    lstm_in = n_flatten + 512
    d_in_pad = _round_up(data_in, 128)          # 151 -> 256
    out_pad = _round_up(output_dim, 128)        # 32  -> 128

    p = {}
    # conv stack (HWIO, bf16 operands; f32 biases)
    p['c1_w'] = nrm(ks[0], (8, 8, in_channels, 32), 8 * 8 * in_channels).astype(jnp.bfloat16)
    p['c1_b'] = jnp.zeros((32,), jnp.float32)
    p['c2_w'] = nrm(ks[1], (4, 4, 32, 64), 4 * 4 * 32).astype(jnp.bfloat16)
    p['c2_b'] = jnp.zeros((64,), jnp.float32)
    p['c3_w'] = nrm(ks[2], (3, 3, 64, 64), 3 * 3 * 64).astype(jnp.bfloat16)
    p['c3_b'] = jnp.zeros((64,), jnp.float32)

    # data MLP (K padded with zero rows: padded data columns are zero anyway)
    d1 = nrm(ks[3], (data_in, 1024), data_in)
    p['d1_w'] = jnp.pad(d1, ((0, d_in_pad - data_in), (0, 0))).astype(jnp.bfloat16)
    p['d1_b'] = jnp.zeros((1024,), jnp.float32)
    p['d2_w'] = nrm(ks[4], (1024, 512), 1024).astype(jnp.bfloat16)
    p['d2_b'] = jnp.zeros((512,), jnp.float32)

    # LSTMs: weights stored as (I, 4H)/(H, 4H) (= transposed PyTorch weight_ih/hh),
    # gate order (i, f, g, o), combined bias b_ih + b_hh (zeros here), hidden
    # padded 100 -> 128 per gate with zeros (exactly preserves the real lanes).
    wih_a = _pad_gate_cols(nrm(ks[5], (lstm_in, 4 * hidden_dim), lstm_in), hidden_dim, Hp)
    wih_b = _pad_gate_cols(nrm(ks[6], (lstm_in, 4 * hidden_dim), lstm_in), hidden_dim, Hp)
    p['wih_both'] = jnp.concatenate([wih_a, wih_b], axis=1).astype(jnp.bfloat16)  # (I, 2*4H)
    p['b_both'] = jnp.zeros((2 * 4 * Hp,), jnp.float32)
    whh_a = _pad_gate_cols(nrm(ks[7], (hidden_dim, 4 * hidden_dim), hidden_dim), hidden_dim, Hp)
    whh_b = _pad_gate_cols(nrm(ks[8], (hidden_dim, 4 * hidden_dim), hidden_dim), hidden_dim, Hp)
    whh_a = jnp.pad(whh_a, ((0, Hp - hidden_dim), (0, 0)))
    whh_b = jnp.pad(whh_b, ((0, Hp - hidden_dim), (0, 0)))
    p['whh_both'] = jnp.concatenate([whh_a, whh_b], axis=0)          # (2H, 4H) f32

    # head: K = 2*hidden_dim -> 2*Hp (zero rows on padded hidden lanes),
    #       final N padded to 128 for a lane-dense store (sliced in the wrapper).
    f1 = nrm(ks[9], (2 * hidden_dim, 512), 2 * hidden_dim)
    zrow = jnp.zeros((Hp - hidden_dim, 512), jnp.float32)
    p['f1_w'] = jnp.concatenate([f1[:hidden_dim], zrow,
                                 f1[hidden_dim:], zrow], axis=0).astype(jnp.bfloat16)
    p['f1_b'] = jnp.zeros((512,), jnp.float32)
    f2 = nrm(ks[10], (512, output_dim), 512)
    p['f2_w'] = jnp.pad(f2, ((0, 0), (0, out_pad - output_dim))).astype(jnp.bfloat16)
    p['f2_b'] = jnp.zeros((out_pad,), jnp.float32)
    return p


# ----------------------------------- main ------------------------------------

if __name__ == "__main__":
    # T must equal max_his (=20) so both LSTM halves are length 10 (as in forward).
    # H = W = 36 is the smallest spatial size the valid-padding conv stack accepts
    # (36 -> 8 -> 3 -> 1), giving n_flatten = 64.
    B, T = 2, MAX_HIS
    C, Himg, Wimg = 4, 36, 36
    data_size = 16
    output_dim = 32
    hidden_dim = 100
    data_in = data_size + 9 * MAX_LAST_ACTION   # 151
    n_flatten = 64

    key = jax.random.PRNGKey(0)
    k_obs, k_data, k_par = jax.random.split(key, 3)
    observations = jax.random.uniform(k_obs, (B, T, C, Himg, Wimg), jnp.float32)
    data = jax.random.normal(k_data, (B, T, data_in), jnp.float32)

    params = init_params(k_par, C, data_in, output_dim, n_flatten, hidden_dim)

    fwd = jax.jit(functools.partial(nature_cnn_forward, output_dim=output_dim))
    out = fwd(params, observations, data)
    out = jax.block_until_ready(out)
    assert out.shape == (B, output_dim)
    assert bool(jnp.all(jnp.isfinite(out)))
    print("KERNEL_OK")
</pallas_src>

<mosaic_0001>
module attributes {stable_mosaic.version = 11 : i64} {
  func.func @_linear_kernel(%arg0: i32, %arg1: memref<512x256xbf16, #tpu.memory_space<vmem>>, %arg2: memref<256x32xbf16, #tpu.memory_space<vmem>>, %arg3: memref<1x32xf32, #tpu.memory_space<vmem>>, %arg4: memref<512x32xbf16, #tpu.memory_space<vmem>>) attributes {dimension_semantics = [#tpu.dimension_semantics<parallel>], iteration_bounds = array<i64: 5>, scalar_prefetch = 0 : i64, scratch_operands = 0 : i64, tpu.core_type = #tpu.core_type<tc>, window_params = [{transform_indices = @transform_0, window_bounds = array<i64: 512, 256>}, {pipeline_mode = #tpu.pipeline_mode<synchronous>, transform_indices = @transform_1, window_bounds = array<i64: 256, 32>}, {pipeline_mode = #tpu.pipeline_mode<synchronous>, transform_indices = @transform_2, window_bounds = array<i64: 1, 32>}, {transform_indices = @transform_3, window_bounds = array<i64: 512, 32>}]} {
    %c0 = arith.constant 0 : index
    %c0_0 = arith.constant 0 : index
    %0 = vector.load %arg1[%c0, %c0_0] : memref<512x256xbf16, #tpu.memory_space<vmem>>, vector<512x256xbf16>
    %c0_1 = arith.constant 0 : index
    %c0_2 = arith.constant 0 : index
    %1 = vector.load %arg2[%c0_1, %c0_2] : memref<256x32xbf16, #tpu.memory_space<vmem>>, vector<256x32xbf16>
    %cst = arith.constant dense<0.000000e+00> : vector<512x32xf32>
    %2 = tpu.matmul %0, %1, %cst {dimension_numbers = #tpu.dot_dimension_numbers<[1], [0], [0], [1], [0, 0, 1, 1], [], []>} : vector<512x256xbf16>, vector<256x32xbf16>, vector<512x32xf32> -> vector<512x32xf32>
    %c0_3 = arith.constant 0 : index
    %c0_4 = arith.constant 0 : index
    %3 = vector.load %arg3[%c0_3, %c0_4] : memref<1x32xf32, #tpu.memory_space<vmem>>, vector<1x32xf32>
    %4 = vector.broadcast %3 : vector<1x32xf32> to vector<512x32xf32>
    %5 = arith.addf %2, %4 : vector<512x32xf32>
    %cst_5 = arith.constant 0.000000e+00 : f32
    %6 = vector.broadcast %cst_5 : f32 to vector<512x32xf32>
    %7 = arith.maximumf %5, %6 : vector<512x32xf32>
    %8 = arith.truncf %7 : vector<512x32xf32> to vector<512x32xbf16>
    %c0_6 = arith.constant 0 : index
    %c0_7 = arith.constant 0 : index
    %9 = vector.load %arg4[%c0_6, %c0_7] : memref<512x32xbf16, #tpu.memory_space<vmem>>, vector<512x32xbf16>
    tpu.vector_store %arg4[%c0_6, %c0_7], %8 {strides = array<i32>} : memref<512x32xbf16, #tpu.memory_space<vmem>>, vector<512x32xbf16>,
    return
  }
  func.func @transform_0(%arg0: i32) -> (i32, i32) {
    %c0_i32 = arith.constant 0 : i32
    %c0_i32_0 = arith.constant 0 : i32
    return %arg0, %c0_i32 : i32, i32
  }
  func.func @transform_1(%arg0: i32) -> (i32, i32) {
    %c0_i32 = arith.constant 0 : i32
    %c0_i32_0 = arith.constant 0 : i32
    %c0_i32_1 = arith.constant 0 : i32
    return %c0_i32, %c0_i32_0 : i32, i32
  }
  func.func @transform_2(%arg0: i32) -> (i32, i32) {
    %c0_i32 = arith.constant 0 : i32
    %c0_i32_0 = arith.constant 0 : i32
    %c0_i32_1 = arith.constant 0 : i32
    return %c0_i32, %c0_i32_0 : i32, i32
  }
  func.func @transform_3(%arg0: i32) -> (i32, i32) {
    %c0_i32 = arith.constant 0 : i32
    %c0_i32_0 = arith.constant 0 : i32
    return %arg0, %c0_i32 : i32, i32
  }
}

module attributes {stable_mosaic.version = 11 : i64} {
  func.func @_linear_kernel(%arg0: i32, %arg1: memref<360x512xbf16, #tpu.memory_space<vmem>>, %arg2: memref<512x64xbf16, #tpu.memory_space<vmem>>, %arg3: memref<1x64xf32, #tpu.memory_space<vmem>>, %arg4: memref<360x64xbf16, #tpu.memory_space<vmem>>) attributes {dimension_semantics = [#tpu.dimension_semantics<parallel>], iteration_bounds = array<i64: 1>, scalar_prefetch = 0 : i64, scratch_operands = 0 : i64, tpu.core_type = #tpu.core_type<tc>, window_params = [{transform_indices = @transform_0, window_bounds = array<i64: 360, 512>}, {pipeline_mode = #tpu.pipeline_mode<synchronous>, transform_indices = @transform_1, window_bounds = array<i64: 512, 64>}, {pipeline_mode = #tpu.pipeline_mode<synchronous>, transform_indices = @transform_2, window_bounds = array<i64: 1, 64>}, {transform_indices = @transform_3, window_bounds = array<i64: 360, 64>}]} {
    %c0 = arith.constant 0 : index
    %c0_0 = arith.constant 0 : index
    %0 = vector.load %arg1[%c0, %c0_0] : memref<360x512xbf16, #tpu.memory_space<vmem>>, vector<360x512xbf16>
    %c0_1 = arith.constant 0 : index
    %c0_2 = arith.constant 0 : index
    %1 = vector.load %arg2[%c0_1, %c0_2] : memref<512x64xbf16, #tpu.memory_space<vmem>>, vector<512x64xbf16>
    %cst = arith.constant dense<0.000000e+00> : vector<360x64xf32>
    %2 = tpu.matmul %0, %1, %cst {dimension_numbers = #tpu.dot_dimension_numbers<[1], [0], [0], [1], [0, 0, 1, 1], [], []>} : vector<360x512xbf16>, vector<512x64xbf16>, vector<360x64xf32> -> vector<360x64xf32>
    %c0_3 = arith.constant 0 : index
    %c0_4 = arith.constant 0 : index
    %3 = vector.load %arg3[%c0_3, %c0_4] : memref<1x64xf32, #tpu.memory_space<vmem>>, vector<1x64xf32>
    %4 = vector.broadcast %3 : vector<1x64xf32> to vector<360x64xf32>
    %5 = arith.addf %2, %4 : vector<360x64xf32>
    %cst_5 = arith.constant 0.000000e+00 : f32
    %6 = vector.broadcast %cst_5 : f32 to vector<360x64xf32>
    %7 = arith.maximumf %5, %6 : vector<360x64xf32>
    %8 = arith.truncf %7 : vector<360x64xf32> to vector<360x64xbf16>
    %c0_6 = arith.constant 0 : index
    %c0_7 = arith.constant 0 : index
    %9 = vector.load %arg4[%c0_6, %c0_7] : memref<360x64xbf16, #tpu.memory_space<vmem>>, vector<360x64xbf16>
    tpu.vector_store %arg4[%c0_6, %c0_7], %8 {strides = array<i32>} : memref<360x64xbf16, #tpu.memory_space<vmem>>, vector<360x64xbf16>,
    return
  }
  func.func @transform_0(%arg0: i32) -> (i32, i32) {
    %c0_i32 = arith.constant 0 : i32
    %c0_i32_0 = arith.constant 0 : i32
    return %arg0, %c0_i32 : i32, i32
  }
  func.func @transform_1(%arg0: i32) -> (i32, i32) {
    %c0_i32 = arith.constant 0 : i32
    %c0_i32_0 = arith.constant 0 : i32
    %c0_i32_1 = arith.constant 0 : i32
    return %c0_i32, %c0_i32_0 : i32, i32
  }
  func.func @transform_2(%arg0: i32) -> (i32, i32) {
    %c0_i32 = arith.constant 0 : i32
    %c0_i32_0 = arith.constant 0 : i32
    %c0_i32_1 = arith.constant 0 : i32
    return %c0_i32, %c0_i32_0 : i32, i32
  }
  func.func @transform_3(%arg0: i32) -> (i32, i32) {
    %c0_i32 = arith.constant 0 : i32
    %c0_i32_0 = arith.constant 0 : i32
    return %arg0, %c0_i32 : i32, i32
  }
}

module attributes {stable_mosaic.version = 11 : i64} {
  func.func @_mlp2_kernel(%arg0: memref<40x256xbf16, #tpu.memory_space<vmem>>, %arg1: memref<256x1024xbf16, #tpu.memory_space<vmem>>, %arg2: memref<1x1024xf32, #tpu.memory_space<vmem>>, %arg3: memref<1024x512xbf16, #tpu.memory_space<vmem>>, %arg4: memref<1x512xf32, #tpu.memory_space<vmem>>, %arg5: memref<40x512xbf16, #tpu.memory_space<vmem>>) attributes {dimension_semantics = [], scalar_prefetch = 0 : i64, scratch_operands = 0 : i64, tpu.core_type = #tpu.core_type<tc>} {
    %c0 = arith.constant 0 : index
    %c0_0 = arith.constant 0 : index
    %0 = vector.load %arg0[%c0, %c0_0] : memref<40x256xbf16, #tpu.memory_space<vmem>>, vector<40x256xbf16>
    %c0_1 = arith.constant 0 : index
    %c0_2 = arith.constant 0 : index
    %1 = vector.load %arg1[%c0_1, %c0_2] : memref<256x1024xbf16, #tpu.memory_space<vmem>>, vector<256x1024xbf16>
    %cst = arith.constant dense<0.000000e+00> : vector<40x1024xf32>
    %2 = tpu.matmul %0, %1, %cst {dimension_numbers = #tpu.dot_dimension_numbers<[1], [0], [0], [1], [0, 0, 1, 1], [], []>} : vector<40x256xbf16>, vector<256x1024xbf16>, vector<40x1024xf32> -> vector<40x1024xf32>
    %c0_3 = arith.constant 0 : index
    %c0_4 = arith.constant 0 : index
    %3 = vector.load %arg2[%c0_3, %c0_4] : memref<1x1024xf32, #tpu.memory_space<vmem>>, vector<1x1024xf32>
    %4 = vector.broadcast %3 : vector<1x1024xf32> to vector<40x1024xf32>
    %5 = arith.addf %2, %4 : vector<40x1024xf32>
    %cst_5 = arith.constant 0.000000e+00 : f32
    %6 = vector.broadcast %cst_5 : f32 to vector<40x1024xf32>
    %7 = arith.maximumf %5, %6 : vector<40x1024xf32>
    %8 = arith.truncf %7 : vector<40x1024xf32> to vector<40x1024xbf16>
    %c0_6 = arith.constant 0 : index
    %c0_7 = arith.constant 0 : index
    %9 = vector.load %arg3[%c0_6, %c0_7] : memref<1024x512xbf16, #tpu.memory_space<vmem>>, vector<1024x512xbf16>
    %cst_8 = arith.constant dense<0.000000e+00> : vector<40x512xf32>
    %10 = tpu.matmul %8, %9, %cst_8 {dimension_numbers = #tpu.dot_dimension_numbers<[1], [0], [0], [1], [0, 0, 1, 1], [], []>} : vector<40x1024xbf16>, vector<1024x512xbf16>, vector<40x512xf32> -> vector<40x512xf32>
    %c0_9 = arith.constant 0 : index
    %c0_10 = arith.constant 0 : index
    %11 = vector.load %arg4[%c0_9, %c0_10] : memref<1x512xf32, #tpu.memory_space<vmem>>, vector<1x512xf32>
    %12 = vector.broadcast %11 : vector<1x512xf32> to vector<40x512xf32>
    %13 = arith.addf %10, %12 : vector<40x512xf32>
    %14 = arith.truncf %13 : vector<40x512xf32> to vector<40x512xbf16>
    %c0_11 = arith.constant 0 : index
    %c0_12 = arith.constant 0 : index
    %15 = vector.load %arg5[%c0_11, %c0_12] : memref<40x512xbf16, #tpu.memory_space<vmem>>, vector<40x512xbf16>
    tpu.vector_store %arg5[%c0_11, %c0_12], %14 {strides = array<i32>} : memref<40x512xbf16, #tpu.memory_space<vmem>>, vector<40x512xbf16>,
    return
  }
}

module attributes {stable_mosaic.version = 11 : i64} {
  func.func @_linear_kernel(%arg0: i32, %arg1: memref<40x576xbf16, #tpu.memory_space<vmem>>, %arg2: memref<576x64xbf16, #tpu.memory_space<vmem>>, %arg3: memref<1x64xf32, #tpu.memory_space<vmem>>, %arg4: memref<40x64xbf16, #tpu.memory_space<vmem>>) attributes {dimension_semantics = [#tpu.dimension_semantics<parallel>], iteration_bounds = array<i64: 1>, scalar_prefetch = 0 : i64, scratch_operands = 0 : i64, tpu.core_type = #tpu.core_type<tc>, window_params = [{transform_indices = @transform_0, window_bounds = array<i64: 40, 576>}, {pipeline_mode = #tpu.pipeline_mode<synchronous>, transform_indices = @transform_1, window_bounds = array<i64: 576, 64>}, {pipeline_mode = #tpu.pipeline_mode<synchronous>, transform_indices = @transform_2, window_bounds = array<i64: 1, 64>}, {transform_indices = @transform_3, window_bounds = array<i64: 40, 64>}]} {
    %c0 = arith.constant 0 : index
    %c0_0 = arith.constant 0 : index
    %0 = vector.load %arg1[%c0, %c0_0] : memref<40x576xbf16, #tpu.memory_space<vmem>>, vector<40x576xbf16>
    %c0_1 = arith.constant 0 : index
    %c0_2 = arith.constant 0 : index
    %1 = vector.load %arg2[%c0_1, %c0_2] : memref<576x64xbf16, #tpu.memory_space<vmem>>, vector<576x64xbf16>
    %cst = arith.constant dense<0.000000e+00> : vector<40x64xf32>
    %2 = tpu.matmul %0, %1, %cst {dimension_numbers = #tpu.dot_dimension_numbers<[1], [0], [0], [1], [0, 0, 1, 1], [], []>} : vector<40x576xbf16>, vector<576x64xbf16>, vector<40x64xf32> -> vector<40x64xf32>
    %c0_3 = arith.constant 0 : index
    %c0_4 = arith.constant 0 : index
    %3 = vector.load %arg3[%c0_3, %c0_4] : memref<1x64xf32, #tpu.memory_space<vmem>>, vector<1x64xf32>
    %4 = vector.broadcast %3 : vector<1x64xf32> to vector<40x64xf32>
    %5 = arith.addf %2, %4 : vector<40x64xf32>
    %cst_5 = arith.constant 0.000000e+00 : f32
    %6 = vector.broadcast %cst_5 : f32 to vector<40x64xf32>
    %7 = arith.maximumf %5, %6 : vector<40x64xf32>
    %8 = arith.truncf %7 : vector<40x64xf32> to vector<40x64xbf16>
    %c0_6 = arith.constant 0 : index
    %c0_7 = arith.constant 0 : index
    %9 = vector.load %arg4[%c0_6, %c0_7] : memref<40x64xbf16, #tpu.memory_space<vmem>>, vector<40x64xbf16>
    tpu.vector_store %arg4[%c0_6, %c0_7], %8 {strides = array<i32>} : memref<40x64xbf16, #tpu.memory_space<vmem>>, vector<40x64xbf16>,
    return
  }
  func.func @transform_0(%arg0: i32) -> (i32, i32) {
    %c0_i32 = arith.constant 0 : i32
    %c0_i32_0 = arith.constant 0 : i32
    return %arg0, %c0_i32 : i32, i32
  }
  func.func @transform_1(%arg0: i32) -> (i32, i32) {
    %c0_i32 = arith.constant 0 : i32
    %c0_i32_0 = arith.constant 0 : i32
    %c0_i32_1 = arith.constant 0 : i32
    return %c0_i32, %c0_i32_0 : i32, i32
  }
  func.func @transform_2(%arg0: i32) -> (i32, i32) {
    %c0_i32 = arith.constant 0 : i32
    %c0_i32_0 = arith.constant 0 : i32
    %c0_i32_1 = arith.constant 0 : i32
    return %c0_i32, %c0_i32_0 : i32, i32
  }
  func.func @transform_3(%arg0: i32) -> (i32, i32) {
    %c0_i32 = arith.constant 0 : i32
    %c0_i32_0 = arith.constant 0 : i32
    return %arg0, %c0_i32 : i32, i32
  }
}

module attributes {stable_mosaic.version = 11 : i64} {
  func.func @_linear_kernel(%arg0: i32, %arg1: memref<40x576xbf16, #tpu.memory_space<vmem>>, %arg2: memref<576x1024xbf16, #tpu.memory_space<vmem>>, %arg3: memref<1x1024xf32, #tpu.memory_space<vmem>>, %arg4: memref<40x1024xf32, #tpu.memory_space<vmem>>) attributes {dimension_semantics = [#tpu.dimension_semantics<parallel>], iteration_bounds = array<i64: 1>, scalar_prefetch = 0 : i64, scratch_operands = 0 : i64, tpu.core_type = #tpu.core_type<tc>, window_params = [{transform_indices = @transform_0, window_bounds = array<i64: 40, 576>}, {pipeline_mode = #tpu.pipeline_mode<synchronous>, transform_indices = @transform_1, window_bounds = array<i64: 576, 1024>}, {pipeline_mode = #tpu.pipeline_mode<synchronous>, transform_indices = @transform_2, window_bounds = array<i64: 1, 1024>}, {transform_indices = @transform_3, window_bounds = array<i64: 40, 1024>}]} {
    %c0 = arith.constant 0 : index
    %c0_0 = arith.constant 0 : index
    %0 = vector.load %arg1[%c0, %c0_0] : memref<40x576xbf16, #tpu.memory_space<vmem>>, vector<40x576xbf16>
    %c0_1 = arith.constant 0 : index
    %c0_2 = arith.constant 0 : index
    %1 = vector.load %arg2[%c0_1, %c0_2] : memref<576x1024xbf16, #tpu.memory_space<vmem>>, vector<576x1024xbf16>
    %cst = arith.constant dense<0.000000e+00> : vector<40x1024xf32>
    %2 = tpu.matmul %0, %1, %cst {dimension_numbers = #tpu.dot_dimension_numbers<[1], [0], [0], [1], [0, 0, 1, 1], [], []>} : vector<40x576xbf16>, vector<576x1024xbf16>, vector<40x1024xf32> -> vector<40x1024xf32>
    %c0_3 = arith.constant 0 : index
    %c0_4 = arith.constant 0 : index
    %3 = vector.load %arg3[%c0_3, %c0_4] : memref<1x1024xf32, #tpu.memory_space<vmem>>, vector<1x1024xf32>
    %4 = vector.broadcast %3 : vector<1x1024xf32> to vector<40x1024xf32>
    %5 = arith.addf %2, %4 : vector<40x1024xf32>
    %c0_5 = arith.constant 0 : index
    %c0_6 = arith.constant 0 : index
    %6 = vector.load %arg4[%c0_5, %c0_6] : memref<40x1024xf32, #tpu.memory_space<vmem>>, vector<40x1024xf32>
    tpu.vector_store %arg4[%c0_5, %c0_6], %5 {strides = array<i32>} : memref<40x1024xf32, #tpu.memory_space<vmem>>, vector<40x1024xf32>,
    return
  }
  func.func @transform_0(%arg0: i32) -> (i32, i32) {
    %c0_i32 = arith.constant 0 : i32
    %c0_i32_0 = arith.constant 0 : i32
    return %arg0, %c0_i32 : i32, i32
  }
  func.func @transform_1(%arg0: i32) -> (i32, i32) {
    %c0_i32 = arith.constant 0 : i32
    %c0_i32_0 = arith.constant 0 : i32
    %c0_i32_1 = arith.constant 0 : i32
    return %c0_i32, %c0_i32_0 : i32, i32
  }
  func.func @transform_2(%arg0: i32) -> (i32, i32) {
    %c0_i32 = arith.constant 0 : i32
    %c0_i32_0 = arith.constant 0 : i32
    %c0_i32_1 = arith.constant 0 : i32
    return %c0_i32, %c0_i32_0 : i32, i32
  }
  func.func @transform_3(%arg0: i32) -> (i32, i32) {
    %c0_i32 = arith.constant 0 : i32
    %c0_i32_0 = arith.constant 0 : i32
    return %arg0, %c0_i32 : i32, i32
  }
}

module attributes {stable_mosaic.version = 11 : i64} {
  func.func @_lstm_pair_kernel(%arg0: i32, %arg1: memref<10x2x512xf32, #tpu.memory_space<vmem>>, %arg2: memref<128x512xf32, #tpu.memory_space<vmem>>, %arg3: memref<1x2x128xf32, #tpu.memory_space<vmem>>) attributes {dimension_semantics = [#tpu.dimension_semantics<parallel>], iteration_bounds = array<i64: 2>, scalar_prefetch = 0 : i64, scratch_operands = 0 : i64, tpu.core_type = #tpu.core_type<tc>, window_params = [{transform_indices = @transform_0, window_bounds = array<i64: 10, 2, 512>}, {transform_indices = @transform_1, window_bounds = array<i64: 128, 512>}, {transform_indices = @transform_2, window_bounds = array<i64: 1, 2, 128>}]} {
    %c0 = arith.constant 0 : index
    %c0_0 = arith.constant 0 : index
    %0 = vector.load %arg2[%c0, %c0_0] : memref<128x512xf32, #tpu.memory_space<vmem>>, vector<128x512xf32>
    %cst = arith.constant 0.000000e+00 : f32
    %1 = vector.broadcast %cst : f32 to vector<2x128xf32>
    %cst_1 = arith.constant 0.000000e+00 : f32
    %2 = vector.broadcast %cst_1 : f32 to vector<2x128xf32>
    %c0_i32 = arith.constant 0 : i32
    %3 = arith.index_cast %c0_i32 : i32 to index
    %c0_2 = arith.constant 0 : index
    %c0_3 = arith.constant 0 : index
    %4 = vector.load %arg1[%3, %c0_2, %c0_3] : memref<10x2x512xf32, #tpu.memory_space<vmem>>, vector<1x2x512xf32>
    %5 = vector.shape_cast %4 : vector<1x2x512xf32> to vector<2x512xf32>
    %cst_4 = arith.constant dense<0.000000e+00> : vector<2x512xf32>
    %6 = tpu.matmul %1, %0, %cst_4 {dimension_numbers = #tpu.dot_dimension_numbers<[1], [0], [0], [1], [0, 0, 1, 1], [], []>} : vector<2x128xf32>, vector<128x512xf32>, vector<2x512xf32> -> vector<2x512xf32>
    %7 = arith.addf %5, %6 : vector<2x512xf32>
    %8 = vector.extract_strided_slice %7 {offsets = [0, 0], sizes = [2, 128], strides = [1, 1]} : vector<2x512xf32> to vector<2x128xf32>
    %9 = arith.negf %8 : vector<2x128xf32>
    %10 = math.exp %9 : vector<2x128xf32>
    %cst_5 = arith.constant 1.000000e+00 : f32
    %11 = vector.broadcast %cst_5 : f32 to vector<2x128xf32>
    %12 = arith.addf %11, %10 : vector<2x128xf32>
    %13 = arith.divf %11, %12 : vector<2x128xf32>
    %14 = vector.extract_strided_slice %7 {offsets = [0, 128], sizes = [2, 128], strides = [1, 1]} : vector<2x512xf32> to vector<2x128xf32>
    %15 = arith.negf %14 : vector<2x128xf32>
    %16 = math.exp %15 : vector<2x128xf32>
    %cst_6 = arith.constant 1.000000e+00 : f32
    %17 = vector.broadcast %cst_6 : f32 to vector<2x128xf32>
    %18 = arith.addf %17, %16 : vector<2x128xf32>
    %19 = arith.divf %17, %18 : vector<2x128xf32>
    %20 = vector.extract_strided_slice %7 {offsets = [0, 256], sizes = [2, 128], strides = [1, 1]} : vector<2x512xf32> to vector<2x128xf32>
    %21 = math.tanh %20 : vector<2x128xf32>
    %22 = vector.extract_strided_slice %7 {offsets = [0, 384], sizes = [2, 128], strides = [1, 1]} : vector<2x512xf32> to vector<2x128xf32>
    %23 = arith.negf %22 : vector<2x128xf32>
    %24 = math.exp %23 : vector<2x128xf32>
    %cst_7 = arith.constant 1.000000e+00 : f32
    %25 = vector.broadcast %cst_7 : f32 to vector<2x128xf32>
    %26 = arith.addf %25, %24 : vector<2x128xf32>
    %27 = arith.divf %25, %26 : vector<2x128xf32>
    %28 = arith.mulf %19, %2 : vector<2x128xf32>
    %29 = arith.mulf %13, %21 : vector<2x128xf32>
    %30 = arith.addf %28, %29 : vector<2x128xf32>
    %31 = math.tanh %30 : vector<2x128xf32>
    %32 = arith.mulf %27, %31 : vector<2x128xf32>
    %c1_i32 = arith.constant 1 : i32
    %33 = arith.index_cast %c1_i32 : i32 to index
    %c0_8 = arith.constant 0 : index
    %c0_9 = arith.constant 0 : index
    %34 = vector.load %arg1[%33, %c0_8, %c0_9] : memref<10x2x512xf32, #tpu.memory_space<vmem>>, vector<1x2x512xf32>
    %35 = vector.shape_cast %34 : vector<1x2x512xf32> to vector<2x512xf32>
    %cst_10 = arith.constant dense<0.000000e+00> : vector<2x512xf32>
    %36 = tpu.matmul %32, %0, %cst_10 {dimension_numbers = #tpu.dot_dimension_numbers<[1], [0], [0], [1], [0, 0, 1, 1], [], []>} : vector<2x128xf32>, vector<128x512xf32>, vector<2x512xf32> -> vector<2x512xf32>
    %37 = arith.addf %35, %36 : vector<2x512xf32>
    %38 = vector.extract_strided_slice %37 {offsets = [0, 0], sizes = [2, 128], strides = [1, 1]} : vector<2x512xf32> to vector<2x128xf32>
    %39 = arith.negf %38 : vector<2x128xf32>
    %40 = math.exp %39 : vector<2x128xf32>
    %cst_11 = arith.constant 1.000000e+00 : f32
    %41 = vector.broadcast %cst_11 : f32 to vector<2x128xf32>
    %42 = arith.addf %41, %40 : vector<2x128xf32>
    %43 = arith.divf %41, %42 : vector<2x128xf32>
    %44 = vector.extract_strided_slice %37 {offsets = [0, 128], sizes = [2, 128], strides = [1, 1]} : vector<2x512xf32> to vector<2x128xf32>
    %45 = arith.negf %44 : vector<2x128xf32>
    %46 = math.exp %45 : vector<2x128xf32>
    %cst_12 = arith.constant 1.000000e+00 : f32
    %47 = vector.broadcast %cst_12 : f32 to vector<2x128xf32>
    %48 = arith.addf %47, %46 : vector<2x128xf32>
    %49 = arith.divf %47, %48 : vector<2x128xf32>
    %50 = vector.extract_strided_slice %37 {offsets = [0, 256], sizes = [2, 128], strides = [1, 1]} : vector<2x512xf32> to vector<2x128xf32>
    %51 = math.tanh %50 : vector<2x128xf32>
    %52 = vector.extract_strided_slice %37 {offsets = [0, 384], sizes = [2, 128], strides = [1, 1]} : vector<2x512xf32> to vector<2x128xf32>
    %53 = arith.negf %52 : vector<2x128xf32>
    %54 = math.exp %53 : vector<2x128xf32>
    %cst_13 = arith.constant 1.000000e+00 : f32
    %55 = vector.broadcast %cst_13 : f32 to vector<2x128xf32>
    %56 = arith.addf %55, %54 : vector<2x128xf32>
    %57 = arith.divf %55, %56 : vector<2x128xf32>
    %58 = arith.mulf %49, %30 : vector<2x128xf32>
    %59 = arith.mulf %43, %51 : vector<2x128xf32>
    %60 = arith.addf %58, %59 : vector<2x128xf32>
    %61 = math.tanh %60 : vector<2x128xf32>
    %62 = arith.mulf %57, %61 : vector<2x128xf32>
    %c2_i32 = arith.constant 2 : i32
    %63 = arith.index_cast %c2_i32 : i32 to index
    %c0_14 = arith.constant 0 : index
    %c0_15 = arith.constant 0 : index
    %64 = vector.load %arg1[%63, %c0_14, %c0_15] : memref<10x2x512xf32, #tpu.memory_space<vmem>>, vector<1x2x512xf32>
    %65 = vector.shape_cast %64 : vector<1x2x512xf32> to vector<2x512xf32>
    %cst_16 = arith.constant dense<0.000000e+00> : vector<2x512xf32>
    %66 = tpu.matmul %62, %0, %cst_16 {dimension_numbers = #tpu.dot_dimension_numbers<[1], [0], [0], [1], [0, 0, 1, 1], [], []>} : vector<2x128xf32>, vector<128x512xf32>, vector<2x512xf32> -> vector<2x512xf32>
    %67 = arith.addf %65, %66 : vector<2x512xf32>
    %68 = vector.extract_strided_slice %67 {offsets = [0, 0], sizes = [2, 128], strides = [1, 1]} : vector<2x512xf32> to vector<2x128xf32>
    %69 = arith.negf %68 : vector<2x128xf32>
    %70 = math.exp %69 : vector<2x128xf32>
    %cst_17 = arith.constant 1.000000e+00 : f32
    %71 = vector.broadcast %cst_17 : f32 to vector<2x128xf32>
    %72 = arith.addf %71, %70 : vector<2x128xf32>
    %73 = arith.divf %71, %72 : vector<2x128xf32>
    %74 = vector.extract_strided_slice %67 {offsets = [0, 128], sizes = [2, 128], strides = [1, 1]} : vector<2x512xf32> to vector<2x128xf32>
    %75 = arith.negf %74 : vector<2x128xf32>
    %76 = math.exp %75 : vector<2x128xf32>
    %cst_18 = arith.constant 1.000000e+00 : f32
    %77 = vector.broadcast %cst_18 : f32 to vector<2x128xf32>
    %78 = arith.addf %77, %76 : vector<2x128xf32>
    %79 = arith.divf %77, %78 : vector<2x128xf32>
    %80 = vector.extract_strided_slice %67 {offsets = [0, 256], sizes = [2, 128], strides = [1, 1]} : vector<2x512xf32> to vector<2x128xf32>
    %81 = math.tanh %80 : vector<2x128xf32>
    %82 = vector.extract_strided_slice %67 {offsets = [0, 384], sizes = [2, 128], strides = [1, 1]} : vector<2x512xf32> to vector<2x128xf32>
    %83 = arith.negf %82 : vector<2x128xf32>
    %84 = math.exp %83 : vector<2x128xf32>
    %cst_19 = arith.constant 1.000000e+00 : f32
    %85 = vector.broadcast %cst_19 : f32 to vector<2x128xf32>
    %86 = arith.addf %85, %84 : vector<2x128xf32>
    %87 = arith.divf %85, %86 : vector<2x128xf32>
    %88 = arith.mulf %79, %60 : vector<2x128xf32>
    %89 = arith.mulf %73, %81 : vector<2x128xf32>
    %90 = arith.addf %88, %89 : vector<2x128xf32>
    %91 = math.tanh %90 : vector<2x128xf32>
    %92 = arith.mulf %87, %91 : vector<2x128xf32>
    %c3_i32 = arith.constant 3 : i32
    %93 = arith.index_cast %c3_i32 : i32 to index
    %c0_20 = arith.constant 0 : index
    %c0_21 = arith.constant 0 : index
    %94 = vector.load %arg1[%93, %c0_20, %c0_21] : memref<10x2x512xf32, #tpu.memory_space<vmem>>, vector<1x2x512xf32>
    %95 = vector.shape_cast %94 : vector<1x2x512xf32> to vector<2x512xf32>
    %cst_22 = arith.constant dense<0.000000e+00> : vector<2x512xf32>
    %96 = tpu.matmul %92, %0, %cst_22 {dimension_numbers = #tpu.dot_dimension_numbers<[1], [0], [0], [1], [0, 0, 1, 1], [], []>} : vector<2x128xf32>, vector<128x512xf32>, vector<2x512xf32> -> vector<2x512xf32>
    %97 = arith.addf %95, %96 : vector<2x512xf32>
    %98 = vector.extract_strided_slice %97 {offsets = [0, 0], sizes = [2, 128], strides = [1, 1]} : vector<2x512xf32> to vector<2x128xf32>
    %99 = arith.negf %98 : vector<2x128xf32>
    %100 = math.exp %99 : vector<2x128xf32>
    %cst_23 = arith.constant 1.000000e+00 : f32
    %101 = vector.broadcast %cst_23 : f32 to vector<2x128xf32>
    %102 = arith.addf %101, %100 : vector<2x128xf32>
    %103 = arith.divf %101, %102 : vector<2x128xf32>
    %104 = vector.extract_strided_slice %97 {offsets = [0, 128], sizes = [2, 128], strides = [1, 1]} : vector<2x512xf32> to vector<2x128xf32>
    %105 = arith.negf %104 : vector<2x128xf32>
    %106 = math.exp %105 : vector<2x128xf32>
    %cst_24 = arith.constant 1.000000e+00 : f32
    %107 = vector.broadcast %cst_24 : f32 to vector<2x128xf32>
    %108 = arith.addf %107, %106 : vector<2x128xf32>
    %109 = arith.divf %107, %108 : vector<2x128xf32>
    %110 = vector.extract_strided_slice %97 {offsets = [0, 256], sizes = [2, 128], strides = [1, 1]} : vector<2x512xf32> to vector<2x128xf32>
    %111 = math.tanh %110 : vector<2x128xf32>
    %112 = vector.extract_strided_slice %97 {offsets = [0, 384], sizes = [2, 128], strides = [1, 1]} : vector<2x512xf32> to vector<2x128xf32>
    %113 = arith.negf %112 : vector<2x128xf32>
    %114 = math.exp %113 : vector<2x128xf32>
    %cst_25 = arith.constant 1.000000e+00 : f32
    %115 = vector.broadcast %cst_25 : f32 to vector<2x128xf32>
    %116 = arith.addf %115, %114 : vector<2x128xf32>
    %117 = arith.divf %115, %116 : vector<2x128xf32>
    %118 = arith.mulf %109, %90 : vector<2x128xf32>
    %119 = arith.mulf %103, %111 : vector<2x128xf32>
    %120 = arith.addf %118, %119 : vector<2x128xf32>
    %121 = math.tanh %120 : vector<2x128xf32>
    %122 = arith.mulf %117, %121 : vector<2x128xf32>
    %c4_i32 = arith.constant 4 : i32
    %123 = arith.index_cast %c4_i32 : i32 to index
    %c0_26 = arith.constant 0 : index
    %c0_27 = arith.constant 0 : index
    %124 = vector.load %arg1[%123, %c0_26, %c0_27] : memref<10x2x512xf32, #tpu.memory_space<vmem>>, vector<1x2x512xf32>
    %125 = vector.shape_cast %124 : vector<1x2x512xf32> to vector<2x512xf32>
    %cst_28 = arith.constant dense<0.000000e+00> : vector<2x512xf32>
    %126 = tpu.matmul %122, %0, %cst_28 {dimension_numbers = #tpu.dot_dimension_numbers<[1], [0], [0], [1], [0, 0, 1, 1], [], []>} : vector<2x128xf32>, vector<128x512xf32>, vector<2x512xf32> -> vector<2x512xf32>
    %127 = arith.addf %125, %126 : vector<2x512xf32>
    %128 = vector.extract_strided_slice %127 {offsets = [0, 0], sizes = [2, 128], strides = [1, 1]} : vector<2x512xf32> to vector<2x128xf32>
    %129 = arith.negf %128 : vector<2x128xf32>
    %130 = math.exp %129 : vector<2x128xf32>
    %cst_29 = arith.constant 1.000000e+00 : f32
    %131 = vector.broadcast %cst_29 : f32 to vector<2x128xf32>
    %132 = arith.addf %131, %130 : vector<2x128xf32>
    %133 = arith.divf %131, %132 : vector<2x128xf32>
    %134 = vector.extract_strided_slice %127 {offsets = [0, 128], sizes = [2, 128], strides = [1, 1]} : vector<2x512xf32> to vector<2x128xf32>
    %135 = arith.negf %134 : vector<2x128xf32>
    %136 = math.exp %135 : vector<2x128xf32>
    %cst_30 = arith.constant 1.000000e+00 : f32
    %137 = vector.broadcast %cst_30 : f32 to vector<2x128xf32>
    %138 = arith.addf %137, %136 : vector<2x128xf32>
    %139 = arith.divf %137, %138 : vector<2x128xf32>
    %140 = vector.extract_strided_slice %127 {offsets = [0, 256], sizes = [2, 128], strides = [1, 1]} : vector<2x512xf32> to vector<2x128xf32>
    %141 = math.tanh %140 : vector<2x128xf32>
    %142 = vector.extract_strided_slice %127 {offsets = [0, 384], sizes = [2, 128], strides = [1, 1]} : vector<2x512xf32> to vector<2x128xf32>
    %143 = arith.negf %142 : vector<2x128xf32>
    %144 = math.exp %143 : vector<2x128xf32>
    %cst_31 = arith.constant 1.000000e+00 : f32
    %145 = vector.broadcast %cst_31 : f32 to vector<2x128xf32>
    %146 = arith.addf %145, %144 : vector<2x128xf32>
    %147 = arith.divf %145, %146 : vector<2x128xf32>
    %148 = arith.mulf %139, %120 : vector<2x128xf32>
    %149 = arith.mulf %133, %141 : vector<2x128xf32>
    %150 = arith.addf %148, %149 : vector<2x128xf32>
    %151 = math.tanh %150 : vector<2x128xf32>
    %152 = arith.mulf %147, %151 : vector<2x128xf32>
    %c5_i32 = arith.constant 5 : i32
    %153 = arith.index_cast %c5_i32 : i32 to index
    %c0_32 = arith.constant 0 : index
    %c0_33 = arith.constant 0 : index
    %154 = vector.load %arg1[%153, %c0_32, %c0_33] : memref<10x2x512xf32, #tpu.memory_space<vmem>>, vector<1x2x512xf32>
    %155 = vector.shape_cast %154 : vector<1x2x512xf32> to vector<2x512xf32>
    %cst_34 = arith.constant dense<0.000000e+00> : vector<2x512xf32>
    %156 = tpu.matmul %152, %0, %cst_34 {dimension_numbers = #tpu.dot_dimension_numbers<[1], [0], [0], [1], [0, 0, 1, 1], [], []>} : vector<2x128xf32>, vector<128x512xf32>, vector<2x512xf32> -> vector<2x512xf32>
    %157 = arith.addf %155, %156 : vector<2x512xf32>
    %158 = vector.extract_strided_slice %157 {offsets = [0, 0], sizes = [2, 128], strides = [1, 1]} : vector<2x512xf32> to vector<2x128xf32>
    %159 = arith.negf %158 : vector<2x128xf32>
    %160 = math.exp %159 : vector<2x128xf32>
    %cst_35 = arith.constant 1.000000e+00 : f32
    %161 = vector.broadcast %cst_35 : f32 to vector<2x128xf32>
    %162 = arith.addf %161, %160 : vector<2x128xf32>
    %163 = arith.divf %161, %162 : vector<2x128xf32>
    %164 = vector.extract_strided_slice %157 {offsets = [0, 128], sizes = [2, 128], strides = [1, 1]} : vector<2x512xf32> to vector<2x128xf32>
    %165 = arith.negf %164 : vector<2x128xf32>
    %166 = math.exp %165 : vector<2x128xf32>
    %cst_36 = arith.constant 1.000000e+00 : f32
    %167 = vector.broadcast %cst_36 : f32 to vector<2x128xf32>
    %168 = arith.addf %167, %166 : vector<2x128xf32>
    %169 = arith.divf %167, %168 : vector<2x128xf32>
    %170 = vector.extract_strided_slice %157 {offsets = [0, 256], sizes = [2, 128], strides = [1, 1]} : vector<2x512xf32> to vector<2x128xf32>
    %171 = math.tanh %170 : vector<2x128xf32>
    %172 = vector.extract_strided_slice %157 {offsets = [0, 384], sizes = [2, 128], strides = [1, 1]} : vector<2x512xf32> to vector<2x128xf32>
    %173 = arith.negf %172 : vector<2x128xf32>
    %174 = math.exp %173 : vector<2x128xf32>
    %cst_37 = arith.constant 1.000000e+00 : f32
    %175 = vector.broadcast %cst_37 : f32 to vector<2x128xf32>
    %176 = arith.addf %175, %174 : vector<2x128xf32>
    %177 = arith.divf %175, %176 : vector<2x128xf32>
    %178 = arith.mulf %169, %150 : vector<2x128xf32>
    %179 = arith.mulf %163, %171 : vector<2x128xf32>
    %180 = arith.addf %178, %179 : vector<2x128xf32>
    %181 = math.tanh %180 : vector<2x128xf32>
    %182 = arith.mulf %177, %181 : vector<2x128xf32>
    %c6_i32 = arith.constant 6 : i32
    %183 = arith.index_cast %c6_i32 : i32 to index
    %c0_38 = arith.constant 0 : index
    %c0_39 = arith.constant 0 : index
    %184 = vector.load %arg1[%183, %c0_38, %c0_39] : memref<10x2x512xf32, #tpu.memory_space<vmem>>, vector<1x2x512xf32>
    %185 = vector.shape_cast %184 : vector<1x2x512xf32> to vector<2x512xf32>
    %cst_40 = arith.constant dense<0.000000e+00> : vector<2x512xf32>
    %186 = tpu.matmul %182, %0, %cst_40 {dimension_numbers = #tpu.dot_dimension_numbers<[1], [0], [0], [1], [0, 0, 1, 1], [], []>} : vector<2x128xf32>, vector<128x512xf32>, vector<2x512xf32> -> vector<2x512xf32>
    %187 = arith.addf %185, %186 : vector<2x512xf32>
    %188 = vector.extract_strided_slice %187 {offsets = [0, 0], sizes = [2, 128], strides = [1, 1]} : vector<2x512xf32> to vector<2x128xf32>
    %189 = arith.negf %188 : vector<2x128xf32>
    %190 = math.exp %189 : vector<2x128xf32>
    %cst_41 = arith.constant 1.000000e+00 : f32
    %191 = vector.broadcast %cst_41 : f32 to vector<2x128xf32>
    %192 = arith.addf %191, %190 : vector<2x128xf32>
    %193 = arith.divf %191, %192 : vector<2x128xf32>
    %194 = vector.extract_strided_slice %187 {offsets = [0, 128], sizes = [2, 128], strides = [1, 1]} : vector<2x512xf32> to vector<2x128xf32>
    %195 = arith.negf %194 : vector<2x128xf32>
    %196 = math.exp %195 : vector<2x128xf32>
    %cst_42 = arith.constant 1.000000e+00 : f32
    %197 = vector.broadcast %cst_42 : f32 to vector<2x128xf32>
    %198 = arith.addf %197, %196 : vector<2x128xf32>
    %199 = arith.divf %197, %198 : vector<2x128xf32>
    %200 = vector.extract_strided_slice %187 {offsets = [0, 256], sizes = [2, 128], strides = [1, 1]} : vector<2x512xf32> to vector<2x128xf32>
    %201 = math.tanh %200 : vector<2x128xf32>
    %202 = vector.extract_strided_slice %187 {offsets = [0, 384], sizes = [2, 128], strides = [1, 1]} : vector<2x512xf32> to vector<2x128xf32>
    %203 = arith.negf %202 : vector<2x128xf32>
    %204 = math.exp %203 : vector<2x128xf32>
    %cst_43 = arith.constant 1.000000e+00 : f32
    %205 = vector.broadcast %cst_43 : f32 to vector<2x128xf32>
    %206 = arith.addf %205, %204 : vector<2x128xf32>
    %207 = arith.divf %205, %206 : vector<2x128xf32>
    %208 = arith.mulf %199, %180 : vector<2x128xf32>
    %209 = arith.mulf %193, %201 : vector<2x128xf32>
    %210 = arith.addf %208, %209 : vector<2x128xf32>
    %211 = math.tanh %210 : vector<2x128xf32>
    %212 = arith.mulf %207, %211 : vector<2x128xf32>
    %c7_i32 = arith.constant 7 : i32
    %213 = arith.index_cast %c7_i32 : i32 to index
    %c0_44 = arith.constant 0 : index
    %c0_45 = arith.constant 0 : index
    %214 = vector.load %arg1[%213, %c0_44, %c0_45] : memref<10x2x512xf32, #tpu.memory_space<vmem>>, vector<1x2x512xf32>
    %215 = vector.shape_cast %214 : vector<1x2x512xf32> to vector<2x512xf32>
    %cst_46 = arith.constant dense<0.000000e+00> : vector<2x512xf32>
    %216 = tpu.matmul %212, %0, %cst_46 {dimension_numbers = #tpu.dot_dimension_numbers<[1], [0], [0], [1], [0, 0, 1, 1], [], []>} : vector<2x128xf32>, vector<128x512xf32>, vector<2x512xf32> -> vector<2x512xf32>
    %217 = arith.addf %215, %216 : vector<2x512xf32>
    %218 = vector.extract_strided_slice %217 {offsets = [0, 0], sizes = [2, 128], strides = [1, 1]} : vector<2x512xf32> to vector<2x128xf32>
    %219 = arith.negf %218 : vector<2x128xf32>
    %220 = math.exp %219 : vector<2x128xf32>
    %cst_47 = arith.constant 1.000000e+00 : f32
    %221 = vector.broadcast %cst_47 : f32 to vector<2x128xf32>
    %222 = arith.addf %221, %220 : vector<2x128xf32>
    %223 = arith.divf %221, %222 : vector<2x128xf32>
    %224 = vector.extract_strided_slice %217 {offsets = [0, 128], sizes = [2, 128], strides = [1, 1]} : vector<2x512xf32> to vector<2x128xf32>
    %225 = arith.negf %224 : vector<2x128xf32>
    %226 = math.exp %225 : vector<2x128xf32>
    %cst_48 = arith.constant 1.000000e+00 : f32
    %227 = vector.broadcast %cst_48 : f32 to vector<2x128xf32>
    %228 = arith.addf %227, %226 : vector<2x128xf32>
    %229 = arith.divf %227, %228 : vector<2x128xf32>
    %230 = vector.extract_strided_slice %217 {offsets = [0, 256], sizes = [2, 128], strides = [1, 1]} : vector<2x512xf32> to vector<2x128xf32>
    %231 = math.tanh %230 : vector<2x128xf32>
    %232 = vector.extract_strided_slice %217 {offsets = [0, 384], sizes = [2, 128], strides = [1, 1]} : vector<2x512xf32> to vector<2x128xf32>
    %233 = arith.negf %232 : vector<2x128xf32>
    %234 = math.exp %233 : vector<2x128xf32>
    %cst_49 = arith.constant 1.000000e+00 : f32
    %235 = vector.broadcast %cst_49 : f32 to vector<2x128xf32>
    %236 = arith.addf %235, %234 : vector<2x128xf32>
    %237 = arith.divf %235, %236 : vector<2x128xf32>
    %238 = arith.mulf %229, %210 : vector<2x128xf32>
    %239 = arith.mulf %223, %231 : vector<2x128xf32>
    %240 = arith.addf %238, %239 : vector<2x128xf32>
    %241 = math.tanh %240 : vector<2x128xf32>
    %242 = arith.mulf %237, %241 : vector<2x128xf32>
    %c8_i32 = arith.constant 8 : i32
    %243 = arith.index_cast %c8_i32 : i32 to index
    %c0_50 = arith.constant 0 : index
    %c0_51 = arith.constant 0 : index
    %244 = vector.load %arg1[%243, %c0_50, %c0_51] : memref<10x2x512xf32, #tpu.memory_space<vmem>>, vector<1x2x512xf32>
    %245 = vector.shape_cast %244 : vector<1x2x512xf32> to vector<2x512xf32>
    %cst_52 = arith.constant dense<0.000000e+00> : vector<2x512xf32>
    %246 = tpu.matmul %242, %0, %cst_52 {dimension_numbers = #tpu.dot_dimension_numbers<[1], [0], [0], [1], [0, 0, 1, 1], [], []>} : vector<2x128xf32>, vector<128x512xf32>, vector<2x512xf32> -> vector<2x512xf32>
    %247 = arith.addf %245, %246 : vector<2x512xf32>
    %248 = vector.extract_strided_slice %247 {offsets = [0, 0], sizes = [2, 128], strides = [1, 1]} : vector<2x512xf32> to vector<2x128xf32>
    %249 = arith.negf %248 : vector<2x128xf32>
    %250 = math.exp %249 : vector<2x128xf32>
    %cst_53 = arith.constant 1.000000e+00 : f32
    %251 = vector.broadcast %cst_53 : f32 to vector<2x128xf32>
    %252 = arith.addf %251, %250 : vector<2x128xf32>
    %253 = arith.divf %251, %252 : vector<2x128xf32>
    %254 = vector.extract_strided_slice %247 {offsets = [0, 128], sizes = [2, 128], strides = [1, 1]} : vector<2x512xf32> to vector<2x128xf32>
    %255 = arith.negf %254 : vector<2x128xf32>
    %256 = math.exp %255 : vector<2x128xf32>
    %cst_54 = arith.constant 1.000000e+00 : f32
    %257 = vector.broadcast %cst_54 : f32 to vector<2x128xf32>
    %258 = arith.addf %257, %256 : vector<2x128xf32>
    %259 = arith.divf %257, %258 : vector<2x128xf32>
    %260 = vector.extract_strided_slice %247 {offsets = [0, 256], sizes = [2, 128], strides = [1, 1]} : vector<2x512xf32> to vector<2x128xf32>
    %261 = math.tanh %260 : vector<2x128xf32>
    %262 = vector.extract_strided_slice %247 {offsets = [0, 384], sizes = [2, 128], strides = [1, 1]} : vector<2x512xf32> to vector<2x128xf32>
    %263 = arith.negf %262 : vector<2x128xf32>
    %264 = math.exp %263 : vector<2x128xf32>
    %cst_55 = arith.constant 1.000000e+00 : f32
    %265 = vector.broadcast %cst_55 : f32 to vector<2x128xf32>
    %266 = arith.addf %265, %264 : vector<2x128xf32>
    %267 = arith.divf %265, %266 : vector<2x128xf32>
    %268 = arith.mulf %259, %240 : vector<2x128xf32>
    %269 = arith.mulf %253, %261 : vector<2x128xf32>
    %270 = arith.addf %268, %269 : vector<2x128xf32>
    %271 = math.tanh %270 : vector<2x128xf32>
    %272 = arith.mulf %267, %271 : vector<2x128xf32>
    %c9_i32 = arith.constant 9 : i32
    %273 = arith.index_cast %c9_i32 : i32 to index
    %c0_56 = arith.constant 0 : index
    %c0_57 = arith.constant 0 : index
    %274 = vector.load %arg1[%273, %c0_56, %c0_57] : memref<10x2x512xf32, #tpu.memory_space<vmem>>, vector<1x2x512xf32>
    %275 = vector.shape_cast %274 : vector<1x2x512xf32> to vector<2x512xf32>
    %cst_58 = arith.constant dense<0.000000e+00> : vector<2x512xf32>
    %276 = tpu.matmul %272, %0, %cst_58 {dimension_numbers = #tpu.dot_dimension_numbers<[1], [0], [0], [1], [0, 0, 1, 1], [], []>} : vector<2x128xf32>, vector<128x512xf32>, vector<2x512xf32> -> vector<2x512xf32>
    %277 = arith.addf %275, %276 : vector<2x512xf32>
    %278 = vector.extract_strided_slice %277 {offsets = [0, 0], sizes = [2, 128], strides = [1, 1]} : vector<2x512xf32> to vector<2x128xf32>
    %279 = arith.negf %278 : vector<2x128xf32>
    %280 = math.exp %279 : vector<2x128xf32>
    %cst_59 = arith.constant 1.000000e+00 : f32
    %281 = vector.broadcast %cst_59 : f32 to vector<2x128xf32>
    %282 = arith.addf %281, %280 : vector<2x128xf32>
    %283 = arith.divf %281, %282 : vector<2x128xf32>
    %284 = vector.extract_strided_slice %277 {offsets = [0, 128], sizes = [2, 128], strides = [1, 1]} : vector<2x512xf32> to vector<2x128xf32>
    %285 = arith.negf %284 : vector<2x128xf32>
    %286 = math.exp %285 : vector<2x128xf32>
    %cst_60 = arith.constant 1.000000e+00 : f32
    %287 = vector.broadcast %cst_60 : f32 to vector<2x128xf32>
    %288 = arith.addf %287, %286 : vector<2x128xf32>
    %289 = arith.divf %287, %288 : vector<2x128xf32>
    %290 = vector.extract_strided_slice %277 {offsets = [0, 256], sizes = [2, 128], strides = [1, 1]} : vector<2x512xf32> to vector<2x128xf32>
    %291 = math.tanh %290 : vector<2x128xf32>
    %292 = vector.extract_strided_slice %277 {offsets = [0, 384], sizes = [2, 128], strides = [1, 1]} : vector<2x512xf32> to vector<2x128xf32>
    %293 = arith.negf %292 : vector<2x128xf32>
    %294 = math.exp %293 : vector<2x128xf32>
    %cst_61 = arith.constant 1.000000e+00 : f32
    %295 = vector.broadcast %cst_61 : f32 to vector<2x128xf32>
    %296 = arith.addf %295, %294 : vector<2x128xf32>
    %297 = arith.divf %295, %296 : vector<2x128xf32>
    %298 = arith.mulf %289, %270 : vector<2x128xf32>
    %299 = arith.mulf %283, %291 : vector<2x128xf32>
    %300 = arith.addf %298, %299 : vector<2x128xf32>
    %301 = math.tanh %300 : vector<2x128xf32>
    %302 = arith.mulf %297, %301 : vector<2x128xf32>
    %c10_i32 = arith.constant 10 : i32
    %c0_62 = arith.constant 0 : index
    %c0_63 = arith.constant 0 : index
    %c0_64 = arith.constant 0 : index
    %303 = vector.load %arg3[%c0_62, %c0_63, %c0_64] : memref<1x2x128xf32, #tpu.memory_space<vmem>>, vector<1x2x128xf32>
    %304 = vector.shape_cast %303 : vector<1x2x128xf32> to vector<2x128xf32>
    %305 = vector.shape_cast %302 : vector<2x128xf32> to vector<1x2x128xf32>
    tpu.vector_store %arg3[%c0_62, %c0_63, %c0_64], %305 {strides = array<i32>} : memref<1x2x128xf32, #tpu.memory_space<vmem>>, vector<1x2x128xf32>,
    return
  }
  func.func @transform_0(%arg0: i32) -> (i32, i32, i32) {
    %c0_i32 = arith.constant 0 : i32
    %c0_i32_0 = arith.constant 0 : i32
    %c0_i32_1 = arith.constant 0 : i32
    return %arg0, %c0_i32, %c0_i32_0 : i32, i32, i32
  }
  func.func @transform_1(%arg0: i32) -> (i32, i32) {
    %c0_i32 = arith.constant 0 : i32
    %c0_i32_0 = arith.constant 0 : i32
    return %arg0, %c0_i32 : i32, i32
  }
  func.func @transform_2(%arg0: i32) -> (i32, i32, i32) {
    %c0_i32 = arith.constant 0 : i32
    %c0_i32_0 = arith.constant 0 : i32
    %c0_i32_1 = arith.constant 0 : i32
    return %arg0, %c0_i32, %c0_i32_0 : i32, i32, i32
  }
}

module attributes {stable_mosaic.version = 11 : i64} {
  func.func @_mlp2_kernel(%arg0: memref<2x256xbf16, #tpu.memory_space<vmem>>, %arg1: memref<256x512xbf16, #tpu.memory_space<vmem>>, %arg2: memref<1x512xf32, #tpu.memory_space<vmem>>, %arg3: memref<512x128xbf16, #tpu.memory_space<vmem>>, %arg4: memref<1x128xf32, #tpu.memory_space<vmem>>, %arg5: memref<2x128xf32, #tpu.memory_space<vmem>>) attributes {dimension_semantics = [], scalar_prefetch = 0 : i64, scratch_operands = 0 : i64, tpu.core_type = #tpu.core_type<tc>} {
    %c0 = arith.constant 0 : index
    %c0_0 = arith.constant 0 : index
    %0 = vector.load %arg0[%c0, %c0_0] : memref<2x256xbf16, #tpu.memory_space<vmem>>, vector<2x256xbf16>
    %c0_1 = arith.constant 0 : index
    %c0_2 = arith.constant 0 : index
    %1 = vector.load %arg1[%c0_1, %c0_2] : memref<256x512xbf16, #tpu.memory_space<vmem>>, vector<256x512xbf16>
    %cst = arith.constant dense<0.000000e+00> : vector<2x512xf32>
    %2 = tpu.matmul %0, %1, %cst {dimension_numbers = #tpu.dot_dimension_numbers<[1], [0], [0], [1], [0, 0, 1, 1], [], []>} : vector<2x256xbf16>, vector<256x512xbf16>, vector<2x512xf32> -> vector<2x512xf32>
    %c0_3 = arith.constant 0 : index
    %c0_4 = arith.constant 0 : index
    %3 = vector.load %arg2[%c0_3, %c0_4] : memref<1x512xf32, #tpu.memory_space<vmem>>, vector<1x512xf32>
    %4 = vector.broadcast %3 : vector<1x512xf32> to vector<2x512xf32>
    %5 = arith.addf %2, %4 : vector<2x512xf32>
    %cst_5 = arith.constant 0.000000e+00 : f32
    %6 = vector.broadcast %cst_5 : f32 to vector<2x512xf32>
    %7 = arith.maximumf %5, %6 : vector<2x512xf32>
    %8 = arith.truncf %7 : vector<2x512xf32> to vector<2x512xbf16>
    %c0_6 = arith.constant 0 : index
    %c0_7 = arith.constant 0 : index
    %9 = vector.load %arg3[%c0_6, %c0_7] : memref<512x128xbf16, #tpu.memory_space<vmem>>, vector<512x128xbf16>
    %cst_8 = arith.constant dense<0.000000e+00> : vector<2x128xf32>
    %10 = tpu.matmul %8, %9, %cst_8 {dimension_numbers = #tpu.dot_dimension_numbers<[1], [0], [0], [1], [0, 0, 1, 1], [], []>} : vector<2x512xbf16>, vector<512x128xbf16>, vector<2x128xf32> -> vector<2x128xf32>
    %c0_9 = arith.constant 0 : index
    %c0_10 = arith.constant 0 : index
    %11 = vector.load %arg4[%c0_9, %c0_10] : memref<1x128xf32, #tpu.memory_space<vmem>>, vector<1x128xf32>
    %12 = vector.broadcast %11 : vector<1x128xf32> to vector<2x128xf32>
    %13 = arith.addf %10, %12 : vector<2x128xf32>
    %c0_11 = arith.constant 0 : index
    %c0_12 = arith.constant 0 : index
    %14 = vector.load %arg5[%c0_11, %c0_12] : memref<2x128xf32, #tpu.memory_space<vmem>>, vector<2x128xf32>
    tpu.vector_store %arg5[%c0_11, %c0_12], %13 {strides = array<i32>} : memref<2x128xf32, #tpu.memory_space<vmem>>, vector<2x128xf32>,
    return
  }
}

</mosaic_0001>

<llo_original>
// kernel: nature_cnn_forward.7
$region0: #{nature_cnn_forward.7}
  #allocation0 [shape = 'u32[]', space=smem, size = 0x4, offset = 0x4, fixed_abs, tag = 'smem constant byte address 0x4 - core index']
  #allocation1 [shape = 'u32[144,128]{1,0:T(1,128)}', space=vmem, size = 0x12000, scoped, tag = 'internal scratch']
  %s0 = inlined_call_operand.vmem [shape: bf16[2560,256], index: 0, kind: input, shape index: {}]
  %s1 = inlined_call_operand.vmem [shape: bf16[256,32], index: 1, kind: input, shape index: {}]
  %s2 = inlined_call_operand.vmem [shape: f32[1,32], index: 2, kind: input, shape index: {}]
  %s3 = inlined_call_operand.vmem [shape: bf16[2560,32], index: 3, kind: output, shape index: {}]
  %s4 = sld [smem:[#allocation0]]
  $region45: #{nature_cnn_forward.7} parent=0
    _
  %s6 = ssub.s32 1, %s4
  %s7 = scalar_select 0, %s6, %s4
  loop: start=0, step=1, limit=7
  $region2: #{nature_cnn_forward.7} parent=0 // loop_pre_header
    _
  $region3: #{nature_cnn_forward.7} parent=0 // loop_header
    %s9 = sphi 0, %s13
    %p10 = scmp.ge.s32.totalorder %s9, 7
    %s19 = sphi 0, %s21
    %s22 = sphi 0, %s19
    %s23 = sphi 0, %s22
    %s39 = sphi 0, %s23
    %s43 = sphi 0, %s43
    %s45 = sphi 0, %s43
    %s46 = sphi 0, %s45
    %s60 = sphi 0, %s46
    %s64 = sphi 0, %s64
    %s66 = sphi 0, %s64
    %s67 = sphi 0, %s66
    %s81 = sphi 0, %s67
    %s87 = sphi 0, %s89
    %s90 = sphi 0, %s87
    %s91 = sphi 0, %s90
    %s107 = sphi 0, %s91
  $region4: #{nature_cnn_forward.7} parent=0 // loop_header_branch
    %12 = sbr.rel (%p10) target = $region8
  $region5: #{nature_cnn_forward.7} parent=0 // loop_body
    %s14 = ssub.s32 %s9, 1
    %s15 = ssub.s32 %s9, 2
    %s16 = sadd.s32 %s9, 1
    %s17 = ssub.s32 %s9, %s16
    %p18 = scmp.eq.s32.totalorder %s17, 0
    %s20 = sadd.s32 %s19, 1
    %s21 = scalar_select %p18, %s19, %s20
    %p24 = pneg %p18
    %p25 = scmp.eq.s32.totalorder %s9, 4
    %p26 = por %p24, %p25
    %p27 = scmp.ne.s32.totalorder %s19, %s22
    %p28 = scmp.eq.s32.totalorder %s9, 0
    %p29 = por %p27, %p28
    %p30 = scmp.ne.s32.totalorder %s19, %s22
    %p31 = scmp.eq.s32.totalorder %s14, 4
    %p32 = por %p30, %p31
    %p33 = scmp.ne.s32.totalorder %s22, %s23
    %p34 = scmp.eq.s32.totalorder %s14, 0
    %p35 = por %p33, %p34
    %p36 = scmp.ne.s32.totalorder %s22, %s23
    %p37 = scmp.eq.s32.totalorder %s15, 4
    %p38 = por %p36, %p37
    %p40 = scmp.ne.s32.totalorder %s23, %s39
    %p41 = scmp.eq.s32.totalorder %s15, 0
    %p42 = por %p40, %p41
    %s44 = sadd.s32 %s43, 1
    %p47 = scmp.eq.s32.totalorder %s9, 4
    %p48 = scmp.ne.s32.totalorder %s43, %s45
    %p49 = scmp.eq.s32.totalorder %s9, 0
    %p50 = por %p48, %p49
    %p51 = scmp.ne.s32.totalorder %s43, %s45
    %p52 = scmp.eq.s32.totalorder %s14, 4
    %p53 = por %p51, %p52
    %p54 = scmp.ne.s32.totalorder %s45, %s46
    %p55 = scmp.eq.s32.totalorder %s14, 0
    %p56 = por %p54, %p55
    %p57 = scmp.ne.s32.totalorder %s45, %s46
    %p58 = scmp.eq.s32.totalorder %s15, 4
    %p59 = por %p57, %p58
    %p61 = scmp.ne.s32.totalorder %s46, %s60
    %p62 = scmp.eq.s32.totalorder %s15, 0
    %p63 = por %p61, %p62
    %s65 = sadd.s32 %s64, 1
    %p68 = scmp.eq.s32.totalorder %s9, 4
    %p69 = scmp.ne.s32.totalorder %s64, %s66
    %p70 = scmp.eq.s32.totalorder %s9, 0
    %p71 = por %p69, %p70
    %p72 = scmp.ne.s32.totalorder %s64, %s66
    %p73 = scmp.eq.s32.totalorder %s14, 4
    %p74 = por %p72, %p73
    %p75 = scmp.ne.s32.totalorder %s66, %s67
    %p76 = scmp.eq.s32.totalorder %s14, 0
    %p77 = por %p75, %p76
    %p78 = scmp.ne.s32.totalorder %s66, %s67
    %p79 = scmp.eq.s32.totalorder %s15, 4
    %p80 = por %p78, %p79
    %p82 = scmp.ne.s32.totalorder %s67, %s81
    %p83 = scmp.eq.s32.totalorder %s15, 0
    %p84 = por %p82, %p83
    %s85 = ssub.s32 %s9, %s16
    %p86 = scmp.eq.s32.totalorder %s85, 0
    %s88 = sadd.s32 %s87, 1
    %s89 = scalar_select %p86, %s87, %s88
    %p92 = pneg %p86
    %p93 = scmp.eq.s32.totalorder %s9, 4
    %p94 = por %p92, %p93
    %p95 = scmp.ne.s32.totalorder %s87, %s90
    %p96 = scmp.eq.s32.totalorder %s9, 0
    %p97 = por %p95, %p96
    %p98 = scmp.ne.s32.totalorder %s87, %s90
    %p99 = scmp.eq.s32.totalorder %s14, 4
    %p100 = por %p98, %p99
    %p101 = scmp.ne.s32.totalorder %s90, %s91
    %p102 = scmp.eq.s32.totalorder %s14, 0
    %p103 = por %p101, %p102
    %p104 = scmp.ne.s32.totalorder %s90, %s91
    %p105 = scmp.eq.s32.totalorder %s15, 4
    %p106 = por %p104, %p105
    %p108 = scmp.ne.s32.totalorder %s91, %s107
    %p109 = scmp.eq.s32.totalorder %s15, 0
    %p110 = por %p108, %p109
    %p111 = scmp.le.s32.totalorder 1, %s9
    %p112 = scmp.lt.s32.totalorder %s9, 6
    %p113 = pnand %p111, %p112
    %p114 = pneg %p113
    // Predicated region
    $region9: #{nature_cnn_forward.7} parent=5 // pred_check
      _
    $region10: #{nature_cnn_forward.7} parent=5 // pred_check_branch
      %116 = sbr.rel (%p113) target = $region12
    $region11: #{nature_cnn_forward.7} parent=5 // pred_region
      %s117 = ssub.s32 %s9, 1
      // Predicated region
      $region13: #{nature_cnn_forward.7} parent=11 // pred_check
        %p118 = pneg %p56
      $region14: #{nature_cnn_forward.7} parent=11 // pred_check_branch
        %120 = sbr.rel (%p118) target = $region16
      $region15: #{nature_cnn_forward.7} parent=11 // pred_region
        _
      $region16: #{nature_cnn_forward.7} parent=11 // pred_fallthru
        _
      // Predicated region
      $region17: #{nature_cnn_forward.7} parent=11 // pred_check
        %p121 = pneg %p77
      $region18: #{nature_cnn_forward.7} parent=11 // pred_check_branch
        %123 = sbr.rel (%p121) target = $region20
      $region19: #{nature_cnn_forward.7} parent=11 // pred_region
        _
      $region20: #{nature_cnn_forward.7} parent=11 // pred_fallthru
        _
    $region12: #{nature_cnn_forward.7} parent=5 // pred_fallthru
      _
    %p124 = scmp.lt.s32.totalorder %s9, 5
    // Predicated region
    $region21: #{nature_cnn_forward.7} parent=5 // pred_check
      %p125 = pneg %p124
    $region22: #{nature_cnn_forward.7} parent=5 // pred_check_branch
      %127 = sbr.rel (%p125) target = $region24
    $region23: #{nature_cnn_forward.7} parent=5 // pred_region
      // Predicated region
      $region25: #{nature_cnn_forward.7} parent=23 // pred_check
        %p128 = pneg %p29
      $region26: #{nature_cnn_forward.7} parent=23 // pred_check_branch
        %130 = sbr.rel (%p128) target = $region28
      $region27: #{nature_cnn_forward.7} parent=23 // pred_region
        %s131 = smul.u32 64, %s9
        %p132 = scmp.lt.s32.totalorder %s131, 319
        %s133 = scalar_select %p132, %s131, 319
        %s134 = smul.addr %s133, 2
        %s135 = smul.addr %s134, 4
        %s136 = scalar_lea.vmem %s0, %s135
        %s137 = smul.u32 64, %s9
      $region28: #{nature_cnn_forward.7} parent=23 // pred_fallthru
        _
    $region24: #{nature_cnn_forward.7} parent=5 // pred_fallthru
      _
    %p138 = scmp.le.s32.totalorder 1, %s9
    %p139 = scmp.lt.s32.totalorder %s9, 6
    %p140 = pnand %p138, %p139
    %p141 = pneg %p140
    // Predicated region
    $region29: #{nature_cnn_forward.7} parent=5 // pred_check
      _
    $region30: #{nature_cnn_forward.7} parent=5 // pred_check_branch
      %143 = sbr.rel (%p140) target = $region32
    $region31: #{nature_cnn_forward.7} parent=5 // pred_region
      %s144 = ssub.s32 %s9, 1
      %s145 = smul.u32 64, %s14
      %p146 = scmp.lt.s32.totalorder %s145, 319
      %s147 = scalar_select %p146, %s145, 319
      %s148 = smul.addr %s147, 2
      %s149 = smul.addr %s148, 4
      %s150 = scalar_lea.vmem %s0, %s149
      %p151 = pneg %p35
      %p152 = pneg %p32
      %p153 = pneg %p56
      %p154 = pneg %p53
      %p155 = pneg %p77
      %p156 = pneg %p74
      %p157 = pneg %p103
      %p158 = pneg %p100
      %s159 = smul.u32 64, %s14
      %p160 = scmp.lt.s32.totalorder %s159, 319
      %s161 = scalar_select %p160, %s159, 319
      %s162 = smul.addr %s161, 4
      %s163 = scalar_lea.vmem %s3, %s162
      %s164 = smul.u32 64, %s14
      %p165 = scmp.lt.s32.totalorder %s164, 319
      %s166 = scalar_select %p165, %s164, 319
      %s167 = smul.addr %s166, 2
      %s168 = smul.addr %s167, 4
      %s169 = scalar_lea.vmem %s0, %s168
      %s170 = smul.u32 64, %s14
      %s171 = smul.u32 64, %s14
      %p172 = scmp.lt.s32.totalorder %s171, 319
      %s173 = scalar_select %p172, %s171, 319
      %s174 = smul.addr %s173, 4
      %s175 = scalar_lea.vmem %s3, %s174
      %s176 = smul.u32 64, %s14
      %v178 = vld [vmem:[%s169] sm:$0xff]
      %v179 = vld [vmem:[%s169 + $0x8] sm:$0xff]
      %v180 = vld [vmem:[%s169 + $0x10] sm:$0xff]
      %v181 = vld [vmem:[%s169 + $0x18] sm:$0xff]
      %v182 = vld [vmem:[%s169 + $0x20] sm:$0xff]
      %v183 = vld [vmem:[%s169 + $0x28] sm:$0xff]
      %v184 = vld [vmem:[%s169 + $0x30] sm:$0xff]
      %v185 = vld [vmem:[%s169 + $0x38] sm:$0xff]
      %v186 = vld [vmem:[%s169 + $0x40] sm:$0xff]
      %v187 = vld [vmem:[%s169 + $0x48] sm:$0xff]
      %v188 = vld [vmem:[%s169 + $0x50] sm:$0xff]
      %v189 = vld [vmem:[%s169 + $0x58] sm:$0xff]
      %v190 = vld [vmem:[%s169 + $0x60] sm:$0xff]
      %v191 = vld [vmem:[%s169 + $0x68] sm:$0xff]
      %v192 = vld [vmem:[%s169 + $0x70] sm:$0xff]
      %v193 = vld [vmem:[%s169 + $0x78] sm:$0xff]
      %v194 = vld [vmem:[%s169 + $0x80] sm:$0xff]
      %v195 = vld [vmem:[%s169 + $0x88] sm:$0xff]
      %v196 = vld [vmem:[%s169 + $0x90] sm:$0xff]
      %v197 = vld [vmem:[%s169 + $0x98] sm:$0xff]
      %v198 = vld [vmem:[%s169 + $0xa0] sm:$0xff]
      %v199 = vld [vmem:[%s169 + $0xa8] sm:$0xff]
      %v200 = vld [vmem:[%s169 + $0xb0] sm:$0xff]
      %v201 = vld [vmem:[%s169 + $0xb8] sm:$0xff]
      %v202 = vld [vmem:[%s169 + $0xc0] sm:$0xff]
      %v203 = vld [vmem:[%s169 + $0xc8] sm:$0xff]
      %v204 = vld [vmem:[%s169 + $0xd0] sm:$0xff]
      %v205 = vld [vmem:[%s169 + $0xd8] sm:$0xff]
      %v206 = vld [vmem:[%s169 + $0xe0] sm:$0xff]
      %v207 = vld [vmem:[%s169 + $0xe8] sm:$0xff]
      %v208 = vld [vmem:[%s169 + $0xf0] sm:$0xff]
      %v209 = vld [vmem:[%s169 + $0xf8] sm:$0xff]
      %v210 = vld [vmem:[%s169 + $0x100] sm:$0xff]
      %v211 = vld [vmem:[%s169 + $0x108] sm:$0xff]
      %v212 = vld [vmem:[%s169 + $0x110] sm:$0xff]
      %v213 = vld [vmem:[%s169 + $0x118] sm:$0xff]
      %v214 = vld [vmem:[%s169 + $0x120] sm:$0xff]
      %v215 = vld [vmem:[%s169 + $0x128] sm:$0xff]
      %v216 = vld [vmem:[%s169 + $0x130] sm:$0xff]
      %v217 = vld [vmem:[%s169 + $0x138] sm:$0xff]
      %v218 = vld [vmem:[%s169 + $0x140] sm:$0xff]
      %v219 = vld [vmem:[%s169 + $0x148] sm:$0xff]
      %v220 = vld [vmem:[%s169 + $0x150] sm:$0xff]
      %v221 = vld [vmem:[%s169 + $0x158] sm:$0xff]
      %v222 = vld [vmem:[%s169 + $0x160] sm:$0xff]
      %v223 = vld [vmem:[%s169 + $0x168] sm:$0xff]
      %v224 = vld [vmem:[%s169 + $0x170] sm:$0xff]
      %v225 = vld [vmem:[%s169 + $0x178] sm:$0xff]
      %v226 = vld [vmem:[%s169 + $0x180] sm:$0xff]
      %v227 = vld [vmem:[%s169 + $0x188] sm:$0xff]
      %v228 = vld [vmem:[%s169 + $0x190] sm:$0xff]
      %v229 = vld [vmem:[%s169 + $0x198] sm:$0xff]
      %v230 = vld [vmem:[%s169 + $0x1a0] sm:$0xff]
      %v231 = vld [vmem:[%s169 + $0x1a8] sm:$0xff]
      %v232 = vld [vmem:[%s169 + $0x1b0] sm:$0xff]
      %v233 = vld [vmem:[%s169 + $0x1b8] sm:$0xff]
      %v234 = vld [vmem:[%s169 + $0x1c0] sm:$0xff]
      %v235 = vld [vmem:[%s169 + $0x1c8] sm:$0xff]
      %v236 = vld [vmem:[%s169 + $0x1d0] sm:$0xff]
      %v237 = vld [vmem:[%s169 + $0x1d8] sm:$0xff]
      %v238 = vld [vmem:[%s169 + $0x1e0] sm:$0xff]
      %v239 = vld [vmem:[%s169 + $0x1e8] sm:$0xff]
      %v240 = vld [vmem:[%s169 + $0x1f0] sm:$0xff]
      %v241 = vld [vmem:[%s169 + $0x1f8] sm:$0xff]
      %v242 = vld [vmem:[%s1] sm:$0xf]
      %v243 = vld [vmem:[%s1 + $0x4] sm:$0xf]
      %v244 = vld [vmem:[%s1 + $0x8] sm:$0xf]
      %v245 = vld [vmem:[%s1 + $0xc] sm:$0xf]
      %v246 = vld [vmem:[%s1 + $0x10] sm:$0xf]
      %v247 = vld [vmem:[%s1 + $0x14] sm:$0xf]
      %v248 = vld [vmem:[%s1 + $0x18] sm:$0xf]
      %v249 = vld [vmem:[%s1 + $0x1c] sm:$0xf]
      %v250 = vld [vmem:[%s1 + $0x20] sm:$0xf]
      %v251 = vld [vmem:[%s1 + $0x24] sm:$0xf]
      %v252 = vld [vmem:[%s1 + $0x28] sm:$0xf]
      %v253 = vld [vmem:[%s1 + $0x2c] sm:$0xf]
      %v254 = vld [vmem:[%s1 + $0x30] sm:$0xf]
      %v255 = vld [vmem:[%s1 + $0x34] sm:$0xf]
      %v256 = vld [vmem:[%s1 + $0x38] sm:$0xf]
      %v257 = vld [vmem:[%s1 + $0x3c] sm:$0xf]
      %v258 = vld [vmem:[%s1 + $0x40] sm:$0xf]
      %v259 = vld [vmem:[%s1 + $0x44] sm:$0xf]
      %v260 = vld [vmem:[%s1 + $0x48] sm:$0xf]
      %v261 = vld [vmem:[%s1 + $0x4c] sm:$0xf]
      %v262 = vld [vmem:[%s1 + $0x50] sm:$0xf]
      %v263 = vld [vmem:[%s1 + $0x54] sm:$0xf]
      %v264 = vld [vmem:[%s1 + $0x58] sm:$0xf]
      %v265 = vld [vmem:[%s1 + $0x5c] sm:$0xf]
      %v266 = vld [vmem:[%s1 + $0x60] sm:$0xf]
      %v267 = vld [vmem:[%s1 + $0x64] sm:$0xf]
      %v268 = vld [vmem:[%s1 + $0x68] sm:$0xf]
      %v269 = vld [vmem:[%s1 + $0x6c] sm:$0xf]
      %v270 = vld [vmem:[%s1 + $0x70] sm:$0xf]
      %v271 = vld [vmem:[%s1 + $0x74] sm:$0xf]
      %v272 = vld [vmem:[%s1 + $0x78] sm:$0xf]
      %v273 = vld [vmem:[%s1 + $0x7c] sm:$0xf]
      %v274 = vld [vmem:[%s2] sm:$0x1]
      %v276 = vlaneseq
      %v277 = vshrl.u32 %v276, 7
      %v278 = vsub.s32 0, %v277
      %v279 = vrot.slane %v274, %v278
      %v345 = vunpack.c.l.b16 %v178
      %v346 = vunpack.c.h.b16 %v178
      %v347 = vunpack.c.l.b16 %v179
      %v348 = vunpack.c.h.b16 %v179
      %v349 = vunpack.c.l.b16 %v180
      %v350 = vunpack.c.h.b16 %v180
      %v351 = vunpack.c.l.b16 %v181
      %v352 = vunpack.c.h.b16 %v181
      %v353 = vunpack.c.l.b16 %v182
      %v354 = vunpack.c.h.b16 %v182
      %v355 = vunpack.c.l.b16 %v183
      %v356 = vunpack.c.h.b16 %v183
      %v357 = vunpack.c.l.b16 %v184
      %v358 = vunpack.c.h.b16 %v184
      %v359 = vunpack.c.l.b16 %v185
      %v360 = vunpack.c.h.b16 %v185
      %v361 = vunpack.c.l.b16 %v186
      %v362 = vunpack.c.h.b16 %v186
      %v363 = vunpack.c.l.b16 %v187
      %v364 = vunpack.c.h.b16 %v187
      %v365 = vunpack.c.l.b16 %v188
      %v366 = vunpack.c.h.b16 %v188
      %v367 = vunpack.c.l.b16 %v189
      %v368 = vunpack.c.h.b16 %v189
      %v369 = vunpack.c.l.b16 %v190
      %v370 = vunpack.c.h.b16 %v190
      %v371 = vunpack.c.l.b16 %v191
      %v372 = vunpack.c.h.b16 %v191
      %v373 = vunpack.c.l.b16 %v192
      %v374 = vunpack.c.h.b16 %v192
      %v375 = vunpack.c.l.b16 %v193
      %v376 = vunpack.c.h.b16 %v193
      %v377 = vunpack.c.l.b16 %v194
      %v378 = vunpack.c.h.b16 %v194
      %v379 = vunpack.c.l.b16 %v195
      %v380 = vunpack.c.h.b16 %v195
      %v381 = vunpack.c.l.b16 %v196
      %v382 = vunpack.c.h.b16 %v196
      %v383 = vunpack.c.l.b16 %v197
      %v384 = vunpack.c.h.b16 %v197
      %v385 = vunpack.c.l.b16 %v198
      %v386 = vunpack.c.h.b16 %v198
      %v387 = vunpack.c.l.b16 %v199
      %v388 = vunpack.c.h.b16 %v199
      %v389 = vunpack.c.l.b16 %v200
      %v390 = vunpack.c.h.b16 %v200
      %v391 = vunpack.c.l.b16 %v201
      %v392 = vunpack.c.h.b16 %v201
      %v393 = vunpack.c.l.b16 %v202
      %v394 = vunpack.c.h.b16 %v202
      %v395 = vunpack.c.l.b16 %v203
      %v396 = vunpack.c.h.b16 %v203
      %v397 = vunpack.c.l.b16 %v204
      %v398 = vunpack.c.h.b16 %v204
      %v399 = vunpack.c.l.b16 %v205
      %v400 = vunpack.c.h.b16 %v205
      %v401 = vunpack.c.l.b16 %v206
      %v402 = vunpack.c.h.b16 %v206
      %v403 = vunpack.c.l.b16 %v207
      %v404 = vunpack.c.h.b16 %v207
      %v405 = vunpack.c.l.b16 %v208
      %v406 = vunpack.c.h.b16 %v208
      %v407 = vunpack.c.l.b16 %v209
      %v408 = vunpack.c.h.b16 %v209
      %v409 = vunpack.c.l.b16 %v210
      %v410 = vunpack.c.h.b16 %v210
      %v411 = vunpack.c.l.b16 %v211
      %v412 = vunpack.c.h.b16 %v211
      %v413 = vunpack.c.l.b16 %v212
      %v414 = vunpack.c.h.b16 %v212
      %v415 = vunpack.c.l.b16 %v213
      %v416 = vunpack.c.h.b16 %v213
      %v417 = vunpack.c.l.b16 %v214
      %v418 = vunpack.c.h.b16 %v214
      %v419 = vunpack.c.l.b16 %v215
      %v420 = vunpack.c.h.b16 %v215
      %v421 = vunpack.c.l.b16 %v216
      %v422 = vunpack.c.h.b16 %v216
      %v423 = vunpack.c.l.b16 %v217
      %v424 = vunpack.c.h.b16 %v217
      %v425 = vunpack.c.l.b16 %v218
      %v426 = vunpack.c.h.b16 %v218
      %v427 = vunpack.c.l.b16 %v219
      %v428 = vunpack.c.h.b16 %v219
      %v429 = vunpack.c.l.b16 %v220
      %v430 = vunpack.c.h.b16 %v220
      %v431 = vunpack.c.l.b16 %v221
      %v432 = vunpack.c.h.b16 %v221
      %v433 = vunpack.c.l.b16 %v222
      %v434 = vunpack.c.h.b16 %v222
      %v435 = vunpack.c.l.b16 %v223
      %v436 = vunpack.c.h.b16 %v223
      %v437 = vunpack.c.l.b16 %v224
      %v438 = vunpack.c.h.b16 %v224
      %v439 = vunpack.c.l.b16 %v225
      %v440 = vunpack.c.h.b16 %v225
      %v441 = vunpack.c.l.b16 %v226
      %v442 = vunpack.c.h.b16 %v226
      %v443 = vunpack.c.l.b16 %v227
      %v444 = vunpack.c.h.b16 %v227
      %v445 = vunpack.c.l.b16 %v228
      %v446 = vunpack.c.h.b16 %v228
      %v447 = vunpack.c.l.b16 %v229
      %v448 = vunpack.c.h.b16 %v229
      %v449 = vunpack.c.l.b16 %v230
      %v450 = vunpack.c.h.b16 %v230
      %v451 = vunpack.c.l.b16 %v231
      %v452 = vunpack.c.h.b16 %v231
      %v453 = vunpack.c.l.b16 %v232
      %v454 = vunpack.c.h.b16 %v232
      %v455 = vunpack.c.l.b16 %v233
      %v456 = vunpack.c.h.b16 %v233
      %v457 = vunpack.c.l.b16 %v234
      %v458 = vunpack.c.h.b16 %v234
      %v459 = vunpack.c.l.b16 %v235
      %v460 = vunpack.c.h.b16 %v235
      %v461 = vunpack.c.l.b16 %v236
      %v462 = vunpack.c.h.b16 %v236
      %v463 = vunpack.c.l.b16 %v237
      %v464 = vunpack.c.h.b16 %v237
      %v465 = vunpack.c.l.b16 %v238
      %v466 = vunpack.c.h.b16 %v238
      %v467 = vunpack.c.l.b16 %v239
      %v468 = vunpack.c.h.b16 %v239
      %v469 = vunpack.c.l.b16 %v240
      %v470 = vunpack.c.h.b16 %v240
      %v471 = vunpack.c.l.b16 %v241
      %v472 = vunpack.c.h.b16 %v241
      %v473 = vpack.c.b16 %v347, %v345
      %v474 = vpack.c.b16 %v348, %v346
      %v475 = vpack.c.b16 %v351, %v349
      %v476 = vpack.c.b16 %v352, %v350
      %v477 = vpack.c.b16 %v355, %v353
      %v478 = vpack.c.b16 %v356, %v354
      %v479 = vpack.c.b16 %v359, %v357
      %v480 = vpack.c.b16 %v360, %v358
      %v481 = vpack.c.b16 %v363, %v361
      %v482 = vpack.c.b16 %v364, %v362
      %v483 = vpack.c.b16 %v367, %v365
      %v484 = vpack.c.b16 %v368, %v366
      %v485 = vpack.c.b16 %v371, %v369
      %v486 = vpack.c.b16 %v372, %v370
      %v487 = vpack.c.b16 %v375, %v373
      %v488 = vpack.c.b16 %v376, %v374
      %v489 = vpack.c.b16 %v379, %v377
      %v490 = vpack.c.b16 %v380, %v378
      %v491 = vpack.c.b16 %v383, %v381
      %v492 = vpack.c.b16 %v384, %v382
      %v493 = vpack.c.b16 %v387, %v385
      %v494 = vpack.c.b16 %v388, %v386
      %v495 = vpack.c.b16 %v391, %v389
      %v496 = vpack.c.b16 %v392, %v390
      %v497 = vpack.c.b16 %v395, %v393
      %v498 = vpack.c.b16 %v396, %v394
      %v499 = vpack.c.b16 %v399, %v397
      %v500 = vpack.c.b16 %v400, %v398
      %v501 = vpack.c.b16 %v403, %v401
      %v502 = vpack.c.b16 %v404, %v402
      %v503 = vpack.c.b16 %v407, %v405
      %v504 = vpack.c.b16 %v408, %v406
      %v505 = vpack.c.b16 %v411, %v409
      %v506 = vpack.c.b16 %v412, %v410
      %v507 = vpack.c.b16 %v415, %v413
      %v508 = vpack.c.b16 %v416, %v414
      %v509 = vpack.c.b16 %v419, %v417
      %v510 = vpack.c.b16 %v420, %v418
      %v511 = vpack.c.b16 %v423, %v421
      %v512 = vpack.c.b16 %v424, %v422
      %v513 = vpack.c.b16 %v427, %v425
      %v514 = vpack.c.b16 %v428, %v426
      %v515 = vpack.c.b16 %v431, %v429
      %v516 = vpack.c.b16 %v432, %v430
      %v517 = vpack.c.b16 %v435, %v433
      %v518 = vpack.c.b16 %v436, %v434
      %v519 = vpack.c.b16 %v439, %v437
      %v520 = vpack.c.b16 %v440, %v438
      %v521 = vpack.c.b16 %v443, %v441
      %v522 = vpack.c.b16 %v444, %v442
      %v523 = vpack.c.b16 %v447, %v445
      %v524 = vpack.c.b16 %v448, %v446
      %v525 = vpack.c.b16 %v451, %v449
      %v526 = vpack.c.b16 %v452, %v450
      %v527 = vpack.c.b16 %v455, %v453
      %v528 = vpack.c.b16 %v456, %v454
      %v529 = vpack.c.b16 %v459, %v457
      %v530 = vpack.c.b16 %v460, %v458
      %v531 = vpack.c.b16 %v463, %v461
      %v532 = vpack.c.b16 %v464, %v462
      %v533 = vpack.c.b16 %v467, %v465
      %v534 = vpack.c.b16 %v468, %v466
      %v535 = vpack.c.b16 %v471, %v469
      %v536 = vpack.c.b16 %v472, %v470
      %v633 = vunpack.c.l.b16 %v242
      %v634 = vunpack.c.l.b16 %v243
      %v635 = vunpack.c.l.b16 %v244
      %v636 = vunpack.c.l.b16 %v245
      %v637 = vunpack.c.l.b16 %v246
      %v638 = vunpack.c.l.b16 %v247
      %v639 = vunpack.c.l.b16 %v248
      %v640 = vunpack.c.l.b16 %v249
      %v641 = vunpack.c.l.b16 %v250
      %v642 = vunpack.c.l.b16 %v251
      %v643 = vunpack.c.l.b16 %v252
      %v644 = vunpack.c.l.b16 %v253
      %v645 = vunpack.c.l.b16 %v254
      %v646 = vunpack.c.l.b16 %v255
      %v647 = vunpack.c.l.b16 %v256
      %v648 = vunpack.c.l.b16 %v257
      %v649 = vunpack.c.l.b16 %v258
      %v650 = vunpack.c.l.b16 %v259
      %v651 = vunpack.c.l.b16 %v260
      %v652 = vunpack.c.l.b16 %v261
      %v653 = vunpack.c.l.b16 %v262
      %v654 = vunpack.c.l.b16 %v263
      %v655 = vunpack.c.l.b16 %v264
      %v656 = vunpack.c.l.b16 %v265
      %v657 = vunpack.c.l.b16 %v266
      %v658 = vunpack.c.l.b16 %v267
      %v659 = vunpack.c.l.b16 %v268
      %v660 = vunpack.c.l.b16 %v269
      %v661 = vunpack.c.l.b16 %v270
      %v662 = vunpack.c.l.b16 %v271
      %v663 = vunpack.c.l.b16 %v272
      %v664 = vunpack.c.l.b16 %v273
      %v665 = vpack.c.b16 %v634, %v633
      %v666 = vpack.c.b16 %v636, %v635
      %v667 = vpack.c.b16 %v638, %v637
      %v668 = vpack.c.b16 %v640, %v639
      %v669 = vpack.c.b16 %v642, %v641
      %v670 = vpack.c.b16 %v644, %v643
      %v671 = vpack.c.b16 %v646, %v645
      %v672 = vpack.c.b16 %v648, %v647
      %v673 = vpack.c.b16 %v650, %v649
      %v674 = vpack.c.b16 %v652, %v651
      %v675 = vpack.c.b16 %v654, %v653
      %v676 = vpack.c.b16 %v656, %v655
      %v677 = vpack.c.b16 %v658, %v657
      %v678 = vpack.c.b16 %v660, %v659
      %v679 = vpack.c.b16 %v662, %v661
      %v680 = vpack.c.b16 %v664, %v663
      %697 = vmatprep.subr.bf16.mxu0 0
      %698 = vmatpush1.bf16.msra.mxu0 %v665
      %699 = vmatprep.subr.bf16.mxu0 0
      %700 = vmatpush1.bf16.msra.mxu0 %v666
      %701 = vmatprep.subr.bf16.mxu0 0
      %702 = vmatpush1.bf16.msra.mxu0 %v667
      %703 = vmatprep.subr.bf16.mxu0 0
      %704 = vmatpush1.bf16.msra.mxu0 %v668
      %705 = vmatprep.subr.bf16.mxu0 0
      %706 = vmatpush1.bf16.msra.mxu0 %v669
      %707 = vmatprep.subr.bf16.mxu0 0
      %708 = vmatpush1.bf16.msra.mxu0 %v670
      %709 = vmatprep.subr.bf16.mxu0 0
      %710 = vmatpush1.bf16.msra.mxu0 %v671
      %711 = vmatprep.subr.bf16.mxu0 0
      %712 = vmatpush1.bf16.msra.mxu0 %v672
      %713 = vmatprep.subr.bf16.mxu0 0
      %714 = vmatpush1.bf16.msra.mxu0 %v673
      %715 = vmatprep.subr.bf16.mxu0 0
      %716 = vmatpush1.bf16.msra.mxu0 %v674
      %717 = vmatprep.subr.bf16.mxu0 0
      %718 = vmatpush1.bf16.msra.mxu0 %v675
      %719 = vmatprep.subr.bf16.mxu0 0
      %720 = vmatpush1.bf16.msra.mxu0 %v676
      %721 = vmatprep.subr.bf16.mxu0 0
      %722 = vmatpush1.bf16.msra.mxu0 %v677
      %723 = vmatprep.subr.bf16.mxu0 0
      %724 = vmatpush1.bf16.msra.mxu0 %v678
      %725 = vmatprep.subr.bf16.mxu0 0
      %726 = vmatpush1.bf16.msra.mxu0 %v679
      %727 = vmatprep.subr.bf16.mxu0 0
      %728 = vmatpush1.bf16.msra.mxu0 %v680
      %729 = vmatprep.mubr.bf16.mxu0 %v474
      %730 = vmatmul.mubr.bf16.gmra.mrb[0].mxu0 %v473
      %v731 = vpop.f32.mrb[0].mxu0
      %v732 = vadd.f32 %v279, %v731
      %v733 = vpop.f32.mrb[0].mxu0
      %v734 = vpop.f32.mrb[0].mxu0
      %v735 = vadd.f32 %v279, %v734
      %v736 = vpop.f32.mrb[0].mxu0
      %737 = vmatprep.mubr.bf16.mxu0 %v476
      %738 = vmatmul.mubr.bf16.gmra.mrb[0].mxu0 %v475
      %v739 = vpop.f32.mrb[0].mxu0
      %v740 = vadd.f32 %v279, %v739
      %v741 = vpop.f32.mrb[0].mxu0
      %v742 = vpop.f32.mrb[0].mxu0
      %v743 = vadd.f32 %v279, %v742
      %v744 = vpop.f32.mrb[0].mxu0
      %745 = vmatprep.mubr.bf16.mxu0 %v478
      %746 = vmatmul.mubr.bf16.gmra.mrb[0].mxu0 %v477
      %v747 = vpop.f32.mrb[0].mxu0
      %v748 = vadd.f32 %v279, %v747
      %v749 = vpop.f32.mrb[0].mxu0
      %v750 = vpop.f32.mrb[0].mxu0
      %v751 = vadd.f32 %v279, %v750
      %v752 = vpop.f32.mrb[0].mxu0
      %753 = vmatprep.mubr.bf16.mxu0 %v480
      %754 = vmatmul.mubr.bf16.gmra.mrb[0].mxu0 %v479
      %v755 = vpop.f32.mrb[0].mxu0
      %v756 = vadd.f32 %v279, %v755
      %v757 = vpop.f32.mrb[0].mxu0
      %v758 = vpop.f32.mrb[0].mxu0
      %v759 = vadd.f32 %v279, %v758
      %v760 = vpop.f32.mrb[0].mxu0
      %761 = vmatprep.mubr.bf16.mxu0 %v482
      %762 = vmatmul.mubr.bf16.gmra.mrb[0].mxu0 %v481
      %v763 = vpop.f32.mrb[0].mxu0
      %v764 = vadd.f32 %v279, %v763
      %v765 = vpop.f32.mrb[0].mxu0
      %v766 = vpop.f32.mrb[0].mxu0
      %v767 = vadd.f32 %v279, %v766
      %v768 = vpop.f32.mrb[0].mxu0
      %769 = vmatprep.mubr.bf16.mxu0 %v484
      %770 = vmatmul.mubr.bf16.gmra.mrb[0].mxu0 %v483
      %v771 = vpop.f32.mrb[0].mxu0
      %v772 = vadd.f32 %v279, %v771
      %v773 = vpop.f32.mrb[0].mxu0
      %v774 = vpop.f32.mrb[0].mxu0
      %v775 = vadd.f32 %v279, %v774
      %v776 = vpop.f32.mrb[0].mxu0
      %777 = vmatprep.mubr.bf16.mxu0 %v486
      %778 = vmatmul.mubr.bf16.gmra.mrb[0].mxu0 %v485
      %v779 = vpop.f32.mrb[0].mxu0
      %v780 = vadd.f32 %v279, %v779
      %v781 = vpop.f32.mrb[0].mxu0
      %v782 = vpop.f32.mrb[0].mxu0
      %v783 = vadd.f32 %v279, %v782
      %v784 = vpop.f32.mrb[0].mxu0
      %785 = vmatprep.mubr.bf16.mxu0 %v488
      %786 = vmatmul.mubr.bf16.gmra.mrb[0].mxu0 %v487
      %v787 = vpop.f32.mrb[0].mxu0
      %v788 = vadd.f32 %v279, %v787
      %v789 = vpop.f32.mrb[0].mxu0
      %v790 = vpop.f32.mrb[0].mxu0
      %v791 = vadd.f32 %v279, %v790
      %v792 = vpop.f32.mrb[0].mxu0
      %793 = vmatprep.mubr.bf16.mxu0 %v490
      %794 = vmatmul.mubr.bf16.gmra.mrb[0].mxu0 %v489
      %v795 = vpop.f32.mrb[0].mxu0
      %v796 = vadd.f32 %v279, %v795
      %v797 = vpop.f32.mrb[0].mxu0
      %v798 = vpop.f32.mrb[0].mxu0
      %v799 = vadd.f32 %v279, %v798
      %v800 = vpop.f32.mrb[0].mxu0
      %801 = vmatprep.mubr.bf16.mxu0 %v492
      %802 = vmatmul.mubr.bf16.gmra.mrb[0].mxu0 %v491
      %v803 = vpop.f32.mrb[0].mxu0
      %v804 = vadd.f32 %v279, %v803
      %v805 = vpop.f32.mrb[0].mxu0
      %v806 = vpop.f32.mrb[0].mxu0
      %v807 = vadd.f32 %v279, %v806
      %v808 = vpop.f32.mrb[0].mxu0
      %809 = vmatprep.mubr.bf16.mxu0 %v494
      %810 = vmatmul.mubr.bf16.gmra.mrb[0].mxu0 %v493
      %v811 = vpop.f32.mrb[0].mxu0
      %v812 = vadd.f32 %v279, %v811
      %v813 = vpop.f32.mrb[0].mxu0
      %v814 = vpop.f32.mrb[0].mxu0
      %v815 = vadd.f32 %v279, %v814
      %v816 = vpop.f32.mrb[0].mxu0
      %817 = vmatprep.mubr.bf16.mxu0 %v496
      %818 = vmatmul.mubr.bf16.gmra.mrb[0].mxu0 %v495
      %v819 = vpop.f32.mrb[0].mxu0
      %v820 = vadd.f32 %v279, %v819
      %v821 = vpop.f32.mrb[0].mxu0
      %v822 = vpop.f32.mrb[0].mxu0
      %v823 = vadd.f32 %v279, %v822
      %v824 = vpop.f32.mrb[0].mxu0
      %825 = vmatprep.mubr.bf16.mxu0 %v498
      %826 = vmatmul.mubr.bf16.gmra.mrb[0].mxu0 %v497
      %v827 = vpop.f32.mrb[0].mxu0
      %v828 = vadd.f32 %v279, %v827
      %v829 = vpop.f32.mrb[0].mxu0
      %v830 = vpop.f32.mrb[0].mxu0
      %v831 = vadd.f32 %v279, %v830
      %v832 = vpop.f32.mrb[0].mxu0
      %833 = vmatprep.mubr.bf16.mxu0 %v500
      %834 = vmatmul.mubr.bf16.gmra.mrb[0].mxu0 %v499
      %v835 = vpop.f32.mrb[0].mxu0
      %v836 = vadd.f32 %v279, %v835
      %v837 = vpop.f32.mrb[0].mxu0
      %v838 = vpop.f32.mrb[0].mxu0
      %v839 = vadd.f32 %v279, %v838
      %v840 = vpop.f32.mrb[0].mxu0
      %841 = vmatprep.mubr.bf16.mxu0 %v502
      %842 = vmatmul.mubr.bf16.gmra.mrb[0].mxu0 %v501
      %v843 = vpop.f32.mrb[0].mxu0
      %v844 = vadd.f32 %v279, %v843
      %v845 = vpop.f32.mrb[0].mxu0
      %v846 = vpop.f32.mrb[0].mxu0
      %v847 = vadd.f32 %v279, %v846
      %v848 = vpop.f32.mrb[0].mxu0
      %849 = vmatprep.mubr.bf16.mxu0 %v504
      %850 = vmatmul.mubr.bf16.gmra.mrb[0].mxu0 %v503
      %v851 = vpop.f32.mrb[0].mxu0
      %v852 = vadd.f32 %v279, %v851
      %v853 = vpop.f32.mrb[0].mxu0
      %v854 = vpop.f32.mrb[0].mxu0
      %v855 = vadd.f32 %v279, %v854
      %v856 = vpop.f32.mrb[0].mxu0
      %857 = vmatprep.mubr.bf16.mxu0 %v506
      %858 = vmatmul.mubr.bf16.gmra.mrb[0].mxu0 %v505
      %v859 = vpop.f32.mrb[0].mxu0
      %v860 = vadd.f32 %v279, %v859
      %v861 = vpop.f32.mrb[0].mxu0
      %v862 = vpop.f32.mrb[0].mxu0
      %v863 = vadd.f32 %v279, %v862
      %v864 = vpop.f32.mrb[0].mxu0
      %865 = vmatprep.mubr.bf16.mxu0 %v508
      %866 = vmatmul.mubr.bf16.gmra.mrb[0].mxu0 %v507
      %v867 = vpop.f32.mrb[0].mxu0
      %v868 = vadd.f32 %v279, %v867
      %v869 = vpop.f32.mrb[0].mxu0
      %v870 = vpop.f32.mrb[0].mxu0
      %v871 = vadd.f32 %v279, %v870
      %v872 = vpop.f32.mrb[0].mxu0
      %873 = vmatprep.mubr.bf16.mxu0 %v510
      %874 = vmatmul.mubr.bf16.gmra.mrb[0].mxu0 %v509
      %v875 = vpop.f32.mrb[0].mxu0
      %v876 = vadd.f32 %v279, %v875
      %v877 = vpop.f32.mrb[0].mxu0
      %v878 = vpop.f32.mrb[0].mxu0
      %v879 = vadd.f32 %v279, %v878
      %v880 = vpop.f32.mrb[0].mxu0
      %881 = vmatprep.mubr.bf16.mxu0 %v512
      %882 = vmatmul.mubr.bf16.gmra.mrb[0].mxu0 %v511
      %v883 = vpop.f32.mrb[0].mxu0
      %v884 = vadd.f32 %v279, %v883
      %v885 = vpop.f32.mrb[0].mxu0
      %v886 = vpop.f32.mrb[0].mxu0
      %v887 = vadd.f32 %v279, %v886
      %v888 = vpop.f32.mrb[0].mxu0
      %889 = vmatprep.mubr.bf16.mxu0 %v514
      %890 = vmatmul.mubr.bf16.gmra.mrb[0].mxu0 %v513
      %v891 = vpop.f32.mrb[0].mxu0
      %v892 = vadd.f32 %v279, %v891
      %v893 = vpop.f32.mrb[0].mxu0
      %v894 = vpop.f32.mrb[0].mxu0
      %v895 = vadd.f32 %v279, %v894
      %v896 = vpop.f32.mrb[0].mxu0
      %897 = vmatprep.mubr.bf16.mxu0 %v516
      %898 = vmatmul.mubr.bf16.gmra.mrb[0].mxu0 %v515
      %v899 = vpop.f32.mrb[0].mxu0
      %v900 = vadd.f32 %v279, %v899
      %v901 = vpop.f32.mrb[0].mxu0
      %v902 = vpop.f32.mrb[0].mxu0
      %v903 = vadd.f32 %v279, %v902
      %v904 = vpop.f32.mrb[0].mxu0
      %905 = vmatprep.mubr.bf16.mxu0 %v518
      %906 = vmatmul.mubr.bf16.gmra.mrb[0].mxu0 %v517
      %v907 = vpop.f32.mrb[0].mxu0
      %v908 = vadd.f32 %v279, %v907
      %v909 = vpop.f32.mrb[0].mxu0
      %v910 = vpop.f32.mrb[0].mxu0
      %v911 = vadd.f32 %v279, %v910
      %v912 = vpop.f32.mrb[0].mxu0
      %913 = vmatprep.mubr.bf16.mxu0 %v520
      %914 = vmatmul.mubr.bf16.gmra.mrb[0].mxu0 %v519
      %v915 = vpop.f32.mrb[0].mxu0
      %v916 = vadd.f32 %v279, %v915
      %v917 = vpop.f32.mrb[0].mxu0
      %v918 = vpop.f32.mrb[0].mxu0
      %v919 = vadd.f32 %v279, %v918
      %v920 = vpop.f32.mrb[0].mxu0
      %921 = vmatprep.mubr.bf16.mxu0 %v522
      %922 = vmatmul.mubr.bf16.gmra.mrb[0].mxu0 %v521
      %v923 = vpop.f32.mrb[0].mxu0
      %v924 = vadd.f32 %v279, %v923
      %v925 = vpop.f32.mrb[0].mxu0
      %v926 = vpop.f32.mrb[0].mxu0
      %v927 = vadd.f32 %v279, %v926
      %v928 = vpop.f32.mrb[0].mxu0
      %929 = vmatprep.mubr.bf16.mxu0 %v524
      %930 = vmatmul.mubr.bf16.gmra.mrb[0].mxu0 %v523
      %v931 = vpop.f32.mrb[0].mxu0
      %v932 = vadd.f32 %v279, %v931
      %v933 = vpop.f32.mrb[0].mxu0
      %v934 = vpop.f32.mrb[0].mxu0
      %v935 = vadd.f32 %v279, %v934
      %v936 = vpop.f32.mrb[0].mxu0
      %937 = vmatprep.mubr.bf16.mxu0 %v526
      %938 = vmatmul.mubr.bf16.gmra.mrb[0].mxu0 %v525
      %v939 = vpop.f32.mrb[0].mxu0
      %v940 = vadd.f32 %v279, %v939
      %v941 = vpop.f32.mrb[0].mxu0
      %v942 = vpop.f32.mrb[0].mxu0
      %v943 = vadd.f32 %v279, %v942
      %v944 = vpop.f32.mrb[0].mxu0
      %945 = vmatprep.mubr.bf16.mxu0 %v528
      %946 = vmatmul.mubr.bf16.gmra.mrb[0].mxu0 %v527
      %v947 = vpop.f32.mrb[0].mxu0
      %v948 = vadd.f32 %v279, %v947
      %v949 = vpop.f32.mrb[0].mxu0
      %v950 = vpop.f32.mrb[0].mxu0
      %v951 = vadd.f32 %v279, %v950
      %v952 = vpop.f32.mrb[0].mxu0
      %953 = vmatprep.mubr.bf16.mxu0 %v530
      %954 = vmatmul.mubr.bf16.gmra.mrb[0].mxu0 %v529
      %v955 = vpop.f32.mrb[0].mxu0
      %v956 = vadd.f32 %v279, %v955
      %v957 = vpop.f32.mrb[0].mxu0
      %v958 = vpop.f32.mrb[0].mxu0
      %v959 = vadd.f32 %v279, %v958
      %v960 = vpop.f32.mrb[0].mxu0
      %961 = vmatprep.mubr.bf16.mxu0 %v532
      %962 = vmatmul.mubr.bf16.gmra.mrb[0].mxu0 %v531
      %v963 = vpop.f32.mrb[0].mxu0
      %v964 = vadd.f32 %v279, %v963
      %v965 = vpop.f32.mrb[0].mxu0
      %v966 = vpop.f32.mrb[0].mxu0
      %v967 = vadd.f32 %v279, %v966
      %v968 = vpop.f32.mrb[0].mxu0
      %969 = vmatprep.mubr.bf16.mxu0 %v534
      %970 = vmatmul.mubr.bf16.gmra.mrb[0].mxu0 %v533
      %v971 = vpop.f32.mrb[0].mxu0
      %v972 = vadd.f32 %v279, %v971
      %v973 = vpop.f32.mrb[0].mxu0
      %v974 = vpop.f32.mrb[0].mxu0
      %v975 = vadd.f32 %v279, %v974
      %v976 = vpop.f32.mrb[0].mxu0
      %977 = vmatprep.mubr.bf16.mxu0 %v536
      %978 = vmatmul.mubr.bf16.gmra.mrb[0].mxu0 %v535
      %v979 = vpop.f32.mrb[0].mxu0
      %v980 = vadd.f32 %v279, %v979
      %v981 = vpop.f32.mrb[0].mxu0
      %v982 = vpop.f32.mrb[0].mxu0
      %v983 = vadd.f32 %v279, %v982
      %v984 = vpop.f32.mrb[0].mxu0
      %985 = vdwg.mxu0
      %v986 = vmax.f32 %v732, 0.0
      %v987 = vmax.f32 %v735, 0.0
      %v988 = vmax.f32 %v740, 0.0
      %v989 = vmax.f32 %v743, 0.0
      %v990 = vmax.f32 %v748, 0.0
      %v991 = vmax.f32 %v751, 0.0
      %v992 = vmax.f32 %v756, 0.0
      %v993 = vmax.f32 %v759, 0.0
      %v994 = vmax.f32 %v764, 0.0
      %v995 = vmax.f32 %v767, 0.0
      %v996 = vmax.f32 %v772, 0.0
      %v997 = vmax.f32 %v775, 0.0
      %v998 = vmax.f32 %v780, 0.0
      %v999 = vmax.f32 %v783, 0.0
      %v1000 = vmax.f32 %v788, 0.0
      %v1001 = vmax.f32 %v791, 0.0
      %v1002 = vmax.f32 %v796, 0.0
      %v1003 = vmax.f32 %v799, 0.0
      %v1004 = vmax.f32 %v804, 0.0
      %v1005 = vmax.f32 %v807, 0.0
      %v1006 = vmax.f32 %v812, 0.0
      %v1007 = vmax.f32 %v815, 0.0
      %v1008 = vmax.f32 %v820, 0.0
      %v1009 = vmax.f32 %v823, 0.0
      %v1010 = vmax.f32 %v828, 0.0
      %v1011 = vmax.f32 %v831, 0.0
      %v1012 = vmax.f32 %v836, 0.0
      %v1013 = vmax.f32 %v839, 0.0
      %v1014 = vmax.f32 %v844, 0.0
      %v1015 = vmax.f32 %v847, 0.0
      %v1016 = vmax.f32 %v852, 0.0
      %v1017 = vmax.f32 %v855, 0.0
      %v1018 = vmax.f32 %v860, 0.0
      %v1019 = vmax.f32 %v863, 0.0
      %v1020 = vmax.f32 %v868, 0.0
      %v1021 = vmax.f32 %v871, 0.0
      %v1022 = vmax.f32 %v876, 0.0
      %v1023 = vmax.f32 %v879, 0.0
      %v1024 = vmax.f32 %v884, 0.0
      %v1025 = vmax.f32 %v887, 0.0
      %v1026 = vmax.f32 %v892, 0.0
      %v1027 = vmax.f32 %v895, 0.0
      %v1028 = vmax.f32 %v900, 0.0
      %v1029 = vmax.f32 %v903, 0.0
      %v1030 = vmax.f32 %v908, 0.0
      %v1031 = vmax.f32 %v911, 0.0
      %v1032 = vmax.f32 %v916, 0.0
      %v1033 = vmax.f32 %v919, 0.0
      %v1034 = vmax.f32 %v924, 0.0
      %v1035 = vmax.f32 %v927, 0.0
      %v1036 = vmax.f32 %v932, 0.0
      %v1037 = vmax.f32 %v935, 0.0
      %v1038 = vmax.f32 %v940, 0.0
      %v1039 = vmax.f32 %v943, 0.0
      %v1040 = vmax.f32 %v948, 0.0
      %v1041 = vmax.f32 %v951, 0.0
      %v1042 = vmax.f32 %v956, 0.0
      %v1043 = vmax.f32 %v959, 0.0
      %v1044 = vmax.f32 %v964, 0.0
      %v1045 = vmax.f32 %v967, 0.0
      %v1046 = vmax.f32 %v972, 0.0
      %v1047 = vmax.f32 %v975, 0.0
      %v1048 = vmax.f32 %v980, 0.0
      %v1049 = vmax.f32 %v983, 0.0
      %v1050 = vpack.c.bf16 %v987, %v986
      %v1051 = vpack.c.bf16 %v989, %v988
      %v1052 = vpack.c.bf16 %v991, %v990
      %v1053 = vpack.c.bf16 %v993, %v992
      %v1054 = vpack.c.bf16 %v995, %v994
      %v1055 = vpack.c.bf16 %v997, %v996
      %v1056 = vpack.c.bf16 %v999, %v998
      %v1057 = vpack.c.bf16 %v1001, %v1000
      %v1058 = vpack.c.bf16 %v1003, %v1002
      %v1059 = vpack.c.bf16 %v1005, %v1004
      %v1060 = vpack.c.bf16 %v1007, %v1006
      %v1061 = vpack.c.bf16 %v1009, %v1008
      %v1062 = vpack.c.bf16 %v1011, %v1010
      %v1063 = vpack.c.bf16 %v1013, %v1012
      %v1064 = vpack.c.bf16 %v1015, %v1014
      %v1065 = vpack.c.bf16 %v1017, %v1016
      %v1066 = vpack.c.bf16 %v1019, %v1018
      %v1067 = vpack.c.bf16 %v1021, %v1020
      %v1068 = vpack.c.bf16 %v1023, %v1022
      %v1069 = vpack.c.bf16 %v1025, %v1024
      %v1070 = vpack.c.bf16 %v1027, %v1026
      %v1071 = vpack.c.bf16 %v1029, %v1028
      %v1072 = vpack.c.bf16 %v1031, %v1030
      %v1073 = vpack.c.bf16 %v1033, %v1032
      %v1074 = vpack.c.bf16 %v1035, %v1034
      %v1075 = vpack.c.bf16 %v1037, %v1036
      %v1076 = vpack.c.bf16 %v1039, %v1038
      %v1077 = vpack.c.bf16 %v1041, %v1040
      %v1078 = vpack.c.bf16 %v1043, %v1042
      %v1079 = vpack.c.bf16 %v1045, %v1044
      %v1080 = vpack.c.bf16 %v1047, %v1046
      %v1081 = vpack.c.bf16 %v1049, %v1048
      %v1114 = vunpack.c.l.b16 %v1050
      %v1115 = vunpack.c.h.b16 %v1050
      %v1116 = vunpack.c.l.b16 %v1051
      %v1117 = vunpack.c.h.b16 %v1051
      %v1118 = vunpack.c.l.b16 %v1052
      %v1119 = vunpack.c.h.b16 %v1052
      %v1120 = vunpack.c.l.b16 %v1053
      %v1121 = vunpack.c.h.b16 %v1053
      %v1122 = vunpack.c.l.b16 %v1054
      %v1123 = vunpack.c.h.b16 %v1054
      %v1124 = vunpack.c.l.b16 %v1055
      %v1125 = vunpack.c.h.b16 %v1055
      %v1126 = vunpack.c.l.b16 %v1056
      %v1127 = vunpack.c.h.b16 %v1056
      %v1128 = vunpack.c.l.b16 %v1057
      %v1129 = vunpack.c.h.b16 %v1057
      %v1130 = vunpack.c.l.b16 %v1058
      %v1131 = vunpack.c.h.b16 %v1058
      %v1132 = vunpack.c.l.b16 %v1059
      %v1133 = vunpack.c.h.b16 %v1059
      %v1134 = vunpack.c.l.b16 %v1060
      %v1135 = vunpack.c.h.b16 %v1060
      %v1136 = vunpack.c.l.b16 %v1061
      %v1137 = vunpack.c.h.b16 %v1061
      %v1138 = vunpack.c.l.b16 %v1062
      %v1139 = vunpack.c.h.b16 %v1062
      %v1140 = vunpack.c.l.b16 %v1063
      %v1141 = vunpack.c.h.b16 %v1063
      %v1142 = vunpack.c.l.b16 %v1064
      %v1143 = vunpack.c.h.b16 %v1064
      %v1144 = vunpack.c.l.b16 %v1065
      %v1145 = vunpack.c.h.b16 %v1065
      %v1146 = vunpack.c.l.b16 %v1066
      %v1147 = vunpack.c.h.b16 %v1066
      %v1148 = vunpack.c.l.b16 %v1067
      %v1149 = vunpack.c.h.b16 %v1067
      %v1150 = vunpack.c.l.b16 %v1068
      %v1151 = vunpack.c.h.b16 %v1068
      %v1152 = vunpack.c.l.b16 %v1069
      %v1153 = vunpack.c.h.b16 %v1069
      %v1154 = vunpack.c.l.b16 %v1070
      %v1155 = vunpack.c.h.b16 %v1070
      %v1156 = vunpack.c.l.b16 %v1071
      %v1157 = vunpack.c.h.b16 %v1071
      %v1158 = vunpack.c.l.b16 %v1072
      %v1159 = vunpack.c.h.b16 %v1072
      %v1160 = vunpack.c.l.b16 %v1073
      %v1161 = vunpack.c.h.b16 %v1073
      %v1162 = vunpack.c.l.b16 %v1074
      %v1163 = vunpack.c.h.b16 %v1074
      %v1164 = vunpack.c.l.b16 %v1075
      %v1165 = vunpack.c.h.b16 %v1075
      %v1166 = vunpack.c.l.b16 %v1076
      %v1167 = vunpack.c.h.b16 %v1076
      %v1168 = vunpack.c.l.b16 %v1077
      %v1169 = vunpack.c.h.b16 %v1077
      %v1170 = vunpack.c.l.b16 %v1078
      %v1171 = vunpack.c.h.b16 %v1078
      %v1172 = vunpack.c.l.b16 %v1079
      %v1173 = vunpack.c.h.b16 %v1079
      %v1174 = vunpack.c.l.b16 %v1080
      %v1175 = vunpack.c.h.b16 %v1080
      %v1176 = vunpack.c.l.b16 %v1081
      %v1177 = vunpack.c.h.b16 %v1081
      %v1178 = vpack.c.b16 %v1114, %v1114
      %v1179 = vpack.c.b16 %v1115, %v1115
      %v1180 = vpack.c.b16 %v1116, %v1116
      %v1181 = vpack.c.b16 %v1117, %v1117
      %v1182 = vpack.c.b16 %v1118, %v1118
      %v1183 = vpack.c.b16 %v1119, %v1119
      %v1184 = vpack.c.b16 %v1120, %v1120
      %v1185 = vpack.c.b16 %v1121, %v1121
      %v1186 = vpack.c.b16 %v1122, %v1122
      %v1187 = vpack.c.b16 %v1123, %v1123
      %v1188 = vpack.c.b16 %v1124, %v1124
      %v1189 = vpack.c.b16 %v1125, %v1125
      %v1190 = vpack.c.b16 %v1126, %v1126
      %v1191 = vpack.c.b16 %v1127, %v1127
      %v1192 = vpack.c.b16 %v1128, %v1128
      %v1193 = vpack.c.b16 %v1129, %v1129
      %v1194 = vpack.c.b16 %v1130, %v1130
      %v1195 = vpack.c.b16 %v1131, %v1131
      %v1196 = vpack.c.b16 %v1132, %v1132
      %v1197 = vpack.c.b16 %v1133, %v1133
      %v1198 = vpack.c.b16 %v1134, %v1134
      %v1199 = vpack.c.b16 %v1135, %v1135
      %v1200 = vpack.c.b16 %v1136, %v1136
      %v1201 = vpack.c.b16 %v1137, %v1137
      %v1202 = vpack.c.b16 %v1138, %v1138
      %v1203 = vpack.c.b16 %v1139, %v1139
      %v1204 = vpack.c.b16 %v1140, %v1140
      %v1205 = vpack.c.b16 %v1141, %v1141
      %v1206 = vpack.c.b16 %v1142, %v1142
      %v1207 = vpack.c.b16 %v1143, %v1143
      %v1208 = vpack.c.b16 %v1144, %v1144
      %v1209 = vpack.c.b16 %v1145, %v1145
      %v1210 = vpack.c.b16 %v1146, %v1146
      %v1211 = vpack.c.b16 %v1147, %v1147
      %v1212 = vpack.c.b16 %v1148, %v1148
      %v1213 = vpack.c.b16 %v1149, %v1149
      %v1214 = vpack.c.b16 %v1150, %v1150
      %v1215 = vpack.c.b16 %v1151, %v1151
      %v1216 = vpack.c.b16 %v1152, %v1152
      %v1217 = vpack.c.b16 %v1153, %v1153
      %v1218 = vpack.c.b16 %v1154, %v1154
      %v1219 = vpack.c.b16 %v1155, %v1155
      %v1220 = vpack.c.b16 %v1156, %v1156
      %v1221 = vpack.c.b16 %v1157, %v1157
      %v1222 = vpack.c.b16 %v1158, %v1158
      %v1223 = vpack.c.b16 %v1159, %v1159
      %v1224 = vpack.c.b16 %v1160, %v1160
      %v1225 = vpack.c.b16 %v1161, %v1161
      %v1226 = vpack.c.b16 %v1162, %v1162
      %v1227 = vpack.c.b16 %v1163, %v1163
      %v1228 = vpack.c.b16 %v1164, %v1164
      %v1229 = vpack.c.b16 %v1165, %v1165
      %v1230 = vpack.c.b16 %v1166, %v1166
      %v1231 = vpack.c.b16 %v1167, %v1167
      %v1232 = vpack.c.b16 %v1168, %v1168
      %v1233 = vpack.c.b16 %v1169, %v1169
      %v1234 = vpack.c.b16 %v1170, %v1170
      %v1235 = vpack.c.b16 %v1171, %v1171
      %v1236 = vpack.c.b16 %v1172, %v1172
      %v1237 = vpack.c.b16 %v1173, %v1173
      %v1238 = vpack.c.b16 %v1174, %v1174
      %v1239 = vpack.c.b16 %v1175, %v1175
      %v1240 = vpack.c.b16 %v1176, %v1176
      %v1241 = vpack.c.b16 %v1177, %v1177
      %vm1306 = vcmask 257024
      %1307 = vst.msk [vmem:[%s175] sm:$0xf] %vm1306, %v1178
      %1308 = vst.msk [vmem:[%s175 + $0x4] sm:$0xf] %vm1306, %v1179
      %1309 = vst.msk [vmem:[%s175 + $0x8] sm:$0xf] %vm1306, %v1180
      %1310 = vst.msk [vmem:[%s175 + $0xc] sm:$0xf] %vm1306, %v1181
      %1311 = vst.msk [vmem:[%s175 + $0x10] sm:$0xf] %vm1306, %v1182
      %1312 = vst.msk [vmem:[%s175 + $0x14] sm:$0xf] %vm1306, %v1183
      %1313 = vst.msk [vmem:[%s175 + $0x18] sm:$0xf] %vm1306, %v1184
      %1314 = vst.msk [vmem:[%s175 + $0x1c] sm:$0xf] %vm1306, %v1185
      %1315 = vst.msk [vmem:[%s175 + $0x20] sm:$0xf] %vm1306, %v1186
      %1316 = vst.msk [vmem:[%s175 + $0x24] sm:$0xf] %vm1306, %v1187
      %1317 = vst.msk [vmem:[%s175 + $0x28] sm:$0xf] %vm1306, %v1188
      %1318 = vst.msk [vmem:[%s175 + $0x2c] sm:$0xf] %vm1306, %v1189
      %1319 = vst.msk [vmem:[%s175 + $0x30] sm:$0xf] %vm1306, %v1190
      %1320 = vst.msk [vmem:[%s175 + $0x34] sm:$0xf] %vm1306, %v1191
      %1321 = vst.msk [vmem:[%s175 + $0x38] sm:$0xf] %vm1306, %v1192
      %1322 = vst.msk [vmem:[%s175 + $0x3c] sm:$0xf] %vm1306, %v1193
      %1323 = vst.msk [vmem:[%s175 + $0x40] sm:$0xf] %vm1306, %v1194
      %1324 = vst.msk [vmem:[%s175 + $0x44] sm:$0xf] %vm1306, %v1195
      %1325 = vst.msk [vmem:[%s175 + $0x48] sm:$0xf] %vm1306, %v1196
      %1326 = vst.msk [vmem:[%s175 + $0x4c] sm:$0xf] %vm1306, %v1197
      %1327 = vst.msk [vmem:[%s175 + $0x50] sm:$0xf] %vm1306, %v1198
      %1328 = vst.msk [vmem:[%s175 + $0x54] sm:$0xf] %vm1306, %v1199
      %1329 = vst.msk [vmem:[%s175 + $0x58] sm:$0xf] %vm1306, %v1200
      %1330 = vst.msk [vmem:[%s175 + $0x5c] sm:$0xf] %vm1306, %v1201
      %1331 = vst.msk [vmem:[%s175 + $0x60] sm:$0xf] %vm1306, %v1202
      %1332 = vst.msk [vmem:[%s175 + $0x64] sm:$0xf] %vm1306, %v1203
      %1333 = vst.msk [vmem:[%s175 + $0x68] sm:$0xf] %vm1306, %v1204
      %1334 = vst.msk [vmem:[%s175 + $0x6c] sm:$0xf] %vm1306, %v1205
      %1335 = vst.msk [vmem:[%s175 + $0x70] sm:$0xf] %vm1306, %v1206
      %1336 = vst.msk [vmem:[%s175 + $0x74] sm:$0xf] %vm1306, %v1207
      %1337 = vst.msk [vmem:[%s175 + $0x78] sm:$0xf] %vm1306, %v1208
      %1338 = vst.msk [vmem:[%s175 + $0x7c] sm:$0xf] %vm1306, %v1209
      %1339 = vst.msk [vmem:[%s175 + $0x80] sm:$0xf] %vm1306, %v1210
      %1340 = vst.msk [vmem:[%s175 + $0x84] sm:$0xf] %vm1306, %v1211
      %1341 = vst.msk [vmem:[%s175 + $0x88] sm:$0xf] %vm1306, %v1212
      %1342 = vst.msk [vmem:[%s175 + $0x8c] sm:$0xf] %vm1306, %v1213
      %1343 = vst.msk [vmem:[%s175 + $0x90] sm:$0xf] %vm1306, %v1214
      %1344 = vst.msk [vmem:[%s175 + $0x94] sm:$0xf] %vm1306, %v1215
      %1345 = vst.msk [vmem:[%s175 + $0x98] sm:$0xf] %vm1306, %v1216
      %1346 = vst.msk [vmem:[%s175 + $0x9c] sm:$0xf] %vm1306, %v1217
      %1347 = vst.msk [vmem:[%s175 + $0xa0] sm:$0xf] %vm1306, %v1218
      %1348 = vst.msk [vmem:[%s175 + $0xa4] sm:$0xf] %vm1306, %v1219
      %1349 = vst.msk [vmem:[%s175 + $0xa8] sm:$0xf] %vm1306, %v1220
      %1350 = vst.msk [vmem:[%s175 + $0xac] sm:$0xf] %vm1306, %v1221
      %1351 = vst.msk [vmem:[%s175 + $0xb0] sm:$0xf] %vm1306, %v1222
      %1352 = vst.msk [vmem:[%s175 + $0xb4] sm:$0xf] %vm1306, %v1223
      %1353 = vst.msk [vmem:[%s175 + $0xb8] sm:$0xf] %vm1306, %v1224
      %1354 = vst.msk [vmem:[%s175 + $0xbc] sm:$0xf] %vm1306, %v1225
      %1355 = vst.msk [vmem:[%s175 + $0xc0] sm:$0xf] %vm1306, %v1226
      %1356 = vst.msk [vmem:[%s175 + $0xc4] sm:$0xf] %vm1306, %v1227
      %1357 = vst.msk [vmem:[%s175 + $0xc8] sm:$0xf] %vm1306, %v1228
      %1358 = vst.msk [vmem:[%s175 + $0xcc] sm:$0xf] %vm1306, %v1229
      %1359 = vst.msk [vmem:[%s175 + $0xd0] sm:$0xf] %vm1306, %v1230
      %1360 = vst.msk [vmem:[%s175 + $0xd4] sm:$0xf] %vm1306, %v1231
      %1361 = vst.msk [vmem:[%s175 + $0xd8] sm:$0xf] %vm1306, %v1232
      %1362 = vst.msk [vmem:[%s175 + $0xdc] sm:$0xf] %vm1306, %v1233
      %1363 = vst.msk [vmem:[%s175 + $0xe0] sm:$0xf] %vm1306, %v1234
      %1364 = vst.msk [vmem:[%s175 + $0xe4] sm:$0xf] %vm1306, %v1235
      %1365 = vst.msk [vmem:[%s175 + $0xe8] sm:$0xf] %vm1306, %v1236
      %1366 = vst.msk [vmem:[%s175 + $0xec] sm:$0xf] %vm1306, %v1237
      %1367 = vst.msk [vmem:[%s175 + $0xf0] sm:$0xf] %vm1306, %v1238
      %1368 = vst.msk [vmem:[%s175 + $0xf4] sm:$0xf] %vm1306, %v1239
      %1369 = vst.msk [vmem:[%s175 + $0xf8] sm:$0xf] %vm1306, %v1240
      %1370 = vst.msk [vmem:[%s175 + $0xfc] sm:$0xf] %vm1306, %v1241
      %s1371 = smul.u32 64, %s14
      %p1372 = scmp.lt.s32.totalorder %s1371, 319
      %s1373 = scalar_select %p1372, %s1371, 319
      %s1374 = smul.addr %s1373, 4
      %s1375 = scalar_lea.vmem %s3, %s1374
      // Predicated region
      $region33: #{nature_cnn_forward.7} parent=31 // pred_check
        %p1376 = pneg %p100
      $region34: #{nature_cnn_forward.7} parent=31 // pred_check_branch
        %1378 = sbr.rel (%p1376) target = $region36
      $region35: #{nature_cnn_forward.7} parent=31 // pred_region
        %s1379 = smul.u32 64, %s14
      $region36: #{nature_cnn_forward.7} parent=31 // pred_fallthru
        _
    $region32: #{nature_cnn_forward.7} parent=5 // pred_fallthru
      _
    %p1380 = scmp.le.s32.totalorder 2, %s9
    // Predicated region
    $region37: #{nature_cnn_forward.7} parent=5 // pred_check
      %p1381 = pneg %p1380
    $region38: #{nature_cnn_forward.7} parent=5 // pred_check_branch
      %1383 = sbr.rel (%p1381) target = $region40
    $region39: #{nature_cnn_forward.7} parent=5 // pred_region
      %s1384 = ssub.s32 %s9, 2
      // Predicated region
      $region41: #{nature_cnn_forward.7} parent=39 // pred_check
        %p1385 = pneg %p106
      $region42: #{nature_cnn_forward.7} parent=39 // pred_check_branch
        %1387 = sbr.rel (%p1385) target = $region44
      $region43: #{nature_cnn_forward.7} parent=39 // pred_region
        %s1388 = smul.u32 64, %s15
        %p1389 = scmp.lt.s32.totalorder %s1388, 319
        %s1390 = scalar_select %p1389, %s1388, 319
        %s1391 = smul.addr %s1390, 4
        %s1392 = scalar_lea.vmem %s3, %s1391
      $region44: #{nature_cnn_forward.7} parent=39 // pred_fallthru
        _
    $region40: #{nature_cnn_forward.7} parent=5 // pred_fallthru
      _
  $region6: #{nature_cnn_forward.7} parent=0 // loop_footer
    %s13 = sadd.s32 1, %s9
  $region7: #{nature_cnn_forward.7} parent=0 // loop_footer_branch
    %8 = sbr.rel target = $region3
  $region8: #{nature_cnn_forward.7} parent=0 // loop_exit
    _

// kernel: nature_cnn_forward.8
$region0: #{nature_cnn_forward.8}
  #allocation0 [shape = 'u32[]', space=smem, size = 0x4, offset = 0x4, fixed_abs, tag = 'smem constant byte address 0x4 - core index']
  #allocation1 [shape = 'u32[144,128]{1,0:T(1,128)}', space=vmem, size = 0x12000, scoped, tag = 'internal scratch']
  %s0 = inlined_call_operand.vmem [shape: bf16[360,512], index: 0, kind: input, shape index: {}]
  %s1 = inlined_call_operand.vmem [shape: bf16[512,64], index: 1, kind: input, shape index: {}]
  %s2 = inlined_call_operand.vmem [shape: f32[1,64], index: 2, kind: input, shape index: {}]
  %s3 = inlined_call_operand.vmem [shape: bf16[360,64], index: 3, kind: output, shape index: {}]
  %s4 = sld [smem:[#allocation0]]
  $region22: #{nature_cnn_forward.8} parent=0
    _
  %s6 = ssub.s32 1, %s4
  %s7 = scalar_select 0, %s6, %s4
  // Predicated region
  $region2: #{nature_cnn_forward.8} parent=0 // pred_check
    _
  $region3: #{nature_cnn_forward.8} parent=0 // pred_check_branch
    %9 = sbr.rel (0) target = $region5
  $region4: #{nature_cnn_forward.8} parent=0 // pred_region
    _
  $region5: #{nature_cnn_forward.8} parent=0 // pred_fallthru
    _
  // Predicated region
  $region6: #{nature_cnn_forward.8} parent=0 // pred_check
    _
  $region7: #{nature_cnn_forward.8} parent=0 // pred_check_branch
    %11 = sbr.rel (0) target = $region9
  $region8: #{nature_cnn_forward.8} parent=0 // pred_region
    _
  $region9: #{nature_cnn_forward.8} parent=0 // pred_fallthru
    _
  // Predicated region
  $region10: #{nature_cnn_forward.8} parent=0 // pred_check
    _
  $region11: #{nature_cnn_forward.8} parent=0 // pred_check_branch
    %13 = sbr.rel (0) target = $region13
  $region12: #{nature_cnn_forward.8} parent=0 // pred_region
    _
  $region13: #{nature_cnn_forward.8} parent=0 // pred_fallthru
    _
  %v15 = vld [vmem:[%s0] sm:$0xff]
  %v16 = vld [vmem:[%s0 + $0x8] sm:$0xff]
  %v17 = vld [vmem:[%s0 + $0x10] sm:$0xff]
  %v18 = vld [vmem:[%s0 + $0x18] sm:$0xff]
  %v19 = vld [vmem:[%s0 + $0x20] sm:$0xff]
  %v20 = vld [vmem:[%s0 + $0x28] sm:$0xff]
  %v21 = vld [vmem:[%s0 + $0x30] sm:$0xff]
  %v22 = vld [vmem:[%s0 + $0x38] sm:$0xff]
  %v23 = vld [vmem:[%s0 + $0x40] sm:$0xff]
  %v24 = vld [vmem:[%s0 + $0x48] sm:$0xff]
  %v25 = vld [vmem:[%s0 + $0x50] sm:$0xff]
  %v26 = vld [vmem:[%s0 + $0x58] sm:$0xff]
  %v27 = vld [vmem:[%s0 + $0x60] sm:$0xff]
  %v28 = vld [vmem:[%s0 + $0x68] sm:$0xff]
  %v29 = vld [vmem:[%s0 + $0x70] sm:$0xff]
  %v30 = vld [vmem:[%s0 + $0x78] sm:$0xff]
  %v31 = vld [vmem:[%s0 + $0x80] sm:$0xff]
  %v32 = vld [vmem:[%s0 + $0x88] sm:$0xff]
  %v33 = vld [vmem:[%s0 + $0x90] sm:$0xff]
  %v34 = vld [vmem:[%s0 + $0x98] sm:$0xff]
  %v35 = vld [vmem:[%s0 + $0xa0] sm:$0xff]
  %v36 = vld [vmem:[%s0 + $0xa8] sm:$0xff]
  %v37 = vld [vmem:[%s0 + $0xb0] sm:$0xff]
  %v38 = vld [vmem:[%s0 + $0xb8] sm:$0xff]
  %v39 = vld [vmem:[%s0 + $0xc0] sm:$0xff]
  %v40 = vld [vmem:[%s0 + $0xc8] sm:$0xff]
  %v41 = vld [vmem:[%s0 + $0xd0] sm:$0xff]
  %v42 = vld [vmem:[%s0 + $0xd8] sm:$0xff]
  %v43 = vld [vmem:[%s0 + $0xe0] sm:$0xff]
  %v44 = vld [vmem:[%s0 + $0xe8] sm:$0xff]
  %v45 = vld [vmem:[%s0 + $0xf0] sm:$0xff]
  %v46 = vld [vmem:[%s0 + $0xf8] sm:$0xff]
  %v47 = vld [vmem:[%s0 + $0x100] sm:$0xff]
  %v48 = vld [vmem:[%s0 + $0x108] sm:$0xff]
  %v49 = vld [vmem:[%s0 + $0x110] sm:$0xff]
  %v50 = vld [vmem:[%s0 + $0x118] sm:$0xff]
  %v51 = vld [vmem:[%s0 + $0x120] sm:$0xff]
  %v52 = vld [vmem:[%s0 + $0x128] sm:$0xff]
  %v53 = vld [vmem:[%s0 + $0x130] sm:$0xff]
  %v54 = vld [vmem:[%s0 + $0x138] sm:$0xff]
  %v55 = vld [vmem:[%s0 + $0x140] sm:$0xff]
  %v56 = vld [vmem:[%s0 + $0x148] sm:$0xff]
  %v57 = vld [vmem:[%s0 + $0x150] sm:$0xff]
  %v58 = vld [vmem:[%s0 + $0x158] sm:$0xff]
  %v59 = vld [vmem:[%s0 + $0x160] sm:$0xff]
  %v60 = vld [vmem:[%s0 + $0x168] sm:$0xff]
  %v61 = vld [vmem:[%s0 + $0x170] sm:$0xff]
  %v62 = vld [vmem:[%s0 + $0x178] sm:$0xff]
  %v63 = vld [vmem:[%s0 + $0x180] sm:$0xff]
  %v64 = vld [vmem:[%s0 + $0x188] sm:$0xff]
  %v65 = vld [vmem:[%s0 + $0x190] sm:$0xff]
  %v66 = vld [vmem:[%s0 + $0x198] sm:$0xff]
  %v67 = vld [vmem:[%s0 + $0x1a0] sm:$0xff]
  %v68 = vld [vmem:[%s0 + $0x1a8] sm:$0xff]
  %v69 = vld [vmem:[%s0 + $0x1b0] sm:$0xff]
  %v70 = vld [vmem:[%s0 + $0x1b8] sm:$0xff]
  %v71 = vld [vmem:[%s0 + $0x1c0] sm:$0xff]
  %v72 = vld [vmem:[%s0 + $0x1c8] sm:$0xff]
  %v73 = vld [vmem:[%s0 + $0x1d0] sm:$0xff]
  %v74 = vld [vmem:[%s0 + $0x1d8] sm:$0xff]
  %v75 = vld [vmem:[%s0 + $0x1e0] sm:$0xff]
  %v76 = vld [vmem:[%s0 + $0x1e8] sm:$0xff]
  %v77 = vld [vmem:[%s0 + $0x1f0] sm:$0xff]
  %v78 = vld [vmem:[%s0 + $0x1f8] sm:$0xff]
  %v79 = vld [vmem:[%s0 + $0x200] sm:$0xff]
  %v80 = vld [vmem:[%s0 + $0x208] sm:$0xff]
  %v81 = vld [vmem:[%s0 + $0x210] sm:$0xff]
  %v82 = vld [vmem:[%s0 + $0x218] sm:$0xff]
  %v83 = vld [vmem:[%s0 + $0x220] sm:$0xff]
  %v84 = vld [vmem:[%s0 + $0x228] sm:$0xff]
  %v85 = vld [vmem:[%s0 + $0x230] sm:$0xff]
  %v86 = vld [vmem:[%s0 + $0x238] sm:$0xff]
  %v87 = vld [vmem:[%s0 + $0x240] sm:$0xff]
  %v88 = vld [vmem:[%s0 + $0x248] sm:$0xff]
  %v89 = vld [vmem:[%s0 + $0x250] sm:$0xff]
  %v90 = vld [vmem:[%s0 + $0x258] sm:$0xff]
  %v91 = vld [vmem:[%s0 + $0x260] sm:$0xff]
  %v92 = vld [vmem:[%s0 + $0x268] sm:$0xff]
  %v93 = vld [vmem:[%s0 + $0x270] sm:$0xff]
  %v94 = vld [vmem:[%s0 + $0x278] sm:$0xff]
  %v95 = vld [vmem:[%s0 + $0x280] sm:$0xff]
  %v96 = vld [vmem:[%s0 + $0x288] sm:$0xff]
  %v97 = vld [vmem:[%s0 + $0x290] sm:$0xff]
  %v98 = vld [vmem:[%s0 + $0x298] sm:$0xff]
  %v99 = vld [vmem:[%s0 + $0x2a0] sm:$0xff]
  %v100 = vld [vmem:[%s0 + $0x2a8] sm:$0xff]
  %v101 = vld [vmem:[%s0 + $0x2b0] sm:$0xff]
  %v102 = vld [vmem:[%s0 + $0x2b8] sm:$0xff]
  %v103 = vld [vmem:[%s0 + $0x2c0] sm:$0xff]
  %v104 = vld [vmem:[%s0 + $0x2c8] sm:$0xff]
  %v105 = vld [vmem:[%s1] sm:$0xf]
  %v106 = vld [vmem:[%s1 + $0x4] sm:$0xf]
  %v107 = vld [vmem:[%s1 + $0x8] sm:$0xf]
  %v108 = vld [vmem:[%s1 + $0xc] sm:$0xf]
  %v109 = vld [vmem:[%s1 + $0x10] sm:$0xf]
  %v110 = vld [vmem:[%s1 + $0x14] sm:$0xf]
  %v111 = vld [vmem:[%s1 + $0x18] sm:$0xf]
  %v112 = vld [vmem:[%s1 + $0x1c] sm:$0xf]
  %v113 = vld [vmem:[%s1 + $0x20] sm:$0xf]
  %v114 = vld [vmem:[%s1 + $0x24] sm:$0xf]
  %v115 = vld [vmem:[%s1 + $0x28] sm:$0xf]
  %v116 = vld [vmem:[%s1 + $0x2c] sm:$0xf]
  %v117 = vld [vmem:[%s1 + $0x30] sm:$0xf]
  %v118 = vld [vmem:[%s1 + $0x34] sm:$0xf]
  %v119 = vld [vmem:[%s1 + $0x38] sm:$0xf]
  %v120 = vld [vmem:[%s1 + $0x3c] sm:$0xf]
  %v121 = vld [vmem:[%s1 + $0x40] sm:$0xf]
  %v122 = vld [vmem:[%s1 + $0x44] sm:$0xf]
  %v123 = vld [vmem:[%s1 + $0x48] sm:$0xf]
  %v124 = vld [vmem:[%s1 + $0x4c] sm:$0xf]
  %v125 = vld [vmem:[%s1 + $0x50] sm:$0xf]
  %v126 = vld [vmem:[%s1 + $0x54] sm:$0xf]
  %v127 = vld [vmem:[%s1 + $0x58] sm:$0xf]
  %v128 = vld [vmem:[%s1 + $0x5c] sm:$0xf]
  %v129 = vld [vmem:[%s1 + $0x60] sm:$0xf]
  %v130 = vld [vmem:[%s1 + $0x64] sm:$0xf]
  %v131 = vld [vmem:[%s1 + $0x68] sm:$0xf]
  %v132 = vld [vmem:[%s1 + $0x6c] sm:$0xf]
  %v133 = vld [vmem:[%s1 + $0x70] sm:$0xf]
  %v134 = vld [vmem:[%s1 + $0x74] sm:$0xf]
  %v135 = vld [vmem:[%s1 + $0x78] sm:$0xf]
  %v136 = vld [vmem:[%s1 + $0x7c] sm:$0xf]
  %v137 = vld [vmem:[%s1 + $0x80] sm:$0xf]
  %v138 = vld [vmem:[%s1 + $0x84] sm:$0xf]
  %v139 = vld [vmem:[%s1 + $0x88] sm:$0xf]
  %v140 = vld [vmem:[%s1 + $0x8c] sm:$0xf]
  %v141 = vld [vmem:[%s1 + $0x90] sm:$0xf]
  %v142 = vld [vmem:[%s1 + $0x94] sm:$0xf]
  %v143 = vld [vmem:[%s1 + $0x98] sm:$0xf]
  %v144 = vld [vmem:[%s1 + $0x9c] sm:$0xf]
  %v145 = vld [vmem:[%s1 + $0xa0] sm:$0xf]
  %v146 = vld [vmem:[%s1 + $0xa4] sm:$0xf]
  %v147 = vld [vmem:[%s1 + $0xa8] sm:$0xf]
  %v148 = vld [vmem:[%s1 + $0xac] sm:$0xf]
  %v149 = vld [vmem:[%s1 + $0xb0] sm:$0xf]
  %v150 = vld [vmem:[%s1 + $0xb4] sm:$0xf]
  %v151 = vld [vmem:[%s1 + $0xb8] sm:$0xf]
  %v152 = vld [vmem:[%s1 + $0xbc] sm:$0xf]
  %v153 = vld [vmem:[%s1 + $0xc0] sm:$0xf]
  %v154 = vld [vmem:[%s1 + $0xc4] sm:$0xf]
  %v155 = vld [vmem:[%s1 + $0xc8] sm:$0xf]
  %v156 = vld [vmem:[%s1 + $0xcc] sm:$0xf]
  %v157 = vld [vmem:[%s1 + $0xd0] sm:$0xf]
  %v158 = vld [vmem:[%s1 + $0xd4] sm:$0xf]
  %v159 = vld [vmem:[%s1 + $0xd8] sm:$0xf]
  %v160 = vld [vmem:[%s1 + $0xdc] sm:$0xf]
  %v161 = vld [vmem:[%s1 + $0xe0] sm:$0xf]
  %v162 = vld [vmem:[%s1 + $0xe4] sm:$0xf]
  %v163 = vld [vmem:[%s1 + $0xe8] sm:$0xf]
  %v164 = vld [vmem:[%s1 + $0xec] sm:$0xf]
  %v165 = vld [vmem:[%s1 + $0xf0] sm:$0xf]
  %v166 = vld [vmem:[%s1 + $0xf4] sm:$0xf]
  %v167 = vld [vmem:[%s1 + $0xf8] sm:$0xf]
  %v168 = vld [vmem:[%s1 + $0xfc] sm:$0xf]
  %v169 = vld [vmem:[%s2] sm:$0x1]
  %v171 = vlaneseq
  %v172 = vshrl.u32 %v171, 7
  %v173 = vsub.s32 0, %v172
  %v174 = vrot.slane %v169, %v173
  %v266 = vunpack.c.l.b16 %v15
  %v267 = vunpack.c.h.b16 %v15
  %v268 = vunpack.c.l.b16 %v16
  %v269 = vunpack.c.h.b16 %v16
  %v270 = vunpack.c.l.b16 %v17
  %v271 = vunpack.c.h.b16 %v17
  %v272 = vunpack.c.l.b16 %v18
  %v273 = vunpack.c.h.b16 %v18
  %v274 = vunpack.c.l.b16 %v19
  %v275 = vunpack.c.h.b16 %v19
  %v276 = vunpack.c.l.b16 %v20
  %v277 = vunpack.c.h.b16 %v20
  %v278 = vunpack.c.l.b16 %v21
  %v279 = vunpack.c.h.b16 %v21
  %v280 = vunpack.c.l.b16 %v22
  %v281 = vunpack.c.h.b16 %v22
  %v282 = vunpack.c.l.b16 %v23
  %v283 = vunpack.c.h.b16 %v23
  %v284 = vunpack.c.l.b16 %v24
  %v285 = vunpack.c.h.b16 %v24
  %v286 = vunpack.c.l.b16 %v25
  %v287 = vunpack.c.h.b16 %v25
  %v288 = vunpack.c.l.b16 %v26
  %v289 = vunpack.c.h.b16 %v26
  %v290 = vunpack.c.l.b16 %v27
  %v291 = vunpack.c.h.b16 %v27
  %v292 = vunpack.c.l.b16 %v28
  %v293 = vunpack.c.h.b16 %v28
  %v294 = vunpack.c.l.b16 %v29
  %v295 = vunpack.c.h.b16 %v29
  %v296 = vunpack.c.l.b16 %v30
  %v297 = vunpack.c.h.b16 %v30
  %v298 = vunpack.c.l.b16 %v31
  %v299 = vunpack.c.h.b16 %v31
  %v300 = vunpack.c.l.b16 %v32
  %v301 = vunpack.c.h.b16 %v32
  %v302 = vunpack.c.l.b16 %v33
  %v303 = vunpack.c.h.b16 %v33
  %v304 = vunpack.c.l.b16 %v34
  %v305 = vunpack.c.h.b16 %v34
  %v306 = vunpack.c.l.b16 %v35
  %v307 = vunpack.c.h.b16 %v35
  %v308 = vunpack.c.l.b16 %v36
  %v309 = vunpack.c.h.b16 %v36
  %v310 = vunpack.c.l.b16 %v37
  %v311 = vunpack.c.h.b16 %v37
  %v312 = vunpack.c.l.b16 %v38
  %v313 = vunpack.c.h.b16 %v38
  %v314 = vunpack.c.l.b16 %v39
  %v315 = vunpack.c.h.b16 %v39
  %v316 = vunpack.c.l.b16 %v40
  %v317 = vunpack.c.h.b16 %v40
  %v318 = vunpack.c.l.b16 %v41
  %v319 = vunpack.c.h.b16 %v41
  %v320 = vunpack.c.l.b16 %v42
  %v321 = vunpack.c.h.b16 %v42
  %v322 = vunpack.c.l.b16 %v43
  %v323 = vunpack.c.h.b16 %v43
  %v324 = vunpack.c.l.b16 %v44
  %v325 = vunpack.c.h.b16 %v44
  %v326 = vunpack.c.l.b16 %v45
  %v327 = vunpack.c.h.b16 %v45
  %v328 = vunpack.c.l.b16 %v46
  %v329 = vunpack.c.h.b16 %v46
  %v330 = vunpack.c.l.b16 %v47
  %v331 = vunpack.c.h.b16 %v47
  %v332 = vunpack.c.l.b16 %v48
  %v333 = vunpack.c.h.b16 %v48
  %v334 = vunpack.c.l.b16 %v49
  %v335 = vunpack.c.h.b16 %v49
  %v336 = vunpack.c.l.b16 %v50
  %v337 = vunpack.c.h.b16 %v50
  %v338 = vunpack.c.l.b16 %v51
  %v339 = vunpack.c.h.b16 %v51
  %v340 = vunpack.c.l.b16 %v52
  %v341 = vunpack.c.h.b16 %v52
  %v342 = vunpack.c.l.b16 %v53
  %v343 = vunpack.c.h.b16 %v53
  %v344 = vunpack.c.l.b16 %v54
  %v345 = vunpack.c.h.b16 %v54
  %v346 = vunpack.c.l.b16 %v55
  %v347 = vunpack.c.h.b16 %v55
  %v348 = vunpack.c.l.b16 %v56
  %v349 = vunpack.c.h.b16 %v56
  %v350 = vunpack.c.l.b16 %v57
  %v351 = vunpack.c.h.b16 %v57
  %v352 = vunpack.c.l.b16 %v58
  %v353 = vunpack.c.h.b16 %v58
  %v354 = vunpack.c.l.b16 %v59
  %v355 = vunpack.c.h.b16 %v59
  %v356 = vunpack.c.l.b16 %v60
  %v357 = vunpack.c.h.b16 %v60
  %v358 = vunpack.c.l.b16 %v61
  %v359 = vunpack.c.h.b16 %v61
  %v360 = vunpack.c.l.b16 %v62
  %v361 = vunpack.c.h.b16 %v62
  %v362 = vunpack.c.l.b16 %v63
  %v363 = vunpack.c.h.b16 %v63
  %v364 = vunpack.c.l.b16 %v64
  %v365 = vunpack.c.h.b16 %v64
  %v366 = vunpack.c.l.b16 %v65
  %v367 = vunpack.c.h.b16 %v65
  %v368 = vunpack.c.l.b16 %v66
  %v369 = vunpack.c.h.b16 %v66
  %v370 = vunpack.c.l.b16 %v67
  %v371 = vunpack.c.h.b16 %v67
  %v372 = vunpack.c.l.b16 %v68
  %v373 = vunpack.c.h.b16 %v68
  %v374 = vunpack.c.l.b16 %v69
  %v375 = vunpack.c.h.b16 %v69
  %v376 = vunpack.c.l.b16 %v70
  %v377 = vunpack.c.h.b16 %v70
  %v378 = vunpack.c.l.b16 %v71
  %v379 = vunpack.c.h.b16 %v71
  %v380 = vunpack.c.l.b16 %v72
  %v381 = vunpack.c.h.b16 %v72
  %v382 = vunpack.c.l.b16 %v73
  %v383 = vunpack.c.h.b16 %v73
  %v384 = vunpack.c.l.b16 %v74
  %v385 = vunpack.c.h.b16 %v74
  %v386 = vunpack.c.l.b16 %v75
  %v387 = vunpack.c.h.b16 %v75
  %v388 = vunpack.c.l.b16 %v76
  %v389 = vunpack.c.h.b16 %v76
  %v390 = vunpack.c.l.b16 %v77
  %v391 = vunpack.c.h.b16 %v77
  %v392 = vunpack.c.l.b16 %v78
  %v393 = vunpack.c.h.b16 %v78
  %v394 = vunpack.c.l.b16 %v79
  %v395 = vunpack.c.h.b16 %v79
  %v396 = vunpack.c.l.b16 %v80
  %v397 = vunpack.c.h.b16 %v80
  %v398 = vunpack.c.l.b16 %v81
  %v399 = vunpack.c.h.b16 %v81
  %v400 = vunpack.c.l.b16 %v82
  %v401 = vunpack.c.h.b16 %v82
  %v402 = vunpack.c.l.b16 %v83
  %v403 = vunpack.c.h.b16 %v83
  %v404 = vunpack.c.l.b16 %v84
  %v405 = vunpack.c.h.b16 %v84
  %v406 = vunpack.c.l.b16 %v85
  %v407 = vunpack.c.h.b16 %v85
  %v408 = vunpack.c.l.b16 %v86
  %v409 = vunpack.c.h.b16 %v86
  %v410 = vunpack.c.l.b16 %v87
  %v411 = vunpack.c.h.b16 %v87
  %v412 = vunpack.c.l.b16 %v88
  %v413 = vunpack.c.h.b16 %v88
  %v414 = vunpack.c.l.b16 %v89
  %v415 = vunpack.c.h.b16 %v89
  %v416 = vunpack.c.l.b16 %v90
  %v417 = vunpack.c.h.b16 %v90
  %v418 = vunpack.c.l.b16 %v91
  %v419 = vunpack.c.h.b16 %v91
  %v420 = vunpack.c.l.b16 %v92
  %v421 = vunpack.c.h.b16 %v92
  %v422 = vunpack.c.l.b16 %v93
  %v423 = vunpack.c.h.b16 %v93
  %v424 = vunpack.c.l.b16 %v94
  %v425 = vunpack.c.h.b16 %v94
  %v426 = vunpack.c.l.b16 %v95
  %v427 = vunpack.c.h.b16 %v95
  %v428 = vunpack.c.l.b16 %v96
  %v429 = vunpack.c.h.b16 %v96
  %v430 = vunpack.c.l.b16 %v97
  %v431 = vunpack.c.h.b16 %v97
  %v432 = vunpack.c.l.b16 %v98
  %v433 = vunpack.c.h.b16 %v98
  %v434 = vunpack.c.l.b16 %v99
  %v435 = vunpack.c.h.b16 %v99
  %v436 = vunpack.c.l.b16 %v100
  %v437 = vunpack.c.h.b16 %v100
  %v438 = vunpack.c.l.b16 %v101
  %v439 = vunpack.c.h.b16 %v101
  %v440 = vunpack.c.l.b16 %v102
  %v441 = vunpack.c.h.b16 %v102
  %v442 = vunpack.c.l.b16 %v103
  %v443 = vunpack.c.h.b16 %v103
  %v444 = vunpack.c.l.b16 %v104
  %v445 = vunpack.c.h.b16 %v104
  %v446 = vpack.c.b16 %v270, %v266
  %v447 = vpack.c.b16 %v271, %v267
  %v448 = vpack.c.b16 %v272, %v268
  %v449 = vpack.c.b16 %v273, %v269
  %v450 = vpack.c.b16 %v278, %v274
  %v451 = vpack.c.b16 %v279, %v275
  %v452 = vpack.c.b16 %v280, %v276
  %v453 = vpack.c.b16 %v281, %v277
  %v454 = vpack.c.b16 %v286, %v282
  %v455 = vpack.c.b16 %v287, %v283
  %v456 = vpack.c.b16 %v288, %v284
  %v457 = vpack.c.b16 %v289, %v285
  %v458 = vpack.c.b16 %v294, %v290
  %v459 = vpack.c.b16 %v295, %v291
  %v460 = vpack.c.b16 %v296, %v292
  %v461 = vpack.c.b16 %v297, %v293
  %v462 = vpack.c.b16 %v302, %v298
  %v463 = vpack.c.b16 %v303, %v299
  %v464 = vpack.c.b16 %v304, %v300
  %v465 = vpack.c.b16 %v305, %v301
  %v466 = vpack.c.b16 %v310, %v306
  %v467 = vpack.c.b16 %v311, %v307
  %v468 = vpack.c.b16 %v312, %v308
  %v469 = vpack.c.b16 %v313, %v309
  %v470 = vpack.c.b16 %v318, %v314
  %v471 = vpack.c.b16 %v319, %v315
  %v472 = vpack.c.b16 %v320, %v316
  %v473 = vpack.c.b16 %v321, %v317
  %v474 = vpack.c.b16 %v326, %v322
  %v475 = vpack.c.b16 %v327, %v323
  %v476 = vpack.c.b16 %v328, %v324
  %v477 = vpack.c.b16 %v329, %v325
  %v478 = vpack.c.b16 %v334, %v330
  %v479 = vpack.c.b16 %v335, %v331
  %v480 = vpack.c.b16 %v336, %v332
  %v481 = vpack.c.b16 %v337, %v333
  %v482 = vpack.c.b16 %v342, %v338
  %v483 = vpack.c.b16 %v343, %v339
  %v484 = vpack.c.b16 %v344, %v340
  %v485 = vpack.c.b16 %v345, %v341
  %v486 = vpack.c.b16 %v350, %v346
  %v487 = vpack.c.b16 %v351, %v347
  %v488 = vpack.c.b16 %v352, %v348
  %v489 = vpack.c.b16 %v353, %v349
  %v490 = vpack.c.b16 %v358, %v354
  %v491 = vpack.c.b16 %v359, %v355
  %v492 = vpack.c.b16 %v360, %v356
  %v493 = vpack.c.b16 %v361, %v357
  %v494 = vpack.c.b16 %v366, %v362
  %v495 = vpack.c.b16 %v367, %v363
  %v496 = vpack.c.b16 %v368, %v364
  %v497 = vpack.c.b16 %v369, %v365
  %v498 = vpack.c.b16 %v374, %v370
  %v499 = vpack.c.b16 %v375, %v371
  %v500 = vpack.c.b16 %v376, %v372
  %v501 = vpack.c.b16 %v377, %v373
  %v502 = vpack.c.b16 %v382, %v378
  %v503 = vpack.c.b16 %v383, %v379
  %v504 = vpack.c.b16 %v384, %v380
  %v505 = vpack.c.b16 %v385, %v381
  %v506 = vpack.c.b16 %v390, %v386
  %v507 = vpack.c.b16 %v391, %v387
  %v508 = vpack.c.b16 %v392, %v388
  %v509 = vpack.c.b16 %v393, %v389
  %v510 = vpack.c.b16 %v398, %v394
  %v511 = vpack.c.b16 %v399, %v395
  %v512 = vpack.c.b16 %v400, %v396
  %v513 = vpack.c.b16 %v401, %v397
  %v514 = vpack.c.b16 %v406, %v402
  %v515 = vpack.c.b16 %v407, %v403
  %v516 = vpack.c.b16 %v408, %v404
  %v517 = vpack.c.b16 %v409, %v405
  %v518 = vpack.c.b16 %v414, %v410
  %v519 = vpack.c.b16 %v415, %v411
  %v520 = vpack.c.b16 %v416, %v412
  %v521 = vpack.c.b16 %v417, %v413
  %v522 = vpack.c.b16 %v422, %v418
  %v523 = vpack.c.b16 %v423, %v419
  %v524 = vpack.c.b16 %v424, %v420
  %v525 = vpack.c.b16 %v425, %v421
  %v526 = vpack.c.b16 %v430, %v426
  %v527 = vpack.c.b16 %v431, %v427
  %v528 = vpack.c.b16 %v432, %v428
  %v529 = vpack.c.b16 %v433, %v429
  %v530 = vpack.c.b16 %v438, %v434
  %v531 = vpack.c.b16 %v439, %v435
  %v532 = vpack.c.b16 %v440, %v436
  %v533 = vpack.c.b16 %v441, %v437
  %v534 = vpack.c.b16 %v442, %v442
  %v535 = vpack.c.b16 %v443, %v443
  %v536 = vpack.c.b16 %v444, %v444
  %v537 = vpack.c.b16 %v445, %v445
  %v694 = vunpack.c.l.b16 %v105
  %v695 = vunpack.c.l.b16 %v106
  %v696 = vunpack.c.l.b16 %v107
  %v697 = vunpack.c.l.b16 %v108
  %v698 = vunpack.c.l.b16 %v109
  %v699 = vunpack.c.l.b16 %v110
  %v700 = vunpack.c.l.b16 %v111
  %v701 = vunpack.c.l.b16 %v112
  %v702 = vunpack.c.l.b16 %v113
  %v703 = vunpack.c.l.b16 %v114
  %v704 = vunpack.c.l.b16 %v115
  %v705 = vunpack.c.l.b16 %v116
  %v706 = vunpack.c.l.b16 %v117
  %v707 = vunpack.c.l.b16 %v118
  %v708 = vunpack.c.l.b16 %v119
  %v709 = vunpack.c.l.b16 %v120
  %v710 = vunpack.c.l.b16 %v121
  %v711 = vunpack.c.l.b16 %v122
  %v712 = vunpack.c.l.b16 %v123
  %v713 = vunpack.c.l.b16 %v124
  %v714 = vunpack.c.l.b16 %v125
  %v715 = vunpack.c.l.b16 %v126
  %v716 = vunpack.c.l.b16 %v127
  %v717 = vunpack.c.l.b16 %v128
  %v718 = vunpack.c.l.b16 %v129
  %v719 = vunpack.c.l.b16 %v130
  %v720 = vunpack.c.l.b16 %v131
  %v721 = vunpack.c.l.b16 %v132
  %v722 = vunpack.c.l.b16 %v133
  %v723 = vunpack.c.l.b16 %v134
  %v724 = vunpack.c.l.b16 %v135
  %v725 = vunpack.c.l.b16 %v136
  %v726 = vunpack.c.l.b16 %v137
  %v727 = vunpack.c.l.b16 %v138
  %v728 = vunpack.c.l.b16 %v139
  %v729 = vunpack.c.l.b16 %v140
  %v730 = vunpack.c.l.b16 %v141
  %v731 = vunpack.c.l.b16 %v142
  %v732 = vunpack.c.l.b16 %v143
  %v733 = vunpack.c.l.b16 %v144
  %v734 = vunpack.c.l.b16 %v145
  %v735 = vunpack.c.l.b16 %v146
  %v736 = vunpack.c.l.b16 %v147
  %v737 = vunpack.c.l.b16 %v148
  %v738 = vunpack.c.l.b16 %v149
  %v739 = vunpack.c.l.b16 %v150
  %v740 = vunpack.c.l.b16 %v151
  %v741 = vunpack.c.l.b16 %v152
  %v742 = vunpack.c.l.b16 %v153
  %v743 = vunpack.c.l.b16 %v154
  %v744 = vunpack.c.l.b16 %v155
  %v745 = vunpack.c.l.b16 %v156
  %v746 = vunpack.c.l.b16 %v157
  %v747 = vunpack.c.l.b16 %v158
  %v748 = vunpack.c.l.b16 %v159
  %v749 = vunpack.c.l.b16 %v160
  %v750 = vunpack.c.l.b16 %v161
  %v751 = vunpack.c.l.b16 %v162
  %v752 = vunpack.c.l.b16 %v163
  %v753 = vunpack.c.l.b16 %v164
  %v754 = vunpack.c.l.b16 %v165
  %v755 = vunpack.c.l.b16 %v166
  %v756 = vunpack.c.l.b16 %v167
  %v757 = vunpack.c.l.b16 %v168
  %v758 = vpack.c.b16 %v695, %v694
  %v759 = vpack.c.b16 %v697, %v696
  %v760 = vpack.c.b16 %v699, %v698
  %v761 = vpack.c.b16 %v701, %v700
  %v762 = vpack.c.b16 %v703, %v702
  %v763 = vpack.c.b16 %v705, %v704
  %v764 = vpack.c.b16 %v707, %v706
  %v765 = vpack.c.b16 %v709, %v708
  %v766 = vpack.c.b16 %v711, %v710
  %v767 = vpack.c.b16 %v713, %v712
  %v768 = vpack.c.b16 %v715, %v714
  %v769 = vpack.c.b16 %v717, %v716
  %v770 = vpack.c.b16 %v719, %v718
  %v771 = vpack.c.b16 %v721, %v720
  %v772 = vpack.c.b16 %v723, %v722
  %v773 = vpack.c.b16 %v725, %v724
  %v774 = vpack.c.b16 %v727, %v726
  %v775 = vpack.c.b16 %v729, %v728
  %v776 = vpack.c.b16 %v731, %v730
  %v777 = vpack.c.b16 %v733, %v732
  %v778 = vpack.c.b16 %v735, %v734
  %v779 = vpack.c.b16 %v737, %v736
  %v780 = vpack.c.b16 %v739, %v738
  %v781 = vpack.c.b16 %v741, %v740
  %v782 = vpack.c.b16 %v743, %v742
  %v783 = vpack.c.b16 %v745, %v744
  %v784 = vpack.c.b16 %v747, %v746
  %v785 = vpack.c.b16 %v749, %v748
  %v786 = vpack.c.b16 %v751, %v750
  %v787 = vpack.c.b16 %v753, %v752
  %v788 = vpack.c.b16 %v755, %v754
  %v789 = vpack.c.b16 %v757, %v756
  %822 = vmatprep.subr.bf16.mxu0 0
  %823 = vmatpush1.bf16.msra.mxu0 %v758
  %824 = vmatprep.subr.bf16.mxu0 0
  %825 = vmatpush1.bf16.msra.mxu0 %v759
  %826 = vmatprep.subr.bf16.mxu0 0
  %827 = vmatpush1.bf16.msra.mxu0 %v760
  %828 = vmatprep.subr.bf16.mxu0 0
  %829 = vmatpush1.bf16.msra.mxu0 %v761
  %830 = vmatprep.subr.bf16.mxu0 0
  %831 = vmatpush1.bf16.msra.mxu0 %v762
  %832 = vmatprep.subr.bf16.mxu0 0
  %833 = vmatpush1.bf16.msra.mxu0 %v763
  %834 = vmatprep.subr.bf16.mxu0 0
  %835 = vmatpush1.bf16.msra.mxu0 %v764
  %836 = vmatprep.subr.bf16.mxu0 0
  %837 = vmatpush1.bf16.msra.mxu0 %v765
  %838 = vmatprep.subr.bf16.mxu0 0
  %839 = vmatpush1.bf16.msra.mxu0 %v766
  %840 = vmatprep.subr.bf16.mxu0 0
  %841 = vmatpush1.bf16.msra.mxu0 %v767
  %842 = vmatprep.subr.bf16.mxu0 0
  %843 = vmatpush1.bf16.msra.mxu0 %v768
  %844 = vmatprep.subr.bf16.mxu0 0
  %845 = vmatpush1.bf16.msra.mxu0 %v769
  %846 = vmatprep.subr.bf16.mxu0 0
  %847 = vmatpush1.bf16.msra.mxu0 %v770
  %848 = vmatprep.subr.bf16.mxu0 0
  %849 = vmatpush1.bf16.msra.mxu0 %v771
  %850 = vmatprep.subr.bf16.mxu0 0
  %851 = vmatpush1.bf16.msra.mxu0 %v772
  %852 = vmatprep.subr.bf16.mxu0 0
  %853 = vmatpush1.bf16.msra.mxu0 %v773
  %854 = vmatprep.mubr.bf16.mxu0 %v447
  %855 = vmatmul.mubr.bf16.gmra.mrb[0].mxu0 %v446
  %v856 = vpop.f32.mrb[0].mxu0
  %v857 = vadd.f32 %v174, %v856
  %v858 = vpop.f32.mrb[0].mxu0
  %v859 = vpop.f32.mrb[0].mxu0
  %v860 = vadd.f32 %v174, %v859
  %v861 = vpop.f32.mrb[0].mxu0
  %862 = vmatprep.mubr.bf16.mxu0 %v451
  %863 = vmatmul.mubr.bf16.gmra.mrb[0].mxu0 %v450
  %v864 = vpop.f32.mrb[0].mxu0
  %v865 = vadd.f32 %v174, %v864
  %v866 = vpop.f32.mrb[0].mxu0
  %v867 = vpop.f32.mrb[0].mxu0
  %v868 = vadd.f32 %v174, %v867
  %v869 = vpop.f32.mrb[0].mxu0
  %870 = vmatprep.mubr.bf16.mxu0 %v455
  %871 = vmatmul.mubr.bf16.gmra.mrb[0].mxu0 %v454
  %v872 = vpop.f32.mrb[0].mxu0
  %v873 = vadd.f32 %v174, %v872
  %v874 = vpop.f32.mrb[0].mxu0
  %v875 = vpop.f32.mrb[0].mxu0
  %v876 = vadd.f32 %v174, %v875
  %v877 = vpop.f32.mrb[0].mxu0
  %878 = vmatprep.mubr.bf16.mxu0 %v459
  %879 = vmatmul.mubr.bf16.gmra.mrb[0].mxu0 %v458
  %v880 = vpop.f32.mrb[0].mxu0
  %v881 = vadd.f32 %v174, %v880
  %v882 = vpop.f32.mrb[0].mxu0
  %v883 = vpop.f32.mrb[0].mxu0
  %v884 = vadd.f32 %v174, %v883
  %v885 = vpop.f32.mrb[0].mxu0
  %886 = vmatprep.mubr.bf16.mxu0 %v463
  %887 = vmatmul.mubr.bf16.gmra.mrb[0].mxu0 %v462
  %v888 = vpop.f32.mrb[0].mxu0
  %v889 = vadd.f32 %v174, %v888
  %v890 = vpop.f32.mrb[0].mxu0
  %v891 = vpop.f32.mrb[0].mxu0
  %v892 = vadd.f32 %v174, %v891
  %v893 = vpop.f32.mrb[0].mxu0
  %894 = vmatprep.mubr.bf16.mxu0 %v467
  %895 = vmatmul.mubr.bf16.gmra.mrb[0].mxu0 %v466
  %v896 = vpop.f32.mrb[0].mxu0
  %v897 = vadd.f32 %v174, %v896
  %v898 = vpop.f32.mrb[0].mxu0
  %v899 = vpop.f32.mrb[0].mxu0
  %v900 = vadd.f32 %v174, %v899
  %v901 = vpop.f32.mrb[0].mxu0
  %902 = vmatprep.mubr.bf16.mxu0 %v471
  %903 = vmatmul.mubr.bf16.gmra.mrb[0].mxu0 %v470
  %v904 = vpop.f32.mrb[0].mxu0
  %v905 = vadd.f32 %v174, %v904
  %v906 = vpop.f32.mrb[0].mxu0
  %v907 = vpop.f32.mrb[0].mxu0
  %v908 = vadd.f32 %v174, %v907
  %v909 = vpop.f32.mrb[0].mxu0
  %910 = vmatprep.mubr.bf16.mxu0 %v475
  %911 = vmatmul.mubr.bf16.gmra.mrb[0].mxu0 %v474
  %v912 = vpop.f32.mrb[0].mxu0
  %v913 = vadd.f32 %v174, %v912
  %v914 = vpop.f32.mrb[0].mxu0
  %v915 = vpop.f32.mrb[0].mxu0
  %v916 = vadd.f32 %v174, %v915
  %v917 = vpop.f32.mrb[0].mxu0
  %918 = vmatprep.mubr.bf16.mxu0 %v479
  %919 = vmatmul.mubr.bf16.gmra.mrb[0].mxu0 %v478
  %v920 = vpop.f32.mrb[0].mxu0
  %v921 = vadd.f32 %v174, %v920
  %v922 = vpop.f32.mrb[0].mxu0
  %v923 = vpop.f32.mrb[0].mxu0
  %v924 = vadd.f32 %v174, %v923
  %v925 = vpop.f32.mrb[0].mxu0
  %926 = vmatprep.mubr.bf16.mxu0 %v483
  %927 = vmatmul.mubr.bf16.gmra.mrb[0].mxu0 %v482
  %v928 = vpop.f32.mrb[0].mxu0
  %v929 = vadd.f32 %v174, %v928
  %v930 = vpop.f32.mrb[0].mxu0
  %v931 = vpop.f32.mrb[0].mxu0
  %v932 = vadd.f32 %v174, %v931
  %v933 = vpop.f32.mrb[0].mxu0
  %934 = vmatprep.mubr.bf16.mxu0 %v487
  %935 = vmatmul.mubr.bf16.gmra.mrb[0].mxu0 %v486
  %v936 = vpop.f32.mrb[0].mxu0
  %v937 = vadd.f32 %v174, %v936
  %v938 = vpop.f32.mrb[0].mxu0
  %v939 = vpop.f32.mrb[0].mxu0
  %v940 = vadd.f32 %v174, %v939
  %v941 = vpop.f32.mrb[0].mxu0
  %942 = vmatprep.mubr.bf16.mxu0 %v491
  %943 = vmatmul.mubr.bf16.gmra.mrb[0].mxu0 %v490
  %v944 = vpop.f32.mrb[0].mxu0
  %v945 = vadd.f32 %v174, %v944
  %v946 = vpop.f32.mrb[0].mxu0
  %v947 = vpop.f32.mrb[0].mxu0
  %v948 = vadd.f32 %v174, %v947
  %v949 = vpop.f32.mrb[0].mxu0
  %950 = vmatprep.mubr.bf16.mxu0 %v495
  %951 = vmatmul.mubr.bf16.gmra.mrb[0].mxu0 %v494
  %v952 = vpop.f32.mrb[0].mxu0
  %v953 = vadd.f32 %v174, %v952
  %v954 = vpop.f32.mrb[0].mxu0
  %v955 = vpop.f32.mrb[0].mxu0
  %v956 = vadd.f32 %v174, %v955
  %v957 = vpop.f32.mrb[0].mxu0
  %958 = vmatprep.mubr.bf16.mxu0 %v499
  %959 = vmatmul.mubr.bf16.gmra.mrb[0].mxu0 %v498
  %v960 = vpop.f32.mrb[0].mxu0
  %v961 = vadd.f32 %v174, %v960
  %v962 = vpop.f32.mrb[0].mxu0
  %v963 = vpop.f32.mrb[0].mxu0
  %v964 = vadd.f32 %v174, %v963
  %v965 = vpop.f32.mrb[0].mxu0
  %966 = vmatprep.mubr.bf16.mxu0 %v503
  %967 = vmatmul.mubr.bf16.gmra.mrb[0].mxu0 %v502
  %v968 = vpop.f32.mrb[0].mxu0
  %v969 = vadd.f32 %v174, %v968
  %v970 = vpop.f32.mrb[0].mxu0
  %v971 = vpop.f32.mrb[0].mxu0
  %v972 = vadd.f32 %v174, %v971
  %v973 = vpop.f32.mrb[0].mxu0
  %974 = vmatprep.mubr.bf16.mxu0 %v507
  %975 = vmatmul.mubr.bf16.gmra.mrb[0].mxu0 %v506
  %v976 = vpop.f32.mrb[0].mxu0
  %v977 = vadd.f32 %v174, %v976
  %v978 = vpop.f32.mrb[0].mxu0
  %v979 = vpop.f32.mrb[0].mxu0
  %v980 = vadd.f32 %v174, %v979
  %v981 = vpop.f32.mrb[0].mxu0
  %982 = vmatprep.mubr.bf16.mxu0 %v511
  %983 = vmatmul.mubr.bf16.gmra.mrb[0].mxu0 %v510
  %v984 = vpop.f32.mrb[0].mxu0
  %v985 = vadd.f32 %v174, %v984
  %v986 = vpop.f32.mrb[0].mxu0
  %v987 = vpop.f32.mrb[0].mxu0
  %v988 = vadd.f32 %v174, %v987
  %v989 = vpop.f32.mrb[0].mxu0
  %990 = vmatprep.mubr.bf16.mxu0 %v515
  %991 = vmatmul.mubr.bf16.gmra.mrb[0].mxu0 %v514
  %v992 = vpop.f32.mrb[0].mxu0
  %v993 = vadd.f32 %v174, %v992
  %v994 = vpop.f32.mrb[0].mxu0
  %v995 = vpop.f32.mrb[0].mxu0
  %v996 = vadd.f32 %v174, %v995
  %v997 = vpop.f32.mrb[0].mxu0
  %998 = vmatprep.mubr.bf16.mxu0 %v519
  %999 = vmatmul.mubr.bf16.gmra.mrb[0].mxu0 %v518
  %v1000 = vpop.f32.mrb[0].mxu0
  %v1001 = vadd.f32 %v174, %v1000
  %v1002 = vpop.f32.mrb[0].mxu0
  %v1003 = vpop.f32.mrb[0].mxu0
  %v1004 = vadd.f32 %v174, %v1003
  %v1005 = vpop.f32.mrb[0].mxu0
  %1006 = vmatprep.mubr.bf16.mxu0 %v523
  %1007 = vmatmul.mubr.bf16.gmra.mrb[0].mxu0 %v522
  %v1008 = vpop.f32.mrb[0].mxu0
  %v1009 = vadd.f32 %v174, %v1008
  %v1010 = vpop.f32.mrb[0].mxu0
  %v1011 = vpop.f32.mrb[0].mxu0
  %v1012 = vadd.f32 %v174, %v1011
  %v1013 = vpop.f32.mrb[0].mxu0
  %1014 = vmatprep.mubr.bf16.mxu0 %v527
  %1015 = vmatmul.mubr.bf16.gmra.mrb[0].mxu0 %v526
  %v1016 = vpop.f32.mrb[0].mxu0
  %v1017 = vadd.f32 %v174, %v1016
  %v1018 = vpop.f32.mrb[0].mxu0
  %v1019 = vpop.f32.mrb[0].mxu0
  %v1020 = vadd.f32 %v174, %v1019
  %v1021 = vpop.f32.mrb[0].mxu0
  %1022 = vmatprep.mubr.bf16.mxu0 %v531
  %1023 = vmatmul.mubr.bf16.gmra.mrb[0].mxu0 %v530
  %v1024 = vpop.f32.mrb[0].mxu0
  %v1025 = vadd.f32 %v174, %v1024
  %v1026 = vpop.f32.mrb[0].mxu0
  %v1027 = vpop.f32.mrb[0].mxu0
  %v1028 = vadd.f32 %v174, %v1027
  %v1029 = vpop.f32.mrb[0].mxu0
  %1030 = vmatprep.mubr.bf16.mxu0 %v535
  %1031 = vmatmul.mubr.bf16.gmra.mrb[0].mxu0 %v534
  %v1032 = vpop.f32.mrb[0].mxu0
  %v1033 = vadd.f32 %v174, %v1032
  %v1034 = vpop.f32.mrb[0].mxu0
  %v1035 = vpop.f32.mrb[0].mxu0
  %v1036 = vpop.f32.mrb[0].mxu0
  %1037 = vdwg.mxu0
  %1038 = vmatprep.subr.bf16.mxu0 0
  %1039 = vmatpush1.bf16.msra.mxu0 %v774
  %1040 = vmatprep.subr.bf16.mxu0 0
  %1041 = vmatpush1.bf16.msra.mxu0 %v775
  %1042 = vmatprep.subr.bf16.mxu0 0
  %1043 = vmatpush1.bf16.msra.mxu0 %v776
  %1044 = vmatprep.subr.bf16.mxu0 0
  %1045 = vmatpush1.bf16.msra.mxu0 %v777
  %1046 = vmatprep.subr.bf16.mxu0 0
  %1047 = vmatpush1.bf16.msra.mxu0 %v778
  %1048 = vmatprep.subr.bf16.mxu0 0
  %1049 = vmatpush1.bf16.msra.mxu0 %v779
  %1050 = vmatprep.subr.bf16.mxu0 0
  %1051 = vmatpush1.bf16.msra.mxu0 %v780
  %1052 = vmatprep.subr.bf16.mxu0 0
  %1053 = vmatpush1.bf16.msra.mxu0 %v781
  %1054 = vmatprep.subr.bf16.mxu0 0
  %1055 = vmatpush1.bf16.msra.mxu0 %v782
  %1056 = vmatprep.subr.bf16.mxu0 0
  %1057 = vmatpush1.bf16.msra.mxu0 %v783
  %1058 = vmatprep.subr.bf16.mxu0 0
  %1059 = vmatpush1.bf16.msra.mxu0 %v784
  %1060 = vmatprep.subr.bf16.mxu0 0
  %1061 = vmatpush1.bf16.msra.mxu0 %v785
  %1062 = vmatprep.subr.bf16.mxu0 0
  %1063 = vmatpush1.bf16.msra.mxu0 %v786
  %1064 = vmatprep.subr.bf16.mxu0 0
  %1065 = vmatpush1.bf16.msra.mxu0 %v787
  %1066 = vmatprep.subr.bf16.mxu0 0
  %1067 = vmatpush1.bf16.msra.mxu0 %v788
  %1068 = vmatprep.subr.bf16.mxu0 0
  %1069 = vmatpush1.bf16.msra.mxu0 %v789
  %1070 = vmatprep.mubr.bf16.mxu0 %v449
  %1071 = vmatmul.mubr.bf16.gmra.mrb[0].mxu0 %v448
  %v1072 = vpop.f32.mrb[0].mxu0
  %v1073 = vadd.f32 %v857, %v1072
  %v1074 = vpop.f32.mrb[0].mxu0
  %v1075 = vpop.f32.mrb[0].mxu0
  %v1076 = vadd.f32 %v860, %v1075
  %v1077 = vpop.f32.mrb[0].mxu0
  %1078 = vmatprep.mubr.bf16.mxu0 %v453
  %1079 = vmatmul.mubr.bf16.gmra.mrb[0].mxu0 %v452
  %v1080 = vpop.f32.mrb[0].mxu0
  %v1081 = vadd.f32 %v865, %v1080
  %v1082 = vpop.f32.mrb[0].mxu0
  %v1083 = vpop.f32.mrb[0].mxu0
  %v1084 = vadd.f32 %v868, %v1083
  %v1085 = vpop.f32.mrb[0].mxu0
  %1086 = vmatprep.mubr.bf16.mxu0 %v457
  %1087 = vmatmul.mubr.bf16.gmra.mrb[0].mxu0 %v456
  %v1088 = vpop.f32.mrb[0].mxu0
  %v1089 = vadd.f32 %v873, %v1088
  %v1090 = vpop.f32.mrb[0].mxu0
  %v1091 = vpop.f32.mrb[0].mxu0
  %v1092 = vadd.f32 %v876, %v1091
  %v1093 = vpop.f32.mrb[0].mxu0
  %1094 = vmatprep.mubr.bf16.mxu0 %v461
  %1095 = vmatmul.mubr.bf16.gmra.mrb[0].mxu0 %v460
  %v1096 = vpop.f32.mrb[0].mxu0
  %v1097 = vadd.f32 %v881, %v1096
  %v1098 = vpop.f32.mrb[0].mxu0
  %v1099 = vpop.f32.mrb[0].mxu0
  %v1100 = vadd.f32 %v884, %v1099
  %v1101 = vpop.f32.mrb[0].mxu0
  %1102 = vmatprep.mubr.bf16.mxu0 %v465
  %1103 = vmatmul.mubr.bf16.gmra.mrb[0].mxu0 %v464
  %v1104 = vpop.f32.mrb[0].mxu0
  %v1105 = vadd.f32 %v889, %v1104
  %v1106 = vpop.f32.mrb[0].mxu0
  %v1107 = vpop.f32.mrb[0].mxu0
  %v1108 = vadd.f32 %v892, %v1107
  %v1109 = vpop.f32.mrb[0].mxu0
  %1110 = vmatprep.mubr.bf16.mxu0 %v469
  %1111 = vmatmul.mubr.bf16.gmra.mrb[0].mxu0 %v468
  %v1112 = vpop.f32.mrb[0].mxu0
  %v1113 = vadd.f32 %v897, %v1112
  %v1114 = vpop.f32.mrb[0].mxu0
  %v1115 = vpop.f32.mrb[0].mxu0
  %v1116 = vadd.f32 %v900, %v1115
  %v1117 = vpop.f32.mrb[0].mxu0
  %1118 = vmatprep.mubr.bf16.mxu0 %v473
  %1119 = vmatmul.mubr.bf16.gmra.mrb[0].mxu0 %v472
  %v1120 = vpop.f32.mrb[0].mxu0
  %v1121 = vadd.f32 %v905, %v1120
  %v1122 = vpop.f32.mrb[0].mxu0
  %v1123 = vpop.f32.mrb[0].mxu0
  %v1124 = vadd.f32 %v908, %v1123
  %v1125 = vpop.f32.mrb[0].mxu0
  %1126 = vmatprep.mubr.bf16.mxu0 %v477
  %1127 = vmatmul.mubr.bf16.gmra.mrb[0].mxu0 %v476
  %v1128 = vpop.f32.mrb[0].mxu0
  %v1129 = vadd.f32 %v913, %v1128
  %v1130 = vpop.f32.mrb[0].mxu0
  %v1131 = vpop.f32.mrb[0].mxu0
  %v1132 = vadd.f32 %v916, %v1131
  %v1133 = vpop.f32.mrb[0].mxu0
  %1134 = vmatprep.mubr.bf16.mxu0 %v481
  %1135 = vmatmul.mubr.bf16.gmra.mrb[0].mxu0 %v480
  %v1136 = vpop.f32.mrb[0].mxu0
  %v1137 = vadd.f32 %v921, %v1136
  %v1138 = vpop.f32.mrb[0].mxu0
  %v1139 = vpop.f32.mrb[0].mxu0
  %v1140 = vadd.f32 %v924, %v1139
  %v1141 = vpop.f32.mrb[0].mxu0
  %1142 = vmatprep.mubr.bf16.mxu0 %v485
  %1143 = vmatmul.mubr.bf16.gmra.mrb[0].mxu0 %v484
  %v1144 = vpop.f32.mrb[0].mxu0
  %v1145 = vadd.f32 %v929, %v1144
  %v1146 = vpop.f32.mrb[0].mxu0
  %v1147 = vpop.f32.mrb[0].mxu0
  %v1148 = vadd.f32 %v932, %v1147
  %v1149 = vpop.f32.mrb[0].mxu0
  %1150 = vmatprep.mubr.bf16.mxu0 %v489
  %1151 = vmatmul.mubr.bf16.gmra.mrb[0].mxu0 %v488
  %v1152 = vpop.f32.mrb[0].mxu0
  %v1153 = vadd.f32 %v937, %v1152
  %v1154 = vpop.f32.mrb[0].mxu0
  %v1155 = vpop.f32.mrb[0].mxu0
  %v1156 = vadd.f32 %v940, %v1155
  %v1157 = vpop.f32.mrb[0].mxu0
  %1158 = vmatprep.mubr.bf16.mxu0 %v493
  %1159 = vmatmul.mubr.bf16.gmra.mrb[0].mxu0 %v492
  %v1160 = vpop.f32.mrb[0].mxu0
  %v1161 = vadd.f32 %v945, %v1160
  %v1162 = vpop.f32.mrb[0].mxu0
  %v1163 = vpop.f32.mrb[0].mxu0
  %v1164 = vadd.f32 %v948, %v1163
  %v1165 = vpop.f32.mrb[0].mxu0
  %1166 = vmatprep.mubr.bf16.mxu0 %v497
  %1167 = vmatmul.mubr.bf16.gmra.mrb[0].mxu0 %v496
  %v1168 = vpop.f32.mrb[0].mxu0
  %v1169 = vadd.f32 %v953, %v1168
  %v1170 = vpop.f32.mrb[0].mxu0
  %v1171 = vpop.f32.mrb[0].mxu0
  %v1172 = vadd.f32 %v956, %v1171
  %v1173 = vpop.f32.mrb[0].mxu0
  %1174 = vmatprep.mubr.bf16.mxu0 %v501
  %1175 = vmatmul.mubr.bf16.gmra.mrb[0].mxu0 %v500
  %v1176 = vpop.f32.mrb[0].mxu0
  %v1177 = vadd.f32 %v961, %v1176
  %v1178 = vpop.f32.mrb[0].mxu0
  %v1179 = vpop.f32.mrb[0].mxu0
  %v1180 = vadd.f32 %v964, %v1179
  %v1181 = vpop.f32.mrb[0].mxu0
  %1182 = vmatprep.mubr.bf16.mxu0 %v505
  %1183 = vmatmul.mubr.bf16.gmra.mrb[0].mxu0 %v504
  %v1184 = vpop.f32.mrb[0].mxu0
  %v1185 = vadd.f32 %v969, %v1184
  %v1186 = vpop.f32.mrb[0].mxu0
  %v1187 = vpop.f32.mrb[0].mxu0
  %v1188 = vadd.f32 %v972, %v1187
  %v1189 = vpop.f32.mrb[0].mxu0
  %1190 = vmatprep.mubr.bf16.mxu0 %v509
  %1191 = vmatmul.mubr.bf16.gmra.mrb[0].mxu0 %v508
  %v1192 = vpop.f32.mrb[0].mxu0
  %v1193 = vadd.f32 %v977, %v1192
  %v1194 = vpop.f32.mrb[0].mxu0
  %v1195 = vpop.f32.mrb[0].mxu0
  %v1196 = vadd.f32 %v980, %v1195
  %v1197 = vpop.f32.mrb[0].mxu0
  %1198 = vmatprep.mubr.bf16.mxu0 %v513
  %1199 = vmatmul.mubr.bf16.gmra.mrb[0].mxu0 %v512
  %v1200 = vpop.f32.mrb[0].mxu0
  %v1201 = vadd.f32 %v985, %v1200
  %v1202 = vpop.f32.mrb[0].mxu0
  %v1203 = vpop.f32.mrb[0].mxu0
  %v1204 = vadd.f32 %v988, %v1203
  %v1205 = vpop.f32.mrb[0].mxu0
  %1206 = vmatprep.mubr.bf16.mxu0 %v517
  %1207 = vmatmul.mubr.bf16.gmra.mrb[0].mxu0 %v516
  %v1208 = vpop.f32.mrb[0].mxu0
  %v1209 = vadd.f32 %v993, %v1208
  %v1210 = vpop.f32.mrb[0].mxu0
  %v1211 = vpop.f32.mrb[0].mxu0
  %v1212 = vadd.f32 %v996, %v1211
  %v1213 = vpop.f32.mrb[0].mxu0
  %1214 = vmatprep.mubr.bf16.mxu0 %v521
  %1215 = vmatmul.mubr.bf16.gmra.mrb[0].mxu0 %v520
  %v1216 = vpop.f32.mrb[0].mxu0
  %v1217 = vadd.f32 %v1001, %v1216
  %v1218 = vpop.f32.mrb[0].mxu0
  %v1219 = vpop.f32.mrb[0].mxu0
  %v1220 = vadd.f32 %v1004, %v1219
  %v1221 = vpop.f32.mrb[0].mxu0
  %1222 = vmatprep.mubr.bf16.mxu0 %v525
  %1223 = vmatmul.mubr.bf16.gmra.mrb[0].mxu0 %v524
  %v1224 = vpop.f32.mrb[0].mxu0
  %v1225 = vadd.f32 %v1009, %v1224
  %v1226 = vpop.f32.mrb[0].mxu0
  %v1227 = vpop.f32.mrb[0].mxu0
  %v1228 = vadd.f32 %v1012, %v1227
  %v1229 = vpop.f32.mrb[0].mxu0
  %1230 = vmatprep.mubr.bf16.mxu0 %v529
  %1231 = vmatmul.mubr.bf16.gmra.mrb[0].mxu0 %v528
  %v1232 = vpop.f32.mrb[0].mxu0
  %v1233 = vadd.f32 %v1017, %v1232
  %v1234 = vpop.f32.mrb[0].mxu0
  %v1235 = vpop.f32.mrb[0].mxu0
  %v1236 = vadd.f32 %v1020, %v1235
  %v1237 = vpop.f32.mrb[0].mxu0
  %1238 = vmatprep.mubr.bf16.mxu0 %v533
  %1239 = vmatmul.mubr.bf16.gmra.mrb[0].mxu0 %v532
  %v1240 = vpop.f32.mrb[0].mxu0
  %v1241 = vadd.f32 %v1025, %v1240
  %v1242 = vpop.f32.mrb[0].mxu0
  %v1243 = vpop.f32.mrb[0].mxu0
  %v1244 = vadd.f32 %v1028, %v1243
  %v1245 = vpop.f32.mrb[0].mxu0
  %1246 = vmatprep.mubr.bf16.mxu0 %v537
  %1247 = vmatmul.mubr.bf16.gmra.mrb[0].mxu0 %v536
  %v1248 = vpop.f32.mrb[0].mxu0
  %v1249 = vadd.f32 %v1033, %v1248
  %v1250 = vpop.f32.mrb[0].mxu0
  %v1251 = vpop.f32.mrb[0].mxu0
  %v1252 = vpop.f32.mrb[0].mxu0
  %1253 = vdwg.mxu0
  %v1254 = vmax.f32 %v1073, 0.0
  %v1255 = vmax.f32 %v1076, 0.0
  %v1256 = vmax.f32 %v1081, 0.0
  %v1257 = vmax.f32 %v1084, 0.0
  %v1258 = vmax.f32 %v1089, 0.0
  %v1259 = vmax.f32 %v1092, 0.0
  %v1260 = vmax.f32 %v1097, 0.0
  %v1261 = vmax.f32 %v1100, 0.0
  %v1262 = vmax.f32 %v1105, 0.0
  %v1263 = vmax.f32 %v1108, 0.0
  %v1264 = vmax.f32 %v1113, 0.0
  %v1265 = vmax.f32 %v1116, 0.0
  %v1266 = vmax.f32 %v1121, 0.0
  %v1267 = vmax.f32 %v1124, 0.0
  %v1268 = vmax.f32 %v1129, 0.0
  %v1269 = vmax.f32 %v1132, 0.0
  %v1270 = vmax.f32 %v1137, 0.0
  %v1271 = vmax.f32 %v1140, 0.0
  %v1272 = vmax.f32 %v1145, 0.0
  %v1273 = vmax.f32 %v1148, 0.0
  %v1274 = vmax.f32 %v1153, 0.0
  %v1275 = vmax.f32 %v1156, 0.0
  %v1276 = vmax.f32 %v1161, 0.0
  %v1277 = vmax.f32 %v1164, 0.0
  %v1278 = vmax.f32 %v1169, 0.0
  %v1279 = vmax.f32 %v1172, 0.0
  %v1280 = vmax.f32 %v1177, 0.0
  %v1281 = vmax.f32 %v1180, 0.0
  %v1282 = vmax.f32 %v1185, 0.0
  %v1283 = vmax.f32 %v1188, 0.0
  %v1284 = vmax.f32 %v1193, 0.0
  %v1285 = vmax.f32 %v1196, 0.0
  %v1286 = vmax.f32 %v1201, 0.0
  %v1287 = vmax.f32 %v1204, 0.0
  %v1288 = vmax.f32 %v1209, 0.0
  %v1289 = vmax.f32 %v1212, 0.0
  %v1290 = vmax.f32 %v1217, 0.0
  %v1291 = vmax.f32 %v1220, 0.0
  %v1292 = vmax.f32 %v1225, 0.0
  %v1293 = vmax.f32 %v1228, 0.0
  %v1294 = vmax.f32 %v1233, 0.0
  %v1295 = vmax.f32 %v1236, 0.0
  %v1296 = vmax.f32 %v1241, 0.0
  %v1297 = vmax.f32 %v1244, 0.0
  %v1298 = vmax.f32 %v1249, 0.0
  %v1299 = vpack.c.bf16 %v1255, %v1254
  %v1300 = vpack.c.bf16 %v1257, %v1256
  %v1301 = vpack.c.bf16 %v1259, %v1258
  %v1302 = vpack.c.bf16 %v1261, %v1260
  %v1303 = vpack.c.bf16 %v1263, %v1262
  %v1304 = vpack.c.bf16 %v1265, %v1264
  %v1305 = vpack.c.bf16 %v1267, %v1266
  %v1306 = vpack.c.bf16 %v1269, %v1268
  %v1307 = vpack.c.bf16 %v1271, %v1270
  %v1308 = vpack.c.bf16 %v1273, %v1272
  %v1309 = vpack.c.bf16 %v1275, %v1274
  %v1310 = vpack.c.bf16 %v1277, %v1276
  %v1311 = vpack.c.bf16 %v1279, %v1278
  %v1312 = vpack.c.bf16 %v1281, %v1280
  %v1313 = vpack.c.bf16 %v1283, %v1282
  %v1314 = vpack.c.bf16 %v1285, %v1284
  %v1315 = vpack.c.bf16 %v1287, %v1286
  %v1316 = vpack.c.bf16 %v1289, %v1288
  %v1317 = vpack.c.bf16 %v1291, %v1290
  %v1318 = vpack.c.bf16 %v1293, %v1292
  %v1319 = vpack.c.bf16 %v1295, %v1294
  %v1320 = vpack.c.bf16 %v1297, %v1296
  %v1321 = vpack.c.bf16 %v1298, %v1298
  %v1345 = vunpack.c.l.b16 %v1299
  %v1346 = vunpack.c.h.b16 %v1299
  %v1347 = vunpack.c.l.b16 %v1300
  %v1348 = vunpack.c.h.b16 %v1300
  %v1349 = vunpack.c.l.b16 %v1301
  %v1350 = vunpack.c.h.b16 %v1301
  %v1351 = vunpack.c.l.b16 %v1302
  %v1352 = vunpack.c.h.b16 %v1302
  %v1353 = vunpack.c.l.b16 %v1303
  %v1354 = vunpack.c.h.b16 %v1303
  %v1355 = vunpack.c.l.b16 %v1304
  %v1356 = vunpack.c.h.b16 %v1304
  %v1357 = vunpack.c.l.b16 %v1305
  %v1358 = vunpack.c.h.b16 %v1305
  %v1359 = vunpack.c.l.b16 %v1306
  %v1360 = vunpack.c.h.b16 %v1306
  %v1361 = vunpack.c.l.b16 %v1307
  %v1362 = vunpack.c.h.b16 %v1307
  %v1363 = vunpack.c.l.b16 %v1308
  %v1364 = vunpack.c.h.b16 %v1308
  %v1365 = vunpack.c.l.b16 %v1309
  %v1366 = vunpack.c.h.b16 %v1309
  %v1367 = vunpack.c.l.b16 %v1310
  %v1368 = vunpack.c.h.b16 %v1310
  %v1369 = vunpack.c.l.b16 %v1311
  %v1370 = vunpack.c.h.b16 %v1311
  %v1371 = vunpack.c.l.b16 %v1312
  %v1372 = vunpack.c.h.b16 %v1312
  %v1373 = vunpack.c.l.b16 %v1313
  %v1374 = vunpack.c.h.b16 %v1313
  %v1375 = vunpack.c.l.b16 %v1314
  %v1376 = vunpack.c.h.b16 %v1314
  %v1377 = vunpack.c.l.b16 %v1315
  %v1378 = vunpack.c.h.b16 %v1315
  %v1379 = vunpack.c.l.b16 %v1316
  %v1380 = vunpack.c.h.b16 %v1316
  %v1381 = vunpack.c.l.b16 %v1317
  %v1382 = vunpack.c.h.b16 %v1317
  %v1383 = vunpack.c.l.b16 %v1318
  %v1384 = vunpack.c.h.b16 %v1318
  %v1385 = vunpack.c.l.b16 %v1319
  %v1386 = vunpack.c.h.b16 %v1319
  %v1387 = vunpack.c.l.b16 %v1320
  %v1388 = vunpack.c.h.b16 %v1320
  %v1389 = vunpack.c.l.b16 %v1321
  %v1390 = vpack.c.b16 %v1345, %v1345
  %v1391 = vpack.c.b16 %v1346, %v1346
  %v1392 = vpack.c.b16 %v1347, %v1347
  %v1393 = vpack.c.b16 %v1348, %v1348
  %v1394 = vpack.c.b16 %v1349, %v1349
  %v1395 = vpack.c.b16 %v1350, %v1350
  %v1396 = vpack.c.b16 %v1351, %v1351
  %v1397 = vpack.c.b16 %v1352, %v1352
  %v1398 = vpack.c.b16 %v1353, %v1353
  %v1399 = vpack.c.b16 %v1354, %v1354
  %v1400 = vpack.c.b16 %v1355, %v1355
  %v1401 = vpack.c.b16 %v1356, %v1356
  %v1402 = vpack.c.b16 %v1357, %v1357
  %v1403 = vpack.c.b16 %v1358, %v1358
  %v1404 = vpack.c.b16 %v1359, %v1359
  %v1405 = vpack.c.b16 %v1360, %v1360
  %v1406 = vpack.c.b16 %v1361, %v1361
  %v1407 = vpack.c.b16 %v1362, %v1362
  %v1408 = vpack.c.b16 %v1363, %v1363
  %v1409 = vpack.c.b16 %v1364, %v1364
  %v1410 = vpack.c.b16 %v1365, %v1365
  %v1411 = vpack.c.b16 %v1366, %v1366
  %v1412 = vpack.c.b16 %v1367, %v1367
  %v1413 = vpack.c.b16 %v1368, %v1368
  %v1414 = vpack.c.b16 %v1369, %v1369
  %v1415 = vpack.c.b16 %v1370, %v1370
  %v1416 = vpack.c.b16 %v1371, %v1371
  %v1417 = vpack.c.b16 %v1372, %v1372
  %v1418 = vpack.c.b16 %v1373, %v1373
  %v1419 = vpack.c.b16 %v1374, %v1374
  %v1420 = vpack.c.b16 %v1375, %v1375
  %v1421 = vpack.c.b16 %v1376, %v1376
  %v1422 = vpack.c.b16 %v1377, %v1377
  %v1423 = vpack.c.b16 %v1378, %v1378
  %v1424 = vpack.c.b16 %v1379, %v1379
  %v1425 = vpack.c.b16 %v1380, %v1380
  %v1426 = vpack.c.b16 %v1381, %v1381
  %v1427 = vpack.c.b16 %v1382, %v1382
  %v1428 = vpack.c.b16 %v1383, %v1383
  %v1429 = vpack.c.b16 %v1384, %v1384
  %v1430 = vpack.c.b16 %v1385, %v1385
  %v1431 = vpack.c.b16 %v1386, %v1386
  %v1432 = vpack.c.b16 %v1387, %v1387
  %v1433 = vpack.c.b16 %v1388, %v1388
  %v1434 = vpack.c.b16 %v1389, %v1389
  %vm1480 = vcmask 519168
  %1481 = vst.msk [vmem:[%s3] sm:$0xf] %vm1480, %v1390
  %1482 = vst.msk [vmem:[%s3 + $0x4] sm:$0xf] %vm1480, %v1391
  %1483 = vst.msk [vmem:[%s3 + $0x8] sm:$0xf] %vm1480, %v1392
  %1484 = vst.msk [vmem:[%s3 + $0xc] sm:$0xf] %vm1480, %v1393
  %1485 = vst.msk [vmem:[%s3 + $0x10] sm:$0xf] %vm1480, %v1394
  %1486 = vst.msk [vmem:[%s3 + $0x14] sm:$0xf] %vm1480, %v1395
  %1487 = vst.msk [vmem:[%s3 + $0x18] sm:$0xf] %vm1480, %v1396
  %1488 = vst.msk [vmem:[%s3 + $0x1c] sm:$0xf] %vm1480, %v1397
  %1489 = vst.msk [vmem:[%s3 + $0x20] sm:$0xf] %vm1480, %v1398
  %1490 = vst.msk [vmem:[%s3 + $0x24] sm:$0xf] %vm1480, %v1399
  %1491 = vst.msk [vmem:[%s3 + $0x28] sm:$0xf] %vm1480, %v1400
  %1492 = vst.msk [vmem:[%s3 + $0x2c] sm:$0xf] %vm1480, %v1401
  %1493 = vst.msk [vmem:[%s3 + $0x30] sm:$0xf] %vm1480, %v1402
  %1494 = vst.msk [vmem:[%s3 + $0x34] sm:$0xf] %vm1480, %v1403
  %1495 = vst.msk [vmem:[%s3 + $0x38] sm:$0xf] %vm1480, %v1404
  %1496 = vst.msk [vmem:[%s3 + $0x3c] sm:$0xf] %vm1480, %v1405
  %1497 = vst.msk [vmem:[%s3 + $0x40] sm:$0xf] %vm1480, %v1406
  %1498 = vst.msk [vmem:[%s3 + $0x44] sm:$0xf] %vm1480, %v1407
  %1499 = vst.msk [vmem:[%s3 + $0x48] sm:$0xf] %vm1480, %v1408
  %1500 = vst.msk [vmem:[%s3 + $0x4c] sm:$0xf] %vm1480, %v1409
  %1501 = vst.msk [vmem:[%s3 + $0x50] sm:$0xf] %vm1480, %v1410
  %1502 = vst.msk [vmem:[%s3 + $0x54] sm:$0xf] %vm1480, %v1411
  %1503 = vst.msk [vmem:[%s3 + $0x58] sm:$0xf] %vm1480, %v1412
  %1504 = vst.msk [vmem:[%s3 + $0x5c] sm:$0xf] %vm1480, %v1413
  %1505 = vst.msk [vmem:[%s3 + $0x60] sm:$0xf] %vm1480, %v1414
  %1506 = vst.msk [vmem:[%s3 + $0x64] sm:$0xf] %vm1480, %v1415
  %1507 = vst.msk [vmem:[%s3 + $0x68] sm:$0xf] %vm1480, %v1416
  %1508 = vst.msk [vmem:[%s3 + $0x6c] sm:$0xf] %vm1480, %v1417
  %1509 = vst.msk [vmem:[%s3 + $0x70] sm:$0xf] %vm1480, %v1418
  %1510 = vst.msk [vmem:[%s3 + $0x74] sm:$0xf] %vm1480, %v1419
  %1511 = vst.msk [vmem:[%s3 + $0x78] sm:$0xf] %vm1480, %v1420
  %1512 = vst.msk [vmem:[%s3 + $0x7c] sm:$0xf] %vm1480, %v1421
  %1513 = vst.msk [vmem:[%s3 + $0x80] sm:$0xf] %vm1480, %v1422
  %1514 = vst.msk [vmem:[%s3 + $0x84] sm:$0xf] %vm1480, %v1423
  %1515 = vst.msk [vmem:[%s3 + $0x88] sm:$0xf] %vm1480, %v1424
  %1516 = vst.msk [vmem:[%s3 + $0x8c] sm:$0xf] %vm1480, %v1425
  %1517 = vst.msk [vmem:[%s3 + $0x90] sm:$0xf] %vm1480, %v1426
  %1518 = vst.msk [vmem:[%s3 + $0x94] sm:$0xf] %vm1480, %v1427
  %1519 = vst.msk [vmem:[%s3 + $0x98] sm:$0xf] %vm1480, %v1428
  %1520 = vst.msk [vmem:[%s3 + $0x9c] sm:$0xf] %vm1480, %v1429
  %1521 = vst.msk [vmem:[%s3 + $0xa0] sm:$0xf] %vm1480, %v1430
  %1522 = vst.msk [vmem:[%s3 + $0xa4] sm:$0xf] %vm1480, %v1431
  %1523 = vst.msk [vmem:[%s3 + $0xa8] sm:$0xf] %vm1480, %v1432
  %1524 = vst.msk [vmem:[%s3 + $0xac] sm:$0xf] %vm1480, %v1433
  %1525 = vst.msk [vmem:[%s3 + $0xb0] sm:$0xf] %vm1480, %v1434
  // Predicated region
  $region14: #{nature_cnn_forward.8} parent=0 // pred_check
    _
  $region15: #{nature_cnn_forward.8} parent=0 // pred_check_branch
    %1527 = sbr.rel (0) target = $region17
  $region16: #{nature_cnn_forward.8} parent=0 // pred_region
    _
  $region17: #{nature_cnn_forward.8} parent=0 // pred_fallthru
    _
  // Predicated region
  $region18: #{nature_cnn_forward.8} parent=0 // pred_check
    _
  $region19: #{nature_cnn_forward.8} parent=0 // pred_check_branch
    %1529 = sbr.rel (0) target = $region21
  $region20: #{nature_cnn_forward.8} parent=0 // pred_region
    _
  $region21: #{nature_cnn_forward.8} parent=0 // pred_fallthru
    _

// kernel: nature_cnn_forward.9
$region0: #{nature_cnn_forward.9}
  #allocation0 [shape = 'u32[]', space=smem, size = 0x4, offset = 0x4, fixed_abs, tag = 'smem constant byte address 0x4 - core index']
  #allocation1 [shape = 'u32[144,128]{1,0:T(1,128)}', space=vmem, size = 0x12000, scoped, tag = 'internal scratch']
  %s0 = inlined_call_operand.vmem [shape: bf16[40,576], index: 0, kind: input, shape index: {}]
  %s1 = inlined_call_operand.vmem [shape: bf16[576,64], index: 1, kind: input, shape index: {}]
  %s2 = inlined_call_operand.vmem [shape: f32[1,64], index: 2, kind: input, shape index: {}]
  %s3 = inlined_call_operand.vmem [shape: bf16[40,64], index: 3, kind: output, shape index: {}]
  %s4 = sld [smem:[#allocation0]]
  $region22: #{nature_cnn_forward.9} parent=0
    _
  %s6 = ssub.s32 1, %s4
  %s7 = scalar_select 0, %s6, %s4
  // Predicated region
  $region2: #{nature_cnn_forward.9} parent=0 // pred_check
    _
  $region3: #{nature_cnn_forward.9} parent=0 // pred_check_branch
    %9 = sbr.rel (0) target = $region5
  $region4: #{nature_cnn_forward.9} parent=0 // pred_region
    _
  $region5: #{nature_cnn_forward.9} parent=0 // pred_fallthru
    _
  // Predicated region
  $region6: #{nature_cnn_forward.9} parent=0 // pred_check
    _
  $region7: #{nature_cnn_forward.9} parent=0 // pred_check_branch
    %11 = sbr.rel (0) target = $region9
  $region8: #{nature_cnn_forward.9} parent=0 // pred_region
    _
  $region9: #{nature_cnn_forward.9} parent=0 // pred_fallthru
    _
  // Predicated region
  $region10: #{nature_cnn_forward.9} parent=0 // pred_check
    _
  $region11: #{nature_cnn_forward.9} parent=0 // pred_check_branch
    %13 = sbr.rel (0) target = $region13
  $region12: #{nature_cnn_forward.9} parent=0 // pred_region
    _
  $region13: #{nature_cnn_forward.9} parent=0 // pred_fallthru
    _
  %v15 = vld [vmem:[%s0] sm:$0xff]
  %v16 = vld [vmem:[%s0 + $0x8] sm:$0xff]
  %v17 = vld [vmem:[%s0 + $0x10] sm:$0xf]
  %v18 = vld [vmem:[%s0 + $0x14] sm:$0xff]
  %v19 = vld [vmem:[%s0 + $0x1c] sm:$0xff]
  %v20 = vld [vmem:[%s0 + $0x24] sm:$0xf]
  %v21 = vld [vmem:[%s0 + $0x28] sm:$0xff]
  %v22 = vld [vmem:[%s0 + $0x30] sm:$0xff]
  %v23 = vld [vmem:[%s0 + $0x38] sm:$0xf]
  %v24 = vld [vmem:[%s0 + $0x3c] sm:$0xff]
  %v25 = vld [vmem:[%s0 + $0x44] sm:$0xff]
  %v26 = vld [vmem:[%s0 + $0x4c] sm:$0xf]
  %v27 = vld [vmem:[%s0 + $0x50] sm:$0xff]
  %v28 = vld [vmem:[%s0 + $0x58] sm:$0xff]
  %v29 = vld [vmem:[%s0 + $0x60] sm:$0xf]
  %v30 = vld [vmem:[%s1] sm:$0xf]
  %v31 = vld [vmem:[%s1 + $0x4] sm:$0xf]
  %v32 = vld [vmem:[%s1 + $0x8] sm:$0xf]
  %v33 = vld [vmem:[%s1 + $0xc] sm:$0xf]
  %v34 = vld [vmem:[%s1 + $0x10] sm:$0xf]
  %v35 = vld [vmem:[%s1 + $0x14] sm:$0xf]
  %v36 = vld [vmem:[%s1 + $0x18] sm:$0xf]
  %v37 = vld [vmem:[%s1 + $0x1c] sm:$0xf]
  %v38 = vld [vmem:[%s1 + $0x20] sm:$0xf]
  %v39 = vld [vmem:[%s1 + $0x24] sm:$0xf]
  %v40 = vld [vmem:[%s1 + $0x28] sm:$0xf]
  %v41 = vld [vmem:[%s1 + $0x2c] sm:$0xf]
  %v42 = vld [vmem:[%s1 + $0x30] sm:$0xf]
  %v43 = vld [vmem:[%s1 + $0x34] sm:$0xf]
  %v44 = vld [vmem:[%s1 + $0x38] sm:$0xf]
  %v45 = vld [vmem:[%s1 + $0x3c] sm:$0xf]
  %v46 = vld [vmem:[%s1 + $0x40] sm:$0xf]
  %v47 = vld [vmem:[%s1 + $0x44] sm:$0xf]
  %v48 = vld [vmem:[%s1 + $0x48] sm:$0xf]
  %v49 = vld [vmem:[%s1 + $0x4c] sm:$0xf]
  %v50 = vld [vmem:[%s1 + $0x50] sm:$0xf]
  %v51 = vld [vmem:[%s1 + $0x54] sm:$0xf]
  %v52 = vld [vmem:[%s1 + $0x58] sm:$0xf]
  %v53 = vld [vmem:[%s1 + $0x5c] sm:$0xf]
  %v54 = vld [vmem:[%s1 + $0x60] sm:$0xf]
  %v55 = vld [vmem:[%s1 + $0x64] sm:$0xf]
  %v56 = vld [vmem:[%s1 + $0x68] sm:$0xf]
  %v57 = vld [vmem:[%s1 + $0x6c] sm:$0xf]
  %v58 = vld [vmem:[%s1 + $0x70] sm:$0xf]
  %v59 = vld [vmem:[%s1 + $0x74] sm:$0xf]
  %v60 = vld [vmem:[%s1 + $0x78] sm:$0xf]
  %v61 = vld [vmem:[%s1 + $0x7c] sm:$0xf]
  %v62 = vld [vmem:[%s1 + $0x80] sm:$0xf]
  %v63 = vld [vmem:[%s1 + $0x84] sm:$0xf]
  %v64 = vld [vmem:[%s1 + $0x88] sm:$0xf]
  %v65 = vld [vmem:[%s1 + $0x8c] sm:$0xf]
  %v66 = vld [vmem:[%s1 + $0x90] sm:$0xf]
  %v67 = vld [vmem:[%s1 + $0x94] sm:$0xf]
  %v68 = vld [vmem:[%s1 + $0x98] sm:$0xf]
  %v69 = vld [vmem:[%s1 + $0x9c] sm:$0xf]
  %v70 = vld [vmem:[%s1 + $0xa0] sm:$0xf]
  %v71 = vld [vmem:[%s1 + $0xa4] sm:$0xf]
  %v72 = vld [vmem:[%s1 + $0xa8] sm:$0xf]
  %v73 = vld [vmem:[%s1 + $0xac] sm:$0xf]
  %v74 = vld [vmem:[%s1 + $0xb0] sm:$0xf]
  %v75 = vld [vmem:[%s1 + $0xb4] sm:$0xf]
  %v76 = vld [vmem:[%s1 + $0xb8] sm:$0xf]
  %v77 = vld [vmem:[%s1 + $0xbc] sm:$0xf]
  %v78 = vld [vmem:[%s1 + $0xc0] sm:$0xf]
  %v79 = vld [vmem:[%s1 + $0xc4] sm:$0xf]
  %v80 = vld [vmem:[%s1 + $0xc8] sm:$0xf]
  %v81 = vld [vmem:[%s1 + $0xcc] sm:$0xf]
  %v82 = vld [vmem:[%s1 + $0xd0] sm:$0xf]
  %v83 = vld [vmem:[%s1 + $0xd4] sm:$0xf]
  %v84 = vld [vmem:[%s1 + $0xd8] sm:$0xf]
  %v85 = vld [vmem:[%s1 + $0xdc] sm:$0xf]
  %v86 = vld [vmem:[%s1 + $0xe0] sm:$0xf]
  %v87 = vld [vmem:[%s1 + $0xe4] sm:$0xf]
  %v88 = vld [vmem:[%s1 + $0xe8] sm:$0xf]
  %v89 = vld [vmem:[%s1 + $0xec] sm:$0xf]
  %v90 = vld [vmem:[%s1 + $0xf0] sm:$0xf]
  %v91 = vld [vmem:[%s1 + $0xf4] sm:$0xf]
  %v92 = vld [vmem:[%s1 + $0xf8] sm:$0xf]
  %v93 = vld [vmem:[%s1 + $0xfc] sm:$0xf]
  %v94 = vld [vmem:[%s1 + $0x100] sm:$0xf]
  %v95 = vld [vmem:[%s1 + $0x104] sm:$0xf]
  %v96 = vld [vmem:[%s1 + $0x108] sm:$0xf]
  %v97 = vld [vmem:[%s1 + $0x10c] sm:$0xf]
  %v98 = vld [vmem:[%s1 + $0x110] sm:$0xf]
  %v99 = vld [vmem:[%s1 + $0x114] sm:$0xf]
  %v100 = vld [vmem:[%s1 + $0x118] sm:$0xf]
  %v101 = vld [vmem:[%s1 + $0x11c] sm:$0xf]
  %v102 = vld [vmem:[%s2] sm:$0x1]
  %v104 = vlaneseq
  %v105 = vshrl.u32 %v104, 7
  %v106 = vsub.s32 0, %v105
  %v107 = vrot.slane %v102, %v106
  %v124 = vunpack.c.l.b16 %v15
  %v125 = vunpack.c.h.b16 %v15
  %v126 = vunpack.c.l.b16 %v16
  %v127 = vunpack.c.h.b16 %v16
  %v128 = vunpack.c.l.b16 %v17
  %v129 = vunpack.c.l.b16 %v18
  %v130 = vunpack.c.h.b16 %v18
  %v131 = vunpack.c.l.b16 %v19
  %v132 = vunpack.c.h.b16 %v19
  %v133 = vunpack.c.l.b16 %v20
  %v134 = vunpack.c.l.b16 %v21
  %v135 = vunpack.c.h.b16 %v21
  %v136 = vunpack.c.l.b16 %v22
  %v137 = vunpack.c.h.b16 %v22
  %v138 = vunpack.c.l.b16 %v23
  %v139 = vunpack.c.l.b16 %v24
  %v140 = vunpack.c.h.b16 %v24
  %v141 = vunpack.c.l.b16 %v25
  %v142 = vunpack.c.h.b16 %v25
  %v143 = vunpack.c.l.b16 %v26
  %v144 = vunpack.c.l.b16 %v27
  %v145 = vunpack.c.h.b16 %v27
  %v146 = vunpack.c.l.b16 %v28
  %v147 = vunpack.c.h.b16 %v28
  %v148 = vunpack.c.l.b16 %v29
  %v149 = vpack.c.b16 %v129, %v124
  %v150 = vpack.c.b16 %v130, %v125
  %v151 = vpack.c.b16 %v131, %v126
  %v152 = vpack.c.b16 %v132, %v127
  %v153 = vpack.c.b16 %v133, %v128
  %v154 = vpack.c.b16 %v139, %v134
  %v155 = vpack.c.b16 %v140, %v135
  %v156 = vpack.c.b16 %v141, %v136
  %v157 = vpack.c.b16 %v142, %v137
  %v158 = vpack.c.b16 %v143, %v138
  %v159 = vpack.c.b16 %v144, %v144
  %v160 = vpack.c.b16 %v145, %v145
  %v161 = vpack.c.b16 %v146, %v146
  %v162 = vpack.c.b16 %v147, %v147
  %v163 = vpack.c.b16 %v148, %v148
  %v248 = vunpack.c.l.b16 %v30
  %v249 = vunpack.c.l.b16 %v31
  %v250 = vunpack.c.l.b16 %v32
  %v251 = vunpack.c.l.b16 %v33
  %v252 = vunpack.c.l.b16 %v34
  %v253 = vunpack.c.l.b16 %v35
  %v254 = vunpack.c.l.b16 %v36
  %v255 = vunpack.c.l.b16 %v37
  %v256 = vunpack.c.l.b16 %v38
  %v257 = vunpack.c.l.b16 %v39
  %v258 = vunpack.c.l.b16 %v40
  %v259 = vunpack.c.l.b16 %v41
  %v260 = vunpack.c.l.b16 %v42
  %v261 = vunpack.c.l.b16 %v43
  %v262 = vunpack.c.l.b16 %v44
  %v263 = vunpack.c.l.b16 %v45
  %v264 = vunpack.c.l.b16 %v46
  %v265 = vunpack.c.l.b16 %v47
  %v266 = vunpack.c.l.b16 %v48
  %v267 = vunpack.c.l.b16 %v49
  %v268 = vunpack.c.l.b16 %v50
  %v269 = vunpack.c.l.b16 %v51
  %v270 = vunpack.c.l.b16 %v52
  %v271 = vunpack.c.l.b16 %v53
  %v272 = vunpack.c.l.b16 %v54
  %v273 = vunpack.c.l.b16 %v55
  %v274 = vunpack.c.l.b16 %v56
  %v275 = vunpack.c.l.b16 %v57
  %v276 = vunpack.c.l.b16 %v58
  %v277 = vunpack.c.l.b16 %v59
  %v278 = vunpack.c.l.b16 %v60
  %v279 = vunpack.c.l.b16 %v61
  %v280 = vunpack.c.l.b16 %v62
  %v281 = vunpack.c.l.b16 %v63
  %v282 = vunpack.c.l.b16 %v64
  %v283 = vunpack.c.l.b16 %v65
  %v284 = vunpack.c.l.b16 %v66
  %v285 = vunpack.c.l.b16 %v67
  %v286 = vunpack.c.l.b16 %v68
  %v287 = vunpack.c.l.b16 %v69
  %v288 = vunpack.c.l.b16 %v70
  %v289 = vunpack.c.l.b16 %v71
  %v290 = vunpack.c.l.b16 %v72
  %v291 = vunpack.c.l.b16 %v73
  %v292 = vunpack.c.l.b16 %v74
  %v293 = vunpack.c.l.b16 %v75
  %v294 = vunpack.c.l.b16 %v76
  %v295 = vunpack.c.l.b16 %v77
  %v296 = vunpack.c.l.b16 %v78
  %v297 = vunpack.c.l.b16 %v79
  %v298 = vunpack.c.l.b16 %v80
  %v299 = vunpack.c.l.b16 %v81
  %v300 = vunpack.c.l.b16 %v82
  %v301 = vunpack.c.l.b16 %v83
  %v302 = vunpack.c.l.b16 %v84
  %v303 = vunpack.c.l.b16 %v85
  %v304 = vunpack.c.l.b16 %v86
  %v305 = vunpack.c.l.b16 %v87
  %v306 = vunpack.c.l.b16 %v88
  %v307 = vunpack.c.l.b16 %v89
  %v308 = vunpack.c.l.b16 %v90
  %v309 = vunpack.c.l.b16 %v91
  %v310 = vunpack.c.l.b16 %v92
  %v311 = vunpack.c.l.b16 %v93
  %v312 = vunpack.c.l.b16 %v94
  %v313 = vunpack.c.l.b16 %v95
  %v314 = vunpack.c.l.b16 %v96
  %v315 = vunpack.c.l.b16 %v97
  %v316 = vunpack.c.l.b16 %v98
  %v317 = vunpack.c.l.b16 %v99
  %v318 = vunpack.c.l.b16 %v100
  %v319 = vunpack.c.l.b16 %v101
  %v320 = vpack.c.b16 %v249, %v248
  %v321 = vpack.c.b16 %v251, %v250
  %v322 = vpack.c.b16 %v253, %v252
  %v323 = vpack.c.b16 %v255, %v254
  %v324 = vpack.c.b16 %v257, %v256
  %v325 = vpack.c.b16 %v259, %v258
  %v326 = vpack.c.b16 %v261, %v260
  %v327 = vpack.c.b16 %v263, %v262
  %v328 = vpack.c.b16 %v265, %v264
  %v329 = vpack.c.b16 %v267, %v266
  %v330 = vpack.c.b16 %v269, %v268
  %v331 = vpack.c.b16 %v271, %v270
  %v332 = vpack.c.b16 %v273, %v272
  %v333 = vpack.c.b16 %v275, %v274
  %v334 = vpack.c.b16 %v277, %v276
  %v335 = vpack.c.b16 %v279, %v278
  %v336 = vpack.c.b16 %v281, %v280
  %v337 = vpack.c.b16 %v283, %v282
  %v338 = vpack.c.b16 %v285, %v284
  %v339 = vpack.c.b16 %v287, %v286
  %v340 = vpack.c.b16 %v289, %v288
  %v341 = vpack.c.b16 %v291, %v290
  %v342 = vpack.c.b16 %v293, %v292
  %v343 = vpack.c.b16 %v295, %v294
  %v344 = vpack.c.b16 %v297, %v296
  %v345 = vpack.c.b16 %v299, %v298
  %v346 = vpack.c.b16 %v301, %v300
  %v347 = vpack.c.b16 %v303, %v302
  %v348 = vpack.c.b16 %v305, %v304
  %v349 = vpack.c.b16 %v307, %v306
  %v350 = vpack.c.b16 %v309, %v308
  %v351 = vpack.c.b16 %v311, %v310
  %v352 = vpack.c.b16 %v313, %v312
  %v353 = vpack.c.b16 %v315, %v314
  %v354 = vpack.c.b16 %v317, %v316
  %v355 = vpack.c.b16 %v319, %v318
  %vm392 = vcmask 523264
  %v394 = vsel %vm392, %v153, 0
  %v397 = vsel %vm392, %v158, 0
  %v400 = vsel %vm392, %v163, 0
  %402 = vmatprep.subr.bf16.mxu0 0
  %403 = vmatpush1.bf16.msra.mxu0 %v320
  %404 = vmatprep.subr.bf16.mxu0 0
  %405 = vmatpush1.bf16.msra.mxu0 %v321
  %406 = vmatprep.subr.bf16.mxu0 0
  %407 = vmatpush1.bf16.msra.mxu0 %v322
  %408 = vmatprep.subr.bf16.mxu0 0
  %409 = vmatpush1.bf16.msra.mxu0 %v323
  %410 = vmatprep.subr.bf16.mxu0 0
  %411 = vmatpush1.bf16.msra.mxu0 %v324
  %412 = vmatprep.subr.bf16.mxu0 0
  %413 = vmatpush1.bf16.msra.mxu0 %v325
  %414 = vmatprep.subr.bf16.mxu0 0
  %415 = vmatpush1.bf16.msra.mxu0 %v326
  %416 = vmatprep.subr.bf16.mxu0 0
  %417 = vmatpush1.bf16.msra.mxu0 %v327
  %418 = vmatprep.subr.bf16.mxu0 0
  %419 = vmatpush1.bf16.msra.mxu0 %v328
  %420 = vmatprep.subr.bf16.mxu0 0
  %421 = vmatpush1.bf16.msra.mxu0 %v329
  %422 = vmatprep.subr.bf16.mxu0 0
  %423 = vmatpush1.bf16.msra.mxu0 %v330
  %424 = vmatprep.subr.bf16.mxu0 0
  %425 = vmatpush1.bf16.msra.mxu0 %v331
  %426 = vmatprep.subr.bf16.mxu0 0
  %427 = vmatpush1.bf16.msra.mxu0 %v332
  %428 = vmatprep.subr.bf16.mxu0 0
  %429 = vmatpush1.bf16.msra.mxu0 %v333
  %430 = vmatprep.subr.bf16.mxu0 0
  %431 = vmatpush1.bf16.msra.mxu0 %v334
  %432 = vmatprep.subr.bf16.mxu0 0
  %433 = vmatpush1.bf16.msra.mxu0 %v335
  %434 = vmatprep.mubr.bf16.mxu0 %v150
  %435 = vmatmul.mubr.bf16.gmra.mrb[0].mxu0 %v149
  %v436 = vpop.f32.mrb[0].mxu0
  %v437 = vadd.f32 %v107, %v436
  %v438 = vpop.f32.mrb[0].mxu0
  %v439 = vpop.f32.mrb[0].mxu0
  %v440 = vadd.f32 %v107, %v439
  %v441 = vpop.f32.mrb[0].mxu0
  %442 = vmatprep.mubr.bf16.mxu0 %v155
  %443 = vmatmul.mubr.bf16.gmra.mrb[0].mxu0 %v154
  %v444 = vpop.f32.mrb[0].mxu0
  %v445 = vadd.f32 %v107, %v444
  %v446 = vpop.f32.mrb[0].mxu0
  %v447 = vpop.f32.mrb[0].mxu0
  %v448 = vadd.f32 %v107, %v447
  %v449 = vpop.f32.mrb[0].mxu0
  %450 = vmatprep.mubr.bf16.mxu0 %v160
  %451 = vmatmul.mubr.bf16.gmra.mrb[0].mxu0 %v159
  %v452 = vpop.f32.mrb[0].mxu0
  %v453 = vadd.f32 %v107, %v452
  %v454 = vpop.f32.mrb[0].mxu0
  %v455 = vpop.f32.mrb[0].mxu0
  %v456 = vpop.f32.mrb[0].mxu0
  %457 = vdwg.mxu0
  %458 = vmatprep.subr.bf16.mxu0 0
  %459 = vmatpush1.bf16.msra.mxu0 %v336
  %460 = vmatprep.subr.bf16.mxu0 0
  %461 = vmatpush1.bf16.msra.mxu0 %v337
  %462 = vmatprep.subr.bf16.mxu0 0
  %463 = vmatpush1.bf16.msra.mxu0 %v338
  %464 = vmatprep.subr.bf16.mxu0 0
  %465 = vmatpush1.bf16.msra.mxu0 %v339
  %466 = vmatprep.subr.bf16.mxu0 0
  %467 = vmatpush1.bf16.msra.mxu0 %v340
  %468 = vmatprep.subr.bf16.mxu0 0
  %469 = vmatpush1.bf16.msra.mxu0 %v341
  %470 = vmatprep.subr.bf16.mxu0 0
  %471 = vmatpush1.bf16.msra.mxu0 %v342
  %472 = vmatprep.subr.bf16.mxu0 0
  %473 = vmatpush1.bf16.msra.mxu0 %v343
  %474 = vmatprep.subr.bf16.mxu0 0
  %475 = vmatpush1.bf16.msra.mxu0 %v344
  %476 = vmatprep.subr.bf16.mxu0 0
  %477 = vmatpush1.bf16.msra.mxu0 %v345
  %478 = vmatprep.subr.bf16.mxu0 0
  %479 = vmatpush1.bf16.msra.mxu0 %v346
  %480 = vmatprep.subr.bf16.mxu0 0
  %481 = vmatpush1.bf16.msra.mxu0 %v347
  %482 = vmatprep.subr.bf16.mxu0 0
  %483 = vmatpush1.bf16.msra.mxu0 %v348
  %484 = vmatprep.subr.bf16.mxu0 0
  %485 = vmatpush1.bf16.msra.mxu0 %v349
  %486 = vmatprep.subr.bf16.mxu0 0
  %487 = vmatpush1.bf16.msra.mxu0 %v350
  %488 = vmatprep.subr.bf16.mxu0 0
  %489 = vmatpush1.bf16.msra.mxu0 %v351
  %490 = vmatprep.mubr.bf16.mxu0 %v152
  %491 = vmatmul.mubr.bf16.gmra.mrb[0].mxu0 %v151
  %v492 = vpop.f32.mrb[0].mxu0
  %v493 = vadd.f32 %v437, %v492
  %v494 = vpop.f32.mrb[0].mxu0
  %v495 = vpop.f32.mrb[0].mxu0
  %v496 = vadd.f32 %v440, %v495
  %v497 = vpop.f32.mrb[0].mxu0
  %498 = vmatprep.mubr.bf16.mxu0 %v157
  %499 = vmatmul.mubr.bf16.gmra.mrb[0].mxu0 %v156
  %v500 = vpop.f32.mrb[0].mxu0
  %v501 = vadd.f32 %v445, %v500
  %v502 = vpop.f32.mrb[0].mxu0
  %v503 = vpop.f32.mrb[0].mxu0
  %v504 = vadd.f32 %v448, %v503
  %v505 = vpop.f32.mrb[0].mxu0
  %506 = vmatprep.mubr.bf16.mxu0 %v162
  %507 = vmatmul.mubr.bf16.gmra.mrb[0].mxu0 %v161
  %v508 = vpop.f32.mrb[0].mxu0
  %v509 = vadd.f32 %v453, %v508
  %v510 = vpop.f32.mrb[0].mxu0
  %v511 = vpop.f32.mrb[0].mxu0
  %v512 = vpop.f32.mrb[0].mxu0
  %513 = vdwg.mxu0
  %514 = vmatprep.subr.bf16.mxu0 0
  %515 = vmatpush1.bf16.msra.mxu0 %v352
  %516 = vmatprep.subr.bf16.mxu0 0
  %517 = vmatpush1.bf16.msra.mxu0 %v353
  %518 = vmatprep.subr.bf16.mxu0 0
  %519 = vmatpush1.bf16.msra.mxu0 %v354
  %520 = vmatprep.subr.bf16.mxu0 0
  %521 = vmatpush1.bf16.msra.mxu0 %v355
  %522 = vmatprep.subr.bf16.mxu0 0
  %523 = vmatpush1.bf16.msra.mxu0 0
  %524 = vmatprep.subr.bf16.mxu0 0
  %525 = vmatpush1.bf16.msra.mxu0 0
  %526 = vmatprep.subr.bf16.mxu0 0
  %527 = vmatpush1.bf16.msra.mxu0 0
  %528 = vmatprep.subr.bf16.mxu0 0
  %529 = vmatpush1.bf16.msra.mxu0 0
  %530 = vmatprep.subr.bf16.mxu0 0
  %531 = vmatpush1.bf16.msra.mxu0 0
  %532 = vmatprep.subr.bf16.mxu0 0
  %533 = vmatpush1.bf16.msra.mxu0 0
  %534 = vmatprep.subr.bf16.mxu0 0
  %535 = vmatpush1.bf16.msra.mxu0 0
  %536 = vmatprep.subr.bf16.mxu0 0
  %537 = vmatpush1.bf16.msra.mxu0 0
  %538 = vmatprep.subr.bf16.mxu0 0
  %539 = vmatpush1.bf16.msra.mxu0 0
  %540 = vmatprep.subr.bf16.mxu0 0
  %541 = vmatpush1.bf16.msra.mxu0 0
  %542 = vmatprep.subr.bf16.mxu0 0
  %543 = vmatpush1.bf16.msra.mxu0 0
  %544 = vmatprep.subr.bf16.mxu0 0
  %545 = vmatpush1.bf16.msra.mxu0 0
  %546 = vmatprep.mubr.bf16.mxu0 0
  %547 = vmatmul.mubr.bf16.gmra.mrb[0].mxu0 %v394
  %v548 = vpop.f32.mrb[0].mxu0
  %v549 = vadd.f32 %v493, %v548
  %v550 = vpop.f32.mrb[0].mxu0
  %v551 = vpop.f32.mrb[0].mxu0
  %v552 = vadd.f32 %v496, %v551
  %v553 = vpop.f32.mrb[0].mxu0
  %554 = vmatprep.mubr.bf16.mxu0 0
  %555 = vmatmul.mubr.bf16.gmra.mrb[0].mxu0 %v397
  %v556 = vpop.f32.mrb[0].mxu0
  %v557 = vadd.f32 %v501, %v556
  %v558 = vpop.f32.mrb[0].mxu0
  %v559 = vpop.f32.mrb[0].mxu0
  %v560 = vadd.f32 %v504, %v559
  %v561 = vpop.f32.mrb[0].mxu0
  %562 = vmatprep.mubr.bf16.mxu0 0
  %563 = vmatmul.mubr.bf16.gmra.mrb[0].mxu0 %v400
  %v564 = vpop.f32.mrb[0].mxu0
  %v565 = vadd.f32 %v509, %v564
  %v566 = vpop.f32.mrb[0].mxu0
  %v567 = vpop.f32.mrb[0].mxu0
  %v568 = vpop.f32.mrb[0].mxu0
  %569 = vdwg.mxu0
  %v570 = vmax.f32 %v549, 0.0
  %v571 = vmax.f32 %v552, 0.0
  %v572 = vmax.f32 %v557, 0.0
  %v573 = vmax.f32 %v560, 0.0
  %v574 = vmax.f32 %v565, 0.0
  %v575 = vpack.c.bf16 %v571, %v570
  %v576 = vpack.c.bf16 %v573, %v572
  %v577 = vpack.c.bf16 %v574, %v574
  %v581 = vunpack.c.l.b16 %v575
  %v582 = vunpack.c.h.b16 %v575
  %v583 = vunpack.c.l.b16 %v576
  %v584 = vunpack.c.h.b16 %v576
  %v585 = vunpack.c.l.b16 %v577
  %v586 = vpack.c.b16 %v581, %v581
  %v587 = vpack.c.b16 %v582, %v582
  %v588 = vpack.c.b16 %v583, %v583
  %v589 = vpack.c.b16 %v584, %v584
  %v590 = vpack.c.b16 %v585, %v585
  %vm596 = vcmask 519168
  %597 = vst.msk [vmem:[%s3] sm:$0xf] %vm596, %v586
  %598 = vst.msk [vmem:[%s3 + $0x4] sm:$0xf] %vm596, %v587
  %599 = vst.msk [vmem:[%s3 + $0x8] sm:$0xf] %vm596, %v588
  %600 = vst.msk [vmem:[%s3 + $0xc] sm:$0xf] %vm596, %v589
  %601 = vst.msk [vmem:[%s3 + $0x10] sm:$0xf] %vm596, %v590
  // Predicated region
  $region14: #{nature_cnn_forward.9} parent=0 // pred_check
    _
  $region15: #{nature_cnn_forward.9} parent=0 // pred_check_branch
    %603 = sbr.rel (0) target = $region17
  $region16: #{nature_cnn_forward.9} parent=0 // pred_region
    _
  $region17: #{nature_cnn_forward.9} parent=0 // pred_fallthru
    _
  // Predicated region
  $region18: #{nature_cnn_forward.9} parent=0 // pred_check
    _
  $region19: #{nature_cnn_forward.9} parent=0 // pred_check_branch
    %605 = sbr.rel (0) target = $region21
  $region20: #{nature_cnn_forward.9} parent=0 // pred_region
    _
  $region21: #{nature_cnn_forward.9} parent=0 // pred_fallthru
    _

// kernel: nature_cnn_forward.10
$region0: #{nature_cnn_forward.10}
  #allocation0 [shape = 'u32[]', space=smem, size = 0x4, offset = 0x4, fixed_abs, tag = 'smem constant byte address 0x4 - core index']
  #allocation1 [shape = 'u32[144,128]{1,0:T(1,128)}', space=vmem, size = 0x12000, scoped, tag = 'internal scratch']
  %s0 = inlined_call_operand.vmem [shape: bf16[40,256], index: 0, kind: input, shape index: {}]
  %s1 = inlined_call_operand.vmem [shape: bf16[256,1024], index: 1, kind: input, shape index: {}]
  %s2 = inlined_call_operand.vmem [shape: f32[1,1024], index: 2, kind: input, shape index: {}]
  %s3 = inlined_call_operand.vmem [shape: bf16[1024,512], index: 3, kind: input, shape index: {}]
  %s4 = inlined_call_operand.vmem [shape: f32[1,512], index: 4, kind: input, shape index: {}]
  %s5 = inlined_call_operand.vmem [shape: bf16[40,512], index: 5, kind: output, shape index: {}]
  %s6 = sld [smem:[#allocation0]]
  $region30: #{nature_cnn_forward.10} parent=0
    _
  %s8 = ssub.s32 1, %s6
  %s9 = scalar_select 0, %s8, %s6
  // Predicated region
  $region2: #{nature_cnn_forward.10} parent=0 // pred_check
    _
  $region3: #{nature_cnn_forward.10} parent=0 // pred_check_branch
    %11 = sbr.rel (0) target = $region5
  $region4: #{nature_cnn_forward.10} parent=0 // pred_region
    _
  $region5: #{nature_cnn_forward.10} parent=0 // pred_fallthru
    _
  // Predicated region
  $region6: #{nature_cnn_forward.10} parent=0 // pred_check
    _
  $region7: #{nature_cnn_forward.10} parent=0 // pred_check_branch
    %13 = sbr.rel (0) target = $region9
  $region8: #{nature_cnn_forward.10} parent=0 // pred_region
    _
  $region9: #{nature_cnn_forward.10} parent=0 // pred_fallthru
    _
  // Predicated region
  $region10: #{nature_cnn_forward.10} parent=0 // pred_check
    _
  $region11: #{nature_cnn_forward.10} parent=0 // pred_check_branch
    %15 = sbr.rel (0) target = $region13
  $region12: #{nature_cnn_forward.10} parent=0 // pred_region
    _
  $region13: #{nature_cnn_forward.10} parent=0 // pred_fallthru
    _
  // Predicated region
  $region14: #{nature_cnn_forward.10} parent=0 // pred_check
    _
  $region15: #{nature_cnn_forward.10} parent=0 // pred_check_branch
    %17 = sbr.rel (0) target = $region17
  $region16: #{nature_cnn_forward.10} parent=0 // pred_region
    _
  $region17: #{nature_cnn_forward.10} parent=0 // pred_fallthru
    _
  // Predicated region
  $region18: #{nature_cnn_forward.10} parent=0 // pred_check
    _
  $region19: #{nature_cnn_forward.10} parent=0 // pred_check_branch
    %19 = sbr.rel (0) target = $region21
  $region20: #{nature_cnn_forward.10} parent=0 // pred_region
    _
  $region21: #{nature_cnn_forward.10} parent=0 // pred_fallthru
    _
  %v20 = vld [vmem:[%s0] sm:$0xff]
  %v21 = vld [vmem:[%s0 + $0x8] sm:$0xff]
  %v22 = vld [vmem:[%s0 + $0x10] sm:$0xff]
  %v23 = vld [vmem:[%s0 + $0x18] sm:$0xff]
  %v24 = vld [vmem:[%s0 + $0x20] sm:$0xff]
  %v25 = vld [vmem:[%s1] sm:$0xff]
  %v26 = vld [vmem:[%s1 + $0x8] sm:$0xff]
  %v27 = vld [vmem:[%s1 + $0x10] sm:$0xff]
  %v28 = vld [vmem:[%s1 + $0x18] sm:$0xff]
  %v29 = vld [vmem:[%s1 + $0x20] sm:$0xff]
  %v30 = vld [vmem:[%s1 + $0x28] sm:$0xff]
  %v31 = vld [vmem:[%s1 + $0x30] sm:$0xff]
  %v32 = vld [vmem:[%s1 + $0x38] sm:$0xff]
  %v33 = vld [vmem:[%s1 + $0x40] sm:$0xff]
  %v34 = vld [vmem:[%s1 + $0x48] sm:$0xff]
  %v35 = vld [vmem:[%s1 + $0x50] sm:$0xff]
  %v36 = vld [vmem:[%s1 + $0x58] sm:$0xff]
  %v37 = vld [vmem:[%s1 + $0x60] sm:$0xff]
  %v38 = vld [vmem:[%s1 + $0x68] sm:$0xff]
  %v39 = vld [vmem:[%s1 + $0x70] sm:$0xff]
  %v40 = vld [vmem:[%s1 + $0x78] sm:$0xff]
  %v41 = vld [vmem:[%s1 + $0x80] sm:$0xff]
  %v42 = vld [vmem:[%s1 + $0x88] sm:$0xff]
  %v43 = vld [vmem:[%s1 + $0x90] sm:$0xff]
  %v44 = vld [vmem:[%s1 + $0x98] sm:$0xff]
  %v45 = vld [vmem:[%s1 + $0xa0] sm:$0xff]
  %v46 = vld [vmem:[%s1 + $0xa8] sm:$0xff]
  %v47 = vld [vmem:[%s1 + $0xb0] sm:$0xff]
  %v48 = vld [vmem:[%s1 + $0xb8] sm:$0xff]
  %v49 = vld [vmem:[%s1 + $0xc0] sm:$0xff]
  %v50 = vld [vmem:[%s1 + $0xc8] sm:$0xff]
  %v51 = vld [vmem:[%s1 + $0xd0] sm:$0xff]
  %v52 = vld [vmem:[%s1 + $0xd8] sm:$0xff]
  %v53 = vld [vmem:[%s1 + $0xe0] sm:$0xff]
  %v54 = vld [vmem:[%s1 + $0xe8] sm:$0xff]
  %v55 = vld [vmem:[%s1 + $0xf0] sm:$0xff]
  %v56 = vld [vmem:[%s1 + $0xf8] sm:$0xff]
  %v57 = vld [vmem:[%s1 + $0x100] sm:$0xff]
  %v58 = vld [vmem:[%s1 + $0x108] sm:$0xff]
  %v59 = vld [vmem:[%s1 + $0x110] sm:$0xff]
  %v60 = vld [vmem:[%s1 + $0x118] sm:$0xff]
  %v61 = vld [vmem:[%s1 + $0x120] sm:$0xff]
  %v62 = vld [vmem:[%s1 + $0x128] sm:$0xff]
  %v63 = vld [vmem:[%s1 + $0x130] sm:$0xff]
  %v64 = vld [vmem:[%s1 + $0x138] sm:$0xff]
  %v65 = vld [vmem:[%s1 + $0x140] sm:$0xff]
  %v66 = vld [vmem:[%s1 + $0x148] sm:$0xff]
  %v67 = vld [vmem:[%s1 + $0x150] sm:$0xff]
  %v68 = vld [vmem:[%s1 + $0x158] sm:$0xff]
  %v69 = vld [vmem:[%s1 + $0x160] sm:$0xff]
  %v70 = vld [vmem:[%s1 + $0x168] sm:$0xff]
  %v71 = vld [vmem:[%s1 + $0x170] sm:$0xff]
  %v72 = vld [vmem:[%s1 + $0x178] sm:$0xff]
  %v73 = vld [vmem:[%s1 + $0x180] sm:$0xff]
  %v74 = vld [vmem:[%s1 + $0x188] sm:$0xff]
  %v75 = vld [vmem:[%s1 + $0x190] sm:$0xff]
  %v76 = vld [vmem:[%s1 + $0x198] sm:$0xff]
  %v77 = vld [vmem:[%s1 + $0x1a0] sm:$0xff]
  %v78 = vld [vmem:[%s1 + $0x1a8] sm:$0xff]
  %v79 = vld [vmem:[%s1 + $0x1b0] sm:$0xff]
  %v80 = vld [vmem:[%s1 + $0x1b8] sm:$0xff]
  %v81 = vld [vmem:[%s1 + $0x1c0] sm:$0xff]
  %v82 = vld [vmem:[%s1 + $0x1c8] sm:$0xff]
  %v83 = vld [vmem:[%s1 + $0x1d0] sm:$0xff]
  %v84 = vld [vmem:[%s1 + $0x1d8] sm:$0xff]
  %v85 = vld [vmem:[%s1 + $0x1e0] sm:$0xff]
  %v86 = vld [vmem:[%s1 + $0x1e8] sm:$0xff]
  %v87 = vld [vmem:[%s1 + $0x1f0] sm:$0xff]
  %v88 = vld [vmem:[%s1 + $0x1f8] sm:$0xff]
  %v89 = vld [vmem:[%s1 + $0x200] sm:$0xff]
  %v90 = vld [vmem:[%s1 + $0x208] sm:$0xff]
  %v91 = vld [vmem:[%s1 + $0x210] sm:$0xff]
  %v92 = vld [vmem:[%s1 + $0x218] sm:$0xff]
  %v93 = vld [vmem:[%s1 + $0x220] sm:$0xff]
  %v94 = vld [vmem:[%s1 + $0x228] sm:$0xff]
  %v95 = vld [vmem:[%s1 + $0x230] sm:$0xff]
  %v96 = vld [vmem:[%s1 + $0x238] sm:$0xff]
  %v97 = vld [vmem:[%s1 + $0x240] sm:$0xff]
  %v98 = vld [vmem:[%s1 + $0x248] sm:$0xff]
  %v99 = vld [vmem:[%s1 + $0x250] sm:$0xff]
  %v100 = vld [vmem:[%s1 + $0x258] sm:$0xff]
  %v101 = vld [vmem:[%s1 + $0x260] sm:$0xff]
  %v102 = vld [vmem:[%s1 + $0x268] sm:$0xff]
  %v103 = vld [vmem:[%s1 + $0x270] sm:$0xff]
  %v104 = vld [vmem:[%s1 + $0x278] sm:$0xff]
  %v105 = vld [vmem:[%s1 + $0x280] sm:$0xff]
  %v106 = vld [vmem:[%s1 + $0x288] sm:$0xff]
  %v107 = vld [vmem:[%s1 + $0x290] sm:$0xff]
  %v108 = vld [vmem:[%s1 + $0x298] sm:$0xff]
  %v109 = vld [vmem:[%s1 + $0x2a0] sm:$0xff]
  %v110 = vld [vmem:[%s1 + $0x2a8] sm:$0xff]
  %v111 = vld [vmem:[%s1 + $0x2b0] sm:$0xff]
  %v112 = vld [vmem:[%s1 + $0x2b8] sm:$0xff]
  %v113 = vld [vmem:[%s1 + $0x2c0] sm:$0xff]
  %v114 = vld [vmem:[%s1 + $0x2c8] sm:$0xff]
  %v115 = vld [vmem:[%s1 + $0x2d0] sm:$0xff]
  %v116 = vld [vmem:[%s1 + $0x2d8] sm:$0xff]
  %v117 = vld [vmem:[%s1 + $0x2e0] sm:$0xff]
  %v118 = vld [vmem:[%s1 + $0x2e8] sm:$0xff]
  %v119 = vld [vmem:[%s1 + $0x2f0] sm:$0xff]
  %v120 = vld [vmem:[%s1 + $0x2f8] sm:$0xff]
  %v121 = vld [vmem:[%s1 + $0x300] sm:$0xff]
  %v122 = vld [vmem:[%s1 + $0x308] sm:$0xff]
  %v123 = vld [vmem:[%s1 + $0x310] sm:$0xff]
  %v124 = vld [vmem:[%s1 + $0x318] sm:$0xff]
  %v125 = vld [vmem:[%s1 + $0x320] sm:$0xff]
  %v126 = vld [vmem:[%s1 + $0x328] sm:$0xff]
  %v127 = vld [vmem:[%s1 + $0x330] sm:$0xff]
  %v128 = vld [vmem:[%s1 + $0x338] sm:$0xff]
  %v129 = vld [vmem:[%s1 + $0x340] sm:$0xff]
  %v130 = vld [vmem:[%s1 + $0x348] sm:$0xff]
  %v131 = vld [vmem:[%s1 + $0x350] sm:$0xff]
  %v132 = vld [vmem:[%s1 + $0x358] sm:$0xff]
  %v133 = vld [vmem:[%s1 + $0x360] sm:$0xff]
  %v134 = vld [vmem:[%s1 + $0x368] sm:$0xff]
  %v135 = vld [vmem:[%s1 + $0x370] sm:$0xff]
  %v136 = vld [vmem:[%s1 + $0x378] sm:$0xff]
  %v137 = vld [vmem:[%s1 + $0x380] sm:$0xff]
  %v138 = vld [vmem:[%s1 + $0x388] sm:$0xff]
  %v139 = vld [vmem:[%s1 + $0x390] sm:$0xff]
  %v140 = vld [vmem:[%s1 + $0x398] sm:$0xff]
  %v141 = vld [vmem:[%s1 + $0x3a0] sm:$0xff]
  %v142 = vld [vmem:[%s1 + $0x3a8] sm:$0xff]
  %v143 = vld [vmem:[%s1 + $0x3b0] sm:$0xff]
  %v144 = vld [vmem:[%s1 + $0x3b8] sm:$0xff]
  %v145 = vld [vmem:[%s1 + $0x3c0] sm:$0xff]
  %v146 = vld [vmem:[%s1 + $0x3c8] sm:$0xff]
  %v147 = vld [vmem:[%s1 + $0x3d0] sm:$0xff]
  %v148 = vld [vmem:[%s1 + $0x3d8] sm:$0xff]
  %v149 = vld [vmem:[%s1 + $0x3e0] sm:$0xff]
  %v150 = vld [vmem:[%s1 + $0x3e8] sm:$0xff]
  %v151 = vld [vmem:[%s1 + $0x3f0] sm:$0xff]
  %v152 = vld [vmem:[%s1 + $0x3f8] sm:$0xff]
  %v153 = vld [vmem:[%s2] sm:$0xff]
  %v155 = vlaneseq
  %v156 = vshrl.u32 %v155, 7
  %v157 = vsub.s32 0, %v156
  %v158 = vrot.slane %v153, %v157
  %v159 = vlaneseq
  %v160 = vshrl.u32 %v159, 7
  %v161 = vsub.s32 1, %v160
  %v162 = vrot.slane %v153, %v161
  %v163 = vlaneseq
  %v164 = vshrl.u32 %v163, 7
  %v165 = vsub.s32 2, %v164
  %v166 = vrot.slane %v153, %v165
  %v167 = vlaneseq
  %v168 = vshrl.u32 %v167, 7
  %v169 = vsub.s32 3, %v168
  %v170 = vrot.slane %v153, %v169
  %v171 = vlaneseq
  %v172 = vshrl.u32 %v171, 7
  %v173 = vsub.s32 4, %v172
  %v174 = vrot.slane %v153, %v173
  %v175 = vlaneseq
  %v176 = vshrl.u32 %v175, 7
  %v177 = vsub.s32 5, %v176
  %v178 = vrot.slane %v153, %v177
  %v179 = vlaneseq
  %v180 = vshrl.u32 %v179, 7
  %v181 = vsub.s32 6, %v180
  %v182 = vrot.slane %v153, %v181
  %v183 = vlaneseq
  %v184 = vshrl.u32 %v183, 7
  %v185 = vsub.s32 7, %v184
  %v186 = vrot.slane %v153, %v185
  %v200 = vunpack.c.l.b16 %v20
  %v201 = vunpack.c.h.b16 %v20
  %v202 = vunpack.c.l.b16 %v21
  %v203 = vunpack.c.h.b16 %v21
  %v204 = vunpack.c.l.b16 %v22
  %v205 = vunpack.c.h.b16 %v22
  %v206 = vunpack.c.l.b16 %v23
  %v207 = vunpack.c.h.b16 %v23
  %v208 = vunpack.c.l.b16 %v24
  %v209 = vunpack.c.h.b16 %v24
  %v210 = vpack.c.b16 %v202, %v200
  %v211 = vpack.c.b16 %v203, %v201
  %v212 = vpack.c.b16 %v206, %v204
  %v213 = vpack.c.b16 %v207, %v205
  %v214 = vpack.c.b16 %v208, %v208
  %v215 = vpack.c.b16 %v209, %v209
  %v350 = vunpack.c.l.b16 %v25
  %v351 = vunpack.c.h.b16 %v25
  %v352 = vunpack.c.l.b16 %v26
  %v353 = vunpack.c.h.b16 %v26
  %v354 = vunpack.c.l.b16 %v27
  %v355 = vunpack.c.h.b16 %v27
  %v356 = vunpack.c.l.b16 %v28
  %v357 = vunpack.c.h.b16 %v28
  %v358 = vunpack.c.l.b16 %v29
  %v359 = vunpack.c.h.b16 %v29
  %v360 = vunpack.c.l.b16 %v30
  %v361 = vunpack.c.h.b16 %v30
  %v362 = vunpack.c.l.b16 %v31
  %v363 = vunpack.c.h.b16 %v31
  %v364 = vunpack.c.l.b16 %v32
  %v365 = vunpack.c.h.b16 %v32
  %v366 = vunpack.c.l.b16 %v33
  %v367 = vunpack.c.h.b16 %v33
  %v368 = vunpack.c.l.b16 %v34
  %v369 = vunpack.c.h.b16 %v34
  %v370 = vunpack.c.l.b16 %v35
  %v371 = vunpack.c.h.b16 %v35
  %v372 = vunpack.c.l.b16 %v36
  %v373 = vunpack.c.h.b16 %v36
  %v374 = vunpack.c.l.b16 %v37
  %v375 = vunpack.c.h.b16 %v37
  %v376 = vunpack.c.l.b16 %v38
  %v377 = vunpack.c.h.b16 %v38
  %v378 = vunpack.c.l.b16 %v39
  %v379 = vunpack.c.h.b16 %v39
  %v380 = vunpack.c.l.b16 %v40
  %v381 = vunpack.c.h.b16 %v40
  %v382 = vunpack.c.l.b16 %v41
  %v383 = vunpack.c.h.b16 %v41
  %v384 = vunpack.c.l.b16 %v42
  %v385 = vunpack.c.h.b16 %v42
  %v386 = vunpack.c.l.b16 %v43
  %v387 = vunpack.c.h.b16 %v43
  %v388 = vunpack.c.l.b16 %v44
  %v389 = vunpack.c.h.b16 %v44
  %v390 = vunpack.c.l.b16 %v45
  %v391 = vunpack.c.h.b16 %v45
  %v392 = vunpack.c.l.b16 %v46
  %v393 = vunpack.c.h.b16 %v46
  %v394 = vunpack.c.l.b16 %v47
  %v395 = vunpack.c.h.b16 %v47
  %v396 = vunpack.c.l.b16 %v48
  %v397 = vunpack.c.h.b16 %v48
  %v398 = vunpack.c.l.b16 %v49
  %v399 = vunpack.c.h.b16 %v49
  %v400 = vunpack.c.l.b16 %v50
  %v401 = vunpack.c.h.b16 %v50
  %v402 = vunpack.c.l.b16 %v51
  %v403 = vunpack.c.h.b16 %v51
  %v404 = vunpack.c.l.b16 %v52
  %v405 = vunpack.c.h.b16 %v52
  %v406 = vunpack.c.l.b16 %v53
  %v407 = vunpack.c.h.b16 %v53
  %v408 = vunpack.c.l.b16 %v54
  %v409 = vunpack.c.h.b16 %v54
  %v410 = vunpack.c.l.b16 %v55
  %v411 = vunpack.c.h.b16 %v55
  %v412 = vunpack.c.l.b16 %v56
  %v413 = vunpack.c.h.b16 %v56
  %v414 = vunpack.c.l.b16 %v57
  %v415 = vunpack.c.h.b16 %v57
  %v416 = vunpack.c.l.b16 %v58
  %v417 = vunpack.c.h.b16 %v58
  %v418 = vunpack.c.l.b16 %v59
  %v419 = vunpack.c.h.b16 %v59
  %v420 = vunpack.c.l.b16 %v60
  %v421 = vunpack.c.h.b16 %v60
  %v422 = vunpack.c.l.b16 %v61
  %v423 = vunpack.c.h.b16 %v61
  %v424 = vunpack.c.l.b16 %v62
  %v425 = vunpack.c.h.b16 %v62
  %v426 = vunpack.c.l.b16 %v63
  %v427 = vunpack.c.h.b16 %v63
  %v428 = vunpack.c.l.b16 %v64
  %v429 = vunpack.c.h.b16 %v64
  %v430 = vunpack.c.l.b16 %v65
  %v431 = vunpack.c.h.b16 %v65
  %v432 = vunpack.c.l.b16 %v66
  %v433 = vunpack.c.h.b16 %v66
  %v434 = vunpack.c.l.b16 %v67
  %v435 = vunpack.c.h.b16 %v67
  %v436 = vunpack.c.l.b16 %v68
  %v437 = vunpack.c.h.b16 %v68
  %v438 = vunpack.c.l.b16 %v69
  %v439 = vunpack.c.h.b16 %v69
  %v440 = vunpack.c.l.b16 %v70
  %v441 = vunpack.c.h.b16 %v70
  %v442 = vunpack.c.l.b16 %v71
  %v443 = vunpack.c.h.b16 %v71
  %v444 = vunpack.c.l.b16 %v72
  %v445 = vunpack.c.h.b16 %v72
  %v446 = vunpack.c.l.b16 %v73
  %v447 = vunpack.c.h.b16 %v73
  %v448 = vunpack.c.l.b16 %v74
  %v449 = vunpack.c.h.b16 %v74
  %v450 = vunpack.c.l.b16 %v75
  %v451 = vunpack.c.h.b16 %v75
  %v452 = vunpack.c.l.b16 %v76
  %v453 = vunpack.c.h.b16 %v76
  %v454 = vunpack.c.l.b16 %v77
  %v455 = vunpack.c.h.b16 %v77
  %v456 = vunpack.c.l.b16 %v78
  %v457 = vunpack.c.h.b16 %v78
  %v458 = vunpack.c.l.b16 %v79
  %v459 = vunpack.c.h.b16 %v79
  %v460 = vunpack.c.l.b16 %v80
  %v461 = vunpack.c.h.b16 %v80
  %v462 = vunpack.c.l.b16 %v81
  %v463 = vunpack.c.h.b16 %v81
  %v464 = vunpack.c.l.b16 %v82
  %v465 = vunpack.c.h.b16 %v82
  %v466 = vunpack.c.l.b16 %v83
  %v467 = vunpack.c.h.b16 %v83
  %v468 = vunpack.c.l.b16 %v84
  %v469 = vunpack.c.h.b16 %v84
  %v470 = vunpack.c.l.b16 %v85
  %v471 = vunpack.c.h.b16 %v85
  %v472 = vunpack.c.l.b16 %v86
  %v473 = vunpack.c.h.b16 %v86
  %v474 = vunpack.c.l.b16 %v87
  %v475 = vunpack.c.h.b16 %v87
  %v476 = vunpack.c.l.b16 %v88
  %v477 = vunpack.c.h.b16 %v88
  %v478 = vunpack.c.l.b16 %v89
  %v479 = vunpack.c.h.b16 %v89
  %v480 = vunpack.c.l.b16 %v90
  %v481 = vunpack.c.h.b16 %v90
  %v482 = vunpack.c.l.b16 %v91
  %v483 = vunpack.c.h.b16 %v91
  %v484 = vunpack.c.l.b16 %v92
  %v485 = vunpack.c.h.b16 %v92
  %v486 = vunpack.c.l.b16 %v93
  %v487 = vunpack.c.h.b16 %v93
  %v488 = vunpack.c.l.b16 %v94
  %v489 = vunpack.c.h.b16 %v94
  %v490 = vunpack.c.l.b16 %v95
  %v491 = vunpack.c.h.b16 %v95
  %v492 = vunpack.c.l.b16 %v96
  %v493 = vunpack.c.h.b16 %v96
  %v494 = vunpack.c.l.b16 %v97
  %v495 = vunpack.c.h.b16 %v97
  %v496 = vunpack.c.l.b16 %v98
  %v497 = vunpack.c.h.b16 %v98
  %v498 = vunpack.c.l.b16 %v99
  %v499 = vunpack.c.h.b16 %v99
  %v500 = vunpack.c.l.b16 %v100
  %v501 = vunpack.c.h.b16 %v100
  %v502 = vunpack.c.l.b16 %v101
  %v503 = vunpack.c.h.b16 %v101
  %v504 = vunpack.c.l.b16 %v102
  %v505 = vunpack.c.h.b16 %v102
  %v506 = vunpack.c.l.b16 %v103
  %v507 = vunpack.c.h.b16 %v103
  %v508 = vunpack.c.l.b16 %v104
  %v509 = vunpack.c.h.b16 %v104
  %v510 = vunpack.c.l.b16 %v105
  %v511 = vunpack.c.h.b16 %v105
  %v512 = vunpack.c.l.b16 %v106
  %v513 = vunpack.c.h.b16 %v106
  %v514 = vunpack.c.l.b16 %v107
  %v515 = vunpack.c.h.b16 %v107
  %v516 = vunpack.c.l.b16 %v108
  %v517 = vunpack.c.h.b16 %v108
  %v518 = vunpack.c.l.b16 %v109
  %v519 = vunpack.c.h.b16 %v109
  %v520 = vunpack.c.l.b16 %v110
  %v521 = vunpack.c.h.b16 %v110
  %v522 = vunpack.c.l.b16 %v111
  %v523 = vunpack.c.h.b16 %v111
  %v524 = vunpack.c.l.b16 %v112
  %v525 = vunpack.c.h.b16 %v112
  %v526 = vunpack.c.l.b16 %v113
  %v527 = vunpack.c.h.b16 %v113
  %v528 = vunpack.c.l.b16 %v114
  %v529 = vunpack.c.h.b16 %v114
  %v530 = vunpack.c.l.b16 %v115
  %v531 = vunpack.c.h.b16 %v115
  %v532 = vunpack.c.l.b16 %v116
  %v533 = vunpack.c.h.b16 %v116
  %v534 = vunpack.c.l.b16 %v117
  %v535 = vunpack.c.h.b16 %v117
  %v536 = vunpack.c.l.b16 %v118
  %v537 = vunpack.c.h.b16 %v118
  %v538 = vunpack.c.l.b16 %v119
  %v539 = vunpack.c.h.b16 %v119
  %v540 = vunpack.c.l.b16 %v120
  %v541 = vunpack.c.h.b16 %v120
  %v542 = vunpack.c.l.b16 %v121
  %v543 = vunpack.c.h.b16 %v121
  %v544 = vunpack.c.l.b16 %v122
  %v545 = vunpack.c.h.b16 %v122
  %v546 = vunpack.c.l.b16 %v123
  %v547 = vunpack.c.h.b16 %v123
  %v548 = vunpack.c.l.b16 %v124
  %v549 = vunpack.c.h.b16 %v124
  %v550 = vunpack.c.l.b16 %v125
  %v551 = vunpack.c.h.b16 %v125
  %v552 = vunpack.c.l.b16 %v126
  %v553 = vunpack.c.h.b16 %v126
  %v554 = vunpack.c.l.b16 %v127
  %v555 = vunpack.c.h.b16 %v127
  %v556 = vunpack.c.l.b16 %v128
  %v557 = vunpack.c.h.b16 %v128
  %v558 = vunpack.c.l.b16 %v129
  %v559 = vunpack.c.h.b16 %v129
  %v560 = vunpack.c.l.b16 %v130
  %v561 = vunpack.c.h.b16 %v130
  %v562 = vunpack.c.l.b16 %v131
  %v563 = vunpack.c.h.b16 %v131
  %v564 = vunpack.c.l.b16 %v132
  %v565 = vunpack.c.h.b16 %v132
  %v566 = vunpack.c.l.b16 %v133
  %v567 = vunpack.c.h.b16 %v133
  %v568 = vunpack.c.l.b16 %v134
  %v569 = vunpack.c.h.b16 %v134
  %v570 = vunpack.c.l.b16 %v135
  %v571 = vunpack.c.h.b16 %v135
  %v572 = vunpack.c.l.b16 %v136
  %v573 = vunpack.c.h.b16 %v136
  %v574 = vunpack.c.l.b16 %v137
  %v575 = vunpack.c.h.b16 %v137
  %v576 = vunpack.c.l.b16 %v138
  %v577 = vunpack.c.h.b16 %v138
  %v578 = vunpack.c.l.b16 %v139
  %v579 = vunpack.c.h.b16 %v139
  %v580 = vunpack.c.l.b16 %v140
  %v581 = vunpack.c.h.b16 %v140
  %v582 = vunpack.c.l.b16 %v141
  %v583 = vunpack.c.h.b16 %v141
  %v584 = vunpack.c.l.b16 %v142
  %v585 = vunpack.c.h.b16 %v142
  %v586 = vunpack.c.l.b16 %v143
  %v587 = vunpack.c.h.b16 %v143
  %v588 = vunpack.c.l.b16 %v144
  %v589 = vunpack.c.h.b16 %v144
  %v590 = vunpack.c.l.b16 %v145
  %v591 = vunpack.c.h.b16 %v145
  %v592 = vunpack.c.l.b16 %v146
  %v593 = vunpack.c.h.b16 %v146
  %v594 = vunpack.c.l.b16 %v147
  %v595 = vunpack.c.h.b16 %v147
  %v596 = vunpack.c.l.b16 %v148
  %v597 = vunpack.c.h.b16 %v148
  %v598 = vunpack.c.l.b16 %v149
  %v599 = vunpack.c.h.b16 %v149
  %v600 = vunpack.c.l.b16 %v150
  %v601 = vunpack.c.h.b16 %v150
  %v602 = vunpack.c.l.b16 %v151
  %v603 = vunpack.c.h.b16 %v151
  %v604 = vunpack.c.l.b16 %v152
  %v605 = vunpack.c.h.b16 %v152
  %v606 = vpack.c.b16 %v358, %v350
  %v607 = vpack.c.b16 %v359, %v351
  %v608 = vpack.c.b16 %v360, %v352
  %v609 = vpack.c.b16 %v361, %v353
  %v610 = vpack.c.b16 %v362, %v354
  %v611 = vpack.c.b16 %v363, %v355
  %v612 = vpack.c.b16 %v364, %v356
  %v613 = vpack.c.b16 %v365, %v357
  %v614 = vpack.c.b16 %v374, %v366
  %v615 = vpack.c.b16 %v375, %v367
  %v616 = vpack.c.b16 %v376, %v368
  %v617 = vpack.c.b16 %v377, %v369
  %v618 = vpack.c.b16 %v378, %v370
  %v619 = vpack.c.b16 %v379, %v371
  %v620 = vpack.c.b16 %v380, %v372
  %v621 = vpack.c.b16 %v381, %v373
  %v622 = vpack.c.b16 %v390, %v382
  %v623 = vpack.c.b16 %v391, %v383
  %v624 = vpack.c.b16 %v392, %v384
  %v625 = vpack.c.b16 %v393, %v385
  %v626 = vpack.c.b16 %v394, %v386
  %v627 = vpack.c.b16 %v395, %v387
  %v628 = vpack.c.b16 %v396, %v388
  %v629 = vpack.c.b16 %v397, %v389
  %v630 = vpack.c.b16 %v406, %v398
  %v631 = vpack.c.b16 %v407, %v399
  %v632 = vpack.c.b16 %v408, %v400
  %v633 = vpack.c.b16 %v409, %v401
  %v634 = vpack.c.b16 %v410, %v402
  %v635 = vpack.c.b16 %v411, %v403
  %v636 = vpack.c.b16 %v412, %v404
  %v637 = vpack.c.b16 %v413, %v405
  %v638 = vpack.c.b16 %v422, %v414
  %v639 = vpack.c.b16 %v423, %v415
  %v640 = vpack.c.b16 %v424, %v416
  %v641 = vpack.c.b16 %v425, %v417
  %v642 = vpack.c.b16 %v426, %v418
  %v643 = vpack.c.b16 %v427, %v419
  %v644 = vpack.c.b16 %v428, %v420
  %v645 = vpack.c.b16 %v429, %v421
  %v646 = vpack.c.b16 %v438, %v430
  %v647 = vpack.c.b16 %v439, %v431
  %v648 = vpack.c.b16 %v440, %v432
  %v649 = vpack.c.b16 %v441, %v433
  %v650 = vpack.c.b16 %v442, %v434
  %v651 = vpack.c.b16 %v443, %v435
  %v652 = vpack.c.b16 %v444, %v436
  %v653 = vpack.c.b16 %v445, %v437
  %v654 = vpack.c.b16 %v454, %v446
  %v655 = vpack.c.b16 %v455, %v447
  %v656 = vpack.c.b16 %v456, %v448
  %v657 = vpack.c.b16 %v457, %v449
  %v658 = vpack.c.b16 %v458, %v450
  %v659 = vpack.c.b16 %v459, %v451
  %v660 = vpack.c.b16 %v460, %v452
  %v661 = vpack.c.b16 %v461, %v453
  %v662 = vpack.c.b16 %v470, %v462
  %v663 = vpack.c.b16 %v471, %v463
  %v664 = vpack.c.b16 %v472, %v464
  %v665 = vpack.c.b16 %v473, %v465
  %v666 = vpack.c.b16 %v474, %v466
  %v667 = vpack.c.b16 %v475, %v467
  %v668 = vpack.c.b16 %v476, %v468
  %v669 = vpack.c.b16 %v477, %v469
  %v670 = vpack.c.b16 %v486, %v478
  %v671 = vpack.c.b16 %v487, %v479
  %v672 = vpack.c.b16 %v488, %v480
  %v673 = vpack.c.b16 %v489, %v481
  %v674 = vpack.c.b16 %v490, %v482
  %v675 = vpack.c.b16 %v491, %v483
  %v676 = vpack.c.b16 %v492, %v484
  %v677 = vpack.c.b16 %v493, %v485
  %v678 = vpack.c.b16 %v502, %v494
  %v679 = vpack.c.b16 %v503, %v495
  %v680 = vpack.c.b16 %v504, %v496
  %v681 = vpack.c.b16 %v505, %v497
  %v682 = vpack.c.b16 %v506, %v498
  %v683 = vpack.c.b16 %v507, %v499
  %v684 = vpack.c.b16 %v508, %v500
  %v685 = vpack.c.b16 %v509, %v501
  %v686 = vpack.c.b16 %v518, %v510
  %v687 = vpack.c.b16 %v519, %v511
  %v688 = vpack.c.b16 %v520, %v512
  %v689 = vpack.c.b16 %v521, %v513
  %v690 = vpack.c.b16 %v522, %v514
  %v691 = vpack.c.b16 %v523, %v515
  %v692 = vpack.c.b16 %v524, %v516
  %v693 = vpack.c.b16 %v525, %v517
  %v694 = vpack.c.b16 %v534, %v526
  %v695 = vpack.c.b16 %v535, %v527
  %v696 = vpack.c.b16 %v536, %v528
  %v697 = vpack.c.b16 %v537, %v529
  %v698 = vpack.c.b16 %v538, %v530
  %v699 = vpack.c.b16 %v539, %v531
  %v700 = vpack.c.b16 %v540, %v532
  %v701 = vpack.c.b16 %v541, %v533
  %v702 = vpack.c.b16 %v550, %v542
  %v703 = vpack.c.b16 %v551, %v543
  %v704 = vpack.c.b16 %v552, %v544
  %v705 = vpack.c.b16 %v553, %v545
  %v706 = vpack.c.b16 %v554, %v546
  %v707 = vpack.c.b16 %v555, %v547
  %v708 = vpack.c.b16 %v556, %v548
  %v709 = vpack.c.b16 %v557, %v549
  %v710 = vpack.c.b16 %v566, %v558
  %v711 = vpack.c.b16 %v567, %v559
  %v712 = vpack.c.b16 %v568, %v560
  %v713 = vpack.c.b16 %v569, %v561
  %v714 = vpack.c.b16 %v570, %v562
  %v715 = vpack.c.b16 %v571, %v563
  %v716 = vpack.c.b16 %v572, %v564
  %v717 = vpack.c.b16 %v573, %v565
  %v718 = vpack.c.b16 %v582, %v574
  %v719 = vpack.c.b16 %v583, %v575
  %v720 = vpack.c.b16 %v584, %v576
  %v721 = vpack.c.b16 %v585, %v577
  %v722 = vpack.c.b16 %v586, %v578
  %v723 = vpack.c.b16 %v587, %v579
  %v724 = vpack.c.b16 %v588, %v580
  %v725 = vpack.c.b16 %v589, %v581
  %v726 = vpack.c.b16 %v598, %v590
  %v727 = vpack.c.b16 %v599, %v591
  %v728 = vpack.c.b16 %v600, %v592
  %v729 = vpack.c.b16 %v601, %v593
  %v730 = vpack.c.b16 %v602, %v594
  %v731 = vpack.c.b16 %v603, %v595
  %v732 = vpack.c.b16 %v604, %v596
  %v733 = vpack.c.b16 %v605, %v597
  %862 = vmatprep.subr.bf16.mxu0 %v607
  %863 = vmatpush1.bf16.msra.mxu0 %v606
  %864 = vmatprep.subr.bf16.mxu0 %v615
  %865 = vmatpush1.bf16.msra.mxu0 %v614
  %866 = vmatprep.subr.bf16.mxu0 %v623
  %867 = vmatpush1.bf16.msra.mxu0 %v622
  %868 = vmatprep.subr.bf16.mxu0 %v631
  %869 = vmatpush1.bf16.msra.mxu0 %v630
  %870 = vmatprep.subr.bf16.mxu0 %v639
  %871 = vmatpush1.bf16.msra.mxu0 %v638
  %872 = vmatprep.subr.bf16.mxu0 %v647
  %873 = vmatpush1.bf16.msra.mxu0 %v646
  %874 = vmatprep.subr.bf16.mxu0 %v655
  %875 = vmatpush1.bf16.msra.mxu0 %v654
  %876 = vmatprep.subr.bf16.mxu0 %v663
  %877 = vmatpush1.bf16.msra.mxu0 %v662
  %878 = vmatprep.subr.bf16.mxu0 %v671
  %879 = vmatpush1.bf16.msra.mxu0 %v670
  %880 = vmatprep.subr.bf16.mxu0 %v679
  %881 = vmatpush1.bf16.msra.mxu0 %v678
  %882 = vmatprep.subr.bf16.mxu0 %v687
  %883 = vmatpush1.bf16.msra.mxu0 %v686
  %884 = vmatprep.subr.bf16.mxu0 %v695
  %885 = vmatpush1.bf16.msra.mxu0 %v694
  %886 = vmatprep.subr.bf16.mxu0 %v703
  %887 = vmatpush1.bf16.msra.mxu0 %v702
  %888 = vmatprep.subr.bf16.mxu0 %v711
  %889 = vmatpush1.bf16.msra.mxu0 %v710
  %890 = vmatprep.subr.bf16.mxu0 %v719
  %891 = vmatpush1.bf16.msra.mxu0 %v718
  %892 = vmatprep.subr.bf16.mxu0 %v727
  %893 = vmatpush1.bf16.msra.mxu0 %v726
  %894 = vmatprep.mubr.bf16.mxu0 %v211
  %895 = vmatmul.mubr.bf16.gmra.mrb[0].mxu0 %v210
  %v896 = vpop.f32.mrb[0].mxu0
  %v897 = vadd.f32 %v158, %v896
  %v898 = vpop.f32.mrb[0].mxu0
  %v899 = vadd.f32 %v162, %v898
  %v900 = vpop.f32.mrb[0].mxu0
  %v901 = vadd.f32 %v158, %v900
  %v902 = vpop.f32.mrb[0].mxu0
  %v903 = vadd.f32 %v162, %v902
  %904 = vmatprep.mubr.bf16.mxu0 %v213
  %905 = vmatmul.mubr.bf16.gmra.mrb[0].mxu0 %v212
  %v906 = vpop.f32.mrb[0].mxu0
  %v907 = vadd.f32 %v158, %v906
  %v908 = vpop.f32.mrb[0].mxu0
  %v909 = vadd.f32 %v162, %v908
  %v910 = vpop.f32.mrb[0].mxu0
  %v911 = vadd.f32 %v158, %v910
  %v912 = vpop.f32.mrb[0].mxu0
  %v913 = vadd.f32 %v162, %v912
  %914 = vmatprep.mubr.bf16.mxu0 %v215
  %915 = vmatmul.mubr.bf16.gmra.mrb[0].mxu0 %v214
  %v916 = vpop.f32.mrb[0].mxu0
  %v917 = vadd.f32 %v158, %v916
  %v918 = vpop.f32.mrb[0].mxu0
  %v919 = vadd.f32 %v162, %v918
  %v920 = vpop.f32.mrb[0].mxu0
  %v921 = vpop.f32.mrb[0].mxu0
  %922 = vdwg.mxu0
  %923 = vmatprep.subr.bf16.mxu0 %v609
  %924 = vmatpush1.bf16.msra.mxu0 %v608
  %925 = vmatprep.subr.bf16.mxu0 %v617
  %926 = vmatpush1.bf16.msra.mxu0 %v616
  %927 = vmatprep.subr.bf16.mxu0 %v625
  %928 = vmatpush1.bf16.msra.mxu0 %v624
  %929 = vmatprep.subr.bf16.mxu0 %v633
  %930 = vmatpush1.bf16.msra.mxu0 %v632
  %931 = vmatprep.subr.bf16.mxu0 %v641
  %932 = vmatpush1.bf16.msra.mxu0 %v640
  %933 = vmatprep.subr.bf16.mxu0 %v649
  %934 = vmatpush1.bf16.msra.mxu0 %v648
  %935 = vmatprep.subr.bf16.mxu0 %v657
  %936 = vmatpush1.bf16.msra.mxu0 %v656
  %937 = vmatprep.subr.bf16.mxu0 %v665
  %938 = vmatpush1.bf16.msra.mxu0 %v664
  %939 = vmatprep.subr.bf16.mxu0 %v673
  %940 = vmatpush1.bf16.msra.mxu0 %v672
  %941 = vmatprep.subr.bf16.mxu0 %v681
  %942 = vmatpush1.bf16.msra.mxu0 %v680
  %943 = vmatprep.subr.bf16.mxu0 %v689
  %944 = vmatpush1.bf16.msra.mxu0 %v688
  %945 = vmatprep.subr.bf16.mxu0 %v697
  %946 = vmatpush1.bf16.msra.mxu0 %v696
  %947 = vmatprep.subr.bf16.mxu0 %v705
  %948 = vmatpush1.bf16.msra.mxu0 %v704
  %949 = vmatprep.subr.bf16.mxu0 %v713
  %950 = vmatpush1.bf16.msra.mxu0 %v712
  %951 = vmatprep.subr.bf16.mxu0 %v721
  %952 = vmatpush1.bf16.msra.mxu0 %v720
  %953 = vmatprep.subr.bf16.mxu0 %v729
  %954 = vmatpush1.bf16.msra.mxu0 %v728
  %955 = vmatprep.mubr.bf16.mxu0 %v211
  %956 = vmatmul.mubr.bf16.gmra.mrb[0].mxu0 %v210
  %v957 = vpop.f32.mrb[0].mxu0
  %v958 = vadd.f32 %v166, %v957
  %v959 = vpop.f32.mrb[0].mxu0
  %v960 = vadd.f32 %v170, %v959
  %v961 = vpop.f32.mrb[0].mxu0
  %v962 = vadd.f32 %v166, %v961
  %v963 = vpop.f32.mrb[0].mxu0
  %v964 = vadd.f32 %v170, %v963
  %965 = vmatprep.mubr.bf16.mxu0 %v213
  %966 = vmatmul.mubr.bf16.gmra.mrb[0].mxu0 %v212
  %v967 = vpop.f32.mrb[0].mxu0
  %v968 = vadd.f32 %v166, %v967
  %v969 = vpop.f32.mrb[0].mxu0
  %v970 = vadd.f32 %v170, %v969
  %v971 = vpop.f32.mrb[0].mxu0
  %v972 = vadd.f32 %v166, %v971
  %v973 = vpop.f32.mrb[0].mxu0
  %v974 = vadd.f32 %v170, %v973
  %975 = vmatprep.mubr.bf16.mxu0 %v215
  %976 = vmatmul.mubr.bf16.gmra.mrb[0].mxu0 %v214
  %v977 = vpop.f32.mrb[0].mxu0
  %v978 = vadd.f32 %v166, %v977
  %v979 = vpop.f32.mrb[0].mxu0
  %v980 = vadd.f32 %v170, %v979
  %v981 = vpop.f32.mrb[0].mxu0
  %v982 = vpop.f32.mrb[0].mxu0
  %983 = vdwg.mxu0
  %984 = vmatprep.subr.bf16.mxu0 %v611
  %985 = vmatpush1.bf16.msra.mxu0 %v610
  %986 = vmatprep.subr.bf16.mxu0 %v619
  %987 = vmatpush1.bf16.msra.mxu0 %v618
  %988 = vmatprep.subr.bf16.mxu0 %v627
  %989 = vmatpush1.bf16.msra.mxu0 %v626
  %990 = vmatprep.subr.bf16.mxu0 %v635
  %991 = vmatpush1.bf16.msra.mxu0 %v634
  %992 = vmatprep.subr.bf16.mxu0 %v643
  %993 = vmatpush1.bf16.msra.mxu0 %v642
  %994 = vmatprep.subr.bf16.mxu0 %v651
  %995 = vmatpush1.bf16.msra.mxu0 %v650
  %996 = vmatprep.subr.bf16.mxu0 %v659
  %997 = vmatpush1.bf16.msra.mxu0 %v658
  %998 = vmatprep.subr.bf16.mxu0 %v667
  %999 = vmatpush1.bf16.msra.mxu0 %v666
  %1000 = vmatprep.subr.bf16.mxu0 %v675
  %1001 = vmatpush1.bf16.msra.mxu0 %v674
  %1002 = vmatprep.subr.bf16.mxu0 %v683
  %1003 = vmatpush1.bf16.msra.mxu0 %v682
  %1004 = vmatprep.subr.bf16.mxu0 %v691
  %1005 = vmatpush1.bf16.msra.mxu0 %v690
  %1006 = vmatprep.subr.bf16.mxu0 %v699
  %1007 = vmatpush1.bf16.msra.mxu0 %v698
  %1008 = vmatprep.subr.bf16.mxu0 %v707
  %1009 = vmatpush1.bf16.msra.mxu0 %v706
  %1010 = vmatprep.subr.bf16.mxu0 %v715
  %1011 = vmatpush1.bf16.msra.mxu0 %v714
  %1012 = vmatprep.subr.bf16.mxu0 %v723
  %1013 = vmatpush1.bf16.msra.mxu0 %v722
  %1014 = vmatprep.subr.bf16.mxu0 %v731
  %1015 = vmatpush1.bf16.msra.mxu0 %v730
  %1016 = vmatprep.mubr.bf16.mxu0 %v211
  %1017 = vmatmul.mubr.bf16.gmra.mrb[0].mxu0 %v210
  %v1018 = vpop.f32.mrb[0].mxu0
  %v1019 = vadd.f32 %v174, %v1018
  %v1020 = vpop.f32.mrb[0].mxu0
  %v1021 = vadd.f32 %v178, %v1020
  %v1022 = vpop.f32.mrb[0].mxu0
  %v1023 = vadd.f32 %v174, %v1022
  %v1024 = vpop.f32.mrb[0].mxu0
  %v1025 = vadd.f32 %v178, %v1024
  %1026 = vmatprep.mubr.bf16.mxu0 %v213
  %1027 = vmatmul.mubr.bf16.gmra.mrb[0].mxu0 %v212
  %v1028 = vpop.f32.mrb[0].mxu0
  %v1029 = vadd.f32 %v174, %v1028
  %v1030 = vpop.f32.mrb[0].mxu0
  %v1031 = vadd.f32 %v178, %v1030
  %v1032 = vpop.f32.mrb[0].mxu0
  %v1033 = vadd.f32 %v174, %v1032
  %v1034 = vpop.f32.mrb[0].mxu0
  %v1035 = vadd.f32 %v178, %v1034
  %1036 = vmatprep.mubr.bf16.mxu0 %v215
  %1037 = vmatmul.mubr.bf16.gmra.mrb[0].mxu0 %v214
  %v1038 = vpop.f32.mrb[0].mxu0
  %v1039 = vadd.f32 %v174, %v1038
  %v1040 = vpop.f32.mrb[0].mxu0
  %v1041 = vadd.f32 %v178, %v1040
  %v1042 = vpop.f32.mrb[0].mxu0
  %v1043 = vpop.f32.mrb[0].mxu0
  %1044 = vdwg.mxu0
  %1045 = vmatprep.subr.bf16.mxu0 %v613
  %1046 = vmatpush1.bf16.msra.mxu0 %v612
  %1047 = vmatprep.subr.bf16.mxu0 %v621
  %1048 = vmatpush1.bf16.msra.mxu0 %v620
  %1049 = vmatprep.subr.bf16.mxu0 %v629
  %1050 = vmatpush1.bf16.msra.mxu0 %v628
  %1051 = vmatprep.subr.bf16.mxu0 %v637
  %1052 = vmatpush1.bf16.msra.mxu0 %v636
  %1053 = vmatprep.subr.bf16.mxu0 %v645
  %1054 = vmatpush1.bf16.msra.mxu0 %v644
  %1055 = vmatprep.subr.bf16.mxu0 %v653
  %1056 = vmatpush1.bf16.msra.mxu0 %v652
  %1057 = vmatprep.subr.bf16.mxu0 %v661
  %1058 = vmatpush1.bf16.msra.mxu0 %v660
  %1059 = vmatprep.subr.bf16.mxu0 %v669
  %1060 = vmatpush1.bf16.msra.mxu0 %v668
  %1061 = vmatprep.subr.bf16.mxu0 %v677
  %1062 = vmatpush1.bf16.msra.mxu0 %v676
  %1063 = vmatprep.subr.bf16.mxu0 %v685
  %1064 = vmatpush1.bf16.msra.mxu0 %v684
  %1065 = vmatprep.subr.bf16.mxu0 %v693
  %1066 = vmatpush1.bf16.msra.mxu0 %v692
  %1067 = vmatprep.subr.bf16.mxu0 %v701
  %1068 = vmatpush1.bf16.msra.mxu0 %v700
  %1069 = vmatprep.subr.bf16.mxu0 %v709
  %1070 = vmatpush1.bf16.msra.mxu0 %v708
  %1071 = vmatprep.subr.bf16.mxu0 %v717
  %1072 = vmatpush1.bf16.msra.mxu0 %v716
  %1073 = vmatprep.subr.bf16.mxu0 %v725
  %1074 = vmatpush1.bf16.msra.mxu0 %v724
  %1075 = vmatprep.subr.bf16.mxu0 %v733
  %1076 = vmatpush1.bf16.msra.mxu0 %v732
  %1077 = vmatprep.mubr.bf16.mxu0 %v211
  %1078 = vmatmul.mubr.bf16.gmra.mrb[0].mxu0 %v210
  %v1079 = vpop.f32.mrb[0].mxu0
  %v1080 = vadd.f32 %v182, %v1079
  %v1081 = vpop.f32.mrb[0].mxu0
  %v1082 = vadd.f32 %v186, %v1081
  %v1083 = vpop.f32.mrb[0].mxu0
  %v1084 = vadd.f32 %v182, %v1083
  %v1085 = vpop.f32.mrb[0].mxu0
  %v1086 = vadd.f32 %v186, %v1085
  %1087 = vmatprep.mubr.bf16.mxu0 %v213
  %1088 = vmatmul.mubr.bf16.gmra.mrb[0].mxu0 %v212
  %v1089 = vpop.f32.mrb[0].mxu0
  %v1090 = vadd.f32 %v182, %v1089
  %v1091 = vpop.f32.mrb[0].mxu0
  %v1092 = vadd.f32 %v186, %v1091
  %v1093 = vpop.f32.mrb[0].mxu0
  %v1094 = vadd.f32 %v182, %v1093
  %v1095 = vpop.f32.mrb[0].mxu0
  %v1096 = vadd.f32 %v186, %v1095
  %1097 = vmatprep.mubr.bf16.mxu0 %v215
  %1098 = vmatmul.mubr.bf16.gmra.mrb[0].mxu0 %v214
  %v1099 = vpop.f32.mrb[0].mxu0
  %v1100 = vadd.f32 %v182, %v1099
  %v1101 = vpop.f32.mrb[0].mxu0
  %v1102 = vadd.f32 %v186, %v1101
  %v1103 = vpop.f32.mrb[0].mxu0
  %v1104 = vpop.f32.mrb[0].mxu0
  %1105 = vdwg.mxu0
  %v1106 = vmax.f32 %v897, 0.0
  %v1107 = vmax.f32 %v899, 0.0
  %v1108 = vmax.f32 %v958, 0.0
  %v1109 = vmax.f32 %v960, 0.0
  %v1110 = vmax.f32 %v1019, 0.0
  %v1111 = vmax.f32 %v1021, 0.0
  %v1112 = vmax.f32 %v1080, 0.0
  %v1113 = vmax.f32 %v1082, 0.0
  %v1114 = vmax.f32 %v901, 0.0
  %v1115 = vmax.f32 %v903, 0.0
  %v1116 = vmax.f32 %v962, 0.0
  %v1117 = vmax.f32 %v964, 0.0
  %v1118 = vmax.f32 %v1023, 0.0
  %v1119 = vmax.f32 %v1025, 0.0
  %v1120 = vmax.f32 %v1084, 0.0
  %v1121 = vmax.f32 %v1086, 0.0
  %v1122 = vmax.f32 %v907, 0.0
  %v1123 = vmax.f32 %v909, 0.0
  %v1124 = vmax.f32 %v968, 0.0
  %v1125 = vmax.f32 %v970, 0.0
  %v1126 = vmax.f32 %v1029, 0.0
  %v1127 = vmax.f32 %v1031, 0.0
  %v1128 = vmax.f32 %v1090, 0.0
  %v1129 = vmax.f32 %v1092, 0.0
  %v1130 = vmax.f32 %v911, 0.0
  %v1131 = vmax.f32 %v913, 0.0
  %v1132 = vmax.f32 %v972, 0.0
  %v1133 = vmax.f32 %v974, 0.0
  %v1134 = vmax.f32 %v1033, 0.0
  %v1135 = vmax.f32 %v1035, 0.0
  %v1136 = vmax.f32 %v1094, 0.0
  %v1137 = vmax.f32 %v1096, 0.0
  %v1138 = vmax.f32 %v917, 0.0
  %v1139 = vmax.f32 %v919, 0.0
  %v1140 = vmax.f32 %v978, 0.0
  %v1141 = vmax.f32 %v980, 0.0
  %v1142 = vmax.f32 %v1039, 0.0
  %v1143 = vmax.f32 %v1041, 0.0
  %v1144 = vmax.f32 %v1100, 0.0
  %v1145 = vmax.f32 %v1102, 0.0
  %v1146 = vpack.c.bf16 %v1114, %v1106
  %v1147 = vpack.c.bf16 %v1115, %v1107
  %v1148 = vpack.c.bf16 %v1116, %v1108
  %v1149 = vpack.c.bf16 %v1117, %v1109
  %v1150 = vpack.c.bf16 %v1118, %v1110
  %v1151 = vpack.c.bf16 %v1119, %v1111
  %v1152 = vpack.c.bf16 %v1120, %v1112
  %v1153 = vpack.c.bf16 %v1121, %v1113
  %v1154 = vpack.c.bf16 %v1130, %v1122
  %v1155 = vpack.c.bf16 %v1131, %v1123
  %v1156 = vpack.c.bf16 %v1132, %v1124
  %v1157 = vpack.c.bf16 %v1133, %v1125
  %v1158 = vpack.c.bf16 %v1134, %v1126
  %v1159 = vpack.c.bf16 %v1135, %v1127
  %v1160 = vpack.c.bf16 %v1136, %v1128
  %v1161 = vpack.c.bf16 %v1137, %v1129
  %v1162 = vpack.c.bf16 %v1138, %v1138
  %v1163 = vpack.c.bf16 %v1139, %v1139
  %v1164 = vpack.c.bf16 %v1140, %v1140
  %v1165 = vpack.c.bf16 %v1141, %v1141
  %v1166 = vpack.c.bf16 %v1142, %v1142
  %v1167 = vpack.c.bf16 %v1143, %v1143
  %v1168 = vpack.c.bf16 %v1144, %v1144
  %v1169 = vpack.c.bf16 %v1145, %v1145
  %v1170 = vld [vmem:[%s3] sm:$0xff]
  %v1171 = vld [vmem:[%s3 + $0x8] sm:$0xff]
  %v1172 = vld [vmem:[%s3 + $0x10] sm:$0xff]
  %v1173 = vld [vmem:[%s3 + $0x18] sm:$0xff]
  %v1174 = vld [vmem:[%s3 + $0x20] sm:$0xff]
  %v1175 = vld [vmem:[%s3 + $0x28] sm:$0xff]
  %v1176 = vld [vmem:[%s3 + $0x30] sm:$0xff]
  %v1177 = vld [vmem:[%s3 + $0x38] sm:$0xff]
  %v1178 = vld [vmem:[%s3 + $0x40] sm:$0xff]
  %v1179 = vld [vmem:[%s3 + $0x48] sm:$0xff]
  %v1180 = vld [vmem:[%s3 + $0x50] sm:$0xff]
  %v1181 = vld [vmem:[%s3 + $0x58] sm:$0xff]
  %v1182 = vld [vmem:[%s3 + $0x60] sm:$0xff]
  %v1183 = vld [vmem:[%s3 + $0x68] sm:$0xff]
  %v1184 = vld [vmem:[%s3 + $0x70] sm:$0xff]
  %v1185 = vld [vmem:[%s3 + $0x78] sm:$0xff]
  %v1186 = vld [vmem:[%s3 + $0x80] sm:$0xff]
  %v1187 = vld [vmem:[%s3 + $0x88] sm:$0xff]
  %v1188 = vld [vmem:[%s3 + $0x90] sm:$0xff]
  %v1189 = vld [vmem:[%s3 + $0x98] sm:$0xff]
  %v1190 = vld [vmem:[%s3 + $0xa0] sm:$0xff]
  %v1191 = vld [vmem:[%s3 + $0xa8] sm:$0xff]
  %v1192 = vld [vmem:[%s3 + $0xb0] sm:$0xff]
  %v1193 = vld [vmem:[%s3 + $0xb8] sm:$0xff]
  %v1194 = vld [vmem:[%s3 + $0xc0] sm:$0xff]
  %v1195 = vld [vmem:[%s3 + $0xc8] sm:$0xff]
  %v1196 = vld [vmem:[%s3 + $0xd0] sm:$0xff]
  %v1197 = vld [vmem:[%s3 + $0xd8] sm:$0xff]
  %v1198 = vld [vmem:[%s3 + $0xe0] sm:$0xff]
  %v1199 = vld [vmem:[%s3 + $0xe8] sm:$0xff]
  %v1200 = vld [vmem:[%s3 + $0xf0] sm:$0xff]
  %v1201 = vld [vmem:[%s3 + $0xf8] sm:$0xff]
  %v1202 = vld [vmem:[%s3 + $0x100] sm:$0xff]
  %v1203 = vld [vmem:[%s3 + $0x108] sm:$0xff]
  %v1204 = vld [vmem:[%s3 + $0x110] sm:$0xff]
  %v1205 = vld [vmem:[%s3 + $0x118] sm:$0xff]
  %v1206 = vld [vmem:[%s3 + $0x120] sm:$0xff]
  %v1207 = vld [vmem:[%s3 + $0x128] sm:$0xff]
  %v1208 = vld [vmem:[%s3 + $0x130] sm:$0xff]
  %v1209 = vld [vmem:[%s3 + $0x138] sm:$0xff]
  %v1210 = vld [vmem:[%s3 + $0x140] sm:$0xff]
  %v1211 = vld [vmem:[%s3 + $0x148] sm:$0xff]
  %v1212 = vld [vmem:[%s3 + $0x150] sm:$0xff]
  %v1213 = vld [vmem:[%s3 + $0x158] sm:$0xff]
  %v1214 = vld [vmem:[%s3 + $0x160] sm:$0xff]
  %v1215 = vld [vmem:[%s3 + $0x168] sm:$0xff]
  %v1216 = vld [vmem:[%s3 + $0x170] sm:$0xff]
  %v1217 = vld [vmem:[%s3 + $0x178] sm:$0xff]
  %v1218 = vld [vmem:[%s3 + $0x180] sm:$0xff]
  %v1219 = vld [vmem:[%s3 + $0x188] sm:$0xff]
  %v1220 = vld [vmem:[%s3 + $0x190] sm:$0xff]
  %v1221 = vld [vmem:[%s3 + $0x198] sm:$0xff]
  %v1222 = vld [vmem:[%s3 + $0x1a0] sm:$0xff]
  %v1223 = vld [vmem:[%s3 + $0x1a8] sm:$0xff]
  %v1224 = vld [vmem:[%s3 + $0x1b0] sm:$0xff]
  %v1225 = vld [vmem:[%s3 + $0x1b8] sm:$0xff]
  %v1226 = vld [vmem:[%s3 + $0x1c0] sm:$0xff]
  %v1227 = vld [vmem:[%s3 + $0x1c8] sm:$0xff]
  %v1228 = vld [vmem:[%s3 + $0x1d0] sm:$0xff]
  %v1229 = vld [vmem:[%s3 + $0x1d8] sm:$0xff]
  %v1230 = vld [vmem:[%s3 + $0x1e0] sm:$0xff]
  %v1231 = vld [vmem:[%s3 + $0x1e8] sm:$0xff]
  %v1232 = vld [vmem:[%s3 + $0x1f0] sm:$0xff]
  %v1233 = vld [vmem:[%s3 + $0x1f8] sm:$0xff]
  %v1234 = vld [vmem:[%s3 + $0x200] sm:$0xff]
  %v1235 = vld [vmem:[%s3 + $0x208] sm:$0xff]
  %v1236 = vld [vmem:[%s3 + $0x210] sm:$0xff]
  %v1237 = vld [vmem:[%s3 + $0x218] sm:$0xff]
  %v1238 = vld [vmem:[%s3 + $0x220] sm:$0xff]
  %v1239 = vld [vmem:[%s3 + $0x228] sm:$0xff]
  %v1240 = vld [vmem:[%s3 + $0x230] sm:$0xff]
  %v1241 = vld [vmem:[%s3 + $0x238] sm:$0xff]
  %v1242 = vld [vmem:[%s3 + $0x240] sm:$0xff]
  %v1243 = vld [vmem:[%s3 + $0x248] sm:$0xff]
  %v1244 = vld [vmem:[%s3 + $0x250] sm:$0xff]
  %v1245 = vld [vmem:[%s3 + $0x258] sm:$0xff]
  %v1246 = vld [vmem:[%s3 + $0x260] sm:$0xff]
  %v1247 = vld [vmem:[%s3 + $0x268] sm:$0xff]
  %v1248 = vld [vmem:[%s3 + $0x270] sm:$0xff]
  %v1249 = vld [vmem:[%s3 + $0x278] sm:$0xff]
  %v1250 = vld [vmem:[%s3 + $0x280] sm:$0xff]
  %v1251 = vld [vmem:[%s3 + $0x288] sm:$0xff]
  %v1252 = vld [vmem:[%s3 + $0x290] sm:$0xff]
  %v1253 = vld [vmem:[%s3 + $0x298] sm:$0xff]
  %v1254 = vld [vmem:[%s3 + $0x2a0] sm:$0xff]
  %v1255 = vld [vmem:[%s3 + $0x2a8] sm:$0xff]
  %v1256 = vld [vmem:[%s3 + $0x2b0] sm:$0xff]
  %v1257 = vld [vmem:[%s3 + $0x2b8] sm:$0xff]
  %v1258 = vld [vmem:[%s3 + $0x2c0] sm:$0xff]
  %v1259 = vld [vmem:[%s3 + $0x2c8] sm:$0xff]
  %v1260 = vld [vmem:[%s3 + $0x2d0] sm:$0xff]
  %v1261 = vld [vmem:[%s3 + $0x2d8] sm:$0xff]
  %v1262 = vld [vmem:[%s3 + $0x2e0] sm:$0xff]
  %v1263 = vld [vmem:[%s3 + $0x2e8] sm:$0xff]
  %v1264 = vld [vmem:[%s3 + $0x2f0] sm:$0xff]
  %v1265 = vld [vmem:[%s3 + $0x2f8] sm:$0xff]
  %v1266 = vld [vmem:[%s3 + $0x300] sm:$0xff]
  %v1267 = vld [vmem:[%s3 + $0x308] sm:$0xff]
  %v1268 = vld [vmem:[%s3 + $0x310] sm:$0xff]
  %v1269 = vld [vmem:[%s3 + $0x318] sm:$0xff]
  %v1270 = vld [vmem:[%s3 + $0x320] sm:$0xff]
  %v1271 = vld [vmem:[%s3 + $0x328] sm:$0xff]
  %v1272 = vld [vmem:[%s3 + $0x330] sm:$0xff]
  %v1273 = vld [vmem:[%s3 + $0x338] sm:$0xff]
  %v1274 = vld [vmem:[%s3 + $0x340] sm:$0xff]
  %v1275 = vld [vmem:[%s3 + $0x348] sm:$0xff]
  %v1276 = vld [vmem:[%s3 + $0x350] sm:$0xff]
  %v1277 = vld [vmem:[%s3 + $0x358] sm:$0xff]
  %v1278 = vld [vmem:[%s3 + $0x360] sm:$0xff]
  %v1279 = vld [vmem:[%s3 + $0x368] sm:$0xff]
  %v1280 = vld [vmem:[%s3 + $0x370] sm:$0xff]
  %v1281 = vld [vmem:[%s3 + $0x378] sm:$0xff]
  %v1282 = vld [vmem:[%s3 + $0x380] sm:$0xff]
  %v1283 = vld [vmem:[%s3 + $0x388] sm:$0xff]
  %v1284 = vld [vmem:[%s3 + $0x390] sm:$0xff]
  %v1285 = vld [vmem:[%s3 + $0x398] sm:$0xff]
  %v1286 = vld [vmem:[%s3 + $0x3a0] sm:$0xff]
  %v1287 = vld [vmem:[%s3 + $0x3a8] sm:$0xff]
  %v1288 = vld [vmem:[%s3 + $0x3b0] sm:$0xff]
  %v1289 = vld [vmem:[%s3 + $0x3b8] sm:$0xff]
  %v1290 = vld [vmem:[%s3 + $0x3c0] sm:$0xff]
  %v1291 = vld [vmem:[%s3 + $0x3c8] sm:$0xff]
  %v1292 = vld [vmem:[%s3 + $0x3d0] sm:$0xff]
  %v1293 = vld [vmem:[%s3 + $0x3d8] sm:$0xff]
  %v1294 = vld [vmem:[%s3 + $0x3e0] sm:$0xff]
  %v1295 = vld [vmem:[%s3 + $0x3e8] sm:$0xff]
  %v1296 = vld [vmem:[%s3 + $0x3f0] sm:$0xff]
  %v1297 = vld [vmem:[%s3 + $0x3f8] sm:$0xff]
  %v1298 = vld [vmem:[%s3 + $0x400] sm:$0xff]
  %v1299 = vld [vmem:[%s3 + $0x408] sm:$0xff]
  %v1300 = vld [vmem:[%s3 + $0x410] sm:$0xff]
  %v1301 = vld [vmem:[%s3 + $0x418] sm:$0xff]
  %v1302 = vld [vmem:[%s3 + $0x420] sm:$0xff]
  %v1303 = vld [vmem:[%s3 + $0x428] sm:$0xff]
  %v1304 = vld [vmem:[%s3 + $0x430] sm:$0xff]
  %v1305 = vld [vmem:[%s3 + $0x438] sm:$0xff]
  %v1306 = vld [vmem:[%s3 + $0x440] sm:$0xff]
  %v1307 = vld [vmem:[%s3 + $0x448] sm:$0xff]
  %v1308 = vld [vmem:[%s3 + $0x450] sm:$0xff]
  %v1309 = vld [vmem:[%s3 + $0x458] sm:$0xff]
  %v1310 = vld [vmem:[%s3 + $0x460] sm:$0xff]
  %v1311 = vld [vmem:[%s3 + $0x468] sm:$0xff]
  %v1312 = vld [vmem:[%s3 + $0x470] sm:$0xff]
  %v1313 = vld [vmem:[%s3 + $0x478] sm:$0xff]
  %v1314 = vld [vmem:[%s3 + $0x480] sm:$0xff]
  %v1315 = vld [vmem:[%s3 + $0x488] sm:$0xff]
  %v1316 = vld [vmem:[%s3 + $0x490] sm:$0xff]
  %v1317 = vld [vmem:[%s3 + $0x498] sm:$0xff]
  %v1318 = vld [vmem:[%s3 + $0x4a0] sm:$0xff]
  %v1319 = vld [vmem:[%s3 + $0x4a8] sm:$0xff]
  %v1320 = vld [vmem:[%s3 + $0x4b0] sm:$0xff]
  %v1321 = vld [vmem:[%s3 + $0x4b8] sm:$0xff]
  %v1322 = vld [vmem:[%s3 + $0x4c0] sm:$0xff]
  %v1323 = vld [vmem:[%s3 + $0x4c8] sm:$0xff]
  %v1324 = vld [vmem:[%s3 + $0x4d0] sm:$0xff]
  %v1325 = vld [vmem:[%s3 + $0x4d8] sm:$0xff]
  %v1326 = vld [vmem:[%s3 + $0x4e0] sm:$0xff]
  %v1327 = vld [vmem:[%s3 + $0x4e8] sm:$0xff]
  %v1328 = vld [vmem:[%s3 + $0x4f0] sm:$0xff]
  %v1329 = vld [vmem:[%s3 + $0x4f8] sm:$0xff]
  %v1330 = vld [vmem:[%s3 + $0x500] sm:$0xff]
  %v1331 = vld [vmem:[%s3 + $0x508] sm:$0xff]
  %v1332 = vld [vmem:[%s3 + $0x510] sm:$0xff]
  %v1333 = vld [vmem:[%s3 + $0x518] sm:$0xff]
  %v1334 = vld [vmem:[%s3 + $0x520] sm:$0xff]
  %v1335 = vld [vmem:[%s3 + $0x528] sm:$0xff]
  %v1336 = vld [vmem:[%s3 + $0x530] sm:$0xff]
  %v1337 = vld [vmem:[%s3 + $0x538] sm:$0xff]
  %v1338 = vld [vmem:[%s3 + $0x540] sm:$0xff]
  %v1339 = vld [vmem:[%s3 + $0x548] sm:$0xff]
  %v1340 = vld [vmem:[%s3 + $0x550] sm:$0xff]
  %v1341 = vld [vmem:[%s3 + $0x558] sm:$0xff]
  %v1342 = vld [vmem:[%s3 + $0x560] sm:$0xff]
  %v1343 = vld [vmem:[%s3 + $0x568] sm:$0xff]
  %v1344 = vld [vmem:[%s3 + $0x570] sm:$0xff]
  %v1345 = vld [vmem:[%s3 + $0x578] sm:$0xff]
  %v1346 = vld [vmem:[%s3 + $0x580] sm:$0xff]
  %v1347 = vld [vmem:[%s3 + $0x588] sm:$0xff]
  %v1348 = vld [vmem:[%s3 + $0x590] sm:$0xff]
  %v1349 = vld [vmem:[%s3 + $0x598] sm:$0xff]
  %v1350 = vld [vmem:[%s3 + $0x5a0] sm:$0xff]
  %v1351 = vld [vmem:[%s3 + $0x5a8] sm:$0xff]
  %v1352 = vld [vmem:[%s3 + $0x5b0] sm:$0xff]
  %v1353 = vld [vmem:[%s3 + $0x5b8] sm:$0xff]
  %v1354 = vld [vmem:[%s3 + $0x5c0] sm:$0xff]
  %v1355 = vld [vmem:[%s3 + $0x5c8] sm:$0xff]
  %v1356 = vld [vmem:[%s3 + $0x5d0] sm:$0xff]
  %v1357 = vld [vmem:[%s3 + $0x5d8] sm:$0xff]
  %v1358 = vld [vmem:[%s3 + $0x5e0] sm:$0xff]
  %v1359 = vld [vmem:[%s3 + $0x5e8] sm:$0xff]
  %v1360 = vld [vmem:[%s3 + $0x5f0] sm:$0xff]
  %v1361 = vld [vmem:[%s3 + $0x5f8] sm:$0xff]
  %v1362 = vld [vmem:[%s3 + $0x600] sm:$0xff]
  %v1363 = vld [vmem:[%s3 + $0x608] sm:$0xff]
  %v1364 = vld [vmem:[%s3 + $0x610] sm:$0xff]
  %v1365 = vld [vmem:[%s3 + $0x618] sm:$0xff]
  %v1366 = vld [vmem:[%s3 + $0x620] sm:$0xff]
  %v1367 = vld [vmem:[%s3 + $0x628] sm:$0xff]
  %v1368 = vld [vmem:[%s3 + $0x630] sm:$0xff]
  %v1369 = vld [vmem:[%s3 + $0x638] sm:$0xff]
  %v1370 = vld [vmem:[%s3 + $0x640] sm:$0xff]
  %v1371 = vld [vmem:[%s3 + $0x648] sm:$0xff]
  %v1372 = vld [vmem:[%s3 + $0x650] sm:$0xff]
  %v1373 = vld [vmem:[%s3 + $0x658] sm:$0xff]
  %v1374 = vld [vmem:[%s3 + $0x660] sm:$0xff]
  %v1375 = vld [vmem:[%s3 + $0x668] sm:$0xff]
  %v1376 = vld [vmem:[%s3 + $0x670] sm:$0xff]
  %v1377 = vld [vmem:[%s3 + $0x678] sm:$0xff]
  %v1378 = vld [vmem:[%s3 + $0x680] sm:$0xff]
  %v1379 = vld [vmem:[%s3 + $0x688] sm:$0xff]
  %v1380 = vld [vmem:[%s3 + $0x690] sm:$0xff]
  %v1381 = vld [vmem:[%s3 + $0x698] sm:$0xff]
  %v1382 = vld [vmem:[%s3 + $0x6a0] sm:$0xff]
  %v1383 = vld [vmem:[%s3 + $0x6a8] sm:$0xff]
  %v1384 = vld [vmem:[%s3 + $0x6b0] sm:$0xff]
  %v1385 = vld [vmem:[%s3 + $0x6b8] sm:$0xff]
  %v1386 = vld [vmem:[%s3 + $0x6c0] sm:$0xff]
  %v1387 = vld [vmem:[%s3 + $0x6c8] sm:$0xff]
  %v1388 = vld [vmem:[%s3 + $0x6d0] sm:$0xff]
  %v1389 = vld [vmem:[%s3 + $0x6d8] sm:$0xff]
  %v1390 = vld [vmem:[%s3 + $0x6e0] sm:$0xff]
  %v1391 = vld [vmem:[%s3 + $0x6e8] sm:$0xff]
  %v1392 = vld [vmem:[%s3 + $0x6f0] sm:$0xff]
  %v1393 = vld [vmem:[%s3 + $0x6f8] sm:$0xff]
  %v1394 = vld [vmem:[%s3 + $0x700] sm:$0xff]
  %v1395 = vld [vmem:[%s3 + $0x708] sm:$0xff]
  %v1396 = vld [vmem:[%s3 + $0x710] sm:$0xff]
  %v1397 = vld [vmem:[%s3 + $0x718] sm:$0xff]
  %v1398 = vld [vmem:[%s3 + $0x720] sm:$0xff]
  %v1399 = vld [vmem:[%s3 + $0x728] sm:$0xff]
  %v1400 = vld [vmem:[%s3 + $0x730] sm:$0xff]
  %v1401 = vld [vmem:[%s3 + $0x738] sm:$0xff]
  %v1402 = vld [vmem:[%s3 + $0x740] sm:$0xff]
  %v1403 = vld [vmem:[%s3 + $0x748] sm:$0xff]
  %v1404 = vld [vmem:[%s3 + $0x750] sm:$0xff]
  %v1405 = vld [vmem:[%s3 + $0x758] sm:$0xff]
  %v1406 = vld [vmem:[%s3 + $0x760] sm:$0xff]
  %v1407 = vld [vmem:[%s3 + $0x768] sm:$0xff]
  %v1408 = vld [vmem:[%s3 + $0x770] sm:$0xff]
  %v1409 = vld [vmem:[%s3 + $0x778] sm:$0xff]
  %v1410 = vld [vmem:[%s3 + $0x780] sm:$0xff]
  %v1411 = vld [vmem:[%s3 + $0x788] sm:$0xff]
  %v1412 = vld [vmem:[%s3 + $0x790] sm:$0xff]
  %v1413 = vld [vmem:[%s3 + $0x798] sm:$0xff]
  %v1414 = vld [vmem:[%s3 + $0x7a0] sm:$0xff]
  %v1415 = vld [vmem:[%s3 + $0x7a8] sm:$0xff]
  %v1416 = vld [vmem:[%s3 + $0x7b0] sm:$0xff]
  %v1417 = vld [vmem:[%s3 + $0x7b8] sm:$0xff]
  %v1418 = vld [vmem:[%s3 + $0x7c0] sm:$0xff]
  %v1419 = vld [vmem:[%s3 + $0x7c8] sm:$0xff]
  %v1420 = vld [vmem:[%s3 + $0x7d0] sm:$0xff]
  %v1421 = vld [vmem:[%s3 + $0x7d8] sm:$0xff]
  %v1422 = vld [vmem:[%s3 + $0x7e0] sm:$0xff]
  %v1423 = vld [vmem:[%s3 + $0x7e8] sm:$0xff]
  %v1424 = vld [vmem:[%s3 + $0x7f0] sm:$0xff]
  %v1425 = vld [vmem:[%s3 + $0x7f8] sm:$0xff]
  %v1426 = vld [vmem:[%s4] sm:$0xf]
  %v1428 = vlaneseq
  %v1429 = vshrl.u32 %v1428, 7
  %v1430 = vsub.s32 0, %v1429
  %v1431 = vrot.slane %v1426, %v1430
  %v1432 = vlaneseq
  %v1433 = vshrl.u32 %v1432, 7
  %v1434 = vsub.s32 1, %v1433
  %v1435 = vrot.slane %v1426, %v1434
  %v1436 = vlaneseq
  %v1437 = vshrl.u32 %v1436, 7
  %v1438 = vsub.s32 2, %v1437
  %v1439 = vrot.slane %v1426, %v1438
  %v1440 = vlaneseq
  %v1441 = vshrl.u32 %v1440, 7
  %v1442 = vsub.s32 3, %v1441
  %v1443 = vrot.slane %v1426, %v1442
  %v1704 = vunpack.c.l.b16 %v1170
  %v1705 = vunpack.c.h.b16 %v1170
  %v1706 = vunpack.c.l.b16 %v1171
  %v1707 = vunpack.c.h.b16 %v1171
  %v1708 = vunpack.c.l.b16 %v1172
  %v1709 = vunpack.c.h.b16 %v1172
  %v1710 = vunpack.c.l.b16 %v1173
  %v1711 = vunpack.c.h.b16 %v1173
  %v1712 = vunpack.c.l.b16 %v1174
  %v1713 = vunpack.c.h.b16 %v1174
  %v1714 = vunpack.c.l.b16 %v1175
  %v1715 = vunpack.c.h.b16 %v1175
  %v1716 = vunpack.c.l.b16 %v1176
  %v1717 = vunpack.c.h.b16 %v1176
  %v1718 = vunpack.c.l.b16 %v1177
  %v1719 = vunpack.c.h.b16 %v1177
  %v1720 = vunpack.c.l.b16 %v1178
  %v1721 = vunpack.c.h.b16 %v1178
  %v1722 = vunpack.c.l.b16 %v1179
  %v1723 = vunpack.c.h.b16 %v1179
  %v1724 = vunpack.c.l.b16 %v1180
  %v1725 = vunpack.c.h.b16 %v1180
  %v1726 = vunpack.c.l.b16 %v1181
  %v1727 = vunpack.c.h.b16 %v1181
  %v1728 = vunpack.c.l.b16 %v1182
  %v1729 = vunpack.c.h.b16 %v1182
  %v1730 = vunpack.c.l.b16 %v1183
  %v1731 = vunpack.c.h.b16 %v1183
  %v1732 = vunpack.c.l.b16 %v1184
  %v1733 = vunpack.c.h.b16 %v1184
  %v1734 = vunpack.c.l.b16 %v1185
  %v1735 = vunpack.c.h.b16 %v1185
  %v1736 = vunpack.c.l.b16 %v1186
  %v1737 = vunpack.c.h.b16 %v1186
  %v1738 = vunpack.c.l.b16 %v1187
  %v1739 = vunpack.c.h.b16 %v1187
  %v1740 = vunpack.c.l.b16 %v1188
  %v1741 = vunpack.c.h.b16 %v1188
  %v1742 = vunpack.c.l.b16 %v1189
  %v1743 = vunpack.c.h.b16 %v1189
  %v1744 = vunpack.c.l.b16 %v1190
  %v1745 = vunpack.c.h.b16 %v1190
  %v1746 = vunpack.c.l.b16 %v1191
  %v1747 = vunpack.c.h.b16 %v1191
  %v1748 = vunpack.c.l.b16 %v1192
  %v1749 = vunpack.c.h.b16 %v1192
  %v1750 = vunpack.c.l.b16 %v1193
  %v1751 = vunpack.c.h.b16 %v1193
  %v1752 = vunpack.c.l.b16 %v1194
  %v1753 = vunpack.c.h.b16 %v1194
  %v1754 = vunpack.c.l.b16 %v1195
  %v1755 = vunpack.c.h.b16 %v1195
  %v1756 = vunpack.c.l.b16 %v1196
  %v1757 = vunpack.c.h.b16 %v1196
  %v1758 = vunpack.c.l.b16 %v1197
  %v1759 = vunpack.c.h.b16 %v1197
  %v1760 = vunpack.c.l.b16 %v1198
  %v1761 = vunpack.c.h.b16 %v1198
  %v1762 = vunpack.c.l.b16 %v1199
  %v1763 = vunpack.c.h.b16 %v1199
  %v1764 = vunpack.c.l.b16 %v1200
  %v1765 = vunpack.c.h.b16 %v1200
  %v1766 = vunpack.c.l.b16 %v1201
  %v1767 = vunpack.c.h.b16 %v1201
  %v1768 = vunpack.c.l.b16 %v1202
  %v1769 = vunpack.c.h.b16 %v1202
  %v1770 = vunpack.c.l.b16 %v1203
  %v1771 = vunpack.c.h.b16 %v1203
  %v1772 = vunpack.c.l.b16 %v1204
  %v1773 = vunpack.c.h.b16 %v1204
  %v1774 = vunpack.c.l.b16 %v1205
  %v1775 = vunpack.c.h.b16 %v1205
  %v1776 = vunpack.c.l.b16 %v1206
  %v1777 = vunpack.c.h.b16 %v1206
  %v1778 = vunpack.c.l.b16 %v1207
  %v1779 = vunpack.c.h.b16 %v1207
  %v1780 = vunpack.c.l.b16 %v1208
  %v1781 = vunpack.c.h.b16 %v1208
  %v1782 = vunpack.c.l.b16 %v1209
  %v1783 = vunpack.c.h.b16 %v1209
  %v1784 = vunpack.c.l.b16 %v1210
  %v1785 = vunpack.c.h.b16 %v1210
  %v1786 = vunpack.c.l.b16 %v1211
  %v1787 = vunpack.c.h.b16 %v1211
  %v1788 = vunpack.c.l.b16 %v1212
  %v1789 = vunpack.c.h.b16 %v1212
  %v1790 = vunpack.c.l.b16 %v1213
  %v1791 = vunpack.c.h.b16 %v1213
  %v1792 = vunpack.c.l.b16 %v1214
  %v1793 = vunpack.c.h.b16 %v1214
  %v1794 = vunpack.c.l.b16 %v1215
  %v1795 = vunpack.c.h.b16 %v1215
  %v1796 = vunpack.c.l.b16 %v1216
  %v1797 = vunpack.c.h.b16 %v1216
  %v1798 = vunpack.c.l.b16 %v1217
  %v1799 = vunpack.c.h.b16 %v1217
  %v1800 = vunpack.c.l.b16 %v1218
  %v1801 = vunpack.c.h.b16 %v1218
  %v1802 = vunpack.c.l.b16 %v1219
  %v1803 = vunpack.c.h.b16 %v1219
  %v1804 = vunpack.c.l.b16 %v1220
  %v1805 = vunpack.c.h.b16 %v1220
  %v1806 = vunpack.c.l.b16 %v1221
  %v1807 = vunpack.c.h.b16 %v1221
  %v1808 = vunpack.c.l.b16 %v1222
  %v1809 = vunpack.c.h.b16 %v1222
  %v1810 = vunpack.c.l.b16 %v1223
  %v1811 = vunpack.c.h.b16 %v1223
  %v1812 = vunpack.c.l.b16 %v1224
  %v1813 = vunpack.c.h.b16 %v1224
  %v1814 = vunpack.c.l.b16 %v1225
  %v1815 = vunpack.c.h.b16 %v1225
  %v1816 = vunpack.c.l.b16 %v1226
  %v1817 = vunpack.c.h.b16 %v1226
  %v1818 = vunpack.c.l.b16 %v1227
  %v1819 = vunpack.c.h.b16 %v1227
  %v1820 = vunpack.c.l.b16 %v1228
  %v1821 = vunpack.c.h.b16 %v1228
  %v1822 = vunpack.c.l.b16 %v1229
  %v1823 = vunpack.c.h.b16 %v1229
  %v1824 = vunpack.c.l.b16 %v1230
  %v1825 = vunpack.c.h.b16 %v1230
  %v1826 = vunpack.c.l.b16 %v1231
  %v1827 = vunpack.c.h.b16 %v1231
  %v1828 = vunpack.c.l.b16 %v1232
  %v1829 = vunpack.c.h.b16 %v1232
  %v1830 = vunpack.c.l.b16 %v1233
  %v1831 = vunpack.c.h.b16 %v1233
  %v1832 = vunpack.c.l.b16 %v1234
  %v1833 = vunpack.c.h.b16 %v1234
  %v1834 = vunpack.c.l.b16 %v1235
  %v1835 = vunpack.c.h.b16 %v1235
  %v1836 = vunpack.c.l.b16 %v1236
  %v1837 = vunpack.c.h.b16 %v1236
  %v1838 = vunpack.c.l.b16 %v1237
  %v1839 = vunpack.c.h.b16 %v1237
  %v1840 = vunpack.c.l.b16 %v1238
  %v1841 = vunpack.c.h.b16 %v1238
  %v1842 = vunpack.c.l.b16 %v1239
  %v1843 = vunpack.c.h.b16 %v1239
  %v1844 = vunpack.c.l.b16 %v1240
  %v1845 = vunpack.c.h.b16 %v1240
  %v1846 = vunpack.c.l.b16 %v1241
  %v1847 = vunpack.c.h.b16 %v1241
  %v1848 = vunpack.c.l.b16 %v1242
  %v1849 = vunpack.c.h.b16 %v1242
  %v1850 = vunpack.c.l.b16 %v1243
  %v1851 = vunpack.c.h.b16 %v1243
  %v1852 = vunpack.c.l.b16 %v1244
  %v1853 = vunpack.c.h.b16 %v1244
  %v1854 = vunpack.c.l.b16 %v1245
  %v1855 = vunpack.c.h.b16 %v1245
  %v1856 = vunpack.c.l.b16 %v1246
  %v1857 = vunpack.c.h.b16 %v1246
  %v1858 = vunpack.c.l.b16 %v1247
  %v1859 = vunpack.c.h.b16 %v1247
  %v1860 = vunpack.c.l.b16 %v1248
  %v1861 = vunpack.c.h.b16 %v1248
  %v1862 = vunpack.c.l.b16 %v1249
  %v1863 = vunpack.c.h.b16 %v1249
  %v1864 = vunpack.c.l.b16 %v1250
  %v1865 = vunpack.c.h.b16 %v1250
  %v1866 = vunpack.c.l.b16 %v1251
  %v1867 = vunpack.c.h.b16 %v1251
  %v1868 = vunpack.c.l.b16 %v1252
  %v1869 = vunpack.c.h.b16 %v1252
  %v1870 = vunpack.c.l.b16 %v1253
  %v1871 = vunpack.c.h.b16 %v1253
  %v1872 = vunpack.c.l.b16 %v1254
  %v1873 = vunpack.c.h.b16 %v1254
  %v1874 = vunpack.c.l.b16 %v1255
  %v1875 = vunpack.c.h.b16 %v1255
  %v1876 = vunpack.c.l.b16 %v1256
  %v1877 = vunpack.c.h.b16 %v1256
  %v1878 = vunpack.c.l.b16 %v1257
  %v1879 = vunpack.c.h.b16 %v1257
  %v1880 = vunpack.c.l.b16 %v1258
  %v1881 = vunpack.c.h.b16 %v1258
  %v1882 = vunpack.c.l.b16 %v1259
  %v1883 = vunpack.c.h.b16 %v1259
  %v1884 = vunpack.c.l.b16 %v1260
  %v1885 = vunpack.c.h.b16 %v1260
  %v1886 = vunpack.c.l.b16 %v1261
  %v1887 = vunpack.c.h.b16 %v1261
  %v1888 = vunpack.c.l.b16 %v1262
  %v1889 = vunpack.c.h.b16 %v1262
  %v1890 = vunpack.c.l.b16 %v1263
  %v1891 = vunpack.c.h.b16 %v1263
  %v1892 = vunpack.c.l.b16 %v1264
  %v1893 = vunpack.c.h.b16 %v1264
  %v1894 = vunpack.c.l.b16 %v1265
  %v1895 = vunpack.c.h.b16 %v1265
  %v1896 = vunpack.c.l.b16 %v1266
  %v1897 = vunpack.c.h.b16 %v1266
  %v1898 = vunpack.c.l.b16 %v1267
  %v1899 = vunpack.c.h.b16 %v1267
  %v1900 = vunpack.c.l.b16 %v1268
  %v1901 = vunpack.c.h.b16 %v1268
  %v1902 = vunpack.c.l.b16 %v1269
  %v1903 = vunpack.c.h.b16 %v1269
  %v1904 = vunpack.c.l.b16 %v1270
  %v1905 = vunpack.c.h.b16 %v1270
  %v1906 = vunpack.c.l.b16 %v1271
  %v1907 = vunpack.c.h.b16 %v1271
  %v1908 = vunpack.c.l.b16 %v1272
  %v1909 = vunpack.c.h.b16 %v1272
  %v1910 = vunpack.c.l.b16 %v1273
  %v1911 = vunpack.c.h.b16 %v1273
  %v1912 = vunpack.c.l.b16 %v1274
  %v1913 = vunpack.c.h.b16 %v1274
  %v1914 = vunpack.c.l.b16 %v1275
  %v1915 = vunpack.c.h.b16 %v1275
  %v1916 = vunpack.c.l.b16 %v1276
  %v1917 = vunpack.c.h.b16 %v1276
  %v1918 = vunpack.c.l.b16 %v1277
  %v1919 = vunpack.c.h.b16 %v1277
  %v1920 = vunpack.c.l.b16 %v1278
  %v1921 = vunpack.c.h.b16 %v1278
  %v1922 = vunpack.c.l.b16 %v1279
  %v1923 = vunpack.c.h.b16 %v1279
  %v1924 = vunpack.c.l.b16 %v1280
  %v1925 = vunpack.c.h.b16 %v1280
  %v1926 = vunpack.c.l.b16 %v1281
  %v1927 = vunpack.c.h.b16 %v1281
  %v1928 = vunpack.c.l.b16 %v1282
  %v1929 = vunpack.c.h.b16 %v1282
  %v1930 = vunpack.c.l.b16 %v1283
  %v1931 = vunpack.c.h.b16 %v1283
  %v1932 = vunpack.c.l.b16 %v1284
  %v1933 = vunpack.c.h.b16 %v1284
  %v1934 = vunpack.c.l.b16 %v1285
  %v1935 = vunpack.c.h.b16 %v1285
  %v1936 = vunpack.c.l.b16 %v1286
  %v1937 = vunpack.c.h.b16 %v1286
  %v1938 = vunpack.c.l.b16 %v1287
  %v1939 = vunpack.c.h.b16 %v1287
  %v1940 = vunpack.c.l.b16 %v1288
  %v1941 = vunpack.c.h.b16 %v1288
  %v1942 = vunpack.c.l.b16 %v1289
  %v1943 = vunpack.c.h.b16 %v1289
  %v1944 = vunpack.c.l.b16 %v1290
  %v1945 = vunpack.c.h.b16 %v1290
  %v1946 = vunpack.c.l.b16 %v1291
  %v1947 = vunpack.c.h.b16 %v1291
  %v1948 = vunpack.c.l.b16 %v1292
  %v1949 = vunpack.c.h.b16 %v1292
  %v1950 = vunpack.c.l.b16 %v1293
  %v1951 = vunpack.c.h.b16 %v1293
  %v1952 = vunpack.c.l.b16 %v1294
  %v1953 = vunpack.c.h.b16 %v1294
  %v1954 = vunpack.c.l.b16 %v1295
  %v1955 = vunpack.c.h.b16 %v1295
  %v1956 = vunpack.c.l.b16 %v1296
  %v1957 = vunpack.c.h.b16 %v1296
  %v1958 = vunpack.c.l.b16 %v1297
  %v1959 = vunpack.c.h.b16 %v1297
  %v1960 = vunpack.c.l.b16 %v1298
  %v1961 = vunpack.c.h.b16 %v1298
  %v1962 = vunpack.c.l.b16 %v1299
  %v1963 = vunpack.c.h.b16 %v1299
  %v1964 = vunpack.c.l.b16 %v1300
  %v1965 = vunpack.c.h.b16 %v1300
  %v1966 = vunpack.c.l.b16 %v1301
  %v1967 = vunpack.c.h.b16 %v1301
  %v1968 = vunpack.c.l.b16 %v1302
  %v1969 = vunpack.c.h.b16 %v1302
  %v1970 = vunpack.c.l.b16 %v1303
  %v1971 = vunpack.c.h.b16 %v1303
  %v1972 = vunpack.c.l.b16 %v1304
  %v1973 = vunpack.c.h.b16 %v1304
  %v1974 = vunpack.c.l.b16 %v1305
  %v1975 = vunpack.c.h.b16 %v1305
  %v1976 = vunpack.c.l.b16 %v1306
  %v1977 = vunpack.c.h.b16 %v1306
  %v1978 = vunpack.c.l.b16 %v1307
  %v1979 = vunpack.c.h.b16 %v1307
  %v1980 = vunpack.c.l.b16 %v1308
  %v1981 = vunpack.c.h.b16 %v1308
  %v1982 = vunpack.c.l.b16 %v1309
  %v1983 = vunpack.c.h.b16 %v1309
  %v1984 = vunpack.c.l.b16 %v1310
  %v1985 = vunpack.c.h.b16 %v1310
  %v1986 = vunpack.c.l.b16 %v1311
  %v1987 = vunpack.c.h.b16 %v1311
  %v1988 = vunpack.c.l.b16 %v1312
  %v1989 = vunpack.c.h.b16 %v1312
  %v1990 = vunpack.c.l.b16 %v1313
  %v1991 = vunpack.c.h.b16 %v1313
  %v1992 = vunpack.c.l.b16 %v1314
  %v1993 = vunpack.c.h.b16 %v1314
  %v1994 = vunpack.c.l.b16 %v1315
  %v1995 = vunpack.c.h.b16 %v1315
  %v1996 = vunpack.c.l.b16 %v1316
  %v1997 = vunpack.c.h.b16 %v1316
  %v1998 = vunpack.c.l.b16 %v1317
  %v1999 = vunpack.c.h.b16 %v1317
  %v2000 = vunpack.c.l.b16 %v1318
  %v2001 = vunpack.c.h.b16 %v1318
  %v2002 = vunpack.c.l.b16 %v1319
  %v2003 = vunpack.c.h.b16 %v1319
  %v2004 = vunpack.c.l.b16 %v1320
  %v2005 = vunpack.c.h.b16 %v1320
  %v2006 = vunpack.c.l.b16 %v1321
  %v2007 = vunpack.c.h.b16 %v1321
  %v2008 = vunpack.c.l.b16 %v1322
  %v2009 = vunpack.c.h.b16 %v1322
  %v2010 = vunpack.c.l.b16 %v1323
  %v2011 = vunpack.c.h.b16 %v1323
  %v2012 = vunpack.c.l.b16 %v1324
  %v2013 = vunpack.c.h.b16 %v1324
  %v2014 = vunpack.c.l.b16 %v1325
  %v2015 = vunpack.c.h.b16 %v1325
  %v2016 = vunpack.c.l.b16 %v1326
  %v2017 = vunpack.c.h.b16 %v1326
  %v2018 = vunpack.c.l.b16 %v1327
  %v2019 = vunpack.c.h.b16 %v1327
  %v2020 = vunpack.c.l.b16 %v1328
  %v2021 = vunpack.c.h.b16 %v1328
  %v2022 = vunpack.c.l.b16 %v1329
  %v2023 = vunpack.c.h.b16 %v1329
  %v2024 = vunpack.c.l.b16 %v1330
  %v2025 = vunpack.c.h.b16 %v1330
  %v2026 = vunpack.c.l.b16 %v1331
  %v2027 = vunpack.c.h.b16 %v1331
  %v2028 = vunpack.c.l.b16 %v1332
  %v2029 = vunpack.c.h.b16 %v1332
  %v2030 = vunpack.c.l.b16 %v1333
  %v2031 = vunpack.c.h.b16 %v1333
  %v2032 = vunpack.c.l.b16 %v1334
  %v2033 = vunpack.c.h.b16 %v1334
  %v2034 = vunpack.c.l.b16 %v1335
  %v2035 = vunpack.c.h.b16 %v1335
  %v2036 = vunpack.c.l.b16 %v1336
  %v2037 = vunpack.c.h.b16 %v1336
  %v2038 = vunpack.c.l.b16 %v1337
  %v2039 = vunpack.c.h.b16 %v1337
  %v2040 = vunpack.c.l.b16 %v1338
  %v2041 = vunpack.c.h.b16 %v1338
  %v2042 = vunpack.c.l.b16 %v1339
  %v2043 = vunpack.c.h.b16 %v1339
  %v2044 = vunpack.c.l.b16 %v1340
  %v2045 = vunpack.c.h.b16 %v1340
  %v2046 = vunpack.c.l.b16 %v1341
  %v2047 = vunpack.c.h.b16 %v1341
  %v2048 = vunpack.c.l.b16 %v1342
  %v2049 = vunpack.c.h.b16 %v1342
  %v2050 = vunpack.c.l.b16 %v1343
  %v2051 = vunpack.c.h.b16 %v1343
  %v2052 = vunpack.c.l.b16 %v1344
  %v2053 = vunpack.c.h.b16 %v1344
  %v2054 = vunpack.c.l.b16 %v1345
  %v2055 = vunpack.c.h.b16 %v1345
  %v2056 = vunpack.c.l.b16 %v1346
  %v2057 = vunpack.c.h.b16 %v1346
  %v2058 = vunpack.c.l.b16 %v1347
  %v2059 = vunpack.c.h.b16 %v1347
  %v2060 = vunpack.c.l.b16 %v1348
  %v2061 = vunpack.c.h.b16 %v1348
  %v2062 = vunpack.c.l.b16 %v1349
  %v2063 = vunpack.c.h.b16 %v1349
  %v2064 = vunpack.c.l.b16 %v1350
  %v2065 = vunpack.c.h.b16 %v1350
  %v2066 = vunpack.c.l.b16 %v1351
  %v2067 = vunpack.c.h.b16 %v1351
  %v2068 = vunpack.c.l.b16 %v1352
  %v2069 = vunpack.c.h.b16 %v1352
  %v2070 = vunpack.c.l.b16 %v1353
  %v2071 = vunpack.c.h.b16 %v1353
  %v2072 = vunpack.c.l.b16 %v1354
  %v2073 = vunpack.c.h.b16 %v1354
  %v2074 = vunpack.c.l.b16 %v1355
  %v2075 = vunpack.c.h.b16 %v1355
  %v2076 = vunpack.c.l.b16 %v1356
  %v2077 = vunpack.c.h.b16 %v1356
  %v2078 = vunpack.c.l.b16 %v1357
  %v2079 = vunpack.c.h.b16 %v1357
  %v2080 = vunpack.c.l.b16 %v1358
  %v2081 = vunpack.c.h.b16 %v1358
  %v2082 = vunpack.c.l.b16 %v1359
  %v2083 = vunpack.c.h.b16 %v1359
  %v2084 = vunpack.c.l.b16 %v1360
  %v2085 = vunpack.c.h.b16 %v1360
  %v2086 = vunpack.c.l.b16 %v1361
  %v2087 = vunpack.c.h.b16 %v1361
  %v2088 = vunpack.c.l.b16 %v1362
  %v2089 = vunpack.c.h.b16 %v1362
  %v2090 = vunpack.c.l.b16 %v1363
  %v2091 = vunpack.c.h.b16 %v1363
  %v2092 = vunpack.c.l.b16 %v1364
  %v2093 = vunpack.c.h.b16 %v1364
  %v2094 = vunpack.c.l.b16 %v1365
  %v2095 = vunpack.c.h.b16 %v1365
  %v2096 = vunpack.c.l.b16 %v1366
  %v2097 = vunpack.c.h.b16 %v1366
  %v2098 = vunpack.c.l.b16 %v1367
  %v2099 = vunpack.c.h.b16 %v1367
  %v2100 = vunpack.c.l.b16 %v1368
  %v2101 = vunpack.c.h.b16 %v1368
  %v2102 = vunpack.c.l.b16 %v1369
  %v2103 = vunpack.c.h.b16 %v1369
  %v2104 = vunpack.c.l.b16 %v1370
  %v2105 = vunpack.c.h.b16 %v1370
  %v2106 = vunpack.c.l.b16 %v1371
  %v2107 = vunpack.c.h.b16 %v1371
  %v2108 = vunpack.c.l.b16 %v1372
  %v2109 = vunpack.c.h.b16 %v1372
  %v2110 = vunpack.c.l.b16 %v1373
  %v2111 = vunpack.c.h.b16 %v1373
  %v2112 = vunpack.c.l.b16 %v1374
  %v2113 = vunpack.c.h.b16 %v1374
  %v2114 = vunpack.c.l.b16 %v1375
  %v2115 = vunpack.c.h.b16 %v1375
  %v2116 = vunpack.c.l.b16 %v1376
  %v2117 = vunpack.c.h.b16 %v1376
  %v2118 = vunpack.c.l.b16 %v1377
  %v2119 = vunpack.c.h.b16 %v1377
  %v2120 = vunpack.c.l.b16 %v1378
  %v2121 = vunpack.c.h.b16 %v1378
  %v2122 = vunpack.c.l.b16 %v1379
  %v2123 = vunpack.c.h.b16 %v1379
  %v2124 = vunpack.c.l.b16 %v1380
  %v2125 = vunpack.c.h.b16 %v1380
  %v2126 = vunpack.c.l.b16 %v1381
  %v2127 = vunpack.c.h.b16 %v1381
  %v2128 = vunpack.c.l.b16 %v1382
  %v2129 = vunpack.c.h.b16 %v1382
  %v2130 = vunpack.c.l.b16 %v1383
  %v2131 = vunpack.c.h.b16 %v1383
  %v2132 = vunpack.c.l.b16 %v1384
  %v2133 = vunpack.c.h.b16 %v1384
  %v2134 = vunpack.c.l.b16 %v1385
  %v2135 = vunpack.c.h.b16 %v1385
  %v2136 = vunpack.c.l.b16 %v1386
  %v2137 = vunpack.c.h.b16 %v1386
  %v2138 = vunpack.c.l.b16 %v1387
  %v2139 = vunpack.c.h.b16 %v1387
  %v2140 = vunpack.c.l.b16 %v1388
  %v2141 = vunpack.c.h.b16 %v1388
  %v2142 = vunpack.c.l.b16 %v1389
  %v2143 = vunpack.c.h.b16 %v1389
  %v2144 = vunpack.c.l.b16 %v1390
  %v2145 = vunpack.c.h.b16 %v1390
  %v2146 = vunpack.c.l.b16 %v1391
  %v2147 = vunpack.c.h.b16 %v1391
  %v2148 = vunpack.c.l.b16 %v1392
  %v2149 = vunpack.c.h.b16 %v1392
  %v2150 = vunpack.c.l.b16 %v1393
  %v2151 = vunpack.c.h.b16 %v1393
  %v2152 = vunpack.c.l.b16 %v1394
  %v2153 = vunpack.c.h.b16 %v1394
  %v2154 = vunpack.c.l.b16 %v1395
  %v2155 = vunpack.c.h.b16 %v1395
  %v2156 = vunpack.c.l.b16 %v1396
  %v2157 = vunpack.c.h.b16 %v1396
  %v2158 = vunpack.c.l.b16 %v1397
  %v2159 = vunpack.c.h.b16 %v1397
  %v2160 = vunpack.c.l.b16 %v1398
  %v2161 = vunpack.c.h.b16 %v1398
  %v2162 = vunpack.c.l.b16 %v1399
  %v2163 = vunpack.c.h.b16 %v1399
  %v2164 = vunpack.c.l.b16 %v1400
  %v2165 = vunpack.c.h.b16 %v1400
  %v2166 = vunpack.c.l.b16 %v1401
  %v2167 = vunpack.c.h.b16 %v1401
  %v2168 = vunpack.c.l.b16 %v1402
  %v2169 = vunpack.c.h.b16 %v1402
  %v2170 = vunpack.c.l.b16 %v1403
  %v2171 = vunpack.c.h.b16 %v1403
  %v2172 = vunpack.c.l.b16 %v1404
  %v2173 = vunpack.c.h.b16 %v1404
  %v2174 = vunpack.c.l.b16 %v1405
  %v2175 = vunpack.c.h.b16 %v1405
  %v2176 = vunpack.c.l.b16 %v1406
  %v2177 = vunpack.c.h.b16 %v1406
  %v2178 = vunpack.c.l.b16 %v1407
  %v2179 = vunpack.c.h.b16 %v1407
  %v2180 = vunpack.c.l.b16 %v1408
  %v2181 = vunpack.c.h.b16 %v1408
  %v2182 = vunpack.c.l.b16 %v1409
  %v2183 = vunpack.c.h.b16 %v1409
  %v2184 = vunpack.c.l.b16 %v1410
  %v2185 = vunpack.c.h.b16 %v1410
  %v2186 = vunpack.c.l.b16 %v1411
  %v2187 = vunpack.c.h.b16 %v1411
  %v2188 = vunpack.c.l.b16 %v1412
  %v2189 = vunpack.c.h.b16 %v1412
  %v2190 = vunpack.c.l.b16 %v1413
  %v2191 = vunpack.c.h.b16 %v1413
  %v2192 = vunpack.c.l.b16 %v1414
  %v2193 = vunpack.c.h.b16 %v1414
  %v2194 = vunpack.c.l.b16 %v1415
  %v2195 = vunpack.c.h.b16 %v1415
  %v2196 = vunpack.c.l.b16 %v1416
  %v2197 = vunpack.c.h.b16 %v1416
  %v2198 = vunpack.c.l.b16 %v1417
  %v2199 = vunpack.c.h.b16 %v1417
  %v2200 = vunpack.c.l.b16 %v1418
  %v2201 = vunpack.c.h.b16 %v1418
  %v2202 = vunpack.c.l.b16 %v1419
  %v2203 = vunpack.c.h.b16 %v1419
  %v2204 = vunpack.c.l.b16 %v1420
  %v2205 = vunpack.c.h.b16 %v1420
  %v2206 = vunpack.c.l.b16 %v1421
  %v2207 = vunpack.c.h.b16 %v1421
  %v2208 = vunpack.c.l.b16 %v1422
  %v2209 = vunpack.c.h.b16 %v1422
  %v2210 = vunpack.c.l.b16 %v1423
  %v2211 = vunpack.c.h.b16 %v1423
  %v2212 = vunpack.c.l.b16 %v1424
  %v2213 = vunpack.c.h.b16 %v1424
  %v2214 = vunpack.c.l.b16 %v1425
  %v2215 = vunpack.c.h.b16 %v1425
  %v2216 = vpack.c.b16 %v1708, %v1704
  %v2217 = vpack.c.b16 %v1709, %v1705
  %v2218 = vpack.c.b16 %v1710, %v1706
  %v2219 = vpack.c.b16 %v1711, %v1707
  %v2220 = vpack.c.b16 %v1716, %v1712
  %v2221 = vpack.c.b16 %v1717, %v1713
  %v2222 = vpack.c.b16 %v1718, %v1714
  %v2223 = vpack.c.b16 %v1719, %v1715
  %v2224 = vpack.c.b16 %v1724, %v1720
  %v2225 = vpack.c.b16 %v1725, %v1721
  %v2226 = vpack.c.b16 %v1726, %v1722
  %v2227 = vpack.c.b16 %v1727, %v1723
  %v2228 = vpack.c.b16 %v1732, %v1728
  %v2229 = vpack.c.b16 %v1733, %v1729
  %v2230 = vpack.c.b16 %v1734, %v1730
  %v2231 = vpack.c.b16 %v1735, %v1731
  %v2232 = vpack.c.b16 %v1740, %v1736
  %v2233 = vpack.c.b16 %v1741, %v1737
  %v2234 = vpack.c.b16 %v1742, %v1738
  %v2235 = vpack.c.b16 %v1743, %v1739
  %v2236 = vpack.c.b16 %v1748, %v1744
  %v2237 = vpack.c.b16 %v1749, %v1745
  %v2238 = vpack.c.b16 %v1750, %v1746
  %v2239 = vpack.c.b16 %v1751, %v1747
  %v2240 = vpack.c.b16 %v1756, %v1752
  %v2241 = vpack.c.b16 %v1757, %v1753
  %v2242 = vpack.c.b16 %v1758, %v1754
  %v2243 = vpack.c.b16 %v1759, %v1755
  %v2244 = vpack.c.b16 %v1764, %v1760
  %v2245 = vpack.c.b16 %v1765, %v1761
  %v2246 = vpack.c.b16 %v1766, %v1762
  %v2247 = vpack.c.b16 %v1767, %v1763
  %v2248 = vpack.c.b16 %v1772, %v1768
  %v2249 = vpack.c.b16 %v1773, %v1769
  %v2250 = vpack.c.b16 %v1774, %v1770
  %v2251 = vpack.c.b16 %v1775, %v1771
  %v2252 = vpack.c.b16 %v1780, %v1776
  %v2253 = vpack.c.b16 %v1781, %v1777
  %v2254 = vpack.c.b16 %v1782, %v1778
  %v2255 = vpack.c.b16 %v1783, %v1779
  %v2256 = vpack.c.b16 %v1788, %v1784
  %v2257 = vpack.c.b16 %v1789, %v1785
  %v2258 = vpack.c.b16 %v1790, %v1786
  %v2259 = vpack.c.b16 %v1791, %v1787
  %v2260 = vpack.c.b16 %v1796, %v1792
  %v2261 = vpack.c.b16 %v1797, %v1793
  %v2262 = vpack.c.b16 %v1798, %v1794
  %v2263 = vpack.c.b16 %v1799, %v1795
  %v2264 = vpack.c.b16 %v1804, %v1800
  %v2265 = vpack.c.b16 %v1805, %v1801
  %v2266 = vpack.c.b16 %v1806, %v1802
  %v2267 = vpack.c.b16 %v1807, %v1803
  %v2268 = vpack.c.b16 %v1812, %v1808
  %v2269 = vpack.c.b16 %v1813, %v1809
  %v2270 = vpack.c.b16 %v1814, %v1810
  %v2271 = vpack.c.b16 %v1815, %v1811
  %v2272 = vpack.c.b16 %v1820, %v1816
  %v2273 = vpack.c.b16 %v1821, %v1817
  %v2274 = vpack.c.b16 %v1822, %v1818
  %v2275 = vpack.c.b16 %v1823, %v1819
  %v2276 = vpack.c.b16 %v1828, %v1824
  %v2277 = vpack.c.b16 %v1829, %v1825
  %v2278 = vpack.c.b16 %v1830, %v1826
  %v2279 = vpack.c.b16 %v1831, %v1827
  %v2280 = vpack.c.b16 %v1836, %v1832
  %v2281 = vpack.c.b16 %v1837, %v1833
  %v2282 = vpack.c.b16 %v1838, %v1834
  %v2283 = vpack.c.b16 %v1839, %v1835
  %v2284 = vpack.c.b16 %v1844, %v1840
  %v2285 = vpack.c.b16 %v1845, %v1841
  %v2286 = vpack.c.b16 %v1846, %v1842
  %v2287 = vpack.c.b16 %v1847, %v1843
  %v2288 = vpack.c.b16 %v1852, %v1848
  %v2289 = vpack.c.b16 %v1853, %v1849
  %v2290 = vpack.c.b16 %v1854, %v1850
  %v2291 = vpack.c.b16 %v1855, %v1851
  %v2292 = vpack.c.b16 %v1860, %v1856
  %v2293 = vpack.c.b16 %v1861, %v1857
  %v2294 = vpack.c.b16 %v1862, %v1858
  %v2295 = vpack.c.b16 %v1863, %v1859
  %v2296 = vpack.c.b16 %v1868, %v1864
  %v2297 = vpack.c.b16 %v1869, %v1865
  %v2298 = vpack.c.b16 %v1870, %v1866
  %v2299 = vpack.c.b16 %v1871, %v1867
  %v2300 = vpack.c.b16 %v1876, %v1872
  %v2301 = vpack.c.b16 %v1877, %v1873
  %v2302 = vpack.c.b16 %v1878, %v1874
  %v2303 = vpack.c.b16 %v1879, %v1875
  %v2304 = vpack.c.b16 %v1884, %v1880
  %v2305 = vpack.c.b16 %v1885, %v1881
  %v2306 = vpack.c.b16 %v1886, %v1882
  %v2307 = vpack.c.b16 %v1887, %v1883
  %v2308 = vpack.c.b16 %v1892, %v1888
  %v2309 = vpack.c.b16 %v1893, %v1889
  %v2310 = vpack.c.b16 %v1894, %v1890
  %v2311 = vpack.c.b16 %v1895, %v1891
  %v2312 = vpack.c.b16 %v1900, %v1896
  %v2313 = vpack.c.b16 %v1901, %v1897
  %v2314 = vpack.c.b16 %v1902, %v1898
  %v2315 = vpack.c.b16 %v1903, %v1899
  %v2316 = vpack.c.b16 %v1908, %v1904
  %v2317 = vpack.c.b16 %v1909, %v1905
  %v2318 = vpack.c.b16 %v1910, %v1906
  %v2319 = vpack.c.b16 %v1911, %v1907
  %v2320 = vpack.c.b16 %v1916, %v1912
  %v2321 = vpack.c.b16 %v1917, %v1913
  %v2322 = vpack.c.b16 %v1918, %v1914
  %v2323 = vpack.c.b16 %v1919, %v1915
  %v2324 = vpack.c.b16 %v1924, %v1920
  %v2325 = vpack.c.b16 %v1925, %v1921
  %v2326 = vpack.c.b16 %v1926, %v1922
  %v2327 = vpack.c.b16 %v1927, %v1923
  %v2328 = vpack.c.b16 %v1932, %v1928
  %v2329 = vpack.c.b16 %v1933, %v1929
  %v2330 = vpack.c.b16 %v1934, %v1930
  %v2331 = vpack.c.b16 %v1935, %v1931
  %v2332 = vpack.c.b16 %v1940, %v1936
  %v2333 = vpack.c.b16 %v1941, %v1937
  %v2334 = vpack.c.b16 %v1942, %v1938
  %v2335 = vpack.c.b16 %v1943, %v1939
  %v2336 = vpack.c.b16 %v1948, %v1944
  %v2337 = vpack.c.b16 %v1949, %v1945
  %v2338 = vpack.c.b16 %v1950, %v1946
  %v2339 = vpack.c.b16 %v1951, %v1947
  %v2340 = vpack.c.b16 %v1956, %v1952
  %v2341 = vpack.c.b16 %v1957, %v1953
  %v2342 = vpack.c.b16 %v1958, %v1954
  %v2343 = vpack.c.b16 %v1959, %v1955
  %v2344 = vpack.c.b16 %v1964, %v1960
  %v2345 = vpack.c.b16 %v1965, %v1961
  %v2346 = vpack.c.b16 %v1966, %v1962
  %v2347 = vpack.c.b16 %v1967, %v1963
  %v2348 = vpack.c.b16 %v1972, %v1968
  %v2349 = vpack.c.b16 %v1973, %v1969
  %v2350 = vpack.c.b16 %v1974, %v1970
  %v2351 = vpack.c.b16 %v1975, %v1971
  %v2352 = vpack.c.b16 %v1980, %v1976
  %v2353 = vpack.c.b16 %v1981, %v1977
  %v2354 = vpack.c.b16 %v1982, %v1978
  %v2355 = vpack.c.b16 %v1983, %v1979
  %v2356 = vpack.c.b16 %v1988, %v1984
  %v2357 = vpack.c.b16 %v1989, %v1985
  %v2358 = vpack.c.b16 %v1990, %v1986
  %v2359 = vpack.c.b16 %v1991, %v1987
  %v2360 = vpack.c.b16 %v1996, %v1992
  %v2361 = vpack.c.b16 %v1997, %v1993
  %v2362 = vpack.c.b16 %v1998, %v1994
  %v2363 = vpack.c.b16 %v1999, %v1995
  %v2364 = vpack.c.b16 %v2004, %v2000
  %v2365 = vpack.c.b16 %v2005, %v2001
  %v2366 = vpack.c.b16 %v2006, %v2002
  %v2367 = vpack.c.b16 %v2007, %v2003
  %v2368 = vpack.c.b16 %v2012, %v2008
  %v2369 = vpack.c.b16 %v2013, %v2009
  %v2370 = vpack.c.b16 %v2014, %v2010
  %v2371 = vpack.c.b16 %v2015, %v2011
  %v2372 = vpack.c.b16 %v2020, %v2016
  %v2373 = vpack.c.b16 %v2021, %v2017
  %v2374 = vpack.c.b16 %v2022, %v2018
  %v2375 = vpack.c.b16 %v2023, %v2019
  %v2376 = vpack.c.b16 %v2028, %v2024
  %v2377 = vpack.c.b16 %v2029, %v2025
  %v2378 = vpack.c.b16 %v2030, %v2026
  %v2379 = vpack.c.b16 %v2031, %v2027
  %v2380 = vpack.c.b16 %v2036, %v2032
  %v2381 = vpack.c.b16 %v2037, %v2033
  %v2382 = vpack.c.b16 %v2038, %v2034
  %v2383 = vpack.c.b16 %v2039, %v2035
  %v2384 = vpack.c.b16 %v2044, %v2040
  %v2385 = vpack.c.b16 %v2045, %v2041
  %v2386 = vpack.c.b16 %v2046, %v2042
  %v2387 = vpack.c.b16 %v2047, %v2043
  %v2388 = vpack.c.b16 %v2052, %v2048
  %v2389 = vpack.c.b16 %v2053, %v2049
  %v2390 = vpack.c.b16 %v2054, %v2050
  %v2391 = vpack.c.b16 %v2055, %v2051
  %v2392 = vpack.c.b16 %v2060, %v2056
  %v2393 = vpack.c.b16 %v2061, %v2057
  %v2394 = vpack.c.b16 %v2062, %v2058
  %v2395 = vpack.c.b16 %v2063, %v2059
  %v2396 = vpack.c.b16 %v2068, %v2064
  %v2397 = vpack.c.b16 %v2069, %v2065
  %v2398 = vpack.c.b16 %v2070, %v2066
  %v2399 = vpack.c.b16 %v2071, %v2067
  %v2400 = vpack.c.b16 %v2076, %v2072
  %v2401 = vpack.c.b16 %v2077, %v2073
  %v2402 = vpack.c.b16 %v2078, %v2074
  %v2403 = vpack.c.b16 %v2079, %v2075
  %v2404 = vpack.c.b16 %v2084, %v2080
  %v2405 = vpack.c.b16 %v2085, %v2081
  %v2406 = vpack.c.b16 %v2086, %v2082
  %v2407 = vpack.c.b16 %v2087, %v2083
  %v2408 = vpack.c.b16 %v2092, %v2088
  %v2409 = vpack.c.b16 %v2093, %v2089
  %v2410 = vpack.c.b16 %v2094, %v2090
  %v2411 = vpack.c.b16 %v2095, %v2091
  %v2412 = vpack.c.b16 %v2100, %v2096
  %v2413 = vpack.c.b16 %v2101, %v2097
  %v2414 = vpack.c.b16 %v2102, %v2098
  %v2415 = vpack.c.b16 %v2103, %v2099
  %v2416 = vpack.c.b16 %v2108, %v2104
  %v2417 = vpack.c.b16 %v2109, %v2105
  %v2418 = vpack.c.b16 %v2110, %v2106
  %v2419 = vpack.c.b16 %v2111, %v2107
  %v2420 = vpack.c.b16 %v2116, %v2112
  %v2421 = vpack.c.b16 %v2117, %v2113
  %v2422 = vpack.c.b16 %v2118, %v2114
  %v2423 = vpack.c.b16 %v2119, %v2115
  %v2424 = vpack.c.b16 %v2124, %v2120
  %v2425 = vpack.c.b16 %v2125, %v2121
  %v2426 = vpack.c.b16 %v2126, %v2122
  %v2427 = vpack.c.b16 %v2127, %v2123
  %v2428 = vpack.c.b16 %v2132, %v2128
  %v2429 = vpack.c.b16 %v2133, %v2129
  %v2430 = vpack.c.b16 %v2134, %v2130
  %v2431 = vpack.c.b16 %v2135, %v2131
  %v2432 = vpack.c.b16 %v2140, %v2136
  %v2433 = vpack.c.b16 %v2141, %v2137
  %v2434 = vpack.c.b16 %v2142, %v2138
  %v2435 = vpack.c.b16 %v2143, %v2139
  %v2436 = vpack.c.b16 %v2148, %v2144
  %v2437 = vpack.c.b16 %v2149, %v2145
  %v2438 = vpack.c.b16 %v2150, %v2146
  %v2439 = vpack.c.b16 %v2151, %v2147
  %v2440 = vpack.c.b16 %v2156, %v2152
  %v2441 = vpack.c.b16 %v2157, %v2153
  %v2442 = vpack.c.b16 %v2158, %v2154
  %v2443 = vpack.c.b16 %v2159, %v2155
  %v2444 = vpack.c.b16 %v2164, %v2160
  %v2445 = vpack.c.b16 %v2165, %v2161
  %v2446 = vpack.c.b16 %v2166, %v2162
  %v2447 = vpack.c.b16 %v2167, %v2163
  %v2448 = vpack.c.b16 %v2172, %v2168
  %v2449 = vpack.c.b16 %v2173, %v2169
  %v2450 = vpack.c.b16 %v2174, %v2170
  %v2451 = vpack.c.b16 %v2175, %v2171
  %v2452 = vpack.c.b16 %v2180, %v2176
  %v2453 = vpack.c.b16 %v2181, %v2177
  %v2454 = vpack.c.b16 %v2182, %v2178
  %v2455 = vpack.c.b16 %v2183, %v2179
  %v2456 = vpack.c.b16 %v2188, %v2184
  %v2457 = vpack.c.b16 %v2189, %v2185
  %v2458 = vpack.c.b16 %v2190, %v2186
  %v2459 = vpack.c.b16 %v2191, %v2187
  %v2460 = vpack.c.b16 %v2196, %v2192
  %v2461 = vpack.c.b16 %v2197, %v2193
  %v2462 = vpack.c.b16 %v2198, %v2194
  %v2463 = vpack.c.b16 %v2199, %v2195
  %v2464 = vpack.c.b16 %v2204, %v2200
  %v2465 = vpack.c.b16 %v2205, %v2201
  %v2466 = vpack.c.b16 %v2206, %v2202
  %v2467 = vpack.c.b16 %v2207, %v2203
  %v2468 = vpack.c.b16 %v2212, %v2208
  %v2469 = vpack.c.b16 %v2213, %v2209
  %v2470 = vpack.c.b16 %v2214, %v2210
  %v2471 = vpack.c.b16 %v2215, %v2211
  %2728 = vmatprep.subr.bf16.mxu0 %v2217
  %2729 = vmatpush1.bf16.msra.mxu0 %v2216
  %2730 = vmatprep.subr.bf16.mxu0 %v2221
  %2731 = vmatpush1.bf16.msra.mxu0 %v2220
  %2732 = vmatprep.subr.bf16.mxu0 %v2225
  %2733 = vmatpush1.bf16.msra.mxu0 %v2224
  %2734 = vmatprep.subr.bf16.mxu0 %v2229
  %2735 = vmatpush1.bf16.msra.mxu0 %v2228
  %2736 = vmatprep.subr.bf16.mxu0 %v2233
  %2737 = vmatpush1.bf16.msra.mxu0 %v2232
  %2738 = vmatprep.subr.bf16.mxu0 %v2237
  %2739 = vmatpush1.bf16.msra.mxu0 %v2236
  %2740 = vmatprep.subr.bf16.mxu0 %v2241
  %2741 = vmatpush1.bf16.msra.mxu0 %v2240
  %2742 = vmatprep.subr.bf16.mxu0 %v2245
  %2743 = vmatpush1.bf16.msra.mxu0 %v2244
  %2744 = vmatprep.subr.bf16.mxu0 %v2249
  %2745 = vmatpush1.bf16.msra.mxu0 %v2248
  %2746 = vmatprep.subr.bf16.mxu0 %v2253
  %2747 = vmatpush1.bf16.msra.mxu0 %v2252
  %2748 = vmatprep.subr.bf16.mxu0 %v2257
  %2749 = vmatpush1.bf16.msra.mxu0 %v2256
  %2750 = vmatprep.subr.bf16.mxu0 %v2261
  %2751 = vmatpush1.bf16.msra.mxu0 %v2260
  %2752 = vmatprep.subr.bf16.mxu0 %v2265
  %2753 = vmatpush1.bf16.msra.mxu0 %v2264
  %2754 = vmatprep.subr.bf16.mxu0 %v2269
  %2755 = vmatpush1.bf16.msra.mxu0 %v2268
  %2756 = vmatprep.subr.bf16.mxu0 %v2273
  %2757 = vmatpush1.bf16.msra.mxu0 %v2272
  %2758 = vmatprep.subr.bf16.mxu0 %v2277
  %2759 = vmatpush1.bf16.msra.mxu0 %v2276
  %2760 = vmatprep.mubr.bf16.mxu0 %v1147
  %2761 = vmatmul.mubr.bf16.gmra.mrb[0].mxu0 %v1146
  %v2762 = vpop.f32.mrb[0].mxu0
  %v2763 = vadd.f32 %v1431, %v2762
  %v2764 = vpop.f32.mrb[0].mxu0
  %v2765 = vadd.f32 %v1435, %v2764
  %v2766 = vpop.f32.mrb[0].mxu0
  %v2767 = vadd.f32 %v1431, %v2766
  %v2768 = vpop.f32.mrb[0].mxu0
  %v2769 = vadd.f32 %v1435, %v2768
  %2770 = vmatprep.mubr.bf16.mxu0 %v1155
  %2771 = vmatmul.mubr.bf16.gmra.mrb[0].mxu0 %v1154
  %v2772 = vpop.f32.mrb[0].mxu0
  %v2773 = vadd.f32 %v1431, %v2772
  %v2774 = vpop.f32.mrb[0].mxu0
  %v2775 = vadd.f32 %v1435, %v2774
  %v2776 = vpop.f32.mrb[0].mxu0
  %v2777 = vadd.f32 %v1431, %v2776
  %v2778 = vpop.f32.mrb[0].mxu0
  %v2779 = vadd.f32 %v1435, %v2778
  %2780 = vmatprep.mubr.bf16.mxu0 %v1163
  %2781 = vmatmul.mubr.bf16.gmra.mrb[0].mxu0 %v1162
  %v2782 = vpop.f32.mrb[0].mxu0
  %v2783 = vadd.f32 %v1431, %v2782
  %v2784 = vpop.f32.mrb[0].mxu0
  %v2785 = vadd.f32 %v1435, %v2784
  %v2786 = vpop.f32.mrb[0].mxu0
  %v2787 = vpop.f32.mrb[0].mxu0
  %2788 = vdwg.mxu0
  %2789 = vmatprep.subr.bf16.mxu0 %v2281
  %2790 = vmatpush1.bf16.msra.mxu0 %v2280
  %2791 = vmatprep.subr.bf16.mxu0 %v2285
  %2792 = vmatpush1.bf16.msra.mxu0 %v2284
  %2793 = vmatprep.subr.bf16.mxu0 %v2289
  %2794 = vmatpush1.bf16.msra.mxu0 %v2288
  %2795 = vmatprep.subr.bf16.mxu0 %v2293
  %2796 = vmatpush1.bf16.msra.mxu0 %v2292
  %2797 = vmatprep.subr.bf16.mxu0 %v2297
  %2798 = vmatpush1.bf16.msra.mxu0 %v2296
  %2799 = vmatprep.subr.bf16.mxu0 %v2301
  %2800 = vmatpush1.bf16.msra.mxu0 %v2300
  %2801 = vmatprep.subr.bf16.mxu0 %v2305
  %2802 = vmatpush1.bf16.msra.mxu0 %v2304
  %2803 = vmatprep.subr.bf16.mxu0 %v2309
  %2804 = vmatpush1.bf16.msra.mxu0 %v2308
  %2805 = vmatprep.subr.bf16.mxu0 %v2313
  %2806 = vmatpush1.bf16.msra.mxu0 %v2312
  %2807 = vmatprep.subr.bf16.mxu0 %v2317
  %2808 = vmatpush1.bf16.msra.mxu0 %v2316
  %2809 = vmatprep.subr.bf16.mxu0 %v2321
  %2810 = vmatpush1.bf16.msra.mxu0 %v2320
  %2811 = vmatprep.subr.bf16.mxu0 %v2325
  %2812 = vmatpush1.bf16.msra.mxu0 %v2324
  %2813 = vmatprep.subr.bf16.mxu0 %v2329
  %2814 = vmatpush1.bf16.msra.mxu0 %v2328
  %2815 = vmatprep.subr.bf16.mxu0 %v2333
  %2816 = vmatpush1.bf16.msra.mxu0 %v2332
  %2817 = vmatprep.subr.bf16.mxu0 %v2337
  %2818 = vmatpush1.bf16.msra.mxu0 %v2336
  %2819 = vmatprep.subr.bf16.mxu0 %v2341
  %2820 = vmatpush1.bf16.msra.mxu0 %v2340
  %2821 = vmatprep.mubr.bf16.mxu0 %v1149
  %2822 = vmatmul.mubr.bf16.gmra.mrb[0].mxu0 %v1148
  %v2823 = vpop.f32.mrb[0].mxu0
  %v2824 = vadd.f32 %v2763, %v2823
  %v2825 = vpop.f32.mrb[0].mxu0
  %v2826 = vadd.f32 %v2765, %v2825
  %v2827 = vpop.f32.mrb[0].mxu0
  %v2828 = vadd.f32 %v2767, %v2827
  %v2829 = vpop.f32.mrb[0].mxu0
  %v2830 = vadd.f32 %v2769, %v2829
  %2831 = vmatprep.mubr.bf16.mxu0 %v1157
  %2832 = vmatmul.mubr.bf16.gmra.mrb[0].mxu0 %v1156
  %v2833 = vpop.f32.mrb[0].mxu0
  %v2834 = vadd.f32 %v2773, %v2833
  %v2835 = vpop.f32.mrb[0].mxu0
  %v2836 = vadd.f32 %v2775, %v2835
  %v2837 = vpop.f32.mrb[0].mxu0
  %v2838 = vadd.f32 %v2777, %v2837
  %v2839 = vpop.f32.mrb[0].mxu0
  %v2840 = vadd.f32 %v2779, %v2839
  %2841 = vmatprep.mubr.bf16.mxu0 %v1165
  %2842 = vmatmul.mubr.bf16.gmra.mrb[0].mxu0 %v1164
  %v2843 = vpop.f32.mrb[0].mxu0
  %v2844 = vadd.f32 %v2783, %v2843
  %v2845 = vpop.f32.mrb[0].mxu0
  %v2846 = vadd.f32 %v2785, %v2845
  %v2847 = vpop.f32.mrb[0].mxu0
  %v2848 = vpop.f32.mrb[0].mxu0
  %2849 = vdwg.mxu0
  %2850 = vmatprep.subr.bf16.mxu0 %v2345
  %2851 = vmatpush1.bf16.msra.mxu0 %v2344
  %2852 = vmatprep.subr.bf16.mxu0 %v2349
  %2853 = vmatpush1.bf16.msra.mxu0 %v2348
  %2854 = vmatprep.subr.bf16.mxu0 %v2353
  %2855 = vmatpush1.bf16.msra.mxu0 %v2352
  %2856 = vmatprep.subr.bf16.mxu0 %v2357
  %2857 = vmatpush1.bf16.msra.mxu0 %v2356
  %2858 = vmatprep.subr.bf16.mxu0 %v2361
  %2859 = vmatpush1.bf16.msra.mxu0 %v2360
  %2860 = vmatprep.subr.bf16.mxu0 %v2365
  %2861 = vmatpush1.bf16.msra.mxu0 %v2364
  %2862 = vmatprep.subr.bf16.mxu0 %v2369
  %2863 = vmatpush1.bf16.msra.mxu0 %v2368
  %2864 = vmatprep.subr.bf16.mxu0 %v2373
  %2865 = vmatpush1.bf16.msra.mxu0 %v2372
  %2866 = vmatprep.subr.bf16.mxu0 %v2377
  %2867 = vmatpush1.bf16.msra.mxu0 %v2376
  %2868 = vmatprep.subr.bf16.mxu0 %v2381
  %2869 = vmatpush1.bf16.msra.mxu0 %v2380
  %2870 = vmatprep.subr.bf16.mxu0 %v2385
  %2871 = vmatpush1.bf16.msra.mxu0 %v2384
  %2872 = vmatprep.subr.bf16.mxu0 %v2389
  %2873 = vmatpush1.bf16.msra.mxu0 %v2388
  %2874 = vmatprep.subr.bf16.mxu0 %v2393
  %2875 = vmatpush1.bf16.msra.mxu0 %v2392
  %2876 = vmatprep.subr.bf16.mxu0 %v2397
  %2877 = vmatpush1.bf16.msra.mxu0 %v2396
  %2878 = vmatprep.subr.bf16.mxu0 %v2401
  %2879 = vmatpush1.bf16.msra.mxu0 %v2400
  %2880 = vmatprep.subr.bf16.mxu0 %v2405
  %2881 = vmatpush1.bf16.msra.mxu0 %v2404
  %2882 = vmatprep.mubr.bf16.mxu0 %v1151
  %2883 = vmatmul.mubr.bf16.gmra.mrb[0].mxu0 %v1150
  %v2884 = vpop.f32.mrb[0].mxu0
  %v2885 = vadd.f32 %v2824, %v2884
  %v2886 = vpop.f32.mrb[0].mxu0
  %v2887 = vadd.f32 %v2826, %v2886
  %v2888 = vpop.f32.mrb[0].mxu0
  %v2889 = vadd.f32 %v2828, %v2888
  %v2890 = vpop.f32.mrb[0].mxu0
  %v2891 = vadd.f32 %v2830, %v2890
  %2892 = vmatprep.mubr.bf16.mxu0 %v1159
  %2893 = vmatmul.mubr.bf16.gmra.mrb[0].mxu0 %v1158
  %v2894 = vpop.f32.mrb[0].mxu0
  %v2895 = vadd.f32 %v2834, %v2894
  %v2896 = vpop.f32.mrb[0].mxu0
  %v2897 = vadd.f32 %v2836, %v2896
  %v2898 = vpop.f32.mrb[0].mxu0
  %v2899 = vadd.f32 %v2838, %v2898
  %v2900 = vpop.f32.mrb[0].mxu0
  %v2901 = vadd.f32 %v2840, %v2900
  %2902 = vmatprep.mubr.bf16.mxu0 %v1167
  %2903 = vmatmul.mubr.bf16.gmra.mrb[0].mxu0 %v1166
  %v2904 = vpop.f32.mrb[0].mxu0
  %v2905 = vadd.f32 %v2844, %v2904
  %v2906 = vpop.f32.mrb[0].mxu0
  %v2907 = vadd.f32 %v2846, %v2906
  %v2908 = vpop.f32.mrb[0].mxu0
  %v2909 = vpop.f32.mrb[0].mxu0
  %2910 = vdwg.mxu0
  %2911 = vmatprep.subr.bf16.mxu0 %v2409
  %2912 = vmatpush1.bf16.msra.mxu0 %v2408
  %2913 = vmatprep.subr.bf16.mxu0 %v2413
  %2914 = vmatpush1.bf16.msra.mxu0 %v2412
  %2915 = vmatprep.subr.bf16.mxu0 %v2417
  %2916 = vmatpush1.bf16.msra.mxu0 %v2416
  %2917 = vmatprep.subr.bf16.mxu0 %v2421
  %2918 = vmatpush1.bf16.msra.mxu0 %v2420
  %2919 = vmatprep.subr.bf16.mxu0 %v2425
  %2920 = vmatpush1.bf16.msra.mxu0 %v2424
  %2921 = vmatprep.subr.bf16.mxu0 %v2429
  %2922 = vmatpush1.bf16.msra.mxu0 %v2428
  %2923 = vmatprep.subr.bf16.mxu0 %v2433
  %2924 = vmatpush1.bf16.msra.mxu0 %v2432
  %2925 = vmatprep.subr.bf16.mxu0 %v2437
  %2926 = vmatpush1.bf16.msra.mxu0 %v2436
  %2927 = vmatprep.subr.bf16.mxu0 %v2441
  %2928 = vmatpush1.bf16.msra.mxu0 %v2440
  %2929 = vmatprep.subr.bf16.mxu0 %v2445
  %2930 = vmatpush1.bf16.msra.mxu0 %v2444
  %2931 = vmatprep.subr.bf16.mxu0 %v2449
  %2932 = vmatpush1.bf16.msra.mxu0 %v2448
  %2933 = vmatprep.subr.bf16.mxu0 %v2453
  %2934 = vmatpush1.bf16.msra.mxu0 %v2452
  %2935 = vmatprep.subr.bf16.mxu0 %v2457
  %2936 = vmatpush1.bf16.msra.mxu0 %v2456
  %2937 = vmatprep.subr.bf16.mxu0 %v2461
  %2938 = vmatpush1.bf16.msra.mxu0 %v2460
  %2939 = vmatprep.subr.bf16.mxu0 %v2465
  %2940 = vmatpush1.bf16.msra.mxu0 %v2464
  %2941 = vmatprep.subr.bf16.mxu0 %v2469
  %2942 = vmatpush1.bf16.msra.mxu0 %v2468
  %2943 = vmatprep.mubr.bf16.mxu0 %v1153
  %2944 = vmatmul.mubr.bf16.gmra.mrb[0].mxu0 %v1152
  %v2945 = vpop.f32.mrb[0].mxu0
  %v2946 = vadd.f32 %v2885, %v2945
  %v2947 = vpop.f32.mrb[0].mxu0
  %v2948 = vadd.f32 %v2887, %v2947
  %v2949 = vpop.f32.mrb[0].mxu0
  %v2950 = vadd.f32 %v2889, %v2949
  %v2951 = vpop.f32.mrb[0].mxu0
  %v2952 = vadd.f32 %v2891, %v2951
  %2953 = vmatprep.mubr.bf16.mxu0 %v1161
  %2954 = vmatmul.mubr.bf16.gmra.mrb[0].mxu0 %v1160
  %v2955 = vpop.f32.mrb[0].mxu0
  %v2956 = vadd.f32 %v2895, %v2955
  %v2957 = vpop.f32.mrb[0].mxu0
  %v2958 = vadd.f32 %v2897, %v2957
  %v2959 = vpop.f32.mrb[0].mxu0
  %v2960 = vadd.f32 %v2899, %v2959
  %v2961 = vpop.f32.mrb[0].mxu0
  %v2962 = vadd.f32 %v2901, %v2961
  %2963 = vmatprep.mubr.bf16.mxu0 %v1169
  %2964 = vmatmul.mubr.bf16.gmra.mrb[0].mxu0 %v1168
  %v2965 = vpop.f32.mrb[0].mxu0
  %v2966 = vadd.f32 %v2905, %v2965
  %v2967 = vpop.f32.mrb[0].mxu0
  %v2968 = vadd.f32 %v2907, %v2967
  %v2969 = vpop.f32.mrb[0].mxu0
  %v2970 = vpop.f32.mrb[0].mxu0
  %2971 = vdwg.mxu0
  %2972 = vmatprep.subr.bf16.mxu0 %v2219
  %2973 = vmatpush1.bf16.msra.mxu0 %v2218
  %2974 = vmatprep.subr.bf16.mxu0 %v2223
  %2975 = vmatpush1.bf16.msra.mxu0 %v2222
  %2976 = vmatprep.subr.bf16.mxu0 %v2227
  %2977 = vmatpush1.bf16.msra.mxu0 %v2226
  %2978 = vmatprep.subr.bf16.mxu0 %v2231
  %2979 = vmatpush1.bf16.msra.mxu0 %v2230
  %2980 = vmatprep.subr.bf16.mxu0 %v2235
  %2981 = vmatpush1.bf16.msra.mxu0 %v2234
  %2982 = vmatprep.subr.bf16.mxu0 %v2239
  %2983 = vmatpush1.bf16.msra.mxu0 %v2238
  %2984 = vmatprep.subr.bf16.mxu0 %v2243
  %2985 = vmatpush1.bf16.msra.mxu0 %v2242
  %2986 = vmatprep.subr.bf16.mxu0 %v2247
  %2987 = vmatpush1.bf16.msra.mxu0 %v2246
  %2988 = vmatprep.subr.bf16.mxu0 %v2251
  %2989 = vmatpush1.bf16.msra.mxu0 %v2250
  %2990 = vmatprep.subr.bf16.mxu0 %v2255
  %2991 = vmatpush1.bf16.msra.mxu0 %v2254
  %2992 = vmatprep.subr.bf16.mxu0 %v2259
  %2993 = vmatpush1.bf16.msra.mxu0 %v2258
  %2994 = vmatprep.subr.bf16.mxu0 %v2263
  %2995 = vmatpush1.bf16.msra.mxu0 %v2262
  %2996 = vmatprep.subr.bf16.mxu0 %v2267
  %2997 = vmatpush1.bf16.msra.mxu0 %v2266
  %2998 = vmatprep.subr.bf16.mxu0 %v2271
  %2999 = vmatpush1.bf16.msra.mxu0 %v2270
  %3000 = vmatprep.subr.bf16.mxu0 %v2275
  %3001 = vmatpush1.bf16.msra.mxu0 %v2274
  %3002 = vmatprep.subr.bf16.mxu0 %v2279
  %3003 = vmatpush1.bf16.msra.mxu0 %v2278
  %3004 = vmatprep.mubr.bf16.mxu0 %v1147
  %3005 = vmatmul.mubr.bf16.gmra.mrb[0].mxu0 %v1146
  %v3006 = vpop.f32.mrb[0].mxu0
  %v3007 = vadd.f32 %v1439, %v3006
  %v3008 = vpop.f32.mrb[0].mxu0
  %v3009 = vadd.f32 %v1443, %v3008
  %v3010 = vpop.f32.mrb[0].mxu0
  %v3011 = vadd.f32 %v1439, %v3010
  %v3012 = vpop.f32.mrb[0].mxu0
  %v3013 = vadd.f32 %v1443, %v3012
  %3014 = vmatprep.mubr.bf16.mxu0 %v1155
  %3015 = vmatmul.mubr.bf16.gmra.mrb[0].mxu0 %v1154
  %v3016 = vpop.f32.mrb[0].mxu0
  %v3017 = vadd.f32 %v1439, %v3016
  %v3018 = vpop.f32.mrb[0].mxu0
  %v3019 = vadd.f32 %v1443, %v3018
  %v3020 = vpop.f32.mrb[0].mxu0
  %v3021 = vadd.f32 %v1439, %v3020
  %v3022 = vpop.f32.mrb[0].mxu0
  %v3023 = vadd.f32 %v1443, %v3022
  %3024 = vmatprep.mubr.bf16.mxu0 %v1163
  %3025 = vmatmul.mubr.bf16.gmra.mrb[0].mxu0 %v1162
  %v3026 = vpop.f32.mrb[0].mxu0
  %v3027 = vadd.f32 %v1439, %v3026
  %v3028 = vpop.f32.mrb[0].mxu0
  %v3029 = vadd.f32 %v1443, %v3028
  %v3030 = vpop.f32.mrb[0].mxu0
  %v3031 = vpop.f32.mrb[0].mxu0
  %3032 = vdwg.mxu0
  %3033 = vmatprep.subr.bf16.mxu0 %v2283
  %3034 = vmatpush1.bf16.msra.mxu0 %v2282
  %3035 = vmatprep.subr.bf16.mxu0 %v2287
  %3036 = vmatpush1.bf16.msra.mxu0 %v2286
  %3037 = vmatprep.subr.bf16.mxu0 %v2291
  %3038 = vmatpush1.bf16.msra.mxu0 %v2290
  %3039 = vmatprep.subr.bf16.mxu0 %v2295
  %3040 = vmatpush1.bf16.msra.mxu0 %v2294
  %3041 = vmatprep.subr.bf16.mxu0 %v2299
  %3042 = vmatpush1.bf16.msra.mxu0 %v2298
  %3043 = vmatprep.subr.bf16.mxu0 %v2303
  %3044 = vmatpush1.bf16.msra.mxu0 %v2302
  %3045 = vmatprep.subr.bf16.mxu0 %v2307
  %3046 = vmatpush1.bf16.msra.mxu0 %v2306
  %3047 = vmatprep.subr.bf16.mxu0 %v2311
  %3048 = vmatpush1.bf16.msra.mxu0 %v2310
  %3049 = vmatprep.subr.bf16.mxu0 %v2315
  %3050 = vmatpush1.bf16.msra.mxu0 %v2314
  %3051 = vmatprep.subr.bf16.mxu0 %v2319
  %3052 = vmatpush1.bf16.msra.mxu0 %v2318
  %3053 = vmatprep.subr.bf16.mxu0 %v2323
  %3054 = vmatpush1.bf16.msra.mxu0 %v2322
  %3055 = vmatprep.subr.bf16.mxu0 %v2327
  %3056 = vmatpush1.bf16.msra.mxu0 %v2326
  %3057 = vmatprep.subr.bf16.mxu0 %v2331
  %3058 = vmatpush1.bf16.msra.mxu0 %v2330
  %3059 = vmatprep.subr.bf16.mxu0 %v2335
  %3060 = vmatpush1.bf16.msra.mxu0 %v2334
  %3061 = vmatprep.subr.bf16.mxu0 %v2339
  %3062 = vmatpush1.bf16.msra.mxu0 %v2338
  %3063 = vmatprep.subr.bf16.mxu0 %v2343
  %3064 = vmatpush1.bf16.msra.mxu0 %v2342
  %3065 = vmatprep.mubr.bf16.mxu0 %v1149
  %3066 = vmatmul.mubr.bf16.gmra.mrb[0].mxu0 %v1148
  %v3067 = vpop.f32.mrb[0].mxu0
  %v3068 = vadd.f32 %v3007, %v3067
  %v3069 = vpop.f32.mrb[0].mxu0
  %v3070 = vadd.f32 %v3009, %v3069
  %v3071 = vpop.f32.mrb[0].mxu0
  %v3072 = vadd.f32 %v3011, %v3071
  %v3073 = vpop.f32.mrb[0].mxu0
  %v3074 = vadd.f32 %v3013, %v3073
  %3075 = vmatprep.mubr.bf16.mxu0 %v1157
  %3076 = vmatmul.mubr.bf16.gmra.mrb[0].mxu0 %v1156
  %v3077 = vpop.f32.mrb[0].mxu0
  %v3078 = vadd.f32 %v3017, %v3077
  %v3079 = vpop.f32.mrb[0].mxu0
  %v3080 = vadd.f32 %v3019, %v3079
  %v3081 = vpop.f32.mrb[0].mxu0
  %v3082 = vadd.f32 %v3021, %v3081
  %v3083 = vpop.f32.mrb[0].mxu0
  %v3084 = vadd.f32 %v3023, %v3083
  %3085 = vmatprep.mubr.bf16.mxu0 %v1165
  %3086 = vmatmul.mubr.bf16.gmra.mrb[0].mxu0 %v1164
  %v3087 = vpop.f32.mrb[0].mxu0
  %v3088 = vadd.f32 %v3027, %v3087
  %v3089 = vpop.f32.mrb[0].mxu0
  %v3090 = vadd.f32 %v3029, %v3089
  %v3091 = vpop.f32.mrb[0].mxu0
  %v3092 = vpop.f32.mrb[0].mxu0
  %3093 = vdwg.mxu0
  %3094 = vmatprep.subr.bf16.mxu0 %v2347
  %3095 = vmatpush1.bf16.msra.mxu0 %v2346
  %3096 = vmatprep.subr.bf16.mxu0 %v2351
  %3097 = vmatpush1.bf16.msra.mxu0 %v2350
  %3098 = vmatprep.subr.bf16.mxu0 %v2355
  %3099 = vmatpush1.bf16.msra.mxu0 %v2354
  %3100 = vmatprep.subr.bf16.mxu0 %v2359
  %3101 = vmatpush1.bf16.msra.mxu0 %v2358
  %3102 = vmatprep.subr.bf16.mxu0 %v2363
  %3103 = vmatpush1.bf16.msra.mxu0 %v2362
  %3104 = vmatprep.subr.bf16.mxu0 %v2367
  %3105 = vmatpush1.bf16.msra.mxu0 %v2366
  %3106 = vmatprep.subr.bf16.mxu0 %v2371
  %3107 = vmatpush1.bf16.msra.mxu0 %v2370
  %3108 = vmatprep.subr.bf16.mxu0 %v2375
  %3109 = vmatpush1.bf16.msra.mxu0 %v2374
  %3110 = vmatprep.subr.bf16.mxu0 %v2379
  %3111 = vmatpush1.bf16.msra.mxu0 %v2378
  %3112 = vmatprep.subr.bf16.mxu0 %v2383
  %3113 = vmatpush1.bf16.msra.mxu0 %v2382
  %3114 = vmatprep.subr.bf16.mxu0 %v2387
  %3115 = vmatpush1.bf16.msra.mxu0 %v2386
  %3116 = vmatprep.subr.bf16.mxu0 %v2391
  %3117 = vmatpush1.bf16.msra.mxu0 %v2390
  %3118 = vmatprep.subr.bf16.mxu0 %v2395
  %3119 = vmatpush1.bf16.msra.mxu0 %v2394
  %3120 = vmatprep.subr.bf16.mxu0 %v2399
  %3121 = vmatpush1.bf16.msra.mxu0 %v2398
  %3122 = vmatprep.subr.bf16.mxu0 %v2403
  %3123 = vmatpush1.bf16.msra.mxu0 %v2402
  %3124 = vmatprep.subr.bf16.mxu0 %v2407
  %3125 = vmatpush1.bf16.msra.mxu0 %v2406
  %3126 = vmatprep.mubr.bf16.mxu0 %v1151
  %3127 = vmatmul.mubr.bf16.gmra.mrb[0].mxu0 %v1150
  %v3128 = vpop.f32.mrb[0].mxu0
  %v3129 = vadd.f32 %v3068, %v3128
  %v3130 = vpop.f32.mrb[0].mxu0
  %v3131 = vadd.f32 %v3070, %v3130
  %v3132 = vpop.f32.mrb[0].mxu0
  %v3133 = vadd.f32 %v3072, %v3132
  %v3134 = vpop.f32.mrb[0].mxu0
  %v3135 = vadd.f32 %v3074, %v3134
  %3136 = vmatprep.mubr.bf16.mxu0 %v1159
  %3137 = vmatmul.mubr.bf16.gmra.mrb[0].mxu0 %v1158
  %v3138 = vpop.f32.mrb[0].mxu0
  %v3139 = vadd.f32 %v3078, %v3138
  %v3140 = vpop.f32.mrb[0].mxu0
  %v3141 = vadd.f32 %v3080, %v3140
  %v3142 = vpop.f32.mrb[0].mxu0
  %v3143 = vadd.f32 %v3082, %v3142
  %v3144 = vpop.f32.mrb[0].mxu0
  %v3145 = vadd.f32 %v3084, %v3144
  %3146 = vmatprep.mubr.bf16.mxu0 %v1167
  %3147 = vmatmul.mubr.bf16.gmra.mrb[0].mxu0 %v1166
  %v3148 = vpop.f32.mrb[0].mxu0
  %v3149 = vadd.f32 %v3088, %v3148
  %v3150 = vpop.f32.mrb[0].mxu0
  %v3151 = vadd.f32 %v3090, %v3150
  %v3152 = vpop.f32.mrb[0].mxu0
  %v3153 = vpop.f32.mrb[0].mxu0
  %3154 = vdwg.mxu0
  %3155 = vmatprep.subr.bf16.mxu0 %v2411
  %3156 = vmatpush1.bf16.msra.mxu0 %v2410
  %3157 = vmatprep.subr.bf16.mxu0 %v2415
  %3158 = vmatpush1.bf16.msra.mxu0 %v2414
  %3159 = vmatprep.subr.bf16.mxu0 %v2419
  %3160 = vmatpush1.bf16.msra.mxu0 %v2418
  %3161 = vmatprep.subr.bf16.mxu0 %v2423
  %3162 = vmatpush1.bf16.msra.mxu0 %v2422
  %3163 = vmatprep.subr.bf16.mxu0 %v2427
  %3164 = vmatpush1.bf16.msra.mxu0 %v2426
  %3165 = vmatprep.subr.bf16.mxu0 %v2431
  %3166 = vmatpush1.bf16.msra.mxu0 %v2430
  %3167 = vmatprep.subr.bf16.mxu0 %v2435
  %3168 = vmatpush1.bf16.msra.mxu0 %v2434
  %3169 = vmatprep.subr.bf16.mxu0 %v2439
  %3170 = vmatpush1.bf16.msra.mxu0 %v2438
  %3171 = vmatprep.subr.bf16.mxu0 %v2443
  %3172 = vmatpush1.bf16.msra.mxu0 %v2442
  %3173 = vmatprep.subr.bf16.mxu0 %v2447
  %3174 = vmatpush1.bf16.msra.mxu0 %v2446
  %3175 = vmatprep.subr.bf16.mxu0 %v2451
  %3176 = vmatpush1.bf16.msra.mxu0 %v2450
  %3177 = vmatprep.subr.bf16.mxu0 %v2455
  %3178 = vmatpush1.bf16.msra.mxu0 %v2454
  %3179 = vmatprep.subr.bf16.mxu0 %v2459
  %3180 = vmatpush1.bf16.msra.mxu0 %v2458
  %3181 = vmatprep.subr.bf16.mxu0 %v2463
  %3182 = vmatpush1.bf16.msra.mxu0 %v2462
  %3183 = vmatprep.subr.bf16.mxu0 %v2467
  %3184 = vmatpush1.bf16.msra.mxu0 %v2466
  %3185 = vmatprep.subr.bf16.mxu0 %v2471
  %3186 = vmatpush1.bf16.msra.mxu0 %v2470
  %3187 = vmatprep.mubr.bf16.mxu0 %v1153
  %3188 = vmatmul.mubr.bf16.gmra.mrb[0].mxu0 %v1152
  %v3189 = vpop.f32.mrb[0].mxu0
  %v3190 = vadd.f32 %v3129, %v3189
  %v3191 = vpop.f32.mrb[0].mxu0
  %v3192 = vadd.f32 %v3131, %v3191
  %v3193 = vpop.f32.mrb[0].mxu0
  %v3194 = vadd.f32 %v3133, %v3193
  %v3195 = vpop.f32.mrb[0].mxu0
  %v3196 = vadd.f32 %v3135, %v3195
  %3197 = vmatprep.mubr.bf16.mxu0 %v1161
  %3198 = vmatmul.mubr.bf16.gmra.mrb[0].mxu0 %v1160
  %v3199 = vpop.f32.mrb[0].mxu0
  %v3200 = vadd.f32 %v3139, %v3199
  %v3201 = vpop.f32.mrb[0].mxu0
  %v3202 = vadd.f32 %v3141, %v3201
  %v3203 = vpop.f32.mrb[0].mxu0
  %v3204 = vadd.f32 %v3143, %v3203
  %v3205 = vpop.f32.mrb[0].mxu0
  %v3206 = vadd.f32 %v3145, %v3205
  %3207 = vmatprep.mubr.bf16.mxu0 %v1169
  %3208 = vmatmul.mubr.bf16.gmra.mrb[0].mxu0 %v1168
  %v3209 = vpop.f32.mrb[0].mxu0
  %v3210 = vadd.f32 %v3149, %v3209
  %v3211 = vpop.f32.mrb[0].mxu0
  %v3212 = vadd.f32 %v3151, %v3211
  %v3213 = vpop.f32.mrb[0].mxu0
  %v3214 = vpop.f32.mrb[0].mxu0
  %3215 = vdwg.mxu0
  %v3216 = vpack.c.bf16 %v2950, %v2946
  %v3217 = vpack.c.bf16 %v2952, %v2948
  %v3218 = vpack.c.bf16 %v3194, %v3190
  %v3219 = vpack.c.bf16 %v3196, %v3192
  %v3220 = vpack.c.bf16 %v2960, %v2956
  %v3221 = vpack.c.bf16 %v2962, %v2958
  %v3222 = vpack.c.bf16 %v3204, %v3200
  %v3223 = vpack.c.bf16 %v3206, %v3202
  %v3224 = vpack.c.bf16 %v2966, %v2966
  %v3225 = vpack.c.bf16 %v2968, %v2968
  %v3226 = vpack.c.bf16 %v3210, %v3210
  %v3227 = vpack.c.bf16 %v3212, %v3212
  %v3240 = vunpack.c.l.b16 %v3216
  %v3241 = vunpack.c.l.b16 %v3217
  %v3242 = vunpack.c.l.b16 %v3218
  %v3243 = vunpack.c.l.b16 %v3219
  %v3244 = vunpack.c.h.b16 %v3216
  %v3245 = vunpack.c.h.b16 %v3217
  %v3246 = vunpack.c.h.b16 %v3218
  %v3247 = vunpack.c.h.b16 %v3219
  %v3248 = vunpack.c.l.b16 %v3220
  %v3249 = vunpack.c.l.b16 %v3221
  %v3250 = vunpack.c.l.b16 %v3222
  %v3251 = vunpack.c.l.b16 %v3223
  %v3252 = vunpack.c.h.b16 %v3220
  %v3253 = vunpack.c.h.b16 %v3221
  %v3254 = vunpack.c.h.b16 %v3222
  %v3255 = vunpack.c.h.b16 %v3223
  %v3256 = vunpack.c.l.b16 %v3224
  %v3257 = vunpack.c.l.b16 %v3225
  %v3258 = vunpack.c.l.b16 %v3226
  %v3259 = vunpack.c.l.b16 %v3227
  %v3260 = vpack.c.b16 %v3241, %v3240
  %v3261 = vpack.c.b16 %v3243, %v3242
  %v3262 = vpack.c.b16 %v3245, %v3244
  %v3263 = vpack.c.b16 %v3247, %v3246
  %v3264 = vpack.c.b16 %v3249, %v3248
  %v3265 = vpack.c.b16 %v3251, %v3250
  %v3266 = vpack.c.b16 %v3253, %v3252
  %v3267 = vpack.c.b16 %v3255, %v3254
  %v3268 = vpack.c.b16 %v3257, %v3256
  %v3269 = vpack.c.b16 %v3259, %v3258
  %3280 = vst [vmem:[%s5] sm:$0xff] %v3260
  %3281 = vst [vmem:[%s5 + $0x8] sm:$0xff] %v3261
  %3282 = vst [vmem:[%s5 + $0x10] sm:$0xff] %v3262
  %3283 = vst [vmem:[%s5 + $0x18] sm:$0xff] %v3263
  %3284 = vst [vmem:[%s5 + $0x20] sm:$0xff] %v3264
  %3285 = vst [vmem:[%s5 + $0x28] sm:$0xff] %v3265
  %3286 = vst [vmem:[%s5 + $0x30] sm:$0xff] %v3266
  %3287 = vst [vmem:[%s5 + $0x38] sm:$0xff] %v3267
  %3288 = vst [vmem:[%s5 + $0x40] sm:$0xff] %v3268
  %3289 = vst [vmem:[%s5 + $0x48] sm:$0xff] %v3269
  // Predicated region
  $region22: #{nature_cnn_forward.10} parent=0 // pred_check
    _
  $region23: #{nature_cnn_forward.10} parent=0 // pred_check_branch
    %3291 = sbr.rel (0) target = $region25
  $region24: #{nature_cnn_forward.10} parent=0 // pred_region
    _
  $region25: #{nature_cnn_forward.10} parent=0 // pred_fallthru
    _
  // Predicated region
  $region26: #{nature_cnn_forward.10} parent=0 // pred_check
    _
  $region27: #{nature_cnn_forward.10} parent=0 // pred_check_branch
    %3293 = sbr.rel (0) target = $region29
  $region28: #{nature_cnn_forward.10} parent=0 // pred_region
    _
  $region29: #{nature_cnn_forward.10} parent=0 // pred_fallthru
    _

// kernel: nature_cnn_forward.11
$region0: #{nature_cnn_forward.11}
  #allocation0 [shape = 'u32[]', space=smem, size = 0x4, offset = 0x4, fixed_abs, tag = 'smem constant byte address 0x4 - core index']
  #allocation1 [shape = 'u32[144,128]{1,0:T(1,128)}', space=vmem, size = 0x12000, scoped, tag = 'internal scratch']
  %s0 = inlined_call_operand.vmem [shape: bf16[40,576], index: 0, kind: input, shape index: {}]
  %s1 = inlined_call_operand.vmem [shape: bf16[576,1024], index: 1, kind: input, shape index: {}]
  %s2 = inlined_call_operand.vmem [shape: f32[1,1024], index: 2, kind: input, shape index: {}]
  %s3 = inlined_call_operand.vmem [shape: f32[40,1024], index: 3, kind: output, shape index: {}]
  %s4 = sld [smem:[#allocation0]]
  $region22: #{nature_cnn_forward.11} parent=0
    _
  %s6 = ssub.s32 1, %s4
  %s7 = scalar_select 0, %s6, %s4
  // Predicated region
  $region2: #{nature_cnn_forward.11} parent=0 // pred_check
    _
  $region3: #{nature_cnn_forward.11} parent=0 // pred_check_branch
    %9 = sbr.rel (0) target = $region5
  $region4: #{nature_cnn_forward.11} parent=0 // pred_region
    _
  $region5: #{nature_cnn_forward.11} parent=0 // pred_fallthru
    _
  // Predicated region
  $region6: #{nature_cnn_forward.11} parent=0 // pred_check
    _
  $region7: #{nature_cnn_forward.11} parent=0 // pred_check_branch
    %11 = sbr.rel (0) target = $region9
  $region8: #{nature_cnn_forward.11} parent=0 // pred_region
    _
  $region9: #{nature_cnn_forward.11} parent=0 // pred_fallthru
    _
  // Predicated region
  $region10: #{nature_cnn_forward.11} parent=0 // pred_check
    _
  $region11: #{nature_cnn_forward.11} parent=0 // pred_check_branch
    %13 = sbr.rel (0) target = $region13
  $region12: #{nature_cnn_forward.11} parent=0 // pred_region
    _
  $region13: #{nature_cnn_forward.11} parent=0 // pred_fallthru
    _
  %v15 = vld [vmem:[%s0] sm:$0xff]
  %v16 = vld [vmem:[%s0 + $0x8] sm:$0xff]
  %v17 = vld [vmem:[%s0 + $0x10] sm:$0xf]
  %v18 = vld [vmem:[%s0 + $0x14] sm:$0xff]
  %v19 = vld [vmem:[%s0 + $0x1c] sm:$0xff]
  %v20 = vld [vmem:[%s0 + $0x24] sm:$0xf]
  %v21 = vld [vmem:[%s0 + $0x28] sm:$0xff]
  %v22 = vld [vmem:[%s0 + $0x30] sm:$0xff]
  %v23 = vld [vmem:[%s0 + $0x38] sm:$0xf]
  %v24 = vld [vmem:[%s0 + $0x3c] sm:$0xff]
  %v25 = vld [vmem:[%s0 + $0x44] sm:$0xff]
  %v26 = vld [vmem:[%s0 + $0x4c] sm:$0xf]
  %v27 = vld [vmem:[%s0 + $0x50] sm:$0xff]
  %v28 = vld [vmem:[%s0 + $0x58] sm:$0xff]
  %v29 = vld [vmem:[%s0 + $0x60] sm:$0xf]
  %v30 = vld [vmem:[%s1] sm:$0xff]
  %v31 = vld [vmem:[%s1 + $0x8] sm:$0xff]
  %v32 = vld [vmem:[%s1 + $0x10] sm:$0xff]
  %v33 = vld [vmem:[%s1 + $0x18] sm:$0xff]
  %v34 = vld [vmem:[%s1 + $0x20] sm:$0xff]
  %v35 = vld [vmem:[%s1 + $0x28] sm:$0xff]
  %v36 = vld [vmem:[%s1 + $0x30] sm:$0xff]
  %v37 = vld [vmem:[%s1 + $0x38] sm:$0xff]
  %v38 = vld [vmem:[%s1 + $0x40] sm:$0xff]
  %v39 = vld [vmem:[%s1 + $0x48] sm:$0xff]
  %v40 = vld [vmem:[%s1 + $0x50] sm:$0xff]
  %v41 = vld [vmem:[%s1 + $0x58] sm:$0xff]
  %v42 = vld [vmem:[%s1 + $0x60] sm:$0xff]
  %v43 = vld [vmem:[%s1 + $0x68] sm:$0xff]
  %v44 = vld [vmem:[%s1 + $0x70] sm:$0xff]
  %v45 = vld [vmem:[%s1 + $0x78] sm:$0xff]
  %v46 = vld [vmem:[%s1 + $0x80] sm:$0xff]
  %v47 = vld [vmem:[%s1 + $0x88] sm:$0xff]
  %v48 = vld [vmem:[%s1 + $0x90] sm:$0xff]
  %v49 = vld [vmem:[%s1 + $0x98] sm:$0xff]
  %v50 = vld [vmem:[%s1 + $0xa0] sm:$0xff]
  %v51 = vld [vmem:[%s1 + $0xa8] sm:$0xff]
  %v52 = vld [vmem:[%s1 + $0xb0] sm:$0xff]
  %v53 = vld [vmem:[%s1 + $0xb8] sm:$0xff]
  %v54 = vld [vmem:[%s1 + $0xc0] sm:$0xff]
  %v55 = vld [vmem:[%s1 + $0xc8] sm:$0xff]
  %v56 = vld [vmem:[%s1 + $0xd0] sm:$0xff]
  %v57 = vld [vmem:[%s1 + $0xd8] sm:$0xff]
  %v58 = vld [vmem:[%s1 + $0xe0] sm:$0xff]
  %v59 = vld [vmem:[%s1 + $0xe8] sm:$0xff]
  %v60 = vld [vmem:[%s1 + $0xf0] sm:$0xff]
  %v61 = vld [vmem:[%s1 + $0xf8] sm:$0xff]
  %v62 = vld [vmem:[%s1 + $0x100] sm:$0xff]
  %v63 = vld [vmem:[%s1 + $0x108] sm:$0xff]
  %v64 = vld [vmem:[%s1 + $0x110] sm:$0xff]
  %v65 = vld [vmem:[%s1 + $0x118] sm:$0xff]
  %v66 = vld [vmem:[%s1 + $0x120] sm:$0xff]
  %v67 = vld [vmem:[%s1 + $0x128] sm:$0xff]
  %v68 = vld [vmem:[%s1 + $0x130] sm:$0xff]
  %v69 = vld [vmem:[%s1 + $0x138] sm:$0xff]
  %v70 = vld [vmem:[%s1 + $0x140] sm:$0xff]
  %v71 = vld [vmem:[%s1 + $0x148] sm:$0xff]
  %v72 = vld [vmem:[%s1 + $0x150] sm:$0xff]
  %v73 = vld [vmem:[%s1 + $0x158] sm:$0xff]
  %v74 = vld [vmem:[%s1 + $0x160] sm:$0xff]
  %v75 = vld [vmem:[%s1 + $0x168] sm:$0xff]
  %v76 = vld [vmem:[%s1 + $0x170] sm:$0xff]
  %v77 = vld [vmem:[%s1 + $0x178] sm:$0xff]
  %v78 = vld [vmem:[%s1 + $0x180] sm:$0xff]
  %v79 = vld [vmem:[%s1 + $0x188] sm:$0xff]
  %v80 = vld [vmem:[%s1 + $0x190] sm:$0xff]
  %v81 = vld [vmem:[%s1 + $0x198] sm:$0xff]
  %v82 = vld [vmem:[%s1 + $0x1a0] sm:$0xff]
  %v83 = vld [vmem:[%s1 + $0x1a8] sm:$0xff]
  %v84 = vld [vmem:[%s1 + $0x1b0] sm:$0xff]
  %v85 = vld [vmem:[%s1 + $0x1b8] sm:$0xff]
  %v86 = vld [vmem:[%s1 + $0x1c0] sm:$0xff]
  %v87 = vld [vmem:[%s1 + $0x1c8] sm:$0xff]
  %v88 = vld [vmem:[%s1 + $0x1d0] sm:$0xff]
  %v89 = vld [vmem:[%s1 + $0x1d8] sm:$0xff]
  %v90 = vld [vmem:[%s1 + $0x1e0] sm:$0xff]
  %v91 = vld [vmem:[%s1 + $0x1e8] sm:$0xff]
  %v92 = vld [vmem:[%s1 + $0x1f0] sm:$0xff]
  %v93 = vld [vmem:[%s1 + $0x1f8] sm:$0xff]
  %v94 = vld [vmem:[%s1 + $0x200] sm:$0xff]
  %v95 = vld [vmem:[%s1 + $0x208] sm:$0xff]
  %v96 = vld [vmem:[%s1 + $0x210] sm:$0xff]
  %v97 = vld [vmem:[%s1 + $0x218] sm:$0xff]
  %v98 = vld [vmem:[%s1 + $0x220] sm:$0xff]
  %v99 = vld [vmem:[%s1 + $0x228] sm:$0xff]
  %v100 = vld [vmem:[%s1 + $0x230] sm:$0xff]
  %v101 = vld [vmem:[%s1 + $0x238] sm:$0xff]
  %v102 = vld [vmem:[%s1 + $0x240] sm:$0xff]
  %v103 = vld [vmem:[%s1 + $0x248] sm:$0xff]
  %v104 = vld [vmem:[%s1 + $0x250] sm:$0xff]
  %v105 = vld [vmem:[%s1 + $0x258] sm:$0xff]
  %v106 = vld [vmem:[%s1 + $0x260] sm:$0xff]
  %v107 = vld [vmem:[%s1 + $0x268] sm:$0xff]
  %v108 = vld [vmem:[%s1 + $0x270] sm:$0xff]
  %v109 = vld [vmem:[%s1 + $0x278] sm:$0xff]
  %v110 = vld [vmem:[%s1 + $0x280] sm:$0xff]
  %v111 = vld [vmem:[%s1 + $0x288] sm:$0xff]
  %v112 = vld [vmem:[%s1 + $0x290] sm:$0xff]
  %v113 = vld [vmem:[%s1 + $0x298] sm:$0xff]
  %v114 = vld [vmem:[%s1 + $0x2a0] sm:$0xff]
  %v115 = vld [vmem:[%s1 + $0x2a8] sm:$0xff]
  %v116 = vld [vmem:[%s1 + $0x2b0] sm:$0xff]
  %v117 = vld [vmem:[%s1 + $0x2b8] sm:$0xff]
  %v118 = vld [vmem:[%s1 + $0x2c0] sm:$0xff]
  %v119 = vld [vmem:[%s1 + $0x2c8] sm:$0xff]
  %v120 = vld [vmem:[%s1 + $0x2d0] sm:$0xff]
  %v121 = vld [vmem:[%s1 + $0x2d8] sm:$0xff]
  %v122 = vld [vmem:[%s1 + $0x2e0] sm:$0xff]
  %v123 = vld [vmem:[%s1 + $0x2e8] sm:$0xff]
  %v124 = vld [vmem:[%s1 + $0x2f0] sm:$0xff]
  %v125 = vld [vmem:[%s1 + $0x2f8] sm:$0xff]
  %v126 = vld [vmem:[%s1 + $0x300] sm:$0xff]
  %v127 = vld [vmem:[%s1 + $0x308] sm:$0xff]
  %v128 = vld [vmem:[%s1 + $0x310] sm:$0xff]
  %v129 = vld [vmem:[%s1 + $0x318] sm:$0xff]
  %v130 = vld [vmem:[%s1 + $0x320] sm:$0xff]
  %v131 = vld [vmem:[%s1 + $0x328] sm:$0xff]
  %v132 = vld [vmem:[%s1 + $0x330] sm:$0xff]
  %v133 = vld [vmem:[%s1 + $0x338] sm:$0xff]
  %v134 = vld [vmem:[%s1 + $0x340] sm:$0xff]
  %v135 = vld [vmem:[%s1 + $0x348] sm:$0xff]
  %v136 = vld [vmem:[%s1 + $0x350] sm:$0xff]
  %v137 = vld [vmem:[%s1 + $0x358] sm:$0xff]
  %v138 = vld [vmem:[%s1 + $0x360] sm:$0xff]
  %v139 = vld [vmem:[%s1 + $0x368] sm:$0xff]
  %v140 = vld [vmem:[%s1 + $0x370] sm:$0xff]
  %v141 = vld [vmem:[%s1 + $0x378] sm:$0xff]
  %v142 = vld [vmem:[%s1 + $0x380] sm:$0xff]
  %v143 = vld [vmem:[%s1 + $0x388] sm:$0xff]
  %v144 = vld [vmem:[%s1 + $0x390] sm:$0xff]
  %v145 = vld [vmem:[%s1 + $0x398] sm:$0xff]
  %v146 = vld [vmem:[%s1 + $0x3a0] sm:$0xff]
  %v147 = vld [vmem:[%s1 + $0x3a8] sm:$0xff]
  %v148 = vld [vmem:[%s1 + $0x3b0] sm:$0xff]
  %v149 = vld [vmem:[%s1 + $0x3b8] sm:$0xff]
  %v150 = vld [vmem:[%s1 + $0x3c0] sm:$0xff]
  %v151 = vld [vmem:[%s1 + $0x3c8] sm:$0xff]
  %v152 = vld [vmem:[%s1 + $0x3d0] sm:$0xff]
  %v153 = vld [vmem:[%s1 + $0x3d8] sm:$0xff]
  %v154 = vld [vmem:[%s1 + $0x3e0] sm:$0xff]
  %v155 = vld [vmem:[%s1 + $0x3e8] sm:$0xff]
  %v156 = vld [vmem:[%s1 + $0x3f0] sm:$0xff]
  %v157 = vld [vmem:[%s1 + $0x3f8] sm:$0xff]
  %v158 = vld [vmem:[%s1 + $0x400] sm:$0xff]
  %v159 = vld [vmem:[%s1 + $0x408] sm:$0xff]
  %v160 = vld [vmem:[%s1 + $0x410] sm:$0xff]
  %v161 = vld [vmem:[%s1 + $0x418] sm:$0xff]
  %v162 = vld [vmem:[%s1 + $0x420] sm:$0xff]
  %v163 = vld [vmem:[%s1 + $0x428] sm:$0xff]
  %v164 = vld [vmem:[%s1 + $0x430] sm:$0xff]
  %v165 = vld [vmem:[%s1 + $0x438] sm:$0xff]
  %v166 = vld [vmem:[%s1 + $0x440] sm:$0xff]
  %v167 = vld [vmem:[%s1 + $0x448] sm:$0xff]
  %v168 = vld [vmem:[%s1 + $0x450] sm:$0xff]
  %v169 = vld [vmem:[%s1 + $0x458] sm:$0xff]
  %v170 = vld [vmem:[%s1 + $0x460] sm:$0xff]
  %v171 = vld [vmem:[%s1 + $0x468] sm:$0xff]
  %v172 = vld [vmem:[%s1 + $0x470] sm:$0xff]
  %v173 = vld [vmem:[%s1 + $0x478] sm:$0xff]
  %v174 = vld [vmem:[%s1 + $0x480] sm:$0xff]
  %v175 = vld [vmem:[%s1 + $0x488] sm:$0xff]
  %v176 = vld [vmem:[%s1 + $0x490] sm:$0xff]
  %v177 = vld [vmem:[%s1 + $0x498] sm:$0xff]
  %v178 = vld [vmem:[%s1 + $0x4a0] sm:$0xff]
  %v179 = vld [vmem:[%s1 + $0x4a8] sm:$0xff]
  %v180 = vld [vmem:[%s1 + $0x4b0] sm:$0xff]
  %v181 = vld [vmem:[%s1 + $0x4b8] sm:$0xff]
  %v182 = vld [vmem:[%s1 + $0x4c0] sm:$0xff]
  %v183 = vld [vmem:[%s1 + $0x4c8] sm:$0xff]
  %v184 = vld [vmem:[%s1 + $0x4d0] sm:$0xff]
  %v185 = vld [vmem:[%s1 + $0x4d8] sm:$0xff]
  %v186 = vld [vmem:[%s1 + $0x4e0] sm:$0xff]
  %v187 = vld [vmem:[%s1 + $0x4e8] sm:$0xff]
  %v188 = vld [vmem:[%s1 + $0x4f0] sm:$0xff]
  %v189 = vld [vmem:[%s1 + $0x4f8] sm:$0xff]
  %v190 = vld [vmem:[%s1 + $0x500] sm:$0xff]
  %v191 = vld [vmem:[%s1 + $0x508] sm:$0xff]
  %v192 = vld [vmem:[%s1 + $0x510] sm:$0xff]
  %v193 = vld [vmem:[%s1 + $0x518] sm:$0xff]
  %v194 = vld [vmem:[%s1 + $0x520] sm:$0xff]
  %v195 = vld [vmem:[%s1 + $0x528] sm:$0xff]
  %v196 = vld [vmem:[%s1 + $0x530] sm:$0xff]
  %v197 = vld [vmem:[%s1 + $0x538] sm:$0xff]
  %v198 = vld [vmem:[%s1 + $0x540] sm:$0xff]
  %v199 = vld [vmem:[%s1 + $0x548] sm:$0xff]
  %v200 = vld [vmem:[%s1 + $0x550] sm:$0xff]
  %v201 = vld [vmem:[%s1 + $0x558] sm:$0xff]
  %v202 = vld [vmem:[%s1 + $0x560] sm:$0xff]
  %v203 = vld [vmem:[%s1 + $0x568] sm:$0xff]
  %v204 = vld [vmem:[%s1 + $0x570] sm:$0xff]
  %v205 = vld [vmem:[%s1 + $0x578] sm:$0xff]
  %v206 = vld [vmem:[%s1 + $0x580] sm:$0xff]
  %v207 = vld [vmem:[%s1 + $0x588] sm:$0xff]
  %v208 = vld [vmem:[%s1 + $0x590] sm:$0xff]
  %v209 = vld [vmem:[%s1 + $0x598] sm:$0xff]
  %v210 = vld [vmem:[%s1 + $0x5a0] sm:$0xff]
  %v211 = vld [vmem:[%s1 + $0x5a8] sm:$0xff]
  %v212 = vld [vmem:[%s1 + $0x5b0] sm:$0xff]
  %v213 = vld [vmem:[%s1 + $0x5b8] sm:$0xff]
  %v214 = vld [vmem:[%s1 + $0x5c0] sm:$0xff]
  %v215 = vld [vmem:[%s1 + $0x5c8] sm:$0xff]
  %v216 = vld [vmem:[%s1 + $0x5d0] sm:$0xff]
  %v217 = vld [vmem:[%s1 + $0x5d8] sm:$0xff]
  %v218 = vld [vmem:[%s1 + $0x5e0] sm:$0xff]
  %v219 = vld [vmem:[%s1 + $0x5e8] sm:$0xff]
  %v220 = vld [vmem:[%s1 + $0x5f0] sm:$0xff]
  %v221 = vld [vmem:[%s1 + $0x5f8] sm:$0xff]
  %v222 = vld [vmem:[%s1 + $0x600] sm:$0xff]
  %v223 = vld [vmem:[%s1 + $0x608] sm:$0xff]
  %v224 = vld [vmem:[%s1 + $0x610] sm:$0xff]
  %v225 = vld [vmem:[%s1 + $0x618] sm:$0xff]
  %v226 = vld [vmem:[%s1 + $0x620] sm:$0xff]
  %v227 = vld [vmem:[%s1 + $0x628] sm:$0xff]
  %v228 = vld [vmem:[%s1 + $0x630] sm:$0xff]
  %v229 = vld [vmem:[%s1 + $0x638] sm:$0xff]
  %v230 = vld [vmem:[%s1 + $0x640] sm:$0xff]
  %v231 = vld [vmem:[%s1 + $0x648] sm:$0xff]
  %v232 = vld [vmem:[%s1 + $0x650] sm:$0xff]
  %v233 = vld [vmem:[%s1 + $0x658] sm:$0xff]
  %v234 = vld [vmem:[%s1 + $0x660] sm:$0xff]
  %v235 = vld [vmem:[%s1 + $0x668] sm:$0xff]
  %v236 = vld [vmem:[%s1 + $0x670] sm:$0xff]
  %v237 = vld [vmem:[%s1 + $0x678] sm:$0xff]
  %v238 = vld [vmem:[%s1 + $0x680] sm:$0xff]
  %v239 = vld [vmem:[%s1 + $0x688] sm:$0xff]
  %v240 = vld [vmem:[%s1 + $0x690] sm:$0xff]
  %v241 = vld [vmem:[%s1 + $0x698] sm:$0xff]
  %v242 = vld [vmem:[%s1 + $0x6a0] sm:$0xff]
  %v243 = vld [vmem:[%s1 + $0x6a8] sm:$0xff]
  %v244 = vld [vmem:[%s1 + $0x6b0] sm:$0xff]
  %v245 = vld [vmem:[%s1 + $0x6b8] sm:$0xff]
  %v246 = vld [vmem:[%s1 + $0x6c0] sm:$0xff]
  %v247 = vld [vmem:[%s1 + $0x6c8] sm:$0xff]
  %v248 = vld [vmem:[%s1 + $0x6d0] sm:$0xff]
  %v249 = vld [vmem:[%s1 + $0x6d8] sm:$0xff]
  %v250 = vld [vmem:[%s1 + $0x6e0] sm:$0xff]
  %v251 = vld [vmem:[%s1 + $0x6e8] sm:$0xff]
  %v252 = vld [vmem:[%s1 + $0x6f0] sm:$0xff]
  %v253 = vld [vmem:[%s1 + $0x6f8] sm:$0xff]
  %v254 = vld [vmem:[%s1 + $0x700] sm:$0xff]
  %v255 = vld [vmem:[%s1 + $0x708] sm:$0xff]
  %v256 = vld [vmem:[%s1 + $0x710] sm:$0xff]
  %v257 = vld [vmem:[%s1 + $0x718] sm:$0xff]
  %v258 = vld [vmem:[%s1 + $0x720] sm:$0xff]
  %v259 = vld [vmem:[%s1 + $0x728] sm:$0xff]
  %v260 = vld [vmem:[%s1 + $0x730] sm:$0xff]
  %v261 = vld [vmem:[%s1 + $0x738] sm:$0xff]
  %v262 = vld [vmem:[%s1 + $0x740] sm:$0xff]
  %v263 = vld [vmem:[%s1 + $0x748] sm:$0xff]
  %v264 = vld [vmem:[%s1 + $0x750] sm:$0xff]
  %v265 = vld [vmem:[%s1 + $0x758] sm:$0xff]
  %v266 = vld [vmem:[%s1 + $0x760] sm:$0xff]
  %v267 = vld [vmem:[%s1 + $0x768] sm:$0xff]
  %v268 = vld [vmem:[%s1 + $0x770] sm:$0xff]
  %v269 = vld [vmem:[%s1 + $0x778] sm:$0xff]
  %v270 = vld [vmem:[%s1 + $0x780] sm:$0xff]
  %v271 = vld [vmem:[%s1 + $0x788] sm:$0xff]
  %v272 = vld [vmem:[%s1 + $0x790] sm:$0xff]
  %v273 = vld [vmem:[%s1 + $0x798] sm:$0xff]
  %v274 = vld [vmem:[%s1 + $0x7a0] sm:$0xff]
  %v275 = vld [vmem:[%s1 + $0x7a8] sm:$0xff]
  %v276 = vld [vmem:[%s1 + $0x7b0] sm:$0xff]
  %v277 = vld [vmem:[%s1 + $0x7b8] sm:$0xff]
  %v278 = vld [vmem:[%s1 + $0x7c0] sm:$0xff]
  %v279 = vld [vmem:[%s1 + $0x7c8] sm:$0xff]
  %v280 = vld [vmem:[%s1 + $0x7d0] sm:$0xff]
  %v281 = vld [vmem:[%s1 + $0x7d8] sm:$0xff]
  %v282 = vld [vmem:[%s1 + $0x7e0] sm:$0xff]
  %v283 = vld [vmem:[%s1 + $0x7e8] sm:$0xff]
  %v284 = vld [vmem:[%s1 + $0x7f0] sm:$0xff]
  %v285 = vld [vmem:[%s1 + $0x7f8] sm:$0xff]
  %v286 = vld [vmem:[%s1 + $0x800] sm:$0xff]
  %v287 = vld [vmem:[%s1 + $0x808] sm:$0xff]
  %v288 = vld [vmem:[%s1 + $0x810] sm:$0xff]
  %v289 = vld [vmem:[%s1 + $0x818] sm:$0xff]
  %v290 = vld [vmem:[%s1 + $0x820] sm:$0xff]
  %v291 = vld [vmem:[%s1 + $0x828] sm:$0xff]
  %v292 = vld [vmem:[%s1 + $0x830] sm:$0xff]
  %v293 = vld [vmem:[%s1 + $0x838] sm:$0xff]
  %v294 = vld [vmem:[%s1 + $0x840] sm:$0xff]
  %v295 = vld [vmem:[%s1 + $0x848] sm:$0xff]
  %v296 = vld [vmem:[%s1 + $0x850] sm:$0xff]
  %v297 = vld [vmem:[%s1 + $0x858] sm:$0xff]
  %v298 = vld [vmem:[%s1 + $0x860] sm:$0xff]
  %v299 = vld [vmem:[%s1 + $0x868] sm:$0xff]
  %v300 = vld [vmem:[%s1 + $0x870] sm:$0xff]
  %v301 = vld [vmem:[%s1 + $0x878] sm:$0xff]
  %v302 = vld [vmem:[%s1 + $0x880] sm:$0xff]
  %v303 = vld [vmem:[%s1 + $0x888] sm:$0xff]
  %v304 = vld [vmem:[%s1 + $0x890] sm:$0xff]
  %v305 = vld [vmem:[%s1 + $0x898] sm:$0xff]
  %v306 = vld [vmem:[%s1 + $0x8a0] sm:$0xff]
  %v307 = vld [vmem:[%s1 + $0x8a8] sm:$0xff]
  %v308 = vld [vmem:[%s1 + $0x8b0] sm:$0xff]
  %v309 = vld [vmem:[%s1 + $0x8b8] sm:$0xff]
  %v310 = vld [vmem:[%s1 + $0x8c0] sm:$0xff]
  %v311 = vld [vmem:[%s1 + $0x8c8] sm:$0xff]
  %v312 = vld [vmem:[%s1 + $0x8d0] sm:$0xff]
  %v313 = vld [vmem:[%s1 + $0x8d8] sm:$0xff]
  %v314 = vld [vmem:[%s1 + $0x8e0] sm:$0xff]
  %v315 = vld [vmem:[%s1 + $0x8e8] sm:$0xff]
  %v316 = vld [vmem:[%s1 + $0x8f0] sm:$0xff]
  %v317 = vld [vmem:[%s1 + $0x8f8] sm:$0xff]
  %v318 = vld [vmem:[%s2] sm:$0xff]
  %v320 = vlaneseq
  %v321 = vshrl.u32 %v320, 7
  %v322 = vsub.s32 0, %v321
  %v323 = vrot.slane %v318, %v322
  %v324 = vlaneseq
  %v325 = vshrl.u32 %v324, 7
  %v326 = vsub.s32 1, %v325
  %v327 = vrot.slane %v318, %v326
  %v328 = vlaneseq
  %v329 = vshrl.u32 %v328, 7
  %v330 = vsub.s32 2, %v329
  %v331 = vrot.slane %v318, %v330
  %v332 = vlaneseq
  %v333 = vshrl.u32 %v332, 7
  %v334 = vsub.s32 3, %v333
  %v335 = vrot.slane %v318, %v334
  %v336 = vlaneseq
  %v337 = vshrl.u32 %v336, 7
  %v338 = vsub.s32 4, %v337
  %v339 = vrot.slane %v318, %v338
  %v340 = vlaneseq
  %v341 = vshrl.u32 %v340, 7
  %v342 = vsub.s32 5, %v341
  %v343 = vrot.slane %v318, %v342
  %v344 = vlaneseq
  %v345 = vshrl.u32 %v344, 7
  %v346 = vsub.s32 6, %v345
  %v347 = vrot.slane %v318, %v346
  %v348 = vlaneseq
  %v349 = vshrl.u32 %v348, 7
  %v350 = vsub.s32 7, %v349
  %v351 = vrot.slane %v318, %v350
  %v375 = vunpack.c.l.b16 %v15
  %v376 = vunpack.c.h.b16 %v15
  %v377 = vunpack.c.l.b16 %v16
  %v378 = vunpack.c.h.b16 %v16
  %v379 = vunpack.c.l.b16 %v17
  %v380 = vunpack.c.l.b16 %v18
  %v381 = vunpack.c.h.b16 %v18
  %v382 = vunpack.c.l.b16 %v19
  %v383 = vunpack.c.h.b16 %v19
  %v384 = vunpack.c.l.b16 %v20
  %v385 = vunpack.c.l.b16 %v21
  %v386 = vunpack.c.h.b16 %v21
  %v387 = vunpack.c.l.b16 %v22
  %v388 = vunpack.c.h.b16 %v22
  %v389 = vunpack.c.l.b16 %v23
  %v390 = vunpack.c.l.b16 %v24
  %v391 = vunpack.c.h.b16 %v24
  %v392 = vunpack.c.l.b16 %v25
  %v393 = vunpack.c.h.b16 %v25
  %v394 = vunpack.c.l.b16 %v26
  %v395 = vunpack.c.l.b16 %v27
  %v396 = vunpack.c.h.b16 %v27
  %v397 = vunpack.c.l.b16 %v28
  %v398 = vunpack.c.h.b16 %v28
  %v399 = vunpack.c.l.b16 %v29
  %v400 = vpack.c.b16 %v380, %v375
  %v401 = vpack.c.b16 %v381, %v376
  %v402 = vpack.c.b16 %v382, %v377
  %v403 = vpack.c.b16 %v383, %v378
  %v404 = vpack.c.b16 %v384, %v379
  %v405 = vpack.c.b16 %v390, %v385
  %v406 = vpack.c.b16 %v391, %v386
  %v407 = vpack.c.b16 %v392, %v387
  %v408 = vpack.c.b16 %v393, %v388
  %v409 = vpack.c.b16 %v394, %v389
  %v410 = vpack.c.b16 %v395, %v395
  %v411 = vpack.c.b16 %v396, %v396
  %v412 = vpack.c.b16 %v397, %v397
  %v413 = vpack.c.b16 %v398, %v398
  %v414 = vpack.c.b16 %v399, %v399
  %v715 = vunpack.c.l.b16 %v30
  %v716 = vunpack.c.h.b16 %v30
  %v717 = vunpack.c.l.b16 %v31
  %v718 = vunpack.c.h.b16 %v31
  %v719 = vunpack.c.l.b16 %v32
  %v720 = vunpack.c.h.b16 %v32
  %v721 = vunpack.c.l.b16 %v33
  %v722 = vunpack.c.h.b16 %v33
  %v723 = vunpack.c.l.b16 %v34
  %v724 = vunpack.c.h.b16 %v34
  %v725 = vunpack.c.l.b16 %v35
  %v726 = vunpack.c.h.b16 %v35
  %v727 = vunpack.c.l.b16 %v36
  %v728 = vunpack.c.h.b16 %v36
  %v729 = vunpack.c.l.b16 %v37
  %v730 = vunpack.c.h.b16 %v37
  %v731 = vunpack.c.l.b16 %v38
  %v732 = vunpack.c.h.b16 %v38
  %v733 = vunpack.c.l.b16 %v39
  %v734 = vunpack.c.h.b16 %v39
  %v735 = vunpack.c.l.b16 %v40
  %v736 = vunpack.c.h.b16 %v40
  %v737 = vunpack.c.l.b16 %v41
  %v738 = vunpack.c.h.b16 %v41
  %v739 = vunpack.c.l.b16 %v42
  %v740 = vunpack.c.h.b16 %v42
  %v741 = vunpack.c.l.b16 %v43
  %v742 = vunpack.c.h.b16 %v43
  %v743 = vunpack.c.l.b16 %v44
  %v744 = vunpack.c.h.b16 %v44
  %v745 = vunpack.c.l.b16 %v45
  %v746 = vunpack.c.h.b16 %v45
  %v747 = vunpack.c.l.b16 %v46
  %v748 = vunpack.c.h.b16 %v46
  %v749 = vunpack.c.l.b16 %v47
  %v750 = vunpack.c.h.b16 %v47
  %v751 = vunpack.c.l.b16 %v48
  %v752 = vunpack.c.h.b16 %v48
  %v753 = vunpack.c.l.b16 %v49
  %v754 = vunpack.c.h.b16 %v49
  %v755 = vunpack.c.l.b16 %v50
  %v756 = vunpack.c.h.b16 %v50
  %v757 = vunpack.c.l.b16 %v51
  %v758 = vunpack.c.h.b16 %v51
  %v759 = vunpack.c.l.b16 %v52
  %v760 = vunpack.c.h.b16 %v52
  %v761 = vunpack.c.l.b16 %v53
  %v762 = vunpack.c.h.b16 %v53
  %v763 = vunpack.c.l.b16 %v54
  %v764 = vunpack.c.h.b16 %v54
  %v765 = vunpack.c.l.b16 %v55
  %v766 = vunpack.c.h.b16 %v55
  %v767 = vunpack.c.l.b16 %v56
  %v768 = vunpack.c.h.b16 %v56
  %v769 = vunpack.c.l.b16 %v57
  %v770 = vunpack.c.h.b16 %v57
  %v771 = vunpack.c.l.b16 %v58
  %v772 = vunpack.c.h.b16 %v58
  %v773 = vunpack.c.l.b16 %v59
  %v774 = vunpack.c.h.b16 %v59
  %v775 = vunpack.c.l.b16 %v60
  %v776 = vunpack.c.h.b16 %v60
  %v777 = vunpack.c.l.b16 %v61
  %v778 = vunpack.c.h.b16 %v61
  %v779 = vunpack.c.l.b16 %v62
  %v780 = vunpack.c.h.b16 %v62
  %v781 = vunpack.c.l.b16 %v63
  %v782 = vunpack.c.h.b16 %v63
  %v783 = vunpack.c.l.b16 %v64
  %v784 = vunpack.c.h.b16 %v64
  %v785 = vunpack.c.l.b16 %v65
  %v786 = vunpack.c.h.b16 %v65
  %v787 = vunpack.c.l.b16 %v66
  %v788 = vunpack.c.h.b16 %v66
  %v789 = vunpack.c.l.b16 %v67
  %v790 = vunpack.c.h.b16 %v67
  %v791 = vunpack.c.l.b16 %v68
  %v792 = vunpack.c.h.b16 %v68
  %v793 = vunpack.c.l.b16 %v69
  %v794 = vunpack.c.h.b16 %v69
  %v795 = vunpack.c.l.b16 %v70
  %v796 = vunpack.c.h.b16 %v70
  %v797 = vunpack.c.l.b16 %v71
  %v798 = vunpack.c.h.b16 %v71
  %v799 = vunpack.c.l.b16 %v72
  %v800 = vunpack.c.h.b16 %v72
  %v801 = vunpack.c.l.b16 %v73
  %v802 = vunpack.c.h.b16 %v73
  %v803 = vunpack.c.l.b16 %v74
  %v804 = vunpack.c.h.b16 %v74
  %v805 = vunpack.c.l.b16 %v75
  %v806 = vunpack.c.h.b16 %v75
  %v807 = vunpack.c.l.b16 %v76
  %v808 = vunpack.c.h.b16 %v76
  %v809 = vunpack.c.l.b16 %v77
  %v810 = vunpack.c.h.b16 %v77
  %v811 = vunpack.c.l.b16 %v78
  %v812 = vunpack.c.h.b16 %v78
  %v813 = vunpack.c.l.b16 %v79
  %v814 = vunpack.c.h.b16 %v79
  %v815 = vunpack.c.l.b16 %v80
  %v816 = vunpack.c.h.b16 %v80
  %v817 = vunpack.c.l.b16 %v81
  %v818 = vunpack.c.h.b16 %v81
  %v819 = vunpack.c.l.b16 %v82
  %v820 = vunpack.c.h.b16 %v82
  %v821 = vunpack.c.l.b16 %v83
  %v822 = vunpack.c.h.b16 %v83
  %v823 = vunpack.c.l.b16 %v84
  %v824 = vunpack.c.h.b16 %v84
  %v825 = vunpack.c.l.b16 %v85
  %v826 = vunpack.c.h.b16 %v85
  %v827 = vunpack.c.l.b16 %v86
  %v828 = vunpack.c.h.b16 %v86
  %v829 = vunpack.c.l.b16 %v87
  %v830 = vunpack.c.h.b16 %v87
  %v831 = vunpack.c.l.b16 %v88
  %v832 = vunpack.c.h.b16 %v88
  %v833 = vunpack.c.l.b16 %v89
  %v834 = vunpack.c.h.b16 %v89
  %v835 = vunpack.c.l.b16 %v90
  %v836 = vunpack.c.h.b16 %v90
  %v837 = vunpack.c.l.b16 %v91
  %v838 = vunpack.c.h.b16 %v91
  %v839 = vunpack.c.l.b16 %v92
  %v840 = vunpack.c.h.b16 %v92
  %v841 = vunpack.c.l.b16 %v93
  %v842 = vunpack.c.h.b16 %v93
  %v843 = vunpack.c.l.b16 %v94
  %v844 = vunpack.c.h.b16 %v94
  %v845 = vunpack.c.l.b16 %v95
  %v846 = vunpack.c.h.b16 %v95
  %v847 = vunpack.c.l.b16 %v96
  %v848 = vunpack.c.h.b16 %v96
  %v849 = vunpack.c.l.b16 %v97
  %v850 = vunpack.c.h.b16 %v97
  %v851 = vunpack.c.l.b16 %v98
  %v852 = vunpack.c.h.b16 %v98
  %v853 = vunpack.c.l.b16 %v99
  %v854 = vunpack.c.h.b16 %v99
  %v855 = vunpack.c.l.b16 %v100
  %v856 = vunpack.c.h.b16 %v100
  %v857 = vunpack.c.l.b16 %v101
  %v858 = vunpack.c.h.b16 %v101
  %v859 = vunpack.c.l.b16 %v102
  %v860 = vunpack.c.h.b16 %v102
  %v861 = vunpack.c.l.b16 %v103
  %v862 = vunpack.c.h.b16 %v103
  %v863 = vunpack.c.l.b16 %v104
  %v864 = vunpack.c.h.b16 %v104
  %v865 = vunpack.c.l.b16 %v105
  %v866 = vunpack.c.h.b16 %v105
  %v867 = vunpack.c.l.b16 %v106
  %v868 = vunpack.c.h.b16 %v106
  %v869 = vunpack.c.l.b16 %v107
  %v870 = vunpack.c.h.b16 %v107
  %v871 = vunpack.c.l.b16 %v108
  %v872 = vunpack.c.h.b16 %v108
  %v873 = vunpack.c.l.b16 %v109
  %v874 = vunpack.c.h.b16 %v109
  %v875 = vunpack.c.l.b16 %v110
  %v876 = vunpack.c.h.b16 %v110
  %v877 = vunpack.c.l.b16 %v111
  %v878 = vunpack.c.h.b16 %v111
  %v879 = vunpack.c.l.b16 %v112
  %v880 = vunpack.c.h.b16 %v112
  %v881 = vunpack.c.l.b16 %v113
  %v882 = vunpack.c.h.b16 %v113
  %v883 = vunpack.c.l.b16 %v114
  %v884 = vunpack.c.h.b16 %v114
  %v885 = vunpack.c.l.b16 %v115
  %v886 = vunpack.c.h.b16 %v115
  %v887 = vunpack.c.l.b16 %v116
  %v888 = vunpack.c.h.b16 %v116
  %v889 = vunpack.c.l.b16 %v117
  %v890 = vunpack.c.h.b16 %v117
  %v891 = vunpack.c.l.b16 %v118
  %v892 = vunpack.c.h.b16 %v118
  %v893 = vunpack.c.l.b16 %v119
  %v894 = vunpack.c.h.b16 %v119
  %v895 = vunpack.c.l.b16 %v120
  %v896 = vunpack.c.h.b16 %v120
  %v897 = vunpack.c.l.b16 %v121
  %v898 = vunpack.c.h.b16 %v121
  %v899 = vunpack.c.l.b16 %v122
  %v900 = vunpack.c.h.b16 %v122
  %v901 = vunpack.c.l.b16 %v123
  %v902 = vunpack.c.h.b16 %v123
  %v903 = vunpack.c.l.b16 %v124
  %v904 = vunpack.c.h.b16 %v124
  %v905 = vunpack.c.l.b16 %v125
  %v906 = vunpack.c.h.b16 %v125
  %v907 = vunpack.c.l.b16 %v126
  %v908 = vunpack.c.h.b16 %v126
  %v909 = vunpack.c.l.b16 %v127
  %v910 = vunpack.c.h.b16 %v127
  %v911 = vunpack.c.l.b16 %v128
  %v912 = vunpack.c.h.b16 %v128
  %v913 = vunpack.c.l.b16 %v129
  %v914 = vunpack.c.h.b16 %v129
  %v915 = vunpack.c.l.b16 %v130
  %v916 = vunpack.c.h.b16 %v130
  %v917 = vunpack.c.l.b16 %v131
  %v918 = vunpack.c.h.b16 %v131
  %v919 = vunpack.c.l.b16 %v132
  %v920 = vunpack.c.h.b16 %v132
  %v921 = vunpack.c.l.b16 %v133
  %v922 = vunpack.c.h.b16 %v133
  %v923 = vunpack.c.l.b16 %v134
  %v924 = vunpack.c.h.b16 %v134
  %v925 = vunpack.c.l.b16 %v135
  %v926 = vunpack.c.h.b16 %v135
  %v927 = vunpack.c.l.b16 %v136
  %v928 = vunpack.c.h.b16 %v136
  %v929 = vunpack.c.l.b16 %v137
  %v930 = vunpack.c.h.b16 %v137
  %v931 = vunpack.c.l.b16 %v138
  %v932 = vunpack.c.h.b16 %v138
  %v933 = vunpack.c.l.b16 %v139
  %v934 = vunpack.c.h.b16 %v139
  %v935 = vunpack.c.l.b16 %v140
  %v936 = vunpack.c.h.b16 %v140
  %v937 = vunpack.c.l.b16 %v141
  %v938 = vunpack.c.h.b16 %v141
  %v939 = vunpack.c.l.b16 %v142
  %v940 = vunpack.c.h.b16 %v142
  %v941 = vunpack.c.l.b16 %v143
  %v942 = vunpack.c.h.b16 %v143
  %v943 = vunpack.c.l.b16 %v144
  %v944 = vunpack.c.h.b16 %v144
  %v945 = vunpack.c.l.b16 %v145
  %v946 = vunpack.c.h.b16 %v145
  %v947 = vunpack.c.l.b16 %v146
  %v948 = vunpack.c.h.b16 %v146
  %v949 = vunpack.c.l.b16 %v147
  %v950 = vunpack.c.h.b16 %v147
  %v951 = vunpack.c.l.b16 %v148
  %v952 = vunpack.c.h.b16 %v148
  %v953 = vunpack.c.l.b16 %v149
  %v954 = vunpack.c.h.b16 %v149
  %v955 = vunpack.c.l.b16 %v150
  %v956 = vunpack.c.h.b16 %v150
  %v957 = vunpack.c.l.b16 %v151
  %v958 = vunpack.c.h.b16 %v151
  %v959 = vunpack.c.l.b16 %v152
  %v960 = vunpack.c.h.b16 %v152
  %v961 = vunpack.c.l.b16 %v153
  %v962 = vunpack.c.h.b16 %v153
  %v963 = vunpack.c.l.b16 %v154
  %v964 = vunpack.c.h.b16 %v154
  %v965 = vunpack.c.l.b16 %v155
  %v966 = vunpack.c.h.b16 %v155
  %v967 = vunpack.c.l.b16 %v156
  %v968 = vunpack.c.h.b16 %v156
  %v969 = vunpack.c.l.b16 %v157
  %v970 = vunpack.c.h.b16 %v157
  %v971 = vunpack.c.l.b16 %v158
  %v972 = vunpack.c.h.b16 %v158
  %v973 = vunpack.c.l.b16 %v159
  %v974 = vunpack.c.h.b16 %v159
  %v975 = vunpack.c.l.b16 %v160
  %v976 = vunpack.c.h.b16 %v160
  %v977 = vunpack.c.l.b16 %v161
  %v978 = vunpack.c.h.b16 %v161
  %v979 = vunpack.c.l.b16 %v162
  %v980 = vunpack.c.h.b16 %v162
  %v981 = vunpack.c.l.b16 %v163
  %v982 = vunpack.c.h.b16 %v163
  %v983 = vunpack.c.l.b16 %v164
  %v984 = vunpack.c.h.b16 %v164
  %v985 = vunpack.c.l.b16 %v165
  %v986 = vunpack.c.h.b16 %v165
  %v987 = vunpack.c.l.b16 %v166
  %v988 = vunpack.c.h.b16 %v166
  %v989 = vunpack.c.l.b16 %v167
  %v990 = vunpack.c.h.b16 %v167
  %v991 = vunpack.c.l.b16 %v168
  %v992 = vunpack.c.h.b16 %v168
  %v993 = vunpack.c.l.b16 %v169
  %v994 = vunpack.c.h.b16 %v169
  %v995 = vunpack.c.l.b16 %v170
  %v996 = vunpack.c.h.b16 %v170
  %v997 = vunpack.c.l.b16 %v171
  %v998 = vunpack.c.h.b16 %v171
  %v999 = vunpack.c.l.b16 %v172
  %v1000 = vunpack.c.h.b16 %v172
  %v1001 = vunpack.c.l.b16 %v173
  %v1002 = vunpack.c.h.b16 %v173
  %v1003 = vunpack.c.l.b16 %v174
  %v1004 = vunpack.c.h.b16 %v174
  %v1005 = vunpack.c.l.b16 %v175
  %v1006 = vunpack.c.h.b16 %v175
  %v1007 = vunpack.c.l.b16 %v176
  %v1008 = vunpack.c.h.b16 %v176
  %v1009 = vunpack.c.l.b16 %v177
  %v1010 = vunpack.c.h.b16 %v177
  %v1011 = vunpack.c.l.b16 %v178
  %v1012 = vunpack.c.h.b16 %v178
  %v1013 = vunpack.c.l.b16 %v179
  %v1014 = vunpack.c.h.b16 %v179
  %v1015 = vunpack.c.l.b16 %v180
  %v1016 = vunpack.c.h.b16 %v180
  %v1017 = vunpack.c.l.b16 %v181
  %v1018 = vunpack.c.h.b16 %v181
  %v1019 = vunpack.c.l.b16 %v182
  %v1020 = vunpack.c.h.b16 %v182
  %v1021 = vunpack.c.l.b16 %v183
  %v1022 = vunpack.c.h.b16 %v183
  %v1023 = vunpack.c.l.b16 %v184
  %v1024 = vunpack.c.h.b16 %v184
  %v1025 = vunpack.c.l.b16 %v185
  %v1026 = vunpack.c.h.b16 %v185
  %v1027 = vunpack.c.l.b16 %v186
  %v1028 = vunpack.c.h.b16 %v186
  %v1029 = vunpack.c.l.b16 %v187
  %v1030 = vunpack.c.h.b16 %v187
  %v1031 = vunpack.c.l.b16 %v188
  %v1032 = vunpack.c.h.b16 %v188
  %v1033 = vunpack.c.l.b16 %v189
  %v1034 = vunpack.c.h.b16 %v189
  %v1035 = vunpack.c.l.b16 %v190
  %v1036 = vunpack.c.h.b16 %v190
  %v1037 = vunpack.c.l.b16 %v191
  %v1038 = vunpack.c.h.b16 %v191
  %v1039 = vunpack.c.l.b16 %v192
  %v1040 = vunpack.c.h.b16 %v192
  %v1041 = vunpack.c.l.b16 %v193
  %v1042 = vunpack.c.h.b16 %v193
  %v1043 = vunpack.c.l.b16 %v194
  %v1044 = vunpack.c.h.b16 %v194
  %v1045 = vunpack.c.l.b16 %v195
  %v1046 = vunpack.c.h.b16 %v195
  %v1047 = vunpack.c.l.b16 %v196
  %v1048 = vunpack.c.h.b16 %v196
  %v1049 = vunpack.c.l.b16 %v197
  %v1050 = vunpack.c.h.b16 %v197
  %v1051 = vunpack.c.l.b16 %v198
  %v1052 = vunpack.c.h.b16 %v198
  %v1053 = vunpack.c.l.b16 %v199
  %v1054 = vunpack.c.h.b16 %v199
  %v1055 = vunpack.c.l.b16 %v200
  %v1056 = vunpack.c.h.b16 %v200
  %v1057 = vunpack.c.l.b16 %v201
  %v1058 = vunpack.c.h.b16 %v201
  %v1059 = vunpack.c.l.b16 %v202
  %v1060 = vunpack.c.h.b16 %v202
  %v1061 = vunpack.c.l.b16 %v203
  %v1062 = vunpack.c.h.b16 %v203
  %v1063 = vunpack.c.l.b16 %v204
  %v1064 = vunpack.c.h.b16 %v204
  %v1065 = vunpack.c.l.b16 %v205
  %v1066 = vunpack.c.h.b16 %v205
  %v1067 = vunpack.c.l.b16 %v206
  %v1068 = vunpack.c.h.b16 %v206
  %v1069 = vunpack.c.l.b16 %v207
  %v1070 = vunpack.c.h.b16 %v207
  %v1071 = vunpack.c.l.b16 %v208
  %v1072 = vunpack.c.h.b16 %v208
  %v1073 = vunpack.c.l.b16 %v209
  %v1074 = vunpack.c.h.b16 %v209
  %v1075 = vunpack.c.l.b16 %v210
  %v1076 = vunpack.c.h.b16 %v210
  %v1077 = vunpack.c.l.b16 %v211
  %v1078 = vunpack.c.h.b16 %v211
  %v1079 = vunpack.c.l.b16 %v212
  %v1080 = vunpack.c.h.b16 %v212
  %v1081 = vunpack.c.l.b16 %v213
  %v1082 = vunpack.c.h.b16 %v213
  %v1083 = vunpack.c.l.b16 %v214
  %v1084 = vunpack.c.h.b16 %v214
  %v1085 = vunpack.c.l.b16 %v215
  %v1086 = vunpack.c.h.b16 %v215
  %v1087 = vunpack.c.l.b16 %v216
  %v1088 = vunpack.c.h.b16 %v216
  %v1089 = vunpack.c.l.b16 %v217
  %v1090 = vunpack.c.h.b16 %v217
  %v1091 = vunpack.c.l.b16 %v218
  %v1092 = vunpack.c.h.b16 %v218
  %v1093 = vunpack.c.l.b16 %v219
  %v1094 = vunpack.c.h.b16 %v219
  %v1095 = vunpack.c.l.b16 %v220
  %v1096 = vunpack.c.h.b16 %v220
  %v1097 = vunpack.c.l.b16 %v221
  %v1098 = vunpack.c.h.b16 %v221
  %v1099 = vunpack.c.l.b16 %v222
  %v1100 = vunpack.c.h.b16 %v222
  %v1101 = vunpack.c.l.b16 %v223
  %v1102 = vunpack.c.h.b16 %v223
  %v1103 = vunpack.c.l.b16 %v224
  %v1104 = vunpack.c.h.b16 %v224
  %v1105 = vunpack.c.l.b16 %v225
  %v1106 = vunpack.c.h.b16 %v225
  %v1107 = vunpack.c.l.b16 %v226
  %v1108 = vunpack.c.h.b16 %v226
  %v1109 = vunpack.c.l.b16 %v227
  %v1110 = vunpack.c.h.b16 %v227
  %v1111 = vunpack.c.l.b16 %v228
  %v1112 = vunpack.c.h.b16 %v228
  %v1113 = vunpack.c.l.b16 %v229
  %v1114 = vunpack.c.h.b16 %v229
  %v1115 = vunpack.c.l.b16 %v230
  %v1116 = vunpack.c.h.b16 %v230
  %v1117 = vunpack.c.l.b16 %v231
  %v1118 = vunpack.c.h.b16 %v231
  %v1119 = vunpack.c.l.b16 %v232
  %v1120 = vunpack.c.h.b16 %v232
  %v1121 = vunpack.c.l.b16 %v233
  %v1122 = vunpack.c.h.b16 %v233
  %v1123 = vunpack.c.l.b16 %v234
  %v1124 = vunpack.c.h.b16 %v234
  %v1125 = vunpack.c.l.b16 %v235
  %v1126 = vunpack.c.h.b16 %v235
  %v1127 = vunpack.c.l.b16 %v236
  %v1128 = vunpack.c.h.b16 %v236
  %v1129 = vunpack.c.l.b16 %v237
  %v1130 = vunpack.c.h.b16 %v237
  %v1131 = vunpack.c.l.b16 %v238
  %v1132 = vunpack.c.h.b16 %v238
  %v1133 = vunpack.c.l.b16 %v239
  %v1134 = vunpack.c.h.b16 %v239
  %v1135 = vunpack.c.l.b16 %v240
  %v1136 = vunpack.c.h.b16 %v240
  %v1137 = vunpack.c.l.b16 %v241
  %v1138 = vunpack.c.h.b16 %v241
  %v1139 = vunpack.c.l.b16 %v242
  %v1140 = vunpack.c.h.b16 %v242
  %v1141 = vunpack.c.l.b16 %v243
  %v1142 = vunpack.c.h.b16 %v243
  %v1143 = vunpack.c.l.b16 %v244
  %v1144 = vunpack.c.h.b16 %v244
  %v1145 = vunpack.c.l.b16 %v245
  %v1146 = vunpack.c.h.b16 %v245
  %v1147 = vunpack.c.l.b16 %v246
  %v1148 = vunpack.c.h.b16 %v246
  %v1149 = vunpack.c.l.b16 %v247
  %v1150 = vunpack.c.h.b16 %v247
  %v1151 = vunpack.c.l.b16 %v248
  %v1152 = vunpack.c.h.b16 %v248
  %v1153 = vunpack.c.l.b16 %v249
  %v1154 = vunpack.c.h.b16 %v249
  %v1155 = vunpack.c.l.b16 %v250
  %v1156 = vunpack.c.h.b16 %v250
  %v1157 = vunpack.c.l.b16 %v251
  %v1158 = vunpack.c.h.b16 %v251
  %v1159 = vunpack.c.l.b16 %v252
  %v1160 = vunpack.c.h.b16 %v252
  %v1161 = vunpack.c.l.b16 %v253
  %v1162 = vunpack.c.h.b16 %v253
  %v1163 = vunpack.c.l.b16 %v254
  %v1164 = vunpack.c.h.b16 %v254
  %v1165 = vunpack.c.l.b16 %v255
  %v1166 = vunpack.c.h.b16 %v255
  %v1167 = vunpack.c.l.b16 %v256
  %v1168 = vunpack.c.h.b16 %v256
  %v1169 = vunpack.c.l.b16 %v257
  %v1170 = vunpack.c.h.b16 %v257
  %v1171 = vunpack.c.l.b16 %v258
  %v1172 = vunpack.c.h.b16 %v258
  %v1173 = vunpack.c.l.b16 %v259
  %v1174 = vunpack.c.h.b16 %v259
  %v1175 = vunpack.c.l.b16 %v260
  %v1176 = vunpack.c.h.b16 %v260
  %v1177 = vunpack.c.l.b16 %v261
  %v1178 = vunpack.c.h.b16 %v261
  %v1179 = vunpack.c.l.b16 %v262
  %v1180 = vunpack.c.h.b16 %v262
  %v1181 = vunpack.c.l.b16 %v263
  %v1182 = vunpack.c.h.b16 %v263
  %v1183 = vunpack.c.l.b16 %v264
  %v1184 = vunpack.c.h.b16 %v264
  %v1185 = vunpack.c.l.b16 %v265
  %v1186 = vunpack.c.h.b16 %v265
  %v1187 = vunpack.c.l.b16 %v266
  %v1188 = vunpack.c.h.b16 %v266
  %v1189 = vunpack.c.l.b16 %v267
  %v1190 = vunpack.c.h.b16 %v267
  %v1191 = vunpack.c.l.b16 %v268
  %v1192 = vunpack.c.h.b16 %v268
  %v1193 = vunpack.c.l.b16 %v269
  %v1194 = vunpack.c.h.b16 %v269
  %v1195 = vunpack.c.l.b16 %v270
  %v1196 = vunpack.c.h.b16 %v270
  %v1197 = vunpack.c.l.b16 %v271
  %v1198 = vunpack.c.h.b16 %v271
  %v1199 = vunpack.c.l.b16 %v272
  %v1200 = vunpack.c.h.b16 %v272
  %v1201 = vunpack.c.l.b16 %v273
  %v1202 = vunpack.c.h.b16 %v273
  %v1203 = vunpack.c.l.b16 %v274
  %v1204 = vunpack.c.h.b16 %v274
  %v1205 = vunpack.c.l.b16 %v275
  %v1206 = vunpack.c.h.b16 %v275
  %v1207 = vunpack.c.l.b16 %v276
  %v1208 = vunpack.c.h.b16 %v276
  %v1209 = vunpack.c.l.b16 %v277
  %v1210 = vunpack.c.h.b16 %v277
  %v1211 = vunpack.c.l.b16 %v278
  %v1212 = vunpack.c.h.b16 %v278
  %v1213 = vunpack.c.l.b16 %v279
  %v1214 = vunpack.c.h.b16 %v279
  %v1215 = vunpack.c.l.b16 %v280
  %v1216 = vunpack.c.h.b16 %v280
  %v1217 = vunpack.c.l.b16 %v281
  %v1218 = vunpack.c.h.b16 %v281
  %v1219 = vunpack.c.l.b16 %v282
  %v1220 = vunpack.c.h.b16 %v282
  %v1221 = vunpack.c.l.b16 %v283
  %v1222 = vunpack.c.h.b16 %v283
  %v1223 = vunpack.c.l.b16 %v284
  %v1224 = vunpack.c.h.b16 %v284
  %v1225 = vunpack.c.l.b16 %v285
  %v1226 = vunpack.c.h.b16 %v285
  %v1227 = vunpack.c.l.b16 %v286
  %v1228 = vunpack.c.h.b16 %v286
  %v1229 = vunpack.c.l.b16 %v287
  %v1230 = vunpack.c.h.b16 %v287
  %v1231 = vunpack.c.l.b16 %v288
  %v1232 = vunpack.c.h.b16 %v288
  %v1233 = vunpack.c.l.b16 %v289
  %v1234 = vunpack.c.h.b16 %v289
  %v1235 = vunpack.c.l.b16 %v290
  %v1236 = vunpack.c.h.b16 %v290
  %v1237 = vunpack.c.l.b16 %v291
  %v1238 = vunpack.c.h.b16 %v291
  %v1239 = vunpack.c.l.b16 %v292
  %v1240 = vunpack.c.h.b16 %v292
  %v1241 = vunpack.c.l.b16 %v293
  %v1242 = vunpack.c.h.b16 %v293
  %v1243 = vunpack.c.l.b16 %v294
  %v1244 = vunpack.c.h.b16 %v294
  %v1245 = vunpack.c.l.b16 %v295
  %v1246 = vunpack.c.h.b16 %v295
  %v1247 = vunpack.c.l.b16 %v296
  %v1248 = vunpack.c.h.b16 %v296
  %v1249 = vunpack.c.l.b16 %v297
  %v1250 = vunpack.c.h.b16 %v297
  %v1251 = vunpack.c.l.b16 %v298
  %v1252 = vunpack.c.h.b16 %v298
  %v1253 = vunpack.c.l.b16 %v299
  %v1254 = vunpack.c.h.b16 %v299
  %v1255 = vunpack.c.l.b16 %v300
  %v1256 = vunpack.c.h.b16 %v300
  %v1257 = vunpack.c.l.b16 %v301
  %v1258 = vunpack.c.h.b16 %v301
  %v1259 = vunpack.c.l.b16 %v302
  %v1260 = vunpack.c.h.b16 %v302
  %v1261 = vunpack.c.l.b16 %v303
  %v1262 = vunpack.c.h.b16 %v303
  %v1263 = vunpack.c.l.b16 %v304
  %v1264 = vunpack.c.h.b16 %v304
  %v1265 = vunpack.c.l.b16 %v305
  %v1266 = vunpack.c.h.b16 %v305
  %v1267 = vunpack.c.l.b16 %v306
  %v1268 = vunpack.c.h.b16 %v306
  %v1269 = vunpack.c.l.b16 %v307
  %v1270 = vunpack.c.h.b16 %v307
  %v1271 = vunpack.c.l.b16 %v308
  %v1272 = vunpack.c.h.b16 %v308
  %v1273 = vunpack.c.l.b16 %v309
  %v1274 = vunpack.c.h.b16 %v309
  %v1275 = vunpack.c.l.b16 %v310
  %v1276 = vunpack.c.h.b16 %v310
  %v1277 = vunpack.c.l.b16 %v311
  %v1278 = vunpack.c.h.b16 %v311
  %v1279 = vunpack.c.l.b16 %v312
  %v1280 = vunpack.c.h.b16 %v312
  %v1281 = vunpack.c.l.b16 %v313
  %v1282 = vunpack.c.h.b16 %v313
  %v1283 = vunpack.c.l.b16 %v314
  %v1284 = vunpack.c.h.b16 %v314
  %v1285 = vunpack.c.l.b16 %v315
  %v1286 = vunpack.c.h.b16 %v315
  %v1287 = vunpack.c.l.b16 %v316
  %v1288 = vunpack.c.h.b16 %v316
  %v1289 = vunpack.c.l.b16 %v317
  %v1290 = vunpack.c.h.b16 %v317
  %v1291 = vpack.c.b16 %v723, %v715
  %v1292 = vpack.c.b16 %v724, %v716
  %v1293 = vpack.c.b16 %v725, %v717
  %v1294 = vpack.c.b16 %v726, %v718
  %v1295 = vpack.c.b16 %v727, %v719
  %v1296 = vpack.c.b16 %v728, %v720
  %v1297 = vpack.c.b16 %v729, %v721
  %v1298 = vpack.c.b16 %v730, %v722
  %v1299 = vpack.c.b16 %v739, %v731
  %v1300 = vpack.c.b16 %v740, %v732
  %v1301 = vpack.c.b16 %v741, %v733
  %v1302 = vpack.c.b16 %v742, %v734
  %v1303 = vpack.c.b16 %v743, %v735
  %v1304 = vpack.c.b16 %v744, %v736
  %v1305 = vpack.c.b16 %v745, %v737
  %v1306 = vpack.c.b16 %v746, %v738
  %v1307 = vpack.c.b16 %v755, %v747
  %v1308 = vpack.c.b16 %v756, %v748
  %v1309 = vpack.c.b16 %v757, %v749
  %v1310 = vpack.c.b16 %v758, %v750
  %v1311 = vpack.c.b16 %v759, %v751
  %v1312 = vpack.c.b16 %v760, %v752
  %v1313 = vpack.c.b16 %v761, %v753
  %v1314 = vpack.c.b16 %v762, %v754
  %v1315 = vpack.c.b16 %v771, %v763
  %v1316 = vpack.c.b16 %v772, %v764
  %v1317 = vpack.c.b16 %v773, %v765
  %v1318 = vpack.c.b16 %v774, %v766
  %v1319 = vpack.c.b16 %v775, %v767
  %v1320 = vpack.c.b16 %v776, %v768
  %v1321 = vpack.c.b16 %v777, %v769
  %v1322 = vpack.c.b16 %v778, %v770
  %v1323 = vpack.c.b16 %v787, %v779
  %v1324 = vpack.c.b16 %v788, %v780
  %v1325 = vpack.c.b16 %v789, %v781
  %v1326 = vpack.c.b16 %v790, %v782
  %v1327 = vpack.c.b16 %v791, %v783
  %v1328 = vpack.c.b16 %v792, %v784
  %v1329 = vpack.c.b16 %v793, %v785
  %v1330 = vpack.c.b16 %v794, %v786
  %v1331 = vpack.c.b16 %v803, %v795
  %v1332 = vpack.c.b16 %v804, %v796
  %v1333 = vpack.c.b16 %v805, %v797
  %v1334 = vpack.c.b16 %v806, %v798
  %v1335 = vpack.c.b16 %v807, %v799
  %v1336 = vpack.c.b16 %v808, %v800
  %v1337 = vpack.c.b16 %v809, %v801
  %v1338 = vpack.c.b16 %v810, %v802
  %v1339 = vpack.c.b16 %v819, %v811
  %v1340 = vpack.c.b16 %v820, %v812
  %v1341 = vpack.c.b16 %v821, %v813
  %v1342 = vpack.c.b16 %v822, %v814
  %v1343 = vpack.c.b16 %v823, %v815
  %v1344 = vpack.c.b16 %v824, %v816
  %v1345 = vpack.c.b16 %v825, %v817
  %v1346 = vpack.c.b16 %v826, %v818
  %v1347 = vpack.c.b16 %v835, %v827
  %v1348 = vpack.c.b16 %v836, %v828
  %v1349 = vpack.c.b16 %v837, %v829
  %v1350 = vpack.c.b16 %v838, %v830
  %v1351 = vpack.c.b16 %v839, %v831
  %v1352 = vpack.c.b16 %v840, %v832
  %v1353 = vpack.c.b16 %v841, %v833
  %v1354 = vpack.c.b16 %v842, %v834
  %v1355 = vpack.c.b16 %v851, %v843
  %v1356 = vpack.c.b16 %v852, %v844
  %v1357 = vpack.c.b16 %v853, %v845
  %v1358 = vpack.c.b16 %v854, %v846
  %v1359 = vpack.c.b16 %v855, %v847
  %v1360 = vpack.c.b16 %v856, %v848
  %v1361 = vpack.c.b16 %v857, %v849
  %v1362 = vpack.c.b16 %v858, %v850
  %v1363 = vpack.c.b16 %v867, %v859
  %v1364 = vpack.c.b16 %v868, %v860
  %v1365 = vpack.c.b16 %v869, %v861
  %v1366 = vpack.c.b16 %v870, %v862
  %v1367 = vpack.c.b16 %v871, %v863
  %v1368 = vpack.c.b16 %v872, %v864
  %v1369 = vpack.c.b16 %v873, %v865
  %v1370 = vpack.c.b16 %v874, %v866
  %v1371 = vpack.c.b16 %v883, %v875
  %v1372 = vpack.c.b16 %v884, %v876
  %v1373 = vpack.c.b16 %v885, %v877
  %v1374 = vpack.c.b16 %v886, %v878
  %v1375 = vpack.c.b16 %v887, %v879
  %v1376 = vpack.c.b16 %v888, %v880
  %v1377 = vpack.c.b16 %v889, %v881
  %v1378 = vpack.c.b16 %v890, %v882
  %v1379 = vpack.c.b16 %v899, %v891
  %v1380 = vpack.c.b16 %v900, %v892
  %v1381 = vpack.c.b16 %v901, %v893
  %v1382 = vpack.c.b16 %v902, %v894
  %v1383 = vpack.c.b16 %v903, %v895
  %v1384 = vpack.c.b16 %v904, %v896
  %v1385 = vpack.c.b16 %v905, %v897
  %v1386 = vpack.c.b16 %v906, %v898
  %v1387 = vpack.c.b16 %v915, %v907
  %v1388 = vpack.c.b16 %v916, %v908
  %v1389 = vpack.c.b16 %v917, %v909
  %v1390 = vpack.c.b16 %v918, %v910
  %v1391 = vpack.c.b16 %v919, %v911
  %v1392 = vpack.c.b16 %v920, %v912
  %v1393 = vpack.c.b16 %v921, %v913
  %v1394 = vpack.c.b16 %v922, %v914
  %v1395 = vpack.c.b16 %v931, %v923
  %v1396 = vpack.c.b16 %v932, %v924
  %v1397 = vpack.c.b16 %v933, %v925
  %v1398 = vpack.c.b16 %v934, %v926
  %v1399 = vpack.c.b16 %v935, %v927
  %v1400 = vpack.c.b16 %v936, %v928
  %v1401 = vpack.c.b16 %v937, %v929
  %v1402 = vpack.c.b16 %v938, %v930
  %v1403 = vpack.c.b16 %v947, %v939
  %v1404 = vpack.c.b16 %v948, %v940
  %v1405 = vpack.c.b16 %v949, %v941
  %v1406 = vpack.c.b16 %v950, %v942
  %v1407 = vpack.c.b16 %v951, %v943
  %v1408 = vpack.c.b16 %v952, %v944
  %v1409 = vpack.c.b16 %v953, %v945
  %v1410 = vpack.c.b16 %v954, %v946
  %v1411 = vpack.c.b16 %v963, %v955
  %v1412 = vpack.c.b16 %v964, %v956
  %v1413 = vpack.c.b16 %v965, %v957
  %v1414 = vpack.c.b16 %v966, %v958
  %v1415 = vpack.c.b16 %v967, %v959
  %v1416 = vpack.c.b16 %v968, %v960
  %v1417 = vpack.c.b16 %v969, %v961
  %v1418 = vpack.c.b16 %v970, %v962
  %v1419 = vpack.c.b16 %v979, %v971
  %v1420 = vpack.c.b16 %v980, %v972
  %v1421 = vpack.c.b16 %v981, %v973
  %v1422 = vpack.c.b16 %v982, %v974
  %v1423 = vpack.c.b16 %v983, %v975
  %v1424 = vpack.c.b16 %v984, %v976
  %v1425 = vpack.c.b16 %v985, %v977
  %v1426 = vpack.c.b16 %v986, %v978
  %v1427 = vpack.c.b16 %v995, %v987
  %v1428 = vpack.c.b16 %v996, %v988
  %v1429 = vpack.c.b16 %v997, %v989
  %v1430 = vpack.c.b16 %v998, %v990
  %v1431 = vpack.c.b16 %v999, %v991
  %v1432 = vpack.c.b16 %v1000, %v992
  %v1433 = vpack.c.b16 %v1001, %v993
  %v1434 = vpack.c.b16 %v1002, %v994
  %v1435 = vpack.c.b16 %v1011, %v1003
  %v1436 = vpack.c.b16 %v1012, %v1004
  %v1437 = vpack.c.b16 %v1013, %v1005
  %v1438 = vpack.c.b16 %v1014, %v1006
  %v1439 = vpack.c.b16 %v1015, %v1007
  %v1440 = vpack.c.b16 %v1016, %v1008
  %v1441 = vpack.c.b16 %v1017, %v1009
  %v1442 = vpack.c.b16 %v1018, %v1010
  %v1443 = vpack.c.b16 %v1027, %v1019
  %v1444 = vpack.c.b16 %v1028, %v1020
  %v1445 = vpack.c.b16 %v1029, %v1021
  %v1446 = vpack.c.b16 %v1030, %v1022
  %v1447 = vpack.c.b16 %v1031, %v1023
  %v1448 = vpack.c.b16 %v1032, %v1024
  %v1449 = vpack.c.b16 %v1033, %v1025
  %v1450 = vpack.c.b16 %v1034, %v1026
  %v1451 = vpack.c.b16 %v1043, %v1035
  %v1452 = vpack.c.b16 %v1044, %v1036
  %v1453 = vpack.c.b16 %v1045, %v1037
  %v1454 = vpack.c.b16 %v1046, %v1038
  %v1455 = vpack.c.b16 %v1047, %v1039
  %v1456 = vpack.c.b16 %v1048, %v1040
  %v1457 = vpack.c.b16 %v1049, %v1041
  %v1458 = vpack.c.b16 %v1050, %v1042
  %v1459 = vpack.c.b16 %v1059, %v1051
  %v1460 = vpack.c.b16 %v1060, %v1052
  %v1461 = vpack.c.b16 %v1061, %v1053
  %v1462 = vpack.c.b16 %v1062, %v1054
  %v1463 = vpack.c.b16 %v1063, %v1055
  %v1464 = vpack.c.b16 %v1064, %v1056
  %v1465 = vpack.c.b16 %v1065, %v1057
  %v1466 = vpack.c.b16 %v1066, %v1058
  %v1467 = vpack.c.b16 %v1075, %v1067
  %v1468 = vpack.c.b16 %v1076, %v1068
  %v1469 = vpack.c.b16 %v1077, %v1069
  %v1470 = vpack.c.b16 %v1078, %v1070
  %v1471 = vpack.c.b16 %v1079, %v1071
  %v1472 = vpack.c.b16 %v1080, %v1072
  %v1473 = vpack.c.b16 %v1081, %v1073
  %v1474 = vpack.c.b16 %v1082, %v1074
  %v1475 = vpack.c.b16 %v1091, %v1083
  %v1476 = vpack.c.b16 %v1092, %v1084
  %v1477 = vpack.c.b16 %v1093, %v1085
  %v1478 = vpack.c.b16 %v1094, %v1086
  %v1479 = vpack.c.b16 %v1095, %v1087
  %v1480 = vpack.c.b16 %v1096, %v1088
  %v1481 = vpack.c.b16 %v1097, %v1089
  %v1482 = vpack.c.b16 %v1098, %v1090
  %v1483 = vpack.c.b16 %v1107, %v1099
  %v1484 = vpack.c.b16 %v1108, %v1100
  %v1485 = vpack.c.b16 %v1109, %v1101
  %v1486 = vpack.c.b16 %v1110, %v1102
  %v1487 = vpack.c.b16 %v1111, %v1103
  %v1488 = vpack.c.b16 %v1112, %v1104
  %v1489 = vpack.c.b16 %v1113, %v1105
  %v1490 = vpack.c.b16 %v1114, %v1106
  %v1491 = vpack.c.b16 %v1123, %v1115
  %v1492 = vpack.c.b16 %v1124, %v1116
  %v1493 = vpack.c.b16 %v1125, %v1117
  %v1494 = vpack.c.b16 %v1126, %v1118
  %v1495 = vpack.c.b16 %v1127, %v1119
  %v1496 = vpack.c.b16 %v1128, %v1120
  %v1497 = vpack.c.b16 %v1129, %v1121
  %v1498 = vpack.c.b16 %v1130, %v1122
  %v1499 = vpack.c.b16 %v1139, %v1131
  %v1500 = vpack.c.b16 %v1140, %v1132
  %v1501 = vpack.c.b16 %v1141, %v1133
  %v1502 = vpack.c.b16 %v1142, %v1134
  %v1503 = vpack.c.b16 %v1143, %v1135
  %v1504 = vpack.c.b16 %v1144, %v1136
  %v1505 = vpack.c.b16 %v1145, %v1137
  %v1506 = vpack.c.b16 %v1146, %v1138
  %v1507 = vpack.c.b16 %v1155, %v1147
  %v1508 = vpack.c.b16 %v1156, %v1148
  %v1509 = vpack.c.b16 %v1157, %v1149
  %v1510 = vpack.c.b16 %v1158, %v1150
  %v1511 = vpack.c.b16 %v1159, %v1151
  %v1512 = vpack.c.b16 %v1160, %v1152
  %v1513 = vpack.c.b16 %v1161, %v1153
  %v1514 = vpack.c.b16 %v1162, %v1154
  %v1515 = vpack.c.b16 %v1171, %v1163
  %v1516 = vpack.c.b16 %v1172, %v1164
  %v1517 = vpack.c.b16 %v1173, %v1165
  %v1518 = vpack.c.b16 %v1174, %v1166
  %v1519 = vpack.c.b16 %v1175, %v1167
  %v1520 = vpack.c.b16 %v1176, %v1168
  %v1521 = vpack.c.b16 %v1177, %v1169
  %v1522 = vpack.c.b16 %v1178, %v1170
  %v1523 = vpack.c.b16 %v1187, %v1179
  %v1524 = vpack.c.b16 %v1188, %v1180
  %v1525 = vpack.c.b16 %v1189, %v1181
  %v1526 = vpack.c.b16 %v1190, %v1182
  %v1527 = vpack.c.b16 %v1191, %v1183
  %v1528 = vpack.c.b16 %v1192, %v1184
  %v1529 = vpack.c.b16 %v1193, %v1185
  %v1530 = vpack.c.b16 %v1194, %v1186
  %v1531 = vpack.c.b16 %v1203, %v1195
  %v1532 = vpack.c.b16 %v1204, %v1196
  %v1533 = vpack.c.b16 %v1205, %v1197
  %v1534 = vpack.c.b16 %v1206, %v1198
  %v1535 = vpack.c.b16 %v1207, %v1199
  %v1536 = vpack.c.b16 %v1208, %v1200
  %v1537 = vpack.c.b16 %v1209, %v1201
  %v1538 = vpack.c.b16 %v1210, %v1202
  %v1539 = vpack.c.b16 %v1219, %v1211
  %v1540 = vpack.c.b16 %v1220, %v1212
  %v1541 = vpack.c.b16 %v1221, %v1213
  %v1542 = vpack.c.b16 %v1222, %v1214
  %v1543 = vpack.c.b16 %v1223, %v1215
  %v1544 = vpack.c.b16 %v1224, %v1216
  %v1545 = vpack.c.b16 %v1225, %v1217
  %v1546 = vpack.c.b16 %v1226, %v1218
  %v1547 = vpack.c.b16 %v1235, %v1227
  %v1548 = vpack.c.b16 %v1236, %v1228
  %v1549 = vpack.c.b16 %v1237, %v1229
  %v1550 = vpack.c.b16 %v1238, %v1230
  %v1551 = vpack.c.b16 %v1239, %v1231
  %v1552 = vpack.c.b16 %v1240, %v1232
  %v1553 = vpack.c.b16 %v1241, %v1233
  %v1554 = vpack.c.b16 %v1242, %v1234
  %v1555 = vpack.c.b16 %v1251, %v1243
  %v1556 = vpack.c.b16 %v1252, %v1244
  %v1557 = vpack.c.b16 %v1253, %v1245
  %v1558 = vpack.c.b16 %v1254, %v1246
  %v1559 = vpack.c.b16 %v1255, %v1247
  %v1560 = vpack.c.b16 %v1256, %v1248
  %v1561 = vpack.c.b16 %v1257, %v1249
  %v1562 = vpack.c.b16 %v1258, %v1250
  %v1563 = vpack.c.b16 %v1267, %v1259
  %v1564 = vpack.c.b16 %v1268, %v1260
  %v1565 = vpack.c.b16 %v1269, %v1261
  %v1566 = vpack.c.b16 %v1270, %v1262
  %v1567 = vpack.c.b16 %v1271, %v1263
  %v1568 = vpack.c.b16 %v1272, %v1264
  %v1569 = vpack.c.b16 %v1273, %v1265
  %v1570 = vpack.c.b16 %v1274, %v1266
  %v1571 = vpack.c.b16 %v1283, %v1275
  %v1572 = vpack.c.b16 %v1284, %v1276
  %v1573 = vpack.c.b16 %v1285, %v1277
  %v1574 = vpack.c.b16 %v1286, %v1278
  %v1575 = vpack.c.b16 %v1287, %v1279
  %v1576 = vpack.c.b16 %v1288, %v1280
  %v1577 = vpack.c.b16 %v1289, %v1281
  %v1578 = vpack.c.b16 %v1290, %v1282
  %vm1867 = vcmask 523264
  %v1869 = vsel %vm1867, %v404, 0
  %v1872 = vsel %vm1867, %v409, 0
  %v1875 = vsel %vm1867, %v414, 0
  %1877 = vmatprep.subr.bf16.mxu0 %v1292
  %1878 = vmatpush1.bf16.msra.mxu0 %v1291
  %1879 = vmatprep.subr.bf16.mxu0 %v1300
  %1880 = vmatpush1.bf16.msra.mxu0 %v1299
  %1881 = vmatprep.subr.bf16.mxu0 %v1308
  %1882 = vmatpush1.bf16.msra.mxu0 %v1307
  %1883 = vmatprep.subr.bf16.mxu0 %v1316
  %1884 = vmatpush1.bf16.msra.mxu0 %v1315
  %1885 = vmatprep.subr.bf16.mxu0 %v1324
  %1886 = vmatpush1.bf16.msra.mxu0 %v1323
  %1887 = vmatprep.subr.bf16.mxu0 %v1332
  %1888 = vmatpush1.bf16.msra.mxu0 %v1331
  %1889 = vmatprep.subr.bf16.mxu0 %v1340
  %1890 = vmatpush1.bf16.msra.mxu0 %v1339
  %1891 = vmatprep.subr.bf16.mxu0 %v1348
  %1892 = vmatpush1.bf16.msra.mxu0 %v1347
  %1893 = vmatprep.subr.bf16.mxu0 %v1356
  %1894 = vmatpush1.bf16.msra.mxu0 %v1355
  %1895 = vmatprep.subr.bf16.mxu0 %v1364
  %1896 = vmatpush1.bf16.msra.mxu0 %v1363
  %1897 = vmatprep.subr.bf16.mxu0 %v1372
  %1898 = vmatpush1.bf16.msra.mxu0 %v1371
  %1899 = vmatprep.subr.bf16.mxu0 %v1380
  %1900 = vmatpush1.bf16.msra.mxu0 %v1379
  %1901 = vmatprep.subr.bf16.mxu0 %v1388
  %1902 = vmatpush1.bf16.msra.mxu0 %v1387
  %1903 = vmatprep.subr.bf16.mxu0 %v1396
  %1904 = vmatpush1.bf16.msra.mxu0 %v1395
  %1905 = vmatprep.subr.bf16.mxu0 %v1404
  %1906 = vmatpush1.bf16.msra.mxu0 %v1403
  %1907 = vmatprep.subr.bf16.mxu0 %v1412
  %1908 = vmatpush1.bf16.msra.mxu0 %v1411
  %1909 = vmatprep.mubr.bf16.mxu0 %v401
  %1910 = vmatmul.mubr.bf16.gmra.mrb[0].mxu0 %v400
  %v1911 = vpop.f32.mrb[0].mxu0
  %v1912 = vadd.f32 %v323, %v1911
  %v1913 = vpop.f32.mrb[0].mxu0
  %v1914 = vadd.f32 %v327, %v1913
  %v1915 = vpop.f32.mrb[0].mxu0
  %v1916 = vadd.f32 %v323, %v1915
  %v1917 = vpop.f32.mrb[0].mxu0
  %v1918 = vadd.f32 %v327, %v1917
  %1919 = vmatprep.mubr.bf16.mxu0 %v406
  %1920 = vmatmul.mubr.bf16.gmra.mrb[0].mxu0 %v405
  %v1921 = vpop.f32.mrb[0].mxu0
  %v1922 = vadd.f32 %v323, %v1921
  %v1923 = vpop.f32.mrb[0].mxu0
  %v1924 = vadd.f32 %v327, %v1923
  %v1925 = vpop.f32.mrb[0].mxu0
  %v1926 = vadd.f32 %v323, %v1925
  %v1927 = vpop.f32.mrb[0].mxu0
  %v1928 = vadd.f32 %v327, %v1927
  %1929 = vmatprep.mubr.bf16.mxu0 %v411
  %1930 = vmatmul.mubr.bf16.gmra.mrb[0].mxu0 %v410
  %v1931 = vpop.f32.mrb[0].mxu0
  %v1932 = vadd.f32 %v323, %v1931
  %v1933 = vpop.f32.mrb[0].mxu0
  %v1934 = vadd.f32 %v327, %v1933
  %v1935 = vpop.f32.mrb[0].mxu0
  %v1936 = vpop.f32.mrb[0].mxu0
  %1937 = vdwg.mxu0
  %1938 = vmatprep.subr.bf16.mxu0 %v1420
  %1939 = vmatpush1.bf16.msra.mxu0 %v1419
  %1940 = vmatprep.subr.bf16.mxu0 %v1428
  %1941 = vmatpush1.bf16.msra.mxu0 %v1427
  %1942 = vmatprep.subr.bf16.mxu0 %v1436
  %1943 = vmatpush1.bf16.msra.mxu0 %v1435
  %1944 = vmatprep.subr.bf16.mxu0 %v1444
  %1945 = vmatpush1.bf16.msra.mxu0 %v1443
  %1946 = vmatprep.subr.bf16.mxu0 %v1452
  %1947 = vmatpush1.bf16.msra.mxu0 %v1451
  %1948 = vmatprep.subr.bf16.mxu0 %v1460
  %1949 = vmatpush1.bf16.msra.mxu0 %v1459
  %1950 = vmatprep.subr.bf16.mxu0 %v1468
  %1951 = vmatpush1.bf16.msra.mxu0 %v1467
  %1952 = vmatprep.subr.bf16.mxu0 %v1476
  %1953 = vmatpush1.bf16.msra.mxu0 %v1475
  %1954 = vmatprep.subr.bf16.mxu0 %v1484
  %1955 = vmatpush1.bf16.msra.mxu0 %v1483
  %1956 = vmatprep.subr.bf16.mxu0 %v1492
  %1957 = vmatpush1.bf16.msra.mxu0 %v1491
  %1958 = vmatprep.subr.bf16.mxu0 %v1500
  %1959 = vmatpush1.bf16.msra.mxu0 %v1499
  %1960 = vmatprep.subr.bf16.mxu0 %v1508
  %1961 = vmatpush1.bf16.msra.mxu0 %v1507
  %1962 = vmatprep.subr.bf16.mxu0 %v1516
  %1963 = vmatpush1.bf16.msra.mxu0 %v1515
  %1964 = vmatprep.subr.bf16.mxu0 %v1524
  %1965 = vmatpush1.bf16.msra.mxu0 %v1523
  %1966 = vmatprep.subr.bf16.mxu0 %v1532
  %1967 = vmatpush1.bf16.msra.mxu0 %v1531
  %1968 = vmatprep.subr.bf16.mxu0 %v1540
  %1969 = vmatpush1.bf16.msra.mxu0 %v1539
  %1970 = vmatprep.mubr.bf16.mxu0 %v403
  %1971 = vmatmul.mubr.bf16.gmra.mrb[0].mxu0 %v402
  %v1972 = vpop.f32.mrb[0].mxu0
  %v1973 = vadd.f32 %v1912, %v1972
  %v1974 = vpop.f32.mrb[0].mxu0
  %v1975 = vadd.f32 %v1914, %v1974
  %v1976 = vpop.f32.mrb[0].mxu0
  %v1977 = vadd.f32 %v1916, %v1976
  %v1978 = vpop.f32.mrb[0].mxu0
  %v1979 = vadd.f32 %v1918, %v1978
  %1980 = vmatprep.mubr.bf16.mxu0 %v408
  %1981 = vmatmul.mubr.bf16.gmra.mrb[0].mxu0 %v407
  %v1982 = vpop.f32.mrb[0].mxu0
  %v1983 = vadd.f32 %v1922, %v1982
  %v1984 = vpop.f32.mrb[0].mxu0
  %v1985 = vadd.f32 %v1924, %v1984
  %v1986 = vpop.f32.mrb[0].mxu0
  %v1987 = vadd.f32 %v1926, %v1986
  %v1988 = vpop.f32.mrb[0].mxu0
  %v1989 = vadd.f32 %v1928, %v1988
  %1990 = vmatprep.mubr.bf16.mxu0 %v413
  %1991 = vmatmul.mubr.bf16.gmra.mrb[0].mxu0 %v412
  %v1992 = vpop.f32.mrb[0].mxu0
  %v1993 = vadd.f32 %v1932, %v1992
  %v1994 = vpop.f32.mrb[0].mxu0
  %v1995 = vadd.f32 %v1934, %v1994
  %v1996 = vpop.f32.mrb[0].mxu0
  %v1997 = vpop.f32.mrb[0].mxu0
  %1998 = vdwg.mxu0
  %1999 = vmatprep.subr.bf16.mxu0 %v1548
  %2000 = vmatpush1.bf16.msra.mxu0 %v1547
  %2001 = vmatprep.subr.bf16.mxu0 %v1556
  %2002 = vmatpush1.bf16.msra.mxu0 %v1555
  %2003 = vmatprep.subr.bf16.mxu0 %v1564
  %2004 = vmatpush1.bf16.msra.mxu0 %v1563
  %2005 = vmatprep.subr.bf16.mxu0 %v1572
  %2006 = vmatpush1.bf16.msra.mxu0 %v1571
  %2007 = vmatprep.subr.bf16.mxu0 0
  %2008 = vmatpush1.bf16.msra.mxu0 0
  %2009 = vmatprep.subr.bf16.mxu0 0
  %2010 = vmatpush1.bf16.msra.mxu0 0
  %2011 = vmatprep.subr.bf16.mxu0 0
  %2012 = vmatpush1.bf16.msra.mxu0 0
  %2013 = vmatprep.subr.bf16.mxu0 0
  %2014 = vmatpush1.bf16.msra.mxu0 0
  %2015 = vmatprep.subr.bf16.mxu0 0
  %2016 = vmatpush1.bf16.msra.mxu0 0
  %2017 = vmatprep.subr.bf16.mxu0 0
  %2018 = vmatpush1.bf16.msra.mxu0 0
  %2019 = vmatprep.subr.bf16.mxu0 0
  %2020 = vmatpush1.bf16.msra.mxu0 0
  %2021 = vmatprep.subr.bf16.mxu0 0
  %2022 = vmatpush1.bf16.msra.mxu0 0
  %2023 = vmatprep.subr.bf16.mxu0 0
  %2024 = vmatpush1.bf16.msra.mxu0 0
  %2025 = vmatprep.subr.bf16.mxu0 0
  %2026 = vmatpush1.bf16.msra.mxu0 0
  %2027 = vmatprep.subr.bf16.mxu0 0
  %2028 = vmatpush1.bf16.msra.mxu0 0
  %2029 = vmatprep.subr.bf16.mxu0 0
  %2030 = vmatpush1.bf16.msra.mxu0 0
  %2031 = vmatprep.mubr.bf16.mxu0 0
  %2032 = vmatmul.mubr.bf16.gmra.mrb[0].mxu0 %v1869
  %v2033 = vpop.f32.mrb[0].mxu0
  %v2034 = vadd.f32 %v1973, %v2033
  %v2035 = vpop.f32.mrb[0].mxu0
  %v2036 = vadd.f32 %v1975, %v2035
  %v2037 = vpop.f32.mrb[0].mxu0
  %v2038 = vadd.f32 %v1977, %v2037
  %v2039 = vpop.f32.mrb[0].mxu0
  %v2040 = vadd.f32 %v1979, %v2039
  %2041 = vmatprep.mubr.bf16.mxu0 0
  %2042 = vmatmul.mubr.bf16.gmra.mrb[0].mxu0 %v1872
  %v2043 = vpop.f32.mrb[0].mxu0
  %v2044 = vadd.f32 %v1983, %v2043
  %v2045 = vpop.f32.mrb[0].mxu0
  %v2046 = vadd.f32 %v1985, %v2045
  %v2047 = vpop.f32.mrb[0].mxu0
  %v2048 = vadd.f32 %v1987, %v2047
  %v2049 = vpop.f32.mrb[0].mxu0
  %v2050 = vadd.f32 %v1989, %v2049
  %2051 = vmatprep.mubr.bf16.mxu0 0
  %2052 = vmatmul.mubr.bf16.gmra.mrb[0].mxu0 %v1875
  %v2053 = vpop.f32.mrb[0].mxu0
  %v2054 = vadd.f32 %v1993, %v2053
  %v2055 = vpop.f32.mrb[0].mxu0
  %v2056 = vadd.f32 %v1995, %v2055
  %v2057 = vpop.f32.mrb[0].mxu0
  %v2058 = vpop.f32.mrb[0].mxu0
  %2059 = vdwg.mxu0
  %2060 = vmatprep.subr.bf16.mxu0 %v1294
  %2061 = vmatpush1.bf16.msra.mxu0 %v1293
  %2062 = vmatprep.subr.bf16.mxu0 %v1302
  %2063 = vmatpush1.bf16.msra.mxu0 %v1301
  %2064 = vmatprep.subr.bf16.mxu0 %v1310
  %2065 = vmatpush1.bf16.msra.mxu0 %v1309
  %2066 = vmatprep.subr.bf16.mxu0 %v1318
  %2067 = vmatpush1.bf16.msra.mxu0 %v1317
  %2068 = vmatprep.subr.bf16.mxu0 %v1326
  %2069 = vmatpush1.bf16.msra.mxu0 %v1325
  %2070 = vmatprep.subr.bf16.mxu0 %v1334
  %2071 = vmatpush1.bf16.msra.mxu0 %v1333
  %2072 = vmatprep.subr.bf16.mxu0 %v1342
  %2073 = vmatpush1.bf16.msra.mxu0 %v1341
  %2074 = vmatprep.subr.bf16.mxu0 %v1350
  %2075 = vmatpush1.bf16.msra.mxu0 %v1349
  %2076 = vmatprep.subr.bf16.mxu0 %v1358
  %2077 = vmatpush1.bf16.msra.mxu0 %v1357
  %2078 = vmatprep.subr.bf16.mxu0 %v1366
  %2079 = vmatpush1.bf16.msra.mxu0 %v1365
  %2080 = vmatprep.subr.bf16.mxu0 %v1374
  %2081 = vmatpush1.bf16.msra.mxu0 %v1373
  %2082 = vmatprep.subr.bf16.mxu0 %v1382
  %2083 = vmatpush1.bf16.msra.mxu0 %v1381
  %2084 = vmatprep.subr.bf16.mxu0 %v1390
  %2085 = vmatpush1.bf16.msra.mxu0 %v1389
  %2086 = vmatprep.subr.bf16.mxu0 %v1398
  %2087 = vmatpush1.bf16.msra.mxu0 %v1397
  %2088 = vmatprep.subr.bf16.mxu0 %v1406
  %2089 = vmatpush1.bf16.msra.mxu0 %v1405
  %2090 = vmatprep.subr.bf16.mxu0 %v1414
  %2091 = vmatpush1.bf16.msra.mxu0 %v1413
  %2092 = vmatprep.mubr.bf16.mxu0 %v401
  %2093 = vmatmul.mubr.bf16.gmra.mrb[0].mxu0 %v400
  %v2094 = vpop.f32.mrb[0].mxu0
  %v2095 = vadd.f32 %v331, %v2094
  %v2096 = vpop.f32.mrb[0].mxu0
  %v2097 = vadd.f32 %v335, %v2096
  %v2098 = vpop.f32.mrb[0].mxu0
  %v2099 = vadd.f32 %v331, %v2098
  %v2100 = vpop.f32.mrb[0].mxu0
  %v2101 = vadd.f32 %v335, %v2100
  %2102 = vmatprep.mubr.bf16.mxu0 %v406
  %2103 = vmatmul.mubr.bf16.gmra.mrb[0].mxu0 %v405
  %v2104 = vpop.f32.mrb[0].mxu0
  %v2105 = vadd.f32 %v331, %v2104
  %v2106 = vpop.f32.mrb[0].mxu0
  %v2107 = vadd.f32 %v335, %v2106
  %v2108 = vpop.f32.mrb[0].mxu0
  %v2109 = vadd.f32 %v331, %v2108
  %v2110 = vpop.f32.mrb[0].mxu0
  %v2111 = vadd.f32 %v335, %v2110
  %2112 = vmatprep.mubr.bf16.mxu0 %v411
  %2113 = vmatmul.mubr.bf16.gmra.mrb[0].mxu0 %v410
  %v2114 = vpop.f32.mrb[0].mxu0
  %v2115 = vadd.f32 %v331, %v2114
  %v2116 = vpop.f32.mrb[0].mxu0
  %v2117 = vadd.f32 %v335, %v2116
  %v2118 = vpop.f32.mrb[0].mxu0
  %v2119 = vpop.f32.mrb[0].mxu0
  %2120 = vdwg.mxu0
  %2121 = vmatprep.subr.bf16.mxu0 %v1422
  %2122 = vmatpush1.bf16.msra.mxu0 %v1421
  %2123 = vmatprep.subr.bf16.mxu0 %v1430
  %2124 = vmatpush1.bf16.msra.mxu0 %v1429
  %2125 = vmatprep.subr.bf16.mxu0 %v1438
  %2126 = vmatpush1.bf16.msra.mxu0 %v1437
  %2127 = vmatprep.subr.bf16.mxu0 %v1446
  %2128 = vmatpush1.bf16.msra.mxu0 %v1445
  %2129 = vmatprep.subr.bf16.mxu0 %v1454
  %2130 = vmatpush1.bf16.msra.mxu0 %v1453
  %2131 = vmatprep.subr.bf16.mxu0 %v1462
  %2132 = vmatpush1.bf16.msra.mxu0 %v1461
  %2133 = vmatprep.subr.bf16.mxu0 %v1470
  %2134 = vmatpush1.bf16.msra.mxu0 %v1469
  %2135 = vmatprep.subr.bf16.mxu0 %v1478
  %2136 = vmatpush1.bf16.msra.mxu0 %v1477
  %2137 = vmatprep.subr.bf16.mxu0 %v1486
  %2138 = vmatpush1.bf16.msra.mxu0 %v1485
  %2139 = vmatprep.subr.bf16.mxu0 %v1494
  %2140 = vmatpush1.bf16.msra.mxu0 %v1493
  %2141 = vmatprep.subr.bf16.mxu0 %v1502
  %2142 = vmatpush1.bf16.msra.mxu0 %v1501
  %2143 = vmatprep.subr.bf16.mxu0 %v1510
  %2144 = vmatpush1.bf16.msra.mxu0 %v1509
  %2145 = vmatprep.subr.bf16.mxu0 %v1518
  %2146 = vmatpush1.bf16.msra.mxu0 %v1517
  %2147 = vmatprep.subr.bf16.mxu0 %v1526
  %2148 = vmatpush1.bf16.msra.mxu0 %v1525
  %2149 = vmatprep.subr.bf16.mxu0 %v1534
  %2150 = vmatpush1.bf16.msra.mxu0 %v1533
  %2151 = vmatprep.subr.bf16.mxu0 %v1542
  %2152 = vmatpush1.bf16.msra.mxu0 %v1541
  %2153 = vmatprep.mubr.bf16.mxu0 %v403
  %2154 = vmatmul.mubr.bf16.gmra.mrb[0].mxu0 %v402
  %v2155 = vpop.f32.mrb[0].mxu0
  %v2156 = vadd.f32 %v2095, %v2155
  %v2157 = vpop.f32.mrb[0].mxu0
  %v2158 = vadd.f32 %v2097, %v2157
  %v2159 = vpop.f32.mrb[0].mxu0
  %v2160 = vadd.f32 %v2099, %v2159
  %v2161 = vpop.f32.mrb[0].mxu0
  %v2162 = vadd.f32 %v2101, %v2161
  %2163 = vmatprep.mubr.bf16.mxu0 %v408
  %2164 = vmatmul.mubr.bf16.gmra.mrb[0].mxu0 %v407
  %v2165 = vpop.f32.mrb[0].mxu0
  %v2166 = vadd.f32 %v2105, %v2165
  %v2167 = vpop.f32.mrb[0].mxu0
  %v2168 = vadd.f32 %v2107, %v2167
  %v2169 = vpop.f32.mrb[0].mxu0
  %v2170 = vadd.f32 %v2109, %v2169
  %v2171 = vpop.f32.mrb[0].mxu0
  %v2172 = vadd.f32 %v2111, %v2171
  %2173 = vmatprep.mubr.bf16.mxu0 %v413
  %2174 = vmatmul.mubr.bf16.gmra.mrb[0].mxu0 %v412
  %v2175 = vpop.f32.mrb[0].mxu0
  %v2176 = vadd.f32 %v2115, %v2175
  %v2177 = vpop.f32.mrb[0].mxu0
  %v2178 = vadd.f32 %v2117, %v2177
  %v2179 = vpop.f32.mrb[0].mxu0
  %v2180 = vpop.f32.mrb[0].mxu0
  %2181 = vdwg.mxu0
  %2182 = vmatprep.subr.bf16.mxu0 %v1550
  %2183 = vmatpush1.bf16.msra.mxu0 %v1549
  %2184 = vmatprep.subr.bf16.mxu0 %v1558
  %2185 = vmatpush1.bf16.msra.mxu0 %v1557
  %2186 = vmatprep.subr.bf16.mxu0 %v1566
  %2187 = vmatpush1.bf16.msra.mxu0 %v1565
  %2188 = vmatprep.subr.bf16.mxu0 %v1574
  %2189 = vmatpush1.bf16.msra.mxu0 %v1573
  %2190 = vmatprep.subr.bf16.mxu0 0
  %2191 = vmatpush1.bf16.msra.mxu0 0
  %2192 = vmatprep.subr.bf16.mxu0 0
  %2193 = vmatpush1.bf16.msra.mxu0 0
  %2194 = vmatprep.subr.bf16.mxu0 0
  %2195 = vmatpush1.bf16.msra.mxu0 0
  %2196 = vmatprep.subr.bf16.mxu0 0
  %2197 = vmatpush1.bf16.msra.mxu0 0
  %2198 = vmatprep.subr.bf16.mxu0 0
  %2199 = vmatpush1.bf16.msra.mxu0 0
  %2200 = vmatprep.subr.bf16.mxu0 0
  %2201 = vmatpush1.bf16.msra.mxu0 0
  %2202 = vmatprep.subr.bf16.mxu0 0
  %2203 = vmatpush1.bf16.msra.mxu0 0
  %2204 = vmatprep.subr.bf16.mxu0 0
  %2205 = vmatpush1.bf16.msra.mxu0 0
  %2206 = vmatprep.subr.bf16.mxu0 0
  %2207 = vmatpush1.bf16.msra.mxu0 0
  %2208 = vmatprep.subr.bf16.mxu0 0
  %2209 = vmatpush1.bf16.msra.mxu0 0
  %2210 = vmatprep.subr.bf16.mxu0 0
  %2211 = vmatpush1.bf16.msra.mxu0 0
  %2212 = vmatprep.subr.bf16.mxu0 0
  %2213 = vmatpush1.bf16.msra.mxu0 0
  %2214 = vmatprep.mubr.bf16.mxu0 0
  %2215 = vmatmul.mubr.bf16.gmra.mrb[0].mxu0 %v1869
  %v2216 = vpop.f32.mrb[0].mxu0
  %v2217 = vadd.f32 %v2156, %v2216
  %v2218 = vpop.f32.mrb[0].mxu0
  %v2219 = vadd.f32 %v2158, %v2218
  %v2220 = vpop.f32.mrb[0].mxu0
  %v2221 = vadd.f32 %v2160, %v2220
  %v2222 = vpop.f32.mrb[0].mxu0
  %v2223 = vadd.f32 %v2162, %v2222
  %2224 = vmatprep.mubr.bf16.mxu0 0
  %2225 = vmatmul.mubr.bf16.gmra.mrb[0].mxu0 %v1872
  %v2226 = vpop.f32.mrb[0].mxu0
  %v2227 = vadd.f32 %v2166, %v2226
  %v2228 = vpop.f32.mrb[0].mxu0
  %v2229 = vadd.f32 %v2168, %v2228
  %v2230 = vpop.f32.mrb[0].mxu0
  %v2231 = vadd.f32 %v2170, %v2230
  %v2232 = vpop.f32.mrb[0].mxu0
  %v2233 = vadd.f32 %v2172, %v2232
  %2234 = vmatprep.mubr.bf16.mxu0 0
  %2235 = vmatmul.mubr.bf16.gmra.mrb[0].mxu0 %v1875
  %v2236 = vpop.f32.mrb[0].mxu0
  %v2237 = vadd.f32 %v2176, %v2236
  %v2238 = vpop.f32.mrb[0].mxu0
  %v2239 = vadd.f32 %v2178, %v2238
  %v2240 = vpop.f32.mrb[0].mxu0
  %v2241 = vpop.f32.mrb[0].mxu0
  %2242 = vdwg.mxu0
  %2243 = vmatprep.subr.bf16.mxu0 %v1296
  %2244 = vmatpush1.bf16.msra.mxu0 %v1295
  %2245 = vmatprep.subr.bf16.mxu0 %v1304
  %2246 = vmatpush1.bf16.msra.mxu0 %v1303
  %2247 = vmatprep.subr.bf16.mxu0 %v1312
  %2248 = vmatpush1.bf16.msra.mxu0 %v1311
  %2249 = vmatprep.subr.bf16.mxu0 %v1320
  %2250 = vmatpush1.bf16.msra.mxu0 %v1319
  %2251 = vmatprep.subr.bf16.mxu0 %v1328
  %2252 = vmatpush1.bf16.msra.mxu0 %v1327
  %2253 = vmatprep.subr.bf16.mxu0 %v1336
  %2254 = vmatpush1.bf16.msra.mxu0 %v1335
  %2255 = vmatprep.subr.bf16.mxu0 %v1344
  %2256 = vmatpush1.bf16.msra.mxu0 %v1343
  %2257 = vmatprep.subr.bf16.mxu0 %v1352
  %2258 = vmatpush1.bf16.msra.mxu0 %v1351
  %2259 = vmatprep.subr.bf16.mxu0 %v1360
  %2260 = vmatpush1.bf16.msra.mxu0 %v1359
  %2261 = vmatprep.subr.bf16.mxu0 %v1368
  %2262 = vmatpush1.bf16.msra.mxu0 %v1367
  %2263 = vmatprep.subr.bf16.mxu0 %v1376
  %2264 = vmatpush1.bf16.msra.mxu0 %v1375
  %2265 = vmatprep.subr.bf16.mxu0 %v1384
  %2266 = vmatpush1.bf16.msra.mxu0 %v1383
  %2267 = vmatprep.subr.bf16.mxu0 %v1392
  %2268 = vmatpush1.bf16.msra.mxu0 %v1391
  %2269 = vmatprep.subr.bf16.mxu0 %v1400
  %2270 = vmatpush1.bf16.msra.mxu0 %v1399
  %2271 = vmatprep.subr.bf16.mxu0 %v1408
  %2272 = vmatpush1.bf16.msra.mxu0 %v1407
  %2273 = vmatprep.subr.bf16.mxu0 %v1416
  %2274 = vmatpush1.bf16.msra.mxu0 %v1415
  %2275 = vmatprep.mubr.bf16.mxu0 %v401
  %2276 = vmatmul.mubr.bf16.gmra.mrb[0].mxu0 %v400
  %v2277 = vpop.f32.mrb[0].mxu0
  %v2278 = vadd.f32 %v339, %v2277
  %v2279 = vpop.f32.mrb[0].mxu0
  %v2280 = vadd.f32 %v343, %v2279
  %v2281 = vpop.f32.mrb[0].mxu0
  %v2282 = vadd.f32 %v339, %v2281
  %v2283 = vpop.f32.mrb[0].mxu0
  %v2284 = vadd.f32 %v343, %v2283
  %2285 = vmatprep.mubr.bf16.mxu0 %v406
  %2286 = vmatmul.mubr.bf16.gmra.mrb[0].mxu0 %v405
  %v2287 = vpop.f32.mrb[0].mxu0
  %v2288 = vadd.f32 %v339, %v2287
  %v2289 = vpop.f32.mrb[0].mxu0
  %v2290 = vadd.f32 %v343, %v2289
  %v2291 = vpop.f32.mrb[0].mxu0
  %v2292 = vadd.f32 %v339, %v2291
  %v2293 = vpop.f32.mrb[0].mxu0
  %v2294 = vadd.f32 %v343, %v2293
  %2295 = vmatprep.mubr.bf16.mxu0 %v411
  %2296 = vmatmul.mubr.bf16.gmra.mrb[0].mxu0 %v410
  %v2297 = vpop.f32.mrb[0].mxu0
  %v2298 = vadd.f32 %v339, %v2297
  %v2299 = vpop.f32.mrb[0].mxu0
  %v2300 = vadd.f32 %v343, %v2299
  %v2301 = vpop.f32.mrb[0].mxu0
  %v2302 = vpop.f32.mrb[0].mxu0
  %2303 = vdwg.mxu0
  %2304 = vmatprep.subr.bf16.mxu0 %v1424
  %2305 = vmatpush1.bf16.msra.mxu0 %v1423
  %2306 = vmatprep.subr.bf16.mxu0 %v1432
  %2307 = vmatpush1.bf16.msra.mxu0 %v1431
  %2308 = vmatprep.subr.bf16.mxu0 %v1440
  %2309 = vmatpush1.bf16.msra.mxu0 %v1439
  %2310 = vmatprep.subr.bf16.mxu0 %v1448
  %2311 = vmatpush1.bf16.msra.mxu0 %v1447
  %2312 = vmatprep.subr.bf16.mxu0 %v1456
  %2313 = vmatpush1.bf16.msra.mxu0 %v1455
  %2314 = vmatprep.subr.bf16.mxu0 %v1464
  %2315 = vmatpush1.bf16.msra.mxu0 %v1463
  %2316 = vmatprep.subr.bf16.mxu0 %v1472
  %2317 = vmatpush1.bf16.msra.mxu0 %v1471
  %2318 = vmatprep.subr.bf16.mxu0 %v1480
  %2319 = vmatpush1.bf16.msra.mxu0 %v1479
  %2320 = vmatprep.subr.bf16.mxu0 %v1488
  %2321 = vmatpush1.bf16.msra.mxu0 %v1487
  %2322 = vmatprep.subr.bf16.mxu0 %v1496
  %2323 = vmatpush1.bf16.msra.mxu0 %v1495
  %2324 = vmatprep.subr.bf16.mxu0 %v1504
  %2325 = vmatpush1.bf16.msra.mxu0 %v1503
  %2326 = vmatprep.subr.bf16.mxu0 %v1512
  %2327 = vmatpush1.bf16.msra.mxu0 %v1511
  %2328 = vmatprep.subr.bf16.mxu0 %v1520
  %2329 = vmatpush1.bf16.msra.mxu0 %v1519
  %2330 = vmatprep.subr.bf16.mxu0 %v1528
  %2331 = vmatpush1.bf16.msra.mxu0 %v1527
  %2332 = vmatprep.subr.bf16.mxu0 %v1536
  %2333 = vmatpush1.bf16.msra.mxu0 %v1535
  %2334 = vmatprep.subr.bf16.mxu0 %v1544
  %2335 = vmatpush1.bf16.msra.mxu0 %v1543
  %2336 = vmatprep.mubr.bf16.mxu0 %v403
  %2337 = vmatmul.mubr.bf16.gmra.mrb[0].mxu0 %v402
  %v2338 = vpop.f32.mrb[0].mxu0
  %v2339 = vadd.f32 %v2278, %v2338
  %v2340 = vpop.f32.mrb[0].mxu0
  %v2341 = vadd.f32 %v2280, %v2340
  %v2342 = vpop.f32.mrb[0].mxu0
  %v2343 = vadd.f32 %v2282, %v2342
  %v2344 = vpop.f32.mrb[0].mxu0
  %v2345 = vadd.f32 %v2284, %v2344
  %2346 = vmatprep.mubr.bf16.mxu0 %v408
  %2347 = vmatmul.mubr.bf16.gmra.mrb[0].mxu0 %v407
  %v2348 = vpop.f32.mrb[0].mxu0
  %v2349 = vadd.f32 %v2288, %v2348
  %v2350 = vpop.f32.mrb[0].mxu0
  %v2351 = vadd.f32 %v2290, %v2350
  %v2352 = vpop.f32.mrb[0].mxu0
  %v2353 = vadd.f32 %v2292, %v2352
  %v2354 = vpop.f32.mrb[0].mxu0
  %v2355 = vadd.f32 %v2294, %v2354
  %2356 = vmatprep.mubr.bf16.mxu0 %v413
  %2357 = vmatmul.mubr.bf16.gmra.mrb[0].mxu0 %v412
  %v2358 = vpop.f32.mrb[0].mxu0
  %v2359 = vadd.f32 %v2298, %v2358
  %v2360 = vpop.f32.mrb[0].mxu0
  %v2361 = vadd.f32 %v2300, %v2360
  %v2362 = vpop.f32.mrb[0].mxu0
  %v2363 = vpop.f32.mrb[0].mxu0
  %2364 = vdwg.mxu0
  %2365 = vmatprep.subr.bf16.mxu0 %v1552
  %2366 = vmatpush1.bf16.msra.mxu0 %v1551
  %2367 = vmatprep.subr.bf16.mxu0 %v1560
  %2368 = vmatpush1.bf16.msra.mxu0 %v1559
  %2369 = vmatprep.subr.bf16.mxu0 %v1568
  %2370 = vmatpush1.bf16.msra.mxu0 %v1567
  %2371 = vmatprep.subr.bf16.mxu0 %v1576
  %2372 = vmatpush1.bf16.msra.mxu0 %v1575
  %2373 = vmatprep.subr.bf16.mxu0 0
  %2374 = vmatpush1.bf16.msra.mxu0 0
  %2375 = vmatprep.subr.bf16.mxu0 0
  %2376 = vmatpush1.bf16.msra.mxu0 0
  %2377 = vmatprep.subr.bf16.mxu0 0
  %2378 = vmatpush1.bf16.msra.mxu0 0
  %2379 = vmatprep.subr.bf16.mxu0 0
  %2380 = vmatpush1.bf16.msra.mxu0 0
  %2381 = vmatprep.subr.bf16.mxu0 0
  %2382 = vmatpush1.bf16.msra.mxu0 0
  %2383 = vmatprep.subr.bf16.mxu0 0
  %2384 = vmatpush1.bf16.msra.mxu0 0
  %2385 = vmatprep.subr.bf16.mxu0 0
  %2386 = vmatpush1.bf16.msra.mxu0 0
  %2387 = vmatprep.subr.bf16.mxu0 0
  %2388 = vmatpush1.bf16.msra.mxu0 0
  %2389 = vmatprep.subr.bf16.mxu0 0
  %2390 = vmatpush1.bf16.msra.mxu0 0
  %2391 = vmatprep.subr.bf16.mxu0 0
  %2392 = vmatpush1.bf16.msra.mxu0 0
  %2393 = vmatprep.subr.bf16.mxu0 0
  %2394 = vmatpush1.bf16.msra.mxu0 0
  %2395 = vmatprep.subr.bf16.mxu0 0
  %2396 = vmatpush1.bf16.msra.mxu0 0
  %2397 = vmatprep.mubr.bf16.mxu0 0
  %2398 = vmatmul.mubr.bf16.gmra.mrb[0].mxu0 %v1869
  %v2399 = vpop.f32.mrb[0].mxu0
  %v2400 = vadd.f32 %v2339, %v2399
  %v2401 = vpop.f32.mrb[0].mxu0
  %v2402 = vadd.f32 %v2341, %v2401
  %v2403 = vpop.f32.mrb[0].mxu0
  %v2404 = vadd.f32 %v2343, %v2403
  %v2405 = vpop.f32.mrb[0].mxu0
  %v2406 = vadd.f32 %v2345, %v2405
  %2407 = vmatprep.mubr.bf16.mxu0 0
  %2408 = vmatmul.mubr.bf16.gmra.mrb[0].mxu0 %v1872
  %v2409 = vpop.f32.mrb[0].mxu0
  %v2410 = vadd.f32 %v2349, %v2409
  %v2411 = vpop.f32.mrb[0].mxu0
  %v2412 = vadd.f32 %v2351, %v2411
  %v2413 = vpop.f32.mrb[0].mxu0
  %v2414 = vadd.f32 %v2353, %v2413
  %v2415 = vpop.f32.mrb[0].mxu0
  %v2416 = vadd.f32 %v2355, %v2415
  %2417 = vmatprep.mubr.bf16.mxu0 0
  %2418 = vmatmul.mubr.bf16.gmra.mrb[0].mxu0 %v1875
  %v2419 = vpop.f32.mrb[0].mxu0
  %v2420 = vadd.f32 %v2359, %v2419
  %v2421 = vpop.f32.mrb[0].mxu0
  %v2422 = vadd.f32 %v2361, %v2421
  %v2423 = vpop.f32.mrb[0].mxu0
  %v2424 = vpop.f32.mrb[0].mxu0
  %2425 = vdwg.mxu0
  %2426 = vmatprep.subr.bf16.mxu0 %v1298
  %2427 = vmatpush1.bf16.msra.mxu0 %v1297
  %2428 = vmatprep.subr.bf16.mxu0 %v1306
  %2429 = vmatpush1.bf16.msra.mxu0 %v1305
  %2430 = vmatprep.subr.bf16.mxu0 %v1314
  %2431 = vmatpush1.bf16.msra.mxu0 %v1313
  %2432 = vmatprep.subr.bf16.mxu0 %v1322
  %2433 = vmatpush1.bf16.msra.mxu0 %v1321
  %2434 = vmatprep.subr.bf16.mxu0 %v1330
  %2435 = vmatpush1.bf16.msra.mxu0 %v1329
  %2436 = vmatprep.subr.bf16.mxu0 %v1338
  %2437 = vmatpush1.bf16.msra.mxu0 %v1337
  %2438 = vmatprep.subr.bf16.mxu0 %v1346
  %2439 = vmatpush1.bf16.msra.mxu0 %v1345
  %2440 = vmatprep.subr.bf16.mxu0 %v1354
  %2441 = vmatpush1.bf16.msra.mxu0 %v1353
  %2442 = vmatprep.subr.bf16.mxu0 %v1362
  %2443 = vmatpush1.bf16.msra.mxu0 %v1361
  %2444 = vmatprep.subr.bf16.mxu0 %v1370
  %2445 = vmatpush1.bf16.msra.mxu0 %v1369
  %2446 = vmatprep.subr.bf16.mxu0 %v1378
  %2447 = vmatpush1.bf16.msra.mxu0 %v1377
  %2448 = vmatprep.subr.bf16.mxu0 %v1386
  %2449 = vmatpush1.bf16.msra.mxu0 %v1385
  %2450 = vmatprep.subr.bf16.mxu0 %v1394
  %2451 = vmatpush1.bf16.msra.mxu0 %v1393
  %2452 = vmatprep.subr.bf16.mxu0 %v1402
  %2453 = vmatpush1.bf16.msra.mxu0 %v1401
  %2454 = vmatprep.subr.bf16.mxu0 %v1410
  %2455 = vmatpush1.bf16.msra.mxu0 %v1409
  %2456 = vmatprep.subr.bf16.mxu0 %v1418
  %2457 = vmatpush1.bf16.msra.mxu0 %v1417
  %2458 = vmatprep.mubr.bf16.mxu0 %v401
  %2459 = vmatmul.mubr.bf16.gmra.mrb[0].mxu0 %v400
  %v2460 = vpop.f32.mrb[0].mxu0
  %v2461 = vadd.f32 %v347, %v2460
  %v2462 = vpop.f32.mrb[0].mxu0
  %v2463 = vadd.f32 %v351, %v2462
  %v2464 = vpop.f32.mrb[0].mxu0
  %v2465 = vadd.f32 %v347, %v2464
  %v2466 = vpop.f32.mrb[0].mxu0
  %v2467 = vadd.f32 %v351, %v2466
  %2468 = vmatprep.mubr.bf16.mxu0 %v406
  %2469 = vmatmul.mubr.bf16.gmra.mrb[0].mxu0 %v405
  %v2470 = vpop.f32.mrb[0].mxu0
  %v2471 = vadd.f32 %v347, %v2470
  %v2472 = vpop.f32.mrb[0].mxu0
  %v2473 = vadd.f32 %v351, %v2472
  %v2474 = vpop.f32.mrb[0].mxu0
  %v2475 = vadd.f32 %v347, %v2474
  %v2476 = vpop.f32.mrb[0].mxu0
  %v2477 = vadd.f32 %v351, %v2476
  %2478 = vmatprep.mubr.bf16.mxu0 %v411
  %2479 = vmatmul.mubr.bf16.gmra.mrb[0].mxu0 %v410
  %v2480 = vpop.f32.mrb[0].mxu0
  %v2481 = vadd.f32 %v347, %v2480
  %v2482 = vpop.f32.mrb[0].mxu0
  %v2483 = vadd.f32 %v351, %v2482
  %v2484 = vpop.f32.mrb[0].mxu0
  %v2485 = vpop.f32.mrb[0].mxu0
  %2486 = vdwg.mxu0
  %2487 = vmatprep.subr.bf16.mxu0 %v1426
  %2488 = vmatpush1.bf16.msra.mxu0 %v1425
  %2489 = vmatprep.subr.bf16.mxu0 %v1434
  %2490 = vmatpush1.bf16.msra.mxu0 %v1433
  %2491 = vmatprep.subr.bf16.mxu0 %v1442
  %2492 = vmatpush1.bf16.msra.mxu0 %v1441
  %2493 = vmatprep.subr.bf16.mxu0 %v1450
  %2494 = vmatpush1.bf16.msra.mxu0 %v1449
  %2495 = vmatprep.subr.bf16.mxu0 %v1458
  %2496 = vmatpush1.bf16.msra.mxu0 %v1457
  %2497 = vmatprep.subr.bf16.mxu0 %v1466
  %2498 = vmatpush1.bf16.msra.mxu0 %v1465
  %2499 = vmatprep.subr.bf16.mxu0 %v1474
  %2500 = vmatpush1.bf16.msra.mxu0 %v1473
  %2501 = vmatprep.subr.bf16.mxu0 %v1482
  %2502 = vmatpush1.bf16.msra.mxu0 %v1481
  %2503 = vmatprep.subr.bf16.mxu0 %v1490
  %2504 = vmatpush1.bf16.msra.mxu0 %v1489
  %2505 = vmatprep.subr.bf16.mxu0 %v1498
  %2506 = vmatpush1.bf16.msra.mxu0 %v1497
  %2507 = vmatprep.subr.bf16.mxu0 %v1506
  %2508 = vmatpush1.bf16.msra.mxu0 %v1505
  %2509 = vmatprep.subr.bf16.mxu0 %v1514
  %2510 = vmatpush1.bf16.msra.mxu0 %v1513
  %2511 = vmatprep.subr.bf16.mxu0 %v1522
  %2512 = vmatpush1.bf16.msra.mxu0 %v1521
  %2513 = vmatprep.subr.bf16.mxu0 %v1530
  %2514 = vmatpush1.bf16.msra.mxu0 %v1529
  %2515 = vmatprep.subr.bf16.mxu0 %v1538
  %2516 = vmatpush1.bf16.msra.mxu0 %v1537
  %2517 = vmatprep.subr.bf16.mxu0 %v1546
  %2518 = vmatpush1.bf16.msra.mxu0 %v1545
  %2519 = vmatprep.mubr.bf16.mxu0 %v403
  %2520 = vmatmul.mubr.bf16.gmra.mrb[0].mxu0 %v402
  %v2521 = vpop.f32.mrb[0].mxu0
  %v2522 = vadd.f32 %v2461, %v2521
  %v2523 = vpop.f32.mrb[0].mxu0
  %v2524 = vadd.f32 %v2463, %v2523
  %v2525 = vpop.f32.mrb[0].mxu0
  %v2526 = vadd.f32 %v2465, %v2525
  %v2527 = vpop.f32.mrb[0].mxu0
  %v2528 = vadd.f32 %v2467, %v2527
  %2529 = vmatprep.mubr.bf16.mxu0 %v408
  %2530 = vmatmul.mubr.bf16.gmra.mrb[0].mxu0 %v407
  %v2531 = vpop.f32.mrb[0].mxu0
  %v2532 = vadd.f32 %v2471, %v2531
  %v2533 = vpop.f32.mrb[0].mxu0
  %v2534 = vadd.f32 %v2473, %v2533
  %v2535 = vpop.f32.mrb[0].mxu0
  %v2536 = vadd.f32 %v2475, %v2535
  %v2537 = vpop.f32.mrb[0].mxu0
  %v2538 = vadd.f32 %v2477, %v2537
  %2539 = vmatprep.mubr.bf16.mxu0 %v413
  %2540 = vmatmul.mubr.bf16.gmra.mrb[0].mxu0 %v412
  %v2541 = vpop.f32.mrb[0].mxu0
  %v2542 = vadd.f32 %v2481, %v2541
  %v2543 = vpop.f32.mrb[0].mxu0
  %v2544 = vadd.f32 %v2483, %v2543
  %v2545 = vpop.f32.mrb[0].mxu0
  %v2546 = vpop.f32.mrb[0].mxu0
  %2547 = vdwg.mxu0
  %2548 = vmatprep.subr.bf16.mxu0 %v1554
  %2549 = vmatpush1.bf16.msra.mxu0 %v1553
  %2550 = vmatprep.subr.bf16.mxu0 %v1562
  %2551 = vmatpush1.bf16.msra.mxu0 %v1561
  %2552 = vmatprep.subr.bf16.mxu0 %v1570
  %2553 = vmatpush1.bf16.msra.mxu0 %v1569
  %2554 = vmatprep.subr.bf16.mxu0 %v1578
  %2555 = vmatpush1.bf16.msra.mxu0 %v1577
  %2556 = vmatprep.subr.bf16.mxu0 0
  %2557 = vmatpush1.bf16.msra.mxu0 0
  %2558 = vmatprep.subr.bf16.mxu0 0
  %2559 = vmatpush1.bf16.msra.mxu0 0
  %2560 = vmatprep.subr.bf16.mxu0 0
  %2561 = vmatpush1.bf16.msra.mxu0 0
  %2562 = vmatprep.subr.bf16.mxu0 0
  %2563 = vmatpush1.bf16.msra.mxu0 0
  %2564 = vmatprep.subr.bf16.mxu0 0
  %2565 = vmatpush1.bf16.msra.mxu0 0
  %2566 = vmatprep.subr.bf16.mxu0 0
  %2567 = vmatpush1.bf16.msra.mxu0 0
  %2568 = vmatprep.subr.bf16.mxu0 0
  %2569 = vmatpush1.bf16.msra.mxu0 0
  %2570 = vmatprep.subr.bf16.mxu0 0
  %2571 = vmatpush1.bf16.msra.mxu0 0
  %2572 = vmatprep.subr.bf16.mxu0 0
  %2573 = vmatpush1.bf16.msra.mxu0 0
  %2574 = vmatprep.subr.bf16.mxu0 0
  %2575 = vmatpush1.bf16.msra.mxu0 0
  %2576 = vmatprep.subr.bf16.mxu0 0
  %2577 = vmatpush1.bf16.msra.mxu0 0
  %2578 = vmatprep.subr.bf16.mxu0 0
  %2579 = vmatpush1.bf16.msra.mxu0 0
  %2580 = vmatprep.mubr.bf16.mxu0 0
  %2581 = vmatmul.mubr.bf16.gmra.mrb[0].mxu0 %v1869
  %v2582 = vpop.f32.mrb[0].mxu0
  %v2583 = vadd.f32 %v2522, %v2582
  %v2584 = vpop.f32.mrb[0].mxu0
  %v2585 = vadd.f32 %v2524, %v2584
  %v2586 = vpop.f32.mrb[0].mxu0
  %v2587 = vadd.f32 %v2526, %v2586
  %v2588 = vpop.f32.mrb[0].mxu0
  %v2589 = vadd.f32 %v2528, %v2588
  %2590 = vmatprep.mubr.bf16.mxu0 0
  %2591 = vmatmul.mubr.bf16.gmra.mrb[0].mxu0 %v1872
  %v2592 = vpop.f32.mrb[0].mxu0
  %v2593 = vadd.f32 %v2532, %v2592
  %v2594 = vpop.f32.mrb[0].mxu0
  %v2595 = vadd.f32 %v2534, %v2594
  %v2596 = vpop.f32.mrb[0].mxu0
  %v2597 = vadd.f32 %v2536, %v2596
  %v2598 = vpop.f32.mrb[0].mxu0
  %v2599 = vadd.f32 %v2538, %v2598
  %2600 = vmatprep.mubr.bf16.mxu0 0
  %2601 = vmatmul.mubr.bf16.gmra.mrb[0].mxu0 %v1875
  %v2602 = vpop.f32.mrb[0].mxu0
  %v2603 = vadd.f32 %v2542, %v2602
  %v2604 = vpop.f32.mrb[0].mxu0
  %v2605 = vadd.f32 %v2544, %v2604
  %v2606 = vpop.f32.mrb[0].mxu0
  %v2607 = vpop.f32.mrb[0].mxu0
  %2608 = vdwg.mxu0
  %2609 = vst [vmem:[%s3] sm:$0xff] %v2034
  %2610 = vst [vmem:[%s3 + $0x8] sm:$0xff] %v2036
  %2611 = vst [vmem:[%s3 + $0x10] sm:$0xff] %v2217
  %2612 = vst [vmem:[%s3 + $0x18] sm:$0xff] %v2219
  %2613 = vst [vmem:[%s3 + $0x20] sm:$0xff] %v2400
  %2614 = vst [vmem:[%s3 + $0x28] sm:$0xff] %v2402
  %2615 = vst [vmem:[%s3 + $0x30] sm:$0xff] %v2583
  %2616 = vst [vmem:[%s3 + $0x38] sm:$0xff] %v2585
  %2617 = vst [vmem:[%s3 + $0x40] sm:$0xff] %v2038
  %2618 = vst [vmem:[%s3 + $0x48] sm:$0xff] %v2040
  %2619 = vst [vmem:[%s3 + $0x50] sm:$0xff] %v2221
  %2620 = vst [vmem:[%s3 + $0x58] sm:$0xff] %v2223
  %2621 = vst [vmem:[%s3 + $0x60] sm:$0xff] %v2404
  %2622 = vst [vmem:[%s3 + $0x68] sm:$0xff] %v2406
  %2623 = vst [vmem:[%s3 + $0x70] sm:$0xff] %v2587
  %2624 = vst [vmem:[%s3 + $0x78] sm:$0xff] %v2589
  %2625 = vst [vmem:[%s3 + $0x80] sm:$0xff] %v2044
  %2626 = vst [vmem:[%s3 + $0x88] sm:$0xff] %v2046
  %2627 = vst [vmem:[%s3 + $0x90] sm:$0xff] %v2227
  %2628 = vst [vmem:[%s3 + $0x98] sm:$0xff] %v2229
  %2629 = vst [vmem:[%s3 + $0xa0] sm:$0xff] %v2410
  %2630 = vst [vmem:[%s3 + $0xa8] sm:$0xff] %v2412
  %2631 = vst [vmem:[%s3 + $0xb0] sm:$0xff] %v2593
  %2632 = vst [vmem:[%s3 + $0xb8] sm:$0xff] %v2595
  %2633 = vst [vmem:[%s3 + $0xc0] sm:$0xff] %v2048
  %2634 = vst [vmem:[%s3 + $0xc8] sm:$0xff] %v2050
  %2635 = vst [vmem:[%s3 + $0xd0] sm:$0xff] %v2231
  %2636 = vst [vmem:[%s3 + $0xd8] sm:$0xff] %v2233
  %2637 = vst [vmem:[%s3 + $0xe0] sm:$0xff] %v2414
  %2638 = vst [vmem:[%s3 + $0xe8] sm:$0xff] %v2416
  %2639 = vst [vmem:[%s3 + $0xf0] sm:$0xff] %v2597
  %2640 = vst [vmem:[%s3 + $0xf8] sm:$0xff] %v2599
  %2641 = vst [vmem:[%s3 + $0x100] sm:$0xff] %v2054
  %2642 = vst [vmem:[%s3 + $0x108] sm:$0xff] %v2056
  %2643 = vst [vmem:[%s3 + $0x110] sm:$0xff] %v2237
  %2644 = vst [vmem:[%s3 + $0x118] sm:$0xff] %v2239
  %2645 = vst [vmem:[%s3 + $0x120] sm:$0xff] %v2420
  %2646 = vst [vmem:[%s3 + $0x128] sm:$0xff] %v2422
  %2647 = vst [vmem:[%s3 + $0x130] sm:$0xff] %v2603
  %2648 = vst [vmem:[%s3 + $0x138] sm:$0xff] %v2605
  // Predicated region
  $region14: #{nature_cnn_forward.11} parent=0 // pred_check
    _
  $region15: #{nature_cnn_forward.11} parent=0 // pred_check_branch
    %2650 = sbr.rel (0) target = $region17
  $region16: #{nature_cnn_forward.11} parent=0 // pred_region
    _
  $region17: #{nature_cnn_forward.11} parent=0 // pred_fallthru
    _
  // Predicated region
  $region18: #{nature_cnn_forward.11} parent=0 // pred_check
    _
  $region19: #{nature_cnn_forward.11} parent=0 // pred_check_branch
    %2652 = sbr.rel (0) target = $region21
  $region20: #{nature_cnn_forward.11} parent=0 // pred_region
    _
  $region21: #{nature_cnn_forward.11} parent=0 // pred_fallthru
    _

// kernel: nature_cnn_forward.12
$region0: #{nature_cnn_forward.12}
  #allocation0 [shape = 'u32[]', space=smem, size = 0x4, offset = 0x4, fixed_abs, tag = 'smem constant byte address 0x4 - core index']
  #allocation1 [shape = 'u32[144,128]{1,0:T(1,128)}', space=vmem, size = 0x12000, scoped, tag = 'internal scratch']
  %s0 = inlined_call_operand.vmem [shape: f32[20,2,512], index: 0, kind: input, shape index: {}]
  %s1 = inlined_call_operand.vmem [shape: f32[256,512], index: 1, kind: input, shape index: {}]
  %s2 = inlined_call_operand.vmem [shape: f32[2,2,128], index: 2, kind: output, shape index: {}]
  %s3 = sld [smem:[#allocation0]]
  $region41: #{nature_cnn_forward.12} parent=0
    _
  %s5 = ssub.s32 1, %s3
  %s6 = scalar_select 0, %s5, %s3
  loop: start=0, step=1, limit=4
  $region2: #{nature_cnn_forward.12} parent=0 // loop_pre_header
    _
  $region3: #{nature_cnn_forward.12} parent=0 // loop_header
    %s8 = sphi 0, %s12
    %p9 = scmp.ge.s32.totalorder %s8, 4
    %s18 = sphi 0, %s20
    %s21 = sphi 0, %s18
    %s22 = sphi 0, %s21
    %s38 = sphi 0, %s22
    %s44 = sphi 0, %s46
    %s47 = sphi 0, %s44
    %s48 = sphi 0, %s47
    %s64 = sphi 0, %s48
    %s70 = sphi 0, %s72
    %s73 = sphi 0, %s70
    %s74 = sphi 0, %s73
    %s90 = sphi 0, %s74
  $region4: #{nature_cnn_forward.12} parent=0 // loop_header_branch
    %11 = sbr.rel (%p9) target = $region8
  $region5: #{nature_cnn_forward.12} parent=0 // loop_body
    %s13 = ssub.s32 %s8, 1
    %s14 = ssub.s32 %s8, 2
    %s15 = sadd.s32 %s8, 1
    %s16 = ssub.s32 %s8, %s15
    %p17 = scmp.eq.s32.totalorder %s16, 0
    %s19 = sadd.s32 %s18, 1
    %s20 = scalar_select %p17, %s18, %s19
    %p23 = pneg %p17
    %p24 = scmp.eq.s32.totalorder %s8, 1
    %p25 = por %p23, %p24
    %p26 = scmp.ne.s32.totalorder %s18, %s21
    %p27 = scmp.eq.s32.totalorder %s8, 0
    %p28 = por %p26, %p27
    %p29 = scmp.ne.s32.totalorder %s18, %s21
    %p30 = scmp.eq.s32.totalorder %s13, 1
    %p31 = por %p29, %p30
    %p32 = scmp.ne.s32.totalorder %s21, %s22
    %p33 = scmp.eq.s32.totalorder %s13, 0
    %p34 = por %p32, %p33
    %p35 = scmp.ne.s32.totalorder %s21, %s22
    %p36 = scmp.eq.s32.totalorder %s14, 1
    %p37 = por %p35, %p36
    %p39 = scmp.ne.s32.totalorder %s22, %s38
    %p40 = scmp.eq.s32.totalorder %s14, 0
    %p41 = por %p39, %p40
    %s42 = ssub.s32 %s8, %s15
    %p43 = scmp.eq.s32.totalorder %s42, 0
    %s45 = sadd.s32 %s44, 1
    %s46 = scalar_select %p43, %s44, %s45
    %p49 = pneg %p43
    %p50 = scmp.eq.s32.totalorder %s8, 1
    %p51 = por %p49, %p50
    %p52 = scmp.ne.s32.totalorder %s44, %s47
    %p53 = scmp.eq.s32.totalorder %s8, 0
    %p54 = por %p52, %p53
    %p55 = scmp.ne.s32.totalorder %s44, %s47
    %p56 = scmp.eq.s32.totalorder %s13, 1
    %p57 = por %p55, %p56
    %p58 = scmp.ne.s32.totalorder %s47, %s48
    %p59 = scmp.eq.s32.totalorder %s13, 0
    %p60 = por %p58, %p59
    %p61 = scmp.ne.s32.totalorder %s47, %s48
    %p62 = scmp.eq.s32.totalorder %s14, 1
    %p63 = por %p61, %p62
    %p65 = scmp.ne.s32.totalorder %s48, %s64
    %p66 = scmp.eq.s32.totalorder %s14, 0
    %p67 = por %p65, %p66
    %s68 = ssub.s32 %s8, %s15
    %p69 = scmp.eq.s32.totalorder %s68, 0
    %s71 = sadd.s32 %s70, 1
    %s72 = scalar_select %p69, %s70, %s71
    %p75 = pneg %p69
    %p76 = scmp.eq.s32.totalorder %s8, 1
    %p77 = por %p75, %p76
    %p78 = scmp.ne.s32.totalorder %s70, %s73
    %p79 = scmp.eq.s32.totalorder %s8, 0
    %p80 = por %p78, %p79
    %p81 = scmp.ne.s32.totalorder %s70, %s73
    %p82 = scmp.eq.s32.totalorder %s13, 1
    %p83 = por %p81, %p82
    %p84 = scmp.ne.s32.totalorder %s73, %s74
    %p85 = scmp.eq.s32.totalorder %s13, 0
    %p86 = por %p84, %p85
    %p87 = scmp.ne.s32.totalorder %s73, %s74
    %p88 = scmp.eq.s32.totalorder %s14, 1
    %p89 = por %p87, %p88
    %p91 = scmp.ne.s32.totalorder %s74, %s90
    %p92 = scmp.eq.s32.totalorder %s14, 0
    %p93 = por %p91, %p92
    %p94 = scmp.le.s32.totalorder 1, %s8
    %p95 = scmp.lt.s32.totalorder %s8, 3
    %p96 = pnand %p94, %p95
    %p97 = pneg %p96
    // Predicated region
    $region9: #{nature_cnn_forward.12} parent=5 // pred_check
      _
    $region10: #{nature_cnn_forward.12} parent=5 // pred_check_branch
      %99 = sbr.rel (%p96) target = $region12
    $region11: #{nature_cnn_forward.12} parent=5 // pred_region
      %s100 = ssub.s32 %s8, 1
    $region12: #{nature_cnn_forward.12} parent=5 // pred_fallthru
      _
    %p101 = scmp.lt.s32.totalorder %s8, 2
    // Predicated region
    $region13: #{nature_cnn_forward.12} parent=5 // pred_check
      %p102 = pneg %p101
    $region14: #{nature_cnn_forward.12} parent=5 // pred_check_branch
      %104 = sbr.rel (%p102) target = $region16
    $region15: #{nature_cnn_forward.12} parent=5 // pred_region
      // Predicated region
      $region17: #{nature_cnn_forward.12} parent=15 // pred_check
        %p105 = pneg %p28
      $region18: #{nature_cnn_forward.12} parent=15 // pred_check_branch
        %107 = sbr.rel (%p105) target = $region20
      $region19: #{nature_cnn_forward.12} parent=15 // pred_region
        %s108 = smul.u32 10, %s8
        %p109 = scmp.lt.s32.totalorder %s108, 19
        %s110 = scalar_select %p109, %s108, 19
        %s111 = smul.addr %s110, 4
        %s112 = smul.addr %s111, 2
        %s113 = scalar_lea.vmem %s0, %s112
        %s114 = smul.u32 10, %s8
      $region20: #{nature_cnn_forward.12} parent=15 // pred_fallthru
        _
      // Predicated region
      $region21: #{nature_cnn_forward.12} parent=15 // pred_check
        %p115 = pneg %p54
      $region22: #{nature_cnn_forward.12} parent=15 // pred_check_branch
        %117 = sbr.rel (%p115) target = $region24
      $region23: #{nature_cnn_forward.12} parent=15 // pred_region
        %s118 = smul.u32 16, %s8
        %p119 = scmp.lt.s32.totalorder %s118, 31
        %s120 = scalar_select %p119, %s118, 31
        %s121 = smul.addr %s120, 4
        %s122 = smul.addr %s121, 8
        %s123 = scalar_lea.vmem %s1, %s122
        %s124 = smul.u32 16, %s8
      $region24: #{nature_cnn_forward.12} parent=15 // pred_fallthru
        _
    $region16: #{nature_cnn_forward.12} parent=5 // pred_fallthru
      _
    %p125 = scmp.le.s32.totalorder 1, %s8
    %p126 = scmp.lt.s32.totalorder %s8, 3
    %p127 = pnand %p125, %p126
    %p128 = pneg %p127
    // Predicated region
    $region25: #{nature_cnn_forward.12} parent=5 // pred_check
      _
    $region26: #{nature_cnn_forward.12} parent=5 // pred_check_branch
      %130 = sbr.rel (%p127) target = $region28
    $region27: #{nature_cnn_forward.12} parent=5 // pred_region
      %s131 = ssub.s32 %s8, 1
      %s132 = smul.u32 10, %s13
      %p133 = scmp.lt.s32.totalorder %s132, 19
      %s134 = scalar_select %p133, %s132, 19
      %s135 = smul.addr %s134, 4
      %s136 = smul.addr %s135, 2
      %s137 = scalar_lea.vmem %s0, %s136
      %p138 = pneg %p34
      %p139 = pneg %p31
      %s140 = smul.u32 16, %s13
      %p141 = scmp.lt.s32.totalorder %s140, 31
      %s142 = scalar_select %p141, %s140, 31
      %s143 = smul.addr %s142, 4
      %s144 = smul.addr %s143, 8
      %s145 = scalar_lea.vmem %s1, %s144
      %p146 = pneg %p60
      %p147 = pneg %p57
      %p148 = pneg %p86
      %p149 = pneg %p83
      %p150 = scmp.lt.s32.totalorder %s13, 1
      %s151 = scalar_select %p150, %s13, 1
      %s152 = smul.addr %s151, 2
      %s153 = scalar_lea.vmem %s2, %s152
      %s154 = smul.u32 10, %s13
      %p155 = scmp.lt.s32.totalorder %s154, 19
      %s156 = scalar_select %p155, %s154, 19
      %s157 = smul.addr %s156, 4
      %s158 = smul.addr %s157, 2
      %s159 = scalar_lea.vmem %s0, %s158
      %s160 = smul.u32 10, %s13
      %s161 = smul.u32 16, %s13
      %p162 = scmp.lt.s32.totalorder %s161, 31
      %s163 = scalar_select %p162, %s161, 31
      %s164 = smul.addr %s163, 4
      %s165 = smul.addr %s164, 8
      %s166 = scalar_lea.vmem %s1, %s165
      %s167 = smul.u32 16, %s13
      %p168 = scmp.lt.s32.totalorder %s13, 1
      %s169 = scalar_select %p168, %s13, 1
      %s170 = smul.addr %s169, 2
      %s171 = scalar_lea.vmem %s2, %s170
      %v172 = vld [vmem:[%s166] sm:$0xff]
      %v173 = vld [vmem:[%s166 + $0x8] sm:$0xff]
      %v174 = vld [vmem:[%s166 + $0x10] sm:$0xff]
      %v175 = vld [vmem:[%s166 + $0x18] sm:$0xff]
      %v176 = vld [vmem:[%s166 + $0x20] sm:$0xff]
      %v177 = vld [vmem:[%s166 + $0x28] sm:$0xff]
      %v178 = vld [vmem:[%s166 + $0x30] sm:$0xff]
      %v179 = vld [vmem:[%s166 + $0x38] sm:$0xff]
      %v180 = vld [vmem:[%s166 + $0x40] sm:$0xff]
      %v181 = vld [vmem:[%s166 + $0x48] sm:$0xff]
      %v182 = vld [vmem:[%s166 + $0x50] sm:$0xff]
      %v183 = vld [vmem:[%s166 + $0x58] sm:$0xff]
      %v184 = vld [vmem:[%s166 + $0x60] sm:$0xff]
      %v185 = vld [vmem:[%s166 + $0x68] sm:$0xff]
      %v186 = vld [vmem:[%s166 + $0x70] sm:$0xff]
      %v187 = vld [vmem:[%s166 + $0x78] sm:$0xff]
      %v188 = vld [vmem:[%s166 + $0x80] sm:$0xff]
      %v189 = vld [vmem:[%s166 + $0x88] sm:$0xff]
      %v190 = vld [vmem:[%s166 + $0x90] sm:$0xff]
      %v191 = vld [vmem:[%s166 + $0x98] sm:$0xff]
      %v192 = vld [vmem:[%s166 + $0xa0] sm:$0xff]
      %v193 = vld [vmem:[%s166 + $0xa8] sm:$0xff]
      %v194 = vld [vmem:[%s166 + $0xb0] sm:$0xff]
      %v195 = vld [vmem:[%s166 + $0xb8] sm:$0xff]
      %v196 = vld [vmem:[%s166 + $0xc0] sm:$0xff]
      %v197 = vld [vmem:[%s166 + $0xc8] sm:$0xff]
      %v198 = vld [vmem:[%s166 + $0xd0] sm:$0xff]
      %v199 = vld [vmem:[%s166 + $0xd8] sm:$0xff]
      %v200 = vld [vmem:[%s166 + $0xe0] sm:$0xff]
      %v201 = vld [vmem:[%s166 + $0xe8] sm:$0xff]
      %v202 = vld [vmem:[%s166 + $0xf0] sm:$0xff]
      %v203 = vld [vmem:[%s166 + $0xf8] sm:$0xff]
      %v204 = vld [vmem:[%s166 + $0x100] sm:$0xff]
      %v205 = vld [vmem:[%s166 + $0x108] sm:$0xff]
      %v206 = vld [vmem:[%s166 + $0x110] sm:$0xff]
      %v207 = vld [vmem:[%s166 + $0x118] sm:$0xff]
      %v208 = vld [vmem:[%s166 + $0x120] sm:$0xff]
      %v209 = vld [vmem:[%s166 + $0x128] sm:$0xff]
      %v210 = vld [vmem:[%s166 + $0x130] sm:$0xff]
      %v211 = vld [vmem:[%s166 + $0x138] sm:$0xff]
      %v212 = vld [vmem:[%s166 + $0x140] sm:$0xff]
      %v213 = vld [vmem:[%s166 + $0x148] sm:$0xff]
      %v214 = vld [vmem:[%s166 + $0x150] sm:$0xff]
      %v215 = vld [vmem:[%s166 + $0x158] sm:$0xff]
      %v216 = vld [vmem:[%s166 + $0x160] sm:$0xff]
      %v217 = vld [vmem:[%s166 + $0x168] sm:$0xff]
      %v218 = vld [vmem:[%s166 + $0x170] sm:$0xff]
      %v219 = vld [vmem:[%s166 + $0x178] sm:$0xff]
      %v220 = vld [vmem:[%s166 + $0x180] sm:$0xff]
      %v221 = vld [vmem:[%s166 + $0x188] sm:$0xff]
      %v222 = vld [vmem:[%s166 + $0x190] sm:$0xff]
      %v223 = vld [vmem:[%s166 + $0x198] sm:$0xff]
      %v224 = vld [vmem:[%s166 + $0x1a0] sm:$0xff]
      %v225 = vld [vmem:[%s166 + $0x1a8] sm:$0xff]
      %v226 = vld [vmem:[%s166 + $0x1b0] sm:$0xff]
      %v227 = vld [vmem:[%s166 + $0x1b8] sm:$0xff]
      %v228 = vld [vmem:[%s166 + $0x1c0] sm:$0xff]
      %v229 = vld [vmem:[%s166 + $0x1c8] sm:$0xff]
      %v230 = vld [vmem:[%s166 + $0x1d0] sm:$0xff]
      %v231 = vld [vmem:[%s166 + $0x1d8] sm:$0xff]
      %v232 = vld [vmem:[%s166 + $0x1e0] sm:$0xff]
      %v233 = vld [vmem:[%s166 + $0x1e8] sm:$0xff]
      %v234 = vld [vmem:[%s166 + $0x1f0] sm:$0xff]
      %v235 = vld [vmem:[%s166 + $0x1f8] sm:$0xff]
      %v236 = vld [vmem:[%s159] sm:$0xff]
      %237 = vmatprep.subr.mxu0 %v173
      %238 = vmatpush1.msra.mxu0 %v172
      %239 = vmatprep.subr.mxu0 %v177
      %240 = vmatpush1.msra.mxu0 %v176
      %241 = vmatprep.subr.mxu0 %v181
      %242 = vmatpush1.msra.mxu0 %v180
      %243 = vmatprep.subr.mxu0 %v185
      %244 = vmatpush1.msra.mxu0 %v184
      %245 = vmatprep.subr.mxu0 %v189
      %246 = vmatpush1.msra.mxu0 %v188
      %247 = vmatprep.subr.mxu0 %v193
      %248 = vmatpush1.msra.mxu0 %v192
      %249 = vmatprep.subr.mxu0 %v197
      %250 = vmatpush1.msra.mxu0 %v196
      %251 = vmatprep.subr.mxu0 %v201
      %252 = vmatpush1.msra.mxu0 %v200
      %253 = vmatprep.subr.mxu0 %v205
      %254 = vmatpush1.msra.mxu0 %v204
      %255 = vmatprep.subr.mxu0 %v209
      %256 = vmatpush1.msra.mxu0 %v208
      %257 = vmatprep.subr.mxu0 %v213
      %258 = vmatpush1.msra.mxu0 %v212
      %259 = vmatprep.subr.mxu0 %v217
      %260 = vmatpush1.msra.mxu0 %v216
      %261 = vmatprep.subr.mxu0 %v221
      %262 = vmatpush1.msra.mxu0 %v220
      %263 = vmatprep.subr.mxu0 %v225
      %264 = vmatpush1.msra.mxu0 %v224
      %265 = vmatprep.subr.mxu0 %v229
      %266 = vmatpush1.msra.mxu0 %v228
      %267 = vmatprep.subr.mxu0 %v233
      %268 = vmatpush1.msra.mxu0 %v232
      %269 = vmatprep.subr.mxu0 0.0
      %270 = vmatpush1.msra.mxu0 0.0
      %271 = vmatprep.subr.mxu0 0.0
      %272 = vmatpush1.msra.mxu0 0.0
      %273 = vmatprep.subr.mxu0 0.0
      %274 = vmatpush1.msra.mxu0 0.0
      %275 = vmatprep.subr.mxu0 0.0
      %276 = vmatpush1.msra.mxu0 0.0
      %277 = vmatprep.subr.mxu0 0.0
      %278 = vmatpush1.msra.mxu0 0.0
      %279 = vmatprep.subr.mxu0 0.0
      %280 = vmatpush1.msra.mxu0 0.0
      %281 = vmatprep.subr.mxu0 0.0
      %282 = vmatpush1.msra.mxu0 0.0
      %283 = vmatprep.subr.mxu0 0.0
      %284 = vmatpush1.msra.mxu0 0.0
      %285 = vmatprep.subr.mxu0 0.0
      %286 = vmatpush1.msra.mxu0 0.0
      %287 = vmatprep.subr.mxu0 0.0
      %288 = vmatpush1.msra.mxu0 0.0
      %289 = vmatprep.subr.mxu0 0.0
      %290 = vmatpush1.msra.mxu0 0.0
      %291 = vmatprep.subr.mxu0 0.0
      %292 = vmatpush1.msra.mxu0 0.0
      %293 = vmatprep.subr.mxu0 0.0
      %294 = vmatpush1.msra.mxu0 0.0
      %295 = vmatprep.subr.mxu0 0.0
      %296 = vmatpush1.msra.mxu0 0.0
      %297 = vmatprep.subr.mxu0 0.0
      %298 = vmatpush1.msra.mxu0 0.0
      %299 = vmatprep.subr.mxu0 0.0
      %300 = vmatpush1.msra.mxu0 0.0
      %301 = vmatprep.mubr.f32.mxu0 0.0
      %302 = vmatmul.mubr.f32.gmra.mrb[0].mxu0 0.0
      %v303 = vpop.f32.mrb[0].mxu0
      %v304 = vadd.f32 0.0, %v303
      %v305 = vpop.f32.mrb[0].mxu0
      %v306 = vadd.f32 0.0, %v305
      %307 = vdwg.mxu0
      %308 = vmatprep.subr.mxu0 %v175
      %309 = vmatpush1.msra.mxu0 %v174
      %310 = vmatprep.subr.mxu0 %v179
      %311 = vmatpush1.msra.mxu0 %v178
      %312 = vmatprep.subr.mxu0 %v183
      %313 = vmatpush1.msra.mxu0 %v182
      %314 = vmatprep.subr.mxu0 %v187
      %315 = vmatpush1.msra.mxu0 %v186
      %316 = vmatprep.subr.mxu0 %v191
      %317 = vmatpush1.msra.mxu0 %v190
      %318 = vmatprep.subr.mxu0 %v195
      %319 = vmatpush1.msra.mxu0 %v194
      %320 = vmatprep.subr.mxu0 %v199
      %321 = vmatpush1.msra.mxu0 %v198
      %322 = vmatprep.subr.mxu0 %v203
      %323 = vmatpush1.msra.mxu0 %v202
      %324 = vmatprep.subr.mxu0 %v207
      %325 = vmatpush1.msra.mxu0 %v206
      %326 = vmatprep.subr.mxu0 %v211
      %327 = vmatpush1.msra.mxu0 %v210
      %328 = vmatprep.subr.mxu0 %v215
      %329 = vmatpush1.msra.mxu0 %v214
      %330 = vmatprep.subr.mxu0 %v219
      %331 = vmatpush1.msra.mxu0 %v218
      %332 = vmatprep.subr.mxu0 %v223
      %333 = vmatpush1.msra.mxu0 %v222
      %334 = vmatprep.subr.mxu0 %v227
      %335 = vmatpush1.msra.mxu0 %v226
      %336 = vmatprep.subr.mxu0 %v231
      %337 = vmatpush1.msra.mxu0 %v230
      %338 = vmatprep.subr.mxu0 %v235
      %339 = vmatpush1.msra.mxu0 %v234
      %340 = vmatprep.subr.mxu0 0.0
      %341 = vmatpush1.msra.mxu0 0.0
      %342 = vmatprep.subr.mxu0 0.0
      %343 = vmatpush1.msra.mxu0 0.0
      %344 = vmatprep.subr.mxu0 0.0
      %345 = vmatpush1.msra.mxu0 0.0
      %346 = vmatprep.subr.mxu0 0.0
      %347 = vmatpush1.msra.mxu0 0.0
      %348 = vmatprep.subr.mxu0 0.0
      %349 = vmatpush1.msra.mxu0 0.0
      %350 = vmatprep.subr.mxu0 0.0
      %351 = vmatpush1.msra.mxu0 0.0
      %352 = vmatprep.subr.mxu0 0.0
      %353 = vmatpush1.msra.mxu0 0.0
      %354 = vmatprep.subr.mxu0 0.0
      %355 = vmatpush1.msra.mxu0 0.0
      %356 = vmatprep.subr.mxu0 0.0
      %357 = vmatpush1.msra.mxu0 0.0
      %358 = vmatprep.subr.mxu0 0.0
      %359 = vmatpush1.msra.mxu0 0.0
      %360 = vmatprep.subr.mxu0 0.0
      %361 = vmatpush1.msra.mxu0 0.0
      %362 = vmatprep.subr.mxu0 0.0
      %363 = vmatpush1.msra.mxu0 0.0
      %364 = vmatprep.subr.mxu0 0.0
      %365 = vmatpush1.msra.mxu0 0.0
      %366 = vmatprep.subr.mxu0 0.0
      %367 = vmatpush1.msra.mxu0 0.0
      %368 = vmatprep.subr.mxu0 0.0
      %369 = vmatpush1.msra.mxu0 0.0
      %370 = vmatprep.subr.mxu0 0.0
      %371 = vmatpush1.msra.mxu0 0.0
      %372 = vmatprep.mubr.f32.mxu0 0.0
      %373 = vmatmul.mubr.f32.gmra.mrb[0].mxu0 0.0
      %v374 = vpop.f32.mrb[0].mxu0
      %v375 = vadd.f32 0.0, %v374
      %v376 = vpop.f32.mrb[0].mxu0
      %v377 = vadd.f32 0.0, %v376
      %378 = vdwg.mxu0
      %v383 = vcombine.low %v304, %v306
      %v384 = vcombine.low %v375, %v377
      %v386 = vunpack.c.l.s4 1983009808
      %v387 = vunpack.c.0.s8 %v386
      %v388 = vlaneseq
      %v389 = vshrl.u32 %v388, 7
      %v390 = vsub.s32 %v387, %v389
      %v391 = vrot.slane %v383, %v390
      %v393 = vunpack.c.l.s4 1983009808
      %v394 = vunpack.c.0.s8 %v393
      %v395 = vlaneseq
      %v396 = vshrl.u32 %v395, 7
      %v397 = vsub.s32 %v394, %v396
      %v398 = vrot.slane %v384, %v397
      %v399 = vcombine.low %v391, %v398
      %v401 = vadd.f32 %v236, %v399
      %v402 = vxor.u32 %v401, 2147483648
      %v403 = vmul.f32 %v402, 1.442695
      %v404 = vpow.pop %v403
      %v405 = vadd.f32 %v404, 1.0
      %v406 = vrcp.pop %v405
      %v407 = vmul.f32 1.0, %v406
      %v409 = vrot.slane %v401, 2
      %v411 = vxor.u32 %v409, 2147483648
      %v412 = vmul.f32 %v411, 1.442695
      %v413 = vpow.pop %v412
      %v414 = vadd.f32 %v413, 1.0
      %v415 = vrcp.pop %v414
      %v416 = vmul.f32 1.0, %v415
      %v417 = vrot.slane %v401, 4
      %v419 = vtanh.pop %v417
      %v420 = vrot.slane %v401, 6
      %v422 = vxor.u32 %v420, 2147483648
      %v423 = vmul.f32 %v422, 1.442695
      %v424 = vpow.pop %v423
      %v425 = vadd.f32 %v424, 1.0
      %v426 = vrcp.pop %v425
      %v427 = vmul.f32 1.0, %v426
      %v428 = vmul.f32 %v416, 0.0
      %v429 = vmul.f32 %v407, %v419
      %v430 = vadd.f32 %v428, %v429
      %v431 = vtanh.pop %v430
      %v432 = vmul.f32 %v427, %v431
      %s433 = scalar_lea.vmem %s159, 8
      %v434 = vld [vmem:[%s433] sm:$0xff]
      %435 = vmatprep.subr.mxu0 %v173
      %436 = vmatpush1.msra.mxu0 %v172
      %437 = vmatprep.subr.mxu0 %v177
      %438 = vmatpush1.msra.mxu0 %v176
      %439 = vmatprep.subr.mxu0 %v181
      %440 = vmatpush1.msra.mxu0 %v180
      %441 = vmatprep.subr.mxu0 %v185
      %442 = vmatpush1.msra.mxu0 %v184
      %443 = vmatprep.subr.mxu0 %v189
      %444 = vmatpush1.msra.mxu0 %v188
      %445 = vmatprep.subr.mxu0 %v193
      %446 = vmatpush1.msra.mxu0 %v192
      %447 = vmatprep.subr.mxu0 %v197
      %448 = vmatpush1.msra.mxu0 %v196
      %449 = vmatprep.subr.mxu0 %v201
      %450 = vmatpush1.msra.mxu0 %v200
      %451 = vmatprep.subr.mxu0 %v205
      %452 = vmatpush1.msra.mxu0 %v204
      %453 = vmatprep.subr.mxu0 %v209
      %454 = vmatpush1.msra.mxu0 %v208
      %455 = vmatprep.subr.mxu0 %v213
      %456 = vmatpush1.msra.mxu0 %v212
      %457 = vmatprep.subr.mxu0 %v217
      %458 = vmatpush1.msra.mxu0 %v216
      %459 = vmatprep.subr.mxu0 %v221
      %460 = vmatpush1.msra.mxu0 %v220
      %461 = vmatprep.subr.mxu0 %v225
      %462 = vmatpush1.msra.mxu0 %v224
      %463 = vmatprep.subr.mxu0 %v229
      %464 = vmatpush1.msra.mxu0 %v228
      %465 = vmatprep.subr.mxu0 %v233
      %466 = vmatpush1.msra.mxu0 %v232
      %467 = vmatprep.subr.mxu0 0.0
      %468 = vmatpush1.msra.mxu0 0.0
      %469 = vmatprep.subr.mxu0 0.0
      %470 = vmatpush1.msra.mxu0 0.0
      %471 = vmatprep.subr.mxu0 0.0
      %472 = vmatpush1.msra.mxu0 0.0
      %473 = vmatprep.subr.mxu0 0.0
      %474 = vmatpush1.msra.mxu0 0.0
      %475 = vmatprep.subr.mxu0 0.0
      %476 = vmatpush1.msra.mxu0 0.0
      %477 = vmatprep.subr.mxu0 0.0
      %478 = vmatpush1.msra.mxu0 0.0
      %479 = vmatprep.subr.mxu0 0.0
      %480 = vmatpush1.msra.mxu0 0.0
      %481 = vmatprep.subr.mxu0 0.0
      %482 = vmatpush1.msra.mxu0 0.0
      %483 = vmatprep.subr.mxu0 0.0
      %484 = vmatpush1.msra.mxu0 0.0
      %485 = vmatprep.subr.mxu0 0.0
      %486 = vmatpush1.msra.mxu0 0.0
      %487 = vmatprep.subr.mxu0 0.0
      %488 = vmatpush1.msra.mxu0 0.0
      %489 = vmatprep.subr.mxu0 0.0
      %490 = vmatpush1.msra.mxu0 0.0
      %491 = vmatprep.subr.mxu0 0.0
      %492 = vmatpush1.msra.mxu0 0.0
      %493 = vmatprep.subr.mxu0 0.0
      %494 = vmatpush1.msra.mxu0 0.0
      %495 = vmatprep.subr.mxu0 0.0
      %496 = vmatpush1.msra.mxu0 0.0
      %497 = vmatprep.subr.mxu0 0.0
      %498 = vmatpush1.msra.mxu0 0.0
      %499 = vmatprep.mubr.f32.mxu0 0.0
      %500 = vmatmul.mubr.f32.gmra.mrb[0].mxu0 %v432
      %v501 = vpop.f32.mrb[0].mxu0
      %v502 = vadd.f32 0.0, %v501
      %v503 = vpop.f32.mrb[0].mxu0
      %v504 = vadd.f32 0.0, %v503
      %505 = vdwg.mxu0
      %506 = vmatprep.subr.mxu0 %v175
      %507 = vmatpush1.msra.mxu0 %v174
      %508 = vmatprep.subr.mxu0 %v179
      %509 = vmatpush1.msra.mxu0 %v178
      %510 = vmatprep.subr.mxu0 %v183
      %511 = vmatpush1.msra.mxu0 %v182
      %512 = vmatprep.subr.mxu0 %v187
      %513 = vmatpush1.msra.mxu0 %v186
      %514 = vmatprep.subr.mxu0 %v191
      %515 = vmatpush1.msra.mxu0 %v190
      %516 = vmatprep.subr.mxu0 %v195
      %517 = vmatpush1.msra.mxu0 %v194
      %518 = vmatprep.subr.mxu0 %v199
      %519 = vmatpush1.msra.mxu0 %v198
      %520 = vmatprep.subr.mxu0 %v203
      %521 = vmatpush1.msra.mxu0 %v202
      %522 = vmatprep.subr.mxu0 %v207
      %523 = vmatpush1.msra.mxu0 %v206
      %524 = vmatprep.subr.mxu0 %v211
      %525 = vmatpush1.msra.mxu0 %v210
      %526 = vmatprep.subr.mxu0 %v215
      %527 = vmatpush1.msra.mxu0 %v214
      %528 = vmatprep.subr.mxu0 %v219
      %529 = vmatpush1.msra.mxu0 %v218
      %530 = vmatprep.subr.mxu0 %v223
      %531 = vmatpush1.msra.mxu0 %v222
      %532 = vmatprep.subr.mxu0 %v227
      %533 = vmatpush1.msra.mxu0 %v226
      %534 = vmatprep.subr.mxu0 %v231
      %535 = vmatpush1.msra.mxu0 %v230
      %536 = vmatprep.subr.mxu0 %v235
      %537 = vmatpush1.msra.mxu0 %v234
      %538 = vmatprep.subr.mxu0 0.0
      %539 = vmatpush1.msra.mxu0 0.0
      %540 = vmatprep.subr.mxu0 0.0
      %541 = vmatpush1.msra.mxu0 0.0
      %542 = vmatprep.subr.mxu0 0.0
      %543 = vmatpush1.msra.mxu0 0.0
      %544 = vmatprep.subr.mxu0 0.0
      %545 = vmatpush1.msra.mxu0 0.0
      %546 = vmatprep.subr.mxu0 0.0
      %547 = vmatpush1.msra.mxu0 0.0
      %548 = vmatprep.subr.mxu0 0.0
      %549 = vmatpush1.msra.mxu0 0.0
      %550 = vmatprep.subr.mxu0 0.0
      %551 = vmatpush1.msra.mxu0 0.0
      %552 = vmatprep.subr.mxu0 0.0
      %553 = vmatpush1.msra.mxu0 0.0
      %554 = vmatprep.subr.mxu0 0.0
      %555 = vmatpush1.msra.mxu0 0.0
      %556 = vmatprep.subr.mxu0 0.0
      %557 = vmatpush1.msra.mxu0 0.0
      %558 = vmatprep.subr.mxu0 0.0
      %559 = vmatpush1.msra.mxu0 0.0
      %560 = vmatprep.subr.mxu0 0.0
      %561 = vmatpush1.msra.mxu0 0.0
      %562 = vmatprep.subr.mxu0 0.0
      %563 = vmatpush1.msra.mxu0 0.0
      %564 = vmatprep.subr.mxu0 0.0
      %565 = vmatpush1.msra.mxu0 0.0
      %566 = vmatprep.subr.mxu0 0.0
      %567 = vmatpush1.msra.mxu0 0.0
      %568 = vmatprep.subr.mxu0 0.0
      %569 = vmatpush1.msra.mxu0 0.0
      %570 = vmatprep.mubr.f32.mxu0 0.0
      %571 = vmatmul.mubr.f32.gmra.mrb[0].mxu0 %v432
      %v572 = vpop.f32.mrb[0].mxu0
      %v573 = vadd.f32 0.0, %v572
      %v574 = vpop.f32.mrb[0].mxu0
      %v575 = vadd.f32 0.0, %v574
      %576 = vdwg.mxu0
      %v581 = vcombine.low %v502, %v504
      %v582 = vcombine.low %v573, %v575
      %v584 = vunpack.c.l.s4 1983009808
      %v585 = vunpack.c.0.s8 %v584
      %v586 = vlaneseq
      %v587 = vshrl.u32 %v586, 7
      %v588 = vsub.s32 %v585, %v587
      %v589 = vrot.slane %v581, %v588
      %v591 = vunpack.c.l.s4 1983009808
      %v592 = vunpack.c.0.s8 %v591
      %v593 = vlaneseq
      %v594 = vshrl.u32 %v593, 7
      %v595 = vsub.s32 %v592, %v594
      %v596 = vrot.slane %v582, %v595
      %v597 = vcombine.low %v589, %v596
      %v599 = vadd.f32 %v434, %v597
      %v600 = vxor.u32 %v599, 2147483648
      %v601 = vmul.f32 %v600, 1.442695
      %v602 = vpow.pop %v601
      %v603 = vadd.f32 %v602, 1.0
      %v604 = vrcp.pop %v603
      %v605 = vmul.f32 1.0, %v604
      %v607 = vrot.slane %v599, 2
      %v609 = vxor.u32 %v607, 2147483648
      %v610 = vmul.f32 %v609, 1.442695
      %v611 = vpow.pop %v610
      %v612 = vadd.f32 %v611, 1.0
      %v613 = vrcp.pop %v612
      %v614 = vmul.f32 1.0, %v613
      %v615 = vrot.slane %v599, 4
      %v617 = vtanh.pop %v615
      %v618 = vrot.slane %v599, 6
      %v620 = vxor.u32 %v618, 2147483648
      %v621 = vmul.f32 %v620, 1.442695
      %v622 = vpow.pop %v621
      %v623 = vadd.f32 %v622, 1.0
      %v624 = vrcp.pop %v623
      %v625 = vmul.f32 1.0, %v624
      %v626 = vmul.f32 %v614, %v430
      %v627 = vmul.f32 %v605, %v617
      %v628 = vadd.f32 %v626, %v627
      %v629 = vtanh.pop %v628
      %v630 = vmul.f32 %v625, %v629
      %s631 = scalar_lea.vmem %s159, 16
      %v632 = vld [vmem:[%s631] sm:$0xff]
      %633 = vmatprep.subr.mxu0 %v173
      %634 = vmatpush1.msra.mxu0 %v172
      %635 = vmatprep.subr.mxu0 %v177
      %636 = vmatpush1.msra.mxu0 %v176
      %637 = vmatprep.subr.mxu0 %v181
      %638 = vmatpush1.msra.mxu0 %v180
      %639 = vmatprep.subr.mxu0 %v185
      %640 = vmatpush1.msra.mxu0 %v184
      %641 = vmatprep.subr.mxu0 %v189
      %642 = vmatpush1.msra.mxu0 %v188
      %643 = vmatprep.subr.mxu0 %v193
      %644 = vmatpush1.msra.mxu0 %v192
      %645 = vmatprep.subr.mxu0 %v197
      %646 = vmatpush1.msra.mxu0 %v196
      %647 = vmatprep.subr.mxu0 %v201
      %648 = vmatpush1.msra.mxu0 %v200
      %649 = vmatprep.subr.mxu0 %v205
      %650 = vmatpush1.msra.mxu0 %v204
      %651 = vmatprep.subr.mxu0 %v209
      %652 = vmatpush1.msra.mxu0 %v208
      %653 = vmatprep.subr.mxu0 %v213
      %654 = vmatpush1.msra.mxu0 %v212
      %655 = vmatprep.subr.mxu0 %v217
      %656 = vmatpush1.msra.mxu0 %v216
      %657 = vmatprep.subr.mxu0 %v221
      %658 = vmatpush1.msra.mxu0 %v220
      %659 = vmatprep.subr.mxu0 %v225
      %660 = vmatpush1.msra.mxu0 %v224
      %661 = vmatprep.subr.mxu0 %v229
      %662 = vmatpush1.msra.mxu0 %v228
      %663 = vmatprep.subr.mxu0 %v233
      %664 = vmatpush1.msra.mxu0 %v232
      %665 = vmatprep.subr.mxu0 0.0
      %666 = vmatpush1.msra.mxu0 0.0
      %667 = vmatprep.subr.mxu0 0.0
      %668 = vmatpush1.msra.mxu0 0.0
      %669 = vmatprep.subr.mxu0 0.0
      %670 = vmatpush1.msra.mxu0 0.0
      %671 = vmatprep.subr.mxu0 0.0
      %672 = vmatpush1.msra.mxu0 0.0
      %673 = vmatprep.subr.mxu0 0.0
      %674 = vmatpush1.msra.mxu0 0.0
      %675 = vmatprep.subr.mxu0 0.0
      %676 = vmatpush1.msra.mxu0 0.0
      %677 = vmatprep.subr.mxu0 0.0
      %678 = vmatpush1.msra.mxu0 0.0
      %679 = vmatprep.subr.mxu0 0.0
      %680 = vmatpush1.msra.mxu0 0.0
      %681 = vmatprep.subr.mxu0 0.0
      %682 = vmatpush1.msra.mxu0 0.0
      %683 = vmatprep.subr.mxu0 0.0
      %684 = vmatpush1.msra.mxu0 0.0
      %685 = vmatprep.subr.mxu0 0.0
      %686 = vmatpush1.msra.mxu0 0.0
      %687 = vmatprep.subr.mxu0 0.0
      %688 = vmatpush1.msra.mxu0 0.0
      %689 = vmatprep.subr.mxu0 0.0
      %690 = vmatpush1.msra.mxu0 0.0
      %691 = vmatprep.subr.mxu0 0.0
      %692 = vmatpush1.msra.mxu0 0.0
      %693 = vmatprep.subr.mxu0 0.0
      %694 = vmatpush1.msra.mxu0 0.0
      %695 = vmatprep.subr.mxu0 0.0
      %696 = vmatpush1.msra.mxu0 0.0
      %697 = vmatprep.mubr.f32.mxu0 0.0
      %698 = vmatmul.mubr.f32.gmra.mrb[0].mxu0 %v630
      %v699 = vpop.f32.mrb[0].mxu0
      %v700 = vadd.f32 0.0, %v699
      %v701 = vpop.f32.mrb[0].mxu0
      %v702 = vadd.f32 0.0, %v701
      %703 = vdwg.mxu0
      %704 = vmatprep.subr.mxu0 %v175
      %705 = vmatpush1.msra.mxu0 %v174
      %706 = vmatprep.subr.mxu0 %v179
      %707 = vmatpush1.msra.mxu0 %v178
      %708 = vmatprep.subr.mxu0 %v183
      %709 = vmatpush1.msra.mxu0 %v182
      %710 = vmatprep.subr.mxu0 %v187
      %711 = vmatpush1.msra.mxu0 %v186
      %712 = vmatprep.subr.mxu0 %v191
      %713 = vmatpush1.msra.mxu0 %v190
      %714 = vmatprep.subr.mxu0 %v195
      %715 = vmatpush1.msra.mxu0 %v194
      %716 = vmatprep.subr.mxu0 %v199
      %717 = vmatpush1.msra.mxu0 %v198
      %718 = vmatprep.subr.mxu0 %v203
      %719 = vmatpush1.msra.mxu0 %v202
      %720 = vmatprep.subr.mxu0 %v207
      %721 = vmatpush1.msra.mxu0 %v206
      %722 = vmatprep.subr.mxu0 %v211
      %723 = vmatpush1.msra.mxu0 %v210
      %724 = vmatprep.subr.mxu0 %v215
      %725 = vmatpush1.msra.mxu0 %v214
      %726 = vmatprep.subr.mxu0 %v219
      %727 = vmatpush1.msra.mxu0 %v218
      %728 = vmatprep.subr.mxu0 %v223
      %729 = vmatpush1.msra.mxu0 %v222
      %730 = vmatprep.subr.mxu0 %v227
      %731 = vmatpush1.msra.mxu0 %v226
      %732 = vmatprep.subr.mxu0 %v231
      %733 = vmatpush1.msra.mxu0 %v230
      %734 = vmatprep.subr.mxu0 %v235
      %735 = vmatpush1.msra.mxu0 %v234
      %736 = vmatprep.subr.mxu0 0.0
      %737 = vmatpush1.msra.mxu0 0.0
      %738 = vmatprep.subr.mxu0 0.0
      %739 = vmatpush1.msra.mxu0 0.0
      %740 = vmatprep.subr.mxu0 0.0
      %741 = vmatpush1.msra.mxu0 0.0
      %742 = vmatprep.subr.mxu0 0.0
      %743 = vmatpush1.msra.mxu0 0.0
      %744 = vmatprep.subr.mxu0 0.0
      %745 = vmatpush1.msra.mxu0 0.0
      %746 = vmatprep.subr.mxu0 0.0
      %747 = vmatpush1.msra.mxu0 0.0
      %748 = vmatprep.subr.mxu0 0.0
      %749 = vmatpush1.msra.mxu0 0.0
      %750 = vmatprep.subr.mxu0 0.0
      %751 = vmatpush1.msra.mxu0 0.0
      %752 = vmatprep.subr.mxu0 0.0
      %753 = vmatpush1.msra.mxu0 0.0
      %754 = vmatprep.subr.mxu0 0.0
      %755 = vmatpush1.msra.mxu0 0.0
      %756 = vmatprep.subr.mxu0 0.0
      %757 = vmatpush1.msra.mxu0 0.0
      %758 = vmatprep.subr.mxu0 0.0
      %759 = vmatpush1.msra.mxu0 0.0
      %760 = vmatprep.subr.mxu0 0.0
      %761 = vmatpush1.msra.mxu0 0.0
      %762 = vmatprep.subr.mxu0 0.0
      %763 = vmatpush1.msra.mxu0 0.0
      %764 = vmatprep.subr.mxu0 0.0
      %765 = vmatpush1.msra.mxu0 0.0
      %766 = vmatprep.subr.mxu0 0.0
      %767 = vmatpush1.msra.mxu0 0.0
      %768 = vmatprep.mubr.f32.mxu0 0.0
      %769 = vmatmul.mubr.f32.gmra.mrb[0].mxu0 %v630
      %v770 = vpop.f32.mrb[0].mxu0
      %v771 = vadd.f32 0.0, %v770
      %v772 = vpop.f32.mrb[0].mxu0
      %v773 = vadd.f32 0.0, %v772
      %774 = vdwg.mxu0
      %v779 = vcombine.low %v700, %v702
      %v780 = vcombine.low %v771, %v773
      %v782 = vunpack.c.l.s4 1983009808
      %v783 = vunpack.c.0.s8 %v782
      %v784 = vlaneseq
      %v785 = vshrl.u32 %v784, 7
      %v786 = vsub.s32 %v783, %v785
      %v787 = vrot.slane %v779, %v786
      %v789 = vunpack.c.l.s4 1983009808
      %v790 = vunpack.c.0.s8 %v789
      %v791 = vlaneseq
      %v792 = vshrl.u32 %v791, 7
      %v793 = vsub.s32 %v790, %v792
      %v794 = vrot.slane %v780, %v793
      %v795 = vcombine.low %v787, %v794
      %v797 = vadd.f32 %v632, %v795
      %v798 = vxor.u32 %v797, 2147483648
      %v799 = vmul.f32 %v798, 1.442695
      %v800 = vpow.pop %v799
      %v801 = vadd.f32 %v800, 1.0
      %v802 = vrcp.pop %v801
      %v803 = vmul.f32 1.0, %v802
      %v805 = vrot.slane %v797, 2
      %v807 = vxor.u32 %v805, 2147483648
      %v808 = vmul.f32 %v807, 1.442695
      %v809 = vpow.pop %v808
      %v810 = vadd.f32 %v809, 1.0
      %v811 = vrcp.pop %v810
      %v812 = vmul.f32 1.0, %v811
      %v813 = vrot.slane %v797, 4
      %v815 = vtanh.pop %v813
      %v816 = vrot.slane %v797, 6
      %v818 = vxor.u32 %v816, 2147483648
      %v819 = vmul.f32 %v818, 1.442695
      %v820 = vpow.pop %v819
      %v821 = vadd.f32 %v820, 1.0
      %v822 = vrcp.pop %v821
      %v823 = vmul.f32 1.0, %v822
      %v824 = vmul.f32 %v812, %v628
      %v825 = vmul.f32 %v803, %v815
      %v826 = vadd.f32 %v824, %v825
      %v827 = vtanh.pop %v826
      %v828 = vmul.f32 %v823, %v827
      %s829 = scalar_lea.vmem %s159, 24
      %v830 = vld [vmem:[%s829] sm:$0xff]
      %831 = vmatprep.subr.mxu0 %v173
      %832 = vmatpush1.msra.mxu0 %v172
      %833 = vmatprep.subr.mxu0 %v177
      %834 = vmatpush1.msra.mxu0 %v176
      %835 = vmatprep.subr.mxu0 %v181
      %836 = vmatpush1.msra.mxu0 %v180
      %837 = vmatprep.subr.mxu0 %v185
      %838 = vmatpush1.msra.mxu0 %v184
      %839 = vmatprep.subr.mxu0 %v189
      %840 = vmatpush1.msra.mxu0 %v188
      %841 = vmatprep.subr.mxu0 %v193
      %842 = vmatpush1.msra.mxu0 %v192
      %843 = vmatprep.subr.mxu0 %v197
      %844 = vmatpush1.msra.mxu0 %v196
      %845 = vmatprep.subr.mxu0 %v201
      %846 = vmatpush1.msra.mxu0 %v200
      %847 = vmatprep.subr.mxu0 %v205
      %848 = vmatpush1.msra.mxu0 %v204
      %849 = vmatprep.subr.mxu0 %v209
      %850 = vmatpush1.msra.mxu0 %v208
      %851 = vmatprep.subr.mxu0 %v213
      %852 = vmatpush1.msra.mxu0 %v212
      %853 = vmatprep.subr.mxu0 %v217
      %854 = vmatpush1.msra.mxu0 %v216
      %855 = vmatprep.subr.mxu0 %v221
      %856 = vmatpush1.msra.mxu0 %v220
      %857 = vmatprep.subr.mxu0 %v225
      %858 = vmatpush1.msra.mxu0 %v224
      %859 = vmatprep.subr.mxu0 %v229
      %860 = vmatpush1.msra.mxu0 %v228
      %861 = vmatprep.subr.mxu0 %v233
      %862 = vmatpush1.msra.mxu0 %v232
      %863 = vmatprep.subr.mxu0 0.0
      %864 = vmatpush1.msra.mxu0 0.0
      %865 = vmatprep.subr.mxu0 0.0
      %866 = vmatpush1.msra.mxu0 0.0
      %867 = vmatprep.subr.mxu0 0.0
      %868 = vmatpush1.msra.mxu0 0.0
      %869 = vmatprep.subr.mxu0 0.0
      %870 = vmatpush1.msra.mxu0 0.0
      %871 = vmatprep.subr.mxu0 0.0
      %872 = vmatpush1.msra.mxu0 0.0
      %873 = vmatprep.subr.mxu0 0.0
      %874 = vmatpush1.msra.mxu0 0.0
      %875 = vmatprep.subr.mxu0 0.0
      %876 = vmatpush1.msra.mxu0 0.0
      %877 = vmatprep.subr.mxu0 0.0
      %878 = vmatpush1.msra.mxu0 0.0
      %879 = vmatprep.subr.mxu0 0.0
      %880 = vmatpush1.msra.mxu0 0.0
      %881 = vmatprep.subr.mxu0 0.0
      %882 = vmatpush1.msra.mxu0 0.0
      %883 = vmatprep.subr.mxu0 0.0
      %884 = vmatpush1.msra.mxu0 0.0
      %885 = vmatprep.subr.mxu0 0.0
      %886 = vmatpush1.msra.mxu0 0.0
      %887 = vmatprep.subr.mxu0 0.0
      %888 = vmatpush1.msra.mxu0 0.0
      %889 = vmatprep.subr.mxu0 0.0
      %890 = vmatpush1.msra.mxu0 0.0
      %891 = vmatprep.subr.mxu0 0.0
      %892 = vmatpush1.msra.mxu0 0.0
      %893 = vmatprep.subr.mxu0 0.0
      %894 = vmatpush1.msra.mxu0 0.0
      %895 = vmatprep.mubr.f32.mxu0 0.0
      %896 = vmatmul.mubr.f32.gmra.mrb[0].mxu0 %v828
      %v897 = vpop.f32.mrb[0].mxu0
      %v898 = vadd.f32 0.0, %v897
      %v899 = vpop.f32.mrb[0].mxu0
      %v900 = vadd.f32 0.0, %v899
      %901 = vdwg.mxu0
      %902 = vmatprep.subr.mxu0 %v175
      %903 = vmatpush1.msra.mxu0 %v174
      %904 = vmatprep.subr.mxu0 %v179
      %905 = vmatpush1.msra.mxu0 %v178
      %906 = vmatprep.subr.mxu0 %v183
      %907 = vmatpush1.msra.mxu0 %v182
      %908 = vmatprep.subr.mxu0 %v187
      %909 = vmatpush1.msra.mxu0 %v186
      %910 = vmatprep.subr.mxu0 %v191
      %911 = vmatpush1.msra.mxu0 %v190
      %912 = vmatprep.subr.mxu0 %v195
      %913 = vmatpush1.msra.mxu0 %v194
      %914 = vmatprep.subr.mxu0 %v199
      %915 = vmatpush1.msra.mxu0 %v198
      %916 = vmatprep.subr.mxu0 %v203
      %917 = vmatpush1.msra.mxu0 %v202
      %918 = vmatprep.subr.mxu0 %v207
      %919 = vmatpush1.msra.mxu0 %v206
      %920 = vmatprep.subr.mxu0 %v211
      %921 = vmatpush1.msra.mxu0 %v210
      %922 = vmatprep.subr.mxu0 %v215
      %923 = vmatpush1.msra.mxu0 %v214
      %924 = vmatprep.subr.mxu0 %v219
      %925 = vmatpush1.msra.mxu0 %v218
      %926 = vmatprep.subr.mxu0 %v223
      %927 = vmatpush1.msra.mxu0 %v222
      %928 = vmatprep.subr.mxu0 %v227
      %929 = vmatpush1.msra.mxu0 %v226
      %930 = vmatprep.subr.mxu0 %v231
      %931 = vmatpush1.msra.mxu0 %v230
      %932 = vmatprep.subr.mxu0 %v235
      %933 = vmatpush1.msra.mxu0 %v234
      %934 = vmatprep.subr.mxu0 0.0
      %935 = vmatpush1.msra.mxu0 0.0
      %936 = vmatprep.subr.mxu0 0.0
      %937 = vmatpush1.msra.mxu0 0.0
      %938 = vmatprep.subr.mxu0 0.0
      %939 = vmatpush1.msra.mxu0 0.0
      %940 = vmatprep.subr.mxu0 0.0
      %941 = vmatpush1.msra.mxu0 0.0
      %942 = vmatprep.subr.mxu0 0.0
      %943 = vmatpush1.msra.mxu0 0.0
      %944 = vmatprep.subr.mxu0 0.0
      %945 = vmatpush1.msra.mxu0 0.0
      %946 = vmatprep.subr.mxu0 0.0
      %947 = vmatpush1.msra.mxu0 0.0
      %948 = vmatprep.subr.mxu0 0.0
      %949 = vmatpush1.msra.mxu0 0.0
      %950 = vmatprep.subr.mxu0 0.0
      %951 = vmatpush1.msra.mxu0 0.0
      %952 = vmatprep.subr.mxu0 0.0
      %953 = vmatpush1.msra.mxu0 0.0
      %954 = vmatprep.subr.mxu0 0.0
      %955 = vmatpush1.msra.mxu0 0.0
      %956 = vmatprep.subr.mxu0 0.0
      %957 = vmatpush1.msra.mxu0 0.0
      %958 = vmatprep.subr.mxu0 0.0
      %959 = vmatpush1.msra.mxu0 0.0
      %960 = vmatprep.subr.mxu0 0.0
      %961 = vmatpush1.msra.mxu0 0.0
      %962 = vmatprep.subr.mxu0 0.0
      %963 = vmatpush1.msra.mxu0 0.0
      %964 = vmatprep.subr.mxu0 0.0
      %965 = vmatpush1.msra.mxu0 0.0
      %966 = vmatprep.mubr.f32.mxu0 0.0
      %967 = vmatmul.mubr.f32.gmra.mrb[0].mxu0 %v828
      %v968 = vpop.f32.mrb[0].mxu0
      %v969 = vadd.f32 0.0, %v968
      %v970 = vpop.f32.mrb[0].mxu0
      %v971 = vadd.f32 0.0, %v970
      %972 = vdwg.mxu0
      %v977 = vcombine.low %v898, %v900
      %v978 = vcombine.low %v969, %v971
      %v980 = vunpack.c.l.s4 1983009808
      %v981 = vunpack.c.0.s8 %v980
      %v982 = vlaneseq
      %v983 = vshrl.u32 %v982, 7
      %v984 = vsub.s32 %v981, %v983
      %v985 = vrot.slane %v977, %v984
      %v987 = vunpack.c.l.s4 1983009808
      %v988 = vunpack.c.0.s8 %v987
      %v989 = vlaneseq
      %v990 = vshrl.u32 %v989, 7
      %v991 = vsub.s32 %v988, %v990
      %v992 = vrot.slane %v978, %v991
      %v993 = vcombine.low %v985, %v992
      %v995 = vadd.f32 %v830, %v993
      %v996 = vxor.u32 %v995, 2147483648
      %v997 = vmul.f32 %v996, 1.442695
      %v998 = vpow.pop %v997
      %v999 = vadd.f32 %v998, 1.0
      %v1000 = vrcp.pop %v999
      %v1001 = vmul.f32 1.0, %v1000
      %v1003 = vrot.slane %v995, 2
      %v1005 = vxor.u32 %v1003, 2147483648
      %v1006 = vmul.f32 %v1005, 1.442695
      %v1007 = vpow.pop %v1006
      %v1008 = vadd.f32 %v1007, 1.0
      %v1009 = vrcp.pop %v1008
      %v1010 = vmul.f32 1.0, %v1009
      %v1011 = vrot.slane %v995, 4
      %v1013 = vtanh.pop %v1011
      %v1014 = vrot.slane %v995, 6
      %v1016 = vxor.u32 %v1014, 2147483648
      %v1017 = vmul.f32 %v1016, 1.442695
      %v1018 = vpow.pop %v1017
      %v1019 = vadd.f32 %v1018, 1.0
      %v1020 = vrcp.pop %v1019
      %v1021 = vmul.f32 1.0, %v1020
      %v1022 = vmul.f32 %v1010, %v826
      %v1023 = vmul.f32 %v1001, %v1013
      %v1024 = vadd.f32 %v1022, %v1023
      %v1025 = vtanh.pop %v1024
      %v1026 = vmul.f32 %v1021, %v1025
      %s1027 = scalar_lea.vmem %s159, 32
      %v1028 = vld [vmem:[%s1027] sm:$0xff]
      %1029 = vmatprep.subr.mxu0 %v173
      %1030 = vmatpush1.msra.mxu0 %v172
      %1031 = vmatprep.subr.mxu0 %v177
      %1032 = vmatpush1.msra.mxu0 %v176
      %1033 = vmatprep.subr.mxu0 %v181
      %1034 = vmatpush1.msra.mxu0 %v180
      %1035 = vmatprep.subr.mxu0 %v185
      %1036 = vmatpush1.msra.mxu0 %v184
      %1037 = vmatprep.subr.mxu0 %v189
      %1038 = vmatpush1.msra.mxu0 %v188
      %1039 = vmatprep.subr.mxu0 %v193
      %1040 = vmatpush1.msra.mxu0 %v192
      %1041 = vmatprep.subr.mxu0 %v197
      %1042 = vmatpush1.msra.mxu0 %v196
      %1043 = vmatprep.subr.mxu0 %v201
      %1044 = vmatpush1.msra.mxu0 %v200
      %1045 = vmatprep.subr.mxu0 %v205
      %1046 = vmatpush1.msra.mxu0 %v204
      %1047 = vmatprep.subr.mxu0 %v209
      %1048 = vmatpush1.msra.mxu0 %v208
      %1049 = vmatprep.subr.mxu0 %v213
      %1050 = vmatpush1.msra.mxu0 %v212
      %1051 = vmatprep.subr.mxu0 %v217
      %1052 = vmatpush1.msra.mxu0 %v216
      %1053 = vmatprep.subr.mxu0 %v221
      %1054 = vmatpush1.msra.mxu0 %v220
      %1055 = vmatprep.subr.mxu0 %v225
      %1056 = vmatpush1.msra.mxu0 %v224
      %1057 = vmatprep.subr.mxu0 %v229
      %1058 = vmatpush1.msra.mxu0 %v228
      %1059 = vmatprep.subr.mxu0 %v233
      %1060 = vmatpush1.msra.mxu0 %v232
      %1061 = vmatprep.subr.mxu0 0.0
      %1062 = vmatpush1.msra.mxu0 0.0
      %1063 = vmatprep.subr.mxu0 0.0
      %1064 = vmatpush1.msra.mxu0 0.0
      %1065 = vmatprep.subr.mxu0 0.0
      %1066 = vmatpush1.msra.mxu0 0.0
      %1067 = vmatprep.subr.mxu0 0.0
      %1068 = vmatpush1.msra.mxu0 0.0
      %1069 = vmatprep.subr.mxu0 0.0
      %1070 = vmatpush1.msra.mxu0 0.0
      %1071 = vmatprep.subr.mxu0 0.0
      %1072 = vmatpush1.msra.mxu0 0.0
      %1073 = vmatprep.subr.mxu0 0.0
      %1074 = vmatpush1.msra.mxu0 0.0
      %1075 = vmatprep.subr.mxu0 0.0
      %1076 = vmatpush1.msra.mxu0 0.0
      %1077 = vmatprep.subr.mxu0 0.0
      %1078 = vmatpush1.msra.mxu0 0.0
      %1079 = vmatprep.subr.mxu0 0.0
      %1080 = vmatpush1.msra.mxu0 0.0
      %1081 = vmatprep.subr.mxu0 0.0
      %1082 = vmatpush1.msra.mxu0 0.0
      %1083 = vmatprep.subr.mxu0 0.0
      %1084 = vmatpush1.msra.mxu0 0.0
      %1085 = vmatprep.subr.mxu0 0.0
      %1086 = vmatpush1.msra.mxu0 0.0
      %1087 = vmatprep.subr.mxu0 0.0
      %1088 = vmatpush1.msra.mxu0 0.0
      %1089 = vmatprep.subr.mxu0 0.0
      %1090 = vmatpush1.msra.mxu0 0.0
      %1091 = vmatprep.subr.mxu0 0.0
      %1092 = vmatpush1.msra.mxu0 0.0
      %1093 = vmatprep.mubr.f32.mxu0 0.0
      %1094 = vmatmul.mubr.f32.gmra.mrb[0].mxu0 %v1026
      %v1095 = vpop.f32.mrb[0].mxu0
      %v1096 = vadd.f32 0.0, %v1095
      %v1097 = vpop.f32.mrb[0].mxu0
      %v1098 = vadd.f32 0.0, %v1097
      %1099 = vdwg.mxu0
      %1100 = vmatprep.subr.mxu0 %v175
      %1101 = vmatpush1.msra.mxu0 %v174
      %1102 = vmatprep.subr.mxu0 %v179
      %1103 = vmatpush1.msra.mxu0 %v178
      %1104 = vmatprep.subr.mxu0 %v183
      %1105 = vmatpush1.msra.mxu0 %v182
      %1106 = vmatprep.subr.mxu0 %v187
      %1107 = vmatpush1.msra.mxu0 %v186
      %1108 = vmatprep.subr.mxu0 %v191
      %1109 = vmatpush1.msra.mxu0 %v190
      %1110 = vmatprep.subr.mxu0 %v195
      %1111 = vmatpush1.msra.mxu0 %v194
      %1112 = vmatprep.subr.mxu0 %v199
      %1113 = vmatpush1.msra.mxu0 %v198
      %1114 = vmatprep.subr.mxu0 %v203
      %1115 = vmatpush1.msra.mxu0 %v202
      %1116 = vmatprep.subr.mxu0 %v207
      %1117 = vmatpush1.msra.mxu0 %v206
      %1118 = vmatprep.subr.mxu0 %v211
      %1119 = vmatpush1.msra.mxu0 %v210
      %1120 = vmatprep.subr.mxu0 %v215
      %1121 = vmatpush1.msra.mxu0 %v214
      %1122 = vmatprep.subr.mxu0 %v219
      %1123 = vmatpush1.msra.mxu0 %v218
      %1124 = vmatprep.subr.mxu0 %v223
      %1125 = vmatpush1.msra.mxu0 %v222
      %1126 = vmatprep.subr.mxu0 %v227
      %1127 = vmatpush1.msra.mxu0 %v226
      %1128 = vmatprep.subr.mxu0 %v231
      %1129 = vmatpush1.msra.mxu0 %v230
      %1130 = vmatprep.subr.mxu0 %v235
      %1131 = vmatpush1.msra.mxu0 %v234
      %1132 = vmatprep.subr.mxu0 0.0
      %1133 = vmatpush1.msra.mxu0 0.0
      %1134 = vmatprep.subr.mxu0 0.0
      %1135 = vmatpush1.msra.mxu0 0.0
      %1136 = vmatprep.subr.mxu0 0.0
      %1137 = vmatpush1.msra.mxu0 0.0
      %1138 = vmatprep.subr.mxu0 0.0
      %1139 = vmatpush1.msra.mxu0 0.0
      %1140 = vmatprep.subr.mxu0 0.0
      %1141 = vmatpush1.msra.mxu0 0.0
      %1142 = vmatprep.subr.mxu0 0.0
      %1143 = vmatpush1.msra.mxu0 0.0
      %1144 = vmatprep.subr.mxu0 0.0
      %1145 = vmatpush1.msra.mxu0 0.0
      %1146 = vmatprep.subr.mxu0 0.0
      %1147 = vmatpush1.msra.mxu0 0.0
      %1148 = vmatprep.subr.mxu0 0.0
      %1149 = vmatpush1.msra.mxu0 0.0
      %1150 = vmatprep.subr.mxu0 0.0
      %1151 = vmatpush1.msra.mxu0 0.0
      %1152 = vmatprep.subr.mxu0 0.0
      %1153 = vmatpush1.msra.mxu0 0.0
      %1154 = vmatprep.subr.mxu0 0.0
      %1155 = vmatpush1.msra.mxu0 0.0
      %1156 = vmatprep.subr.mxu0 0.0
      %1157 = vmatpush1.msra.mxu0 0.0
      %1158 = vmatprep.subr.mxu0 0.0
      %1159 = vmatpush1.msra.mxu0 0.0
      %1160 = vmatprep.subr.mxu0 0.0
      %1161 = vmatpush1.msra.mxu0 0.0
      %1162 = vmatprep.subr.mxu0 0.0
      %1163 = vmatpush1.msra.mxu0 0.0
      %1164 = vmatprep.mubr.f32.mxu0 0.0
      %1165 = vmatmul.mubr.f32.gmra.mrb[0].mxu0 %v1026
      %v1166 = vpop.f32.mrb[0].mxu0
      %v1167 = vadd.f32 0.0, %v1166
      %v1168 = vpop.f32.mrb[0].mxu0
      %v1169 = vadd.f32 0.0, %v1168
      %1170 = vdwg.mxu0
      %v1175 = vcombine.low %v1096, %v1098
      %v1176 = vcombine.low %v1167, %v1169
      %v1178 = vunpack.c.l.s4 1983009808
      %v1179 = vunpack.c.0.s8 %v1178
      %v1180 = vlaneseq
      %v1181 = vshrl.u32 %v1180, 7
      %v1182 = vsub.s32 %v1179, %v1181
      %v1183 = vrot.slane %v1175, %v1182
      %v1185 = vunpack.c.l.s4 1983009808
      %v1186 = vunpack.c.0.s8 %v1185
      %v1187 = vlaneseq
      %v1188 = vshrl.u32 %v1187, 7
      %v1189 = vsub.s32 %v1186, %v1188
      %v1190 = vrot.slane %v1176, %v1189
      %v1191 = vcombine.low %v1183, %v1190
      %v1193 = vadd.f32 %v1028, %v1191
      %v1194 = vxor.u32 %v1193, 2147483648
      %v1195 = vmul.f32 %v1194, 1.442695
      %v1196 = vpow.pop %v1195
      %v1197 = vadd.f32 %v1196, 1.0
      %v1198 = vrcp.pop %v1197
      %v1199 = vmul.f32 1.0, %v1198
      %v1201 = vrot.slane %v1193, 2
      %v1203 = vxor.u32 %v1201, 2147483648
      %v1204 = vmul.f32 %v1203, 1.442695
      %v1205 = vpow.pop %v1204
      %v1206 = vadd.f32 %v1205, 1.0
      %v1207 = vrcp.pop %v1206
      %v1208 = vmul.f32 1.0, %v1207
      %v1209 = vrot.slane %v1193, 4
      %v1211 = vtanh.pop %v1209
      %v1212 = vrot.slane %v1193, 6
      %v1214 = vxor.u32 %v1212, 2147483648
      %v1215 = vmul.f32 %v1214, 1.442695
      %v1216 = vpow.pop %v1215
      %v1217 = vadd.f32 %v1216, 1.0
      %v1218 = vrcp.pop %v1217
      %v1219 = vmul.f32 1.0, %v1218
      %v1220 = vmul.f32 %v1208, %v1024
      %v1221 = vmul.f32 %v1199, %v1211
      %v1222 = vadd.f32 %v1220, %v1221
      %v1223 = vtanh.pop %v1222
      %v1224 = vmul.f32 %v1219, %v1223
      %s1225 = scalar_lea.vmem %s159, 40
      %v1226 = vld [vmem:[%s1225] sm:$0xff]
      %1227 = vmatprep.subr.mxu0 %v173
      %1228 = vmatpush1.msra.mxu0 %v172
      %1229 = vmatprep.subr.mxu0 %v177
      %1230 = vmatpush1.msra.mxu0 %v176
      %1231 = vmatprep.subr.mxu0 %v181
      %1232 = vmatpush1.msra.mxu0 %v180
      %1233 = vmatprep.subr.mxu0 %v185
      %1234 = vmatpush1.msra.mxu0 %v184
      %1235 = vmatprep.subr.mxu0 %v189
      %1236 = vmatpush1.msra.mxu0 %v188
      %1237 = vmatprep.subr.mxu0 %v193
      %1238 = vmatpush1.msra.mxu0 %v192
      %1239 = vmatprep.subr.mxu0 %v197
      %1240 = vmatpush1.msra.mxu0 %v196
      %1241 = vmatprep.subr.mxu0 %v201
      %1242 = vmatpush1.msra.mxu0 %v200
      %1243 = vmatprep.subr.mxu0 %v205
      %1244 = vmatpush1.msra.mxu0 %v204
      %1245 = vmatprep.subr.mxu0 %v209
      %1246 = vmatpush1.msra.mxu0 %v208
      %1247 = vmatprep.subr.mxu0 %v213
      %1248 = vmatpush1.msra.mxu0 %v212
      %1249 = vmatprep.subr.mxu0 %v217
      %1250 = vmatpush1.msra.mxu0 %v216
      %1251 = vmatprep.subr.mxu0 %v221
      %1252 = vmatpush1.msra.mxu0 %v220
      %1253 = vmatprep.subr.mxu0 %v225
      %1254 = vmatpush1.msra.mxu0 %v224
      %1255 = vmatprep.subr.mxu0 %v229
      %1256 = vmatpush1.msra.mxu0 %v228
      %1257 = vmatprep.subr.mxu0 %v233
      %1258 = vmatpush1.msra.mxu0 %v232
      %1259 = vmatprep.subr.mxu0 0.0
      %1260 = vmatpush1.msra.mxu0 0.0
      %1261 = vmatprep.subr.mxu0 0.0
      %1262 = vmatpush1.msra.mxu0 0.0
      %1263 = vmatprep.subr.mxu0 0.0
      %1264 = vmatpush1.msra.mxu0 0.0
      %1265 = vmatprep.subr.mxu0 0.0
      %1266 = vmatpush1.msra.mxu0 0.0
      %1267 = vmatprep.subr.mxu0 0.0
      %1268 = vmatpush1.msra.mxu0 0.0
      %1269 = vmatprep.subr.mxu0 0.0
      %1270 = vmatpush1.msra.mxu0 0.0
      %1271 = vmatprep.subr.mxu0 0.0
      %1272 = vmatpush1.msra.mxu0 0.0
      %1273 = vmatprep.subr.mxu0 0.0
      %1274 = vmatpush1.msra.mxu0 0.0
      %1275 = vmatprep.subr.mxu0 0.0
      %1276 = vmatpush1.msra.mxu0 0.0
      %1277 = vmatprep.subr.mxu0 0.0
      %1278 = vmatpush1.msra.mxu0 0.0
      %1279 = vmatprep.subr.mxu0 0.0
      %1280 = vmatpush1.msra.mxu0 0.0
      %1281 = vmatprep.subr.mxu0 0.0
      %1282 = vmatpush1.msra.mxu0 0.0
      %1283 = vmatprep.subr.mxu0 0.0
      %1284 = vmatpush1.msra.mxu0 0.0
      %1285 = vmatprep.subr.mxu0 0.0
      %1286 = vmatpush1.msra.mxu0 0.0
      %1287 = vmatprep.subr.mxu0 0.0
      %1288 = vmatpush1.msra.mxu0 0.0
      %1289 = vmatprep.subr.mxu0 0.0
      %1290 = vmatpush1.msra.mxu0 0.0
      %1291 = vmatprep.mubr.f32.mxu0 0.0
      %1292 = vmatmul.mubr.f32.gmra.mrb[0].mxu0 %v1224
      %v1293 = vpop.f32.mrb[0].mxu0
      %v1294 = vadd.f32 0.0, %v1293
      %v1295 = vpop.f32.mrb[0].mxu0
      %v1296 = vadd.f32 0.0, %v1295
      %1297 = vdwg.mxu0
      %1298 = vmatprep.subr.mxu0 %v175
      %1299 = vmatpush1.msra.mxu0 %v174
      %1300 = vmatprep.subr.mxu0 %v179
      %1301 = vmatpush1.msra.mxu0 %v178
      %1302 = vmatprep.subr.mxu0 %v183
      %1303 = vmatpush1.msra.mxu0 %v182
      %1304 = vmatprep.subr.mxu0 %v187
      %1305 = vmatpush1.msra.mxu0 %v186
      %1306 = vmatprep.subr.mxu0 %v191
      %1307 = vmatpush1.msra.mxu0 %v190
      %1308 = vmatprep.subr.mxu0 %v195
      %1309 = vmatpush1.msra.mxu0 %v194
      %1310 = vmatprep.subr.mxu0 %v199
      %1311 = vmatpush1.msra.mxu0 %v198
      %1312 = vmatprep.subr.mxu0 %v203
      %1313 = vmatpush1.msra.mxu0 %v202
      %1314 = vmatprep.subr.mxu0 %v207
      %1315 = vmatpush1.msra.mxu0 %v206
      %1316 = vmatprep.subr.mxu0 %v211
      %1317 = vmatpush1.msra.mxu0 %v210
      %1318 = vmatprep.subr.mxu0 %v215
      %1319 = vmatpush1.msra.mxu0 %v214
      %1320 = vmatprep.subr.mxu0 %v219
      %1321 = vmatpush1.msra.mxu0 %v218
      %1322 = vmatprep.subr.mxu0 %v223
      %1323 = vmatpush1.msra.mxu0 %v222
      %1324 = vmatprep.subr.mxu0 %v227
      %1325 = vmatpush1.msra.mxu0 %v226
      %1326 = vmatprep.subr.mxu0 %v231
      %1327 = vmatpush1.msra.mxu0 %v230
      %1328 = vmatprep.subr.mxu0 %v235
      %1329 = vmatpush1.msra.mxu0 %v234
      %1330 = vmatprep.subr.mxu0 0.0
      %1331 = vmatpush1.msra.mxu0 0.0
      %1332 = vmatprep.subr.mxu0 0.0
      %1333 = vmatpush1.msra.mxu0 0.0
      %1334 = vmatprep.subr.mxu0 0.0
      %1335 = vmatpush1.msra.mxu0 0.0
      %1336 = vmatprep.subr.mxu0 0.0
      %1337 = vmatpush1.msra.mxu0 0.0
      %1338 = vmatprep.subr.mxu0 0.0
      %1339 = vmatpush1.msra.mxu0 0.0
      %1340 = vmatprep.subr.mxu0 0.0
      %1341 = vmatpush1.msra.mxu0 0.0
      %1342 = vmatprep.subr.mxu0 0.0
      %1343 = vmatpush1.msra.mxu0 0.0
      %1344 = vmatprep.subr.mxu0 0.0
      %1345 = vmatpush1.msra.mxu0 0.0
      %1346 = vmatprep.subr.mxu0 0.0
      %1347 = vmatpush1.msra.mxu0 0.0
      %1348 = vmatprep.subr.mxu0 0.0
      %1349 = vmatpush1.msra.mxu0 0.0
      %1350 = vmatprep.subr.mxu0 0.0
      %1351 = vmatpush1.msra.mxu0 0.0
      %1352 = vmatprep.subr.mxu0 0.0
      %1353 = vmatpush1.msra.mxu0 0.0
      %1354 = vmatprep.subr.mxu0 0.0
      %1355 = vmatpush1.msra.mxu0 0.0
      %1356 = vmatprep.subr.mxu0 0.0
      %1357 = vmatpush1.msra.mxu0 0.0
      %1358 = vmatprep.subr.mxu0 0.0
      %1359 = vmatpush1.msra.mxu0 0.0
      %1360 = vmatprep.subr.mxu0 0.0
      %1361 = vmatpush1.msra.mxu0 0.0
      %1362 = vmatprep.mubr.f32.mxu0 0.0
      %1363 = vmatmul.mubr.f32.gmra.mrb[0].mxu0 %v1224
      %v1364 = vpop.f32.mrb[0].mxu0
      %v1365 = vadd.f32 0.0, %v1364
      %v1366 = vpop.f32.mrb[0].mxu0
      %v1367 = vadd.f32 0.0, %v1366
      %1368 = vdwg.mxu0
      %v1373 = vcombine.low %v1294, %v1296
      %v1374 = vcombine.low %v1365, %v1367
      %v1376 = vunpack.c.l.s4 1983009808
      %v1377 = vunpack.c.0.s8 %v1376
      %v1378 = vlaneseq
      %v1379 = vshrl.u32 %v1378, 7
      %v1380 = vsub.s32 %v1377, %v1379
      %v1381 = vrot.slane %v1373, %v1380
      %v1383 = vunpack.c.l.s4 1983009808
      %v1384 = vunpack.c.0.s8 %v1383
      %v1385 = vlaneseq
      %v1386 = vshrl.u32 %v1385, 7
      %v1387 = vsub.s32 %v1384, %v1386
      %v1388 = vrot.slane %v1374, %v1387
      %v1389 = vcombine.low %v1381, %v1388
      %v1391 = vadd.f32 %v1226, %v1389
      %v1392 = vxor.u32 %v1391, 2147483648
      %v1393 = vmul.f32 %v1392, 1.442695
      %v1394 = vpow.pop %v1393
      %v1395 = vadd.f32 %v1394, 1.0
      %v1396 = vrcp.pop %v1395
      %v1397 = vmul.f32 1.0, %v1396
      %v1399 = vrot.slane %v1391, 2
      %v1401 = vxor.u32 %v1399, 2147483648
      %v1402 = vmul.f32 %v1401, 1.442695
      %v1403 = vpow.pop %v1402
      %v1404 = vadd.f32 %v1403, 1.0
      %v1405 = vrcp.pop %v1404
      %v1406 = vmul.f32 1.0, %v1405
      %v1407 = vrot.slane %v1391, 4
      %v1409 = vtanh.pop %v1407
      %v1410 = vrot.slane %v1391, 6
      %v1412 = vxor.u32 %v1410, 2147483648
      %v1413 = vmul.f32 %v1412, 1.442695
      %v1414 = vpow.pop %v1413
      %v1415 = vadd.f32 %v1414, 1.0
      %v1416 = vrcp.pop %v1415
      %v1417 = vmul.f32 1.0, %v1416
      %v1418 = vmul.f32 %v1406, %v1222
      %v1419 = vmul.f32 %v1397, %v1409
      %v1420 = vadd.f32 %v1418, %v1419
      %v1421 = vtanh.pop %v1420
      %v1422 = vmul.f32 %v1417, %v1421
      %s1423 = scalar_lea.vmem %s159, 48
      %v1424 = vld [vmem:[%s1423] sm:$0xff]
      %1425 = vmatprep.subr.mxu0 %v173
      %1426 = vmatpush1.msra.mxu0 %v172
      %1427 = vmatprep.subr.mxu0 %v177
      %1428 = vmatpush1.msra.mxu0 %v176
      %1429 = vmatprep.subr.mxu0 %v181
      %1430 = vmatpush1.msra.mxu0 %v180
      %1431 = vmatprep.subr.mxu0 %v185
      %1432 = vmatpush1.msra.mxu0 %v184
      %1433 = vmatprep.subr.mxu0 %v189
      %1434 = vmatpush1.msra.mxu0 %v188
      %1435 = vmatprep.subr.mxu0 %v193
      %1436 = vmatpush1.msra.mxu0 %v192
      %1437 = vmatprep.subr.mxu0 %v197
      %1438 = vmatpush1.msra.mxu0 %v196
      %1439 = vmatprep.subr.mxu0 %v201
      %1440 = vmatpush1.msra.mxu0 %v200
      %1441 = vmatprep.subr.mxu0 %v205
      %1442 = vmatpush1.msra.mxu0 %v204
      %1443 = vmatprep.subr.mxu0 %v209
      %1444 = vmatpush1.msra.mxu0 %v208
      %1445 = vmatprep.subr.mxu0 %v213
      %1446 = vmatpush1.msra.mxu0 %v212
      %1447 = vmatprep.subr.mxu0 %v217
      %1448 = vmatpush1.msra.mxu0 %v216
      %1449 = vmatprep.subr.mxu0 %v221
      %1450 = vmatpush1.msra.mxu0 %v220
      %1451 = vmatprep.subr.mxu0 %v225
      %1452 = vmatpush1.msra.mxu0 %v224
      %1453 = vmatprep.subr.mxu0 %v229
      %1454 = vmatpush1.msra.mxu0 %v228
      %1455 = vmatprep.subr.mxu0 %v233
      %1456 = vmatpush1.msra.mxu0 %v232
      %1457 = vmatprep.subr.mxu0 0.0
      %1458 = vmatpush1.msra.mxu0 0.0
      %1459 = vmatprep.subr.mxu0 0.0
      %1460 = vmatpush1.msra.mxu0 0.0
      %1461 = vmatprep.subr.mxu0 0.0
      %1462 = vmatpush1.msra.mxu0 0.0
      %1463 = vmatprep.subr.mxu0 0.0
      %1464 = vmatpush1.msra.mxu0 0.0
      %1465 = vmatprep.subr.mxu0 0.0
      %1466 = vmatpush1.msra.mxu0 0.0
      %1467 = vmatprep.subr.mxu0 0.0
      %1468 = vmatpush1.msra.mxu0 0.0
      %1469 = vmatprep.subr.mxu0 0.0
      %1470 = vmatpush1.msra.mxu0 0.0
      %1471 = vmatprep.subr.mxu0 0.0
      %1472 = vmatpush1.msra.mxu0 0.0
      %1473 = vmatprep.subr.mxu0 0.0
      %1474 = vmatpush1.msra.mxu0 0.0
      %1475 = vmatprep.subr.mxu0 0.0
      %1476 = vmatpush1.msra.mxu0 0.0
      %1477 = vmatprep.subr.mxu0 0.0
      %1478 = vmatpush1.msra.mxu0 0.0
      %1479 = vmatprep.subr.mxu0 0.0
      %1480 = vmatpush1.msra.mxu0 0.0
      %1481 = vmatprep.subr.mxu0 0.0
      %1482 = vmatpush1.msra.mxu0 0.0
      %1483 = vmatprep.subr.mxu0 0.0
      %1484 = vmatpush1.msra.mxu0 0.0
      %1485 = vmatprep.subr.mxu0 0.0
      %1486 = vmatpush1.msra.mxu0 0.0
      %1487 = vmatprep.subr.mxu0 0.0
      %1488 = vmatpush1.msra.mxu0 0.0
      %1489 = vmatprep.mubr.f32.mxu0 0.0
      %1490 = vmatmul.mubr.f32.gmra.mrb[0].mxu0 %v1422
      %v1491 = vpop.f32.mrb[0].mxu0
      %v1492 = vadd.f32 0.0, %v1491
      %v1493 = vpop.f32.mrb[0].mxu0
      %v1494 = vadd.f32 0.0, %v1493
      %1495 = vdwg.mxu0
      %1496 = vmatprep.subr.mxu0 %v175
      %1497 = vmatpush1.msra.mxu0 %v174
      %1498 = vmatprep.subr.mxu0 %v179
      %1499 = vmatpush1.msra.mxu0 %v178
      %1500 = vmatprep.subr.mxu0 %v183
      %1501 = vmatpush1.msra.mxu0 %v182
      %1502 = vmatprep.subr.mxu0 %v187
      %1503 = vmatpush1.msra.mxu0 %v186
      %1504 = vmatprep.subr.mxu0 %v191
      %1505 = vmatpush1.msra.mxu0 %v190
      %1506 = vmatprep.subr.mxu0 %v195
      %1507 = vmatpush1.msra.mxu0 %v194
      %1508 = vmatprep.subr.mxu0 %v199
      %1509 = vmatpush1.msra.mxu0 %v198
      %1510 = vmatprep.subr.mxu0 %v203
      %1511 = vmatpush1.msra.mxu0 %v202
      %1512 = vmatprep.subr.mxu0 %v207
      %1513 = vmatpush1.msra.mxu0 %v206
      %1514 = vmatprep.subr.mxu0 %v211
      %1515 = vmatpush1.msra.mxu0 %v210
      %1516 = vmatprep.subr.mxu0 %v215
      %1517 = vmatpush1.msra.mxu0 %v214
      %1518 = vmatprep.subr.mxu0 %v219
      %1519 = vmatpush1.msra.mxu0 %v218
      %1520 = vmatprep.subr.mxu0 %v223
      %1521 = vmatpush1.msra.mxu0 %v222
      %1522 = vmatprep.subr.mxu0 %v227
      %1523 = vmatpush1.msra.mxu0 %v226
      %1524 = vmatprep.subr.mxu0 %v231
      %1525 = vmatpush1.msra.mxu0 %v230
      %1526 = vmatprep.subr.mxu0 %v235
      %1527 = vmatpush1.msra.mxu0 %v234
      %1528 = vmatprep.subr.mxu0 0.0
      %1529 = vmatpush1.msra.mxu0 0.0
      %1530 = vmatprep.subr.mxu0 0.0
      %1531 = vmatpush1.msra.mxu0 0.0
      %1532 = vmatprep.subr.mxu0 0.0
      %1533 = vmatpush1.msra.mxu0 0.0
      %1534 = vmatprep.subr.mxu0 0.0
      %1535 = vmatpush1.msra.mxu0 0.0
      %1536 = vmatprep.subr.mxu0 0.0
      %1537 = vmatpush1.msra.mxu0 0.0
      %1538 = vmatprep.subr.mxu0 0.0
      %1539 = vmatpush1.msra.mxu0 0.0
      %1540 = vmatprep.subr.mxu0 0.0
      %1541 = vmatpush1.msra.mxu0 0.0
      %1542 = vmatprep.subr.mxu0 0.0
      %1543 = vmatpush1.msra.mxu0 0.0
      %1544 = vmatprep.subr.mxu0 0.0
      %1545 = vmatpush1.msra.mxu0 0.0
      %1546 = vmatprep.subr.mxu0 0.0
      %1547 = vmatpush1.msra.mxu0 0.0
      %1548 = vmatprep.subr.mxu0 0.0
      %1549 = vmatpush1.msra.mxu0 0.0
      %1550 = vmatprep.subr.mxu0 0.0
      %1551 = vmatpush1.msra.mxu0 0.0
      %1552 = vmatprep.subr.mxu0 0.0
      %1553 = vmatpush1.msra.mxu0 0.0
      %1554 = vmatprep.subr.mxu0 0.0
      %1555 = vmatpush1.msra.mxu0 0.0
      %1556 = vmatprep.subr.mxu0 0.0
      %1557 = vmatpush1.msra.mxu0 0.0
      %1558 = vmatprep.subr.mxu0 0.0
      %1559 = vmatpush1.msra.mxu0 0.0
      %1560 = vmatprep.mubr.f32.mxu0 0.0
      %1561 = vmatmul.mubr.f32.gmra.mrb[0].mxu0 %v1422
      %v1562 = vpop.f32.mrb[0].mxu0
      %v1563 = vadd.f32 0.0, %v1562
      %v1564 = vpop.f32.mrb[0].mxu0
      %v1565 = vadd.f32 0.0, %v1564
      %1566 = vdwg.mxu0
      %v1571 = vcombine.low %v1492, %v1494
      %v1572 = vcombine.low %v1563, %v1565
      %v1574 = vunpack.c.l.s4 1983009808
      %v1575 = vunpack.c.0.s8 %v1574
      %v1576 = vlaneseq
      %v1577 = vshrl.u32 %v1576, 7
      %v1578 = vsub.s32 %v1575, %v1577
      %v1579 = vrot.slane %v1571, %v1578
      %v1581 = vunpack.c.l.s4 1983009808
      %v1582 = vunpack.c.0.s8 %v1581
      %v1583 = vlaneseq
      %v1584 = vshrl.u32 %v1583, 7
      %v1585 = vsub.s32 %v1582, %v1584
      %v1586 = vrot.slane %v1572, %v1585
      %v1587 = vcombine.low %v1579, %v1586
      %v1589 = vadd.f32 %v1424, %v1587
      %v1590 = vxor.u32 %v1589, 2147483648
      %v1591 = vmul.f32 %v1590, 1.442695
      %v1592 = vpow.pop %v1591
      %v1593 = vadd.f32 %v1592, 1.0
      %v1594 = vrcp.pop %v1593
      %v1595 = vmul.f32 1.0, %v1594
      %v1597 = vrot.slane %v1589, 2
      %v1599 = vxor.u32 %v1597, 2147483648
      %v1600 = vmul.f32 %v1599, 1.442695
      %v1601 = vpow.pop %v1600
      %v1602 = vadd.f32 %v1601, 1.0
      %v1603 = vrcp.pop %v1602
      %v1604 = vmul.f32 1.0, %v1603
      %v1605 = vrot.slane %v1589, 4
      %v1607 = vtanh.pop %v1605
      %v1608 = vrot.slane %v1589, 6
      %v1610 = vxor.u32 %v1608, 2147483648
      %v1611 = vmul.f32 %v1610, 1.442695
      %v1612 = vpow.pop %v1611
      %v1613 = vadd.f32 %v1612, 1.0
      %v1614 = vrcp.pop %v1613
      %v1615 = vmul.f32 1.0, %v1614
      %v1616 = vmul.f32 %v1604, %v1420
      %v1617 = vmul.f32 %v1595, %v1607
      %v1618 = vadd.f32 %v1616, %v1617
      %v1619 = vtanh.pop %v1618
      %v1620 = vmul.f32 %v1615, %v1619
      %s1621 = scalar_lea.vmem %s159, 56
      %v1622 = vld [vmem:[%s1621] sm:$0xff]
      %1623 = vmatprep.subr.mxu0 %v173
      %1624 = vmatpush1.msra.mxu0 %v172
      %1625 = vmatprep.subr.mxu0 %v177
      %1626 = vmatpush1.msra.mxu0 %v176
      %1627 = vmatprep.subr.mxu0 %v181
      %1628 = vmatpush1.msra.mxu0 %v180
      %1629 = vmatprep.subr.mxu0 %v185
      %1630 = vmatpush1.msra.mxu0 %v184
      %1631 = vmatprep.subr.mxu0 %v189
      %1632 = vmatpush1.msra.mxu0 %v188
      %1633 = vmatprep.subr.mxu0 %v193
      %1634 = vmatpush1.msra.mxu0 %v192
      %1635 = vmatprep.subr.mxu0 %v197
      %1636 = vmatpush1.msra.mxu0 %v196
      %1637 = vmatprep.subr.mxu0 %v201
      %1638 = vmatpush1.msra.mxu0 %v200
      %1639 = vmatprep.subr.mxu0 %v205
      %1640 = vmatpush1.msra.mxu0 %v204
      %1641 = vmatprep.subr.mxu0 %v209
      %1642 = vmatpush1.msra.mxu0 %v208
      %1643 = vmatprep.subr.mxu0 %v213
      %1644 = vmatpush1.msra.mxu0 %v212
      %1645 = vmatprep.subr.mxu0 %v217
      %1646 = vmatpush1.msra.mxu0 %v216
      %1647 = vmatprep.subr.mxu0 %v221
      %1648 = vmatpush1.msra.mxu0 %v220
      %1649 = vmatprep.subr.mxu0 %v225
      %1650 = vmatpush1.msra.mxu0 %v224
      %1651 = vmatprep.subr.mxu0 %v229
      %1652 = vmatpush1.msra.mxu0 %v228
      %1653 = vmatprep.subr.mxu0 %v233
      %1654 = vmatpush1.msra.mxu0 %v232
      %1655 = vmatprep.subr.mxu0 0.0
      %1656 = vmatpush1.msra.mxu0 0.0
      %1657 = vmatprep.subr.mxu0 0.0
      %1658 = vmatpush1.msra.mxu0 0.0
      %1659 = vmatprep.subr.mxu0 0.0
      %1660 = vmatpush1.msra.mxu0 0.0
      %1661 = vmatprep.subr.mxu0 0.0
      %1662 = vmatpush1.msra.mxu0 0.0
      %1663 = vmatprep.subr.mxu0 0.0
      %1664 = vmatpush1.msra.mxu0 0.0
      %1665 = vmatprep.subr.mxu0 0.0
      %1666 = vmatpush1.msra.mxu0 0.0
      %1667 = vmatprep.subr.mxu0 0.0
      %1668 = vmatpush1.msra.mxu0 0.0
      %1669 = vmatprep.subr.mxu0 0.0
      %1670 = vmatpush1.msra.mxu0 0.0
      %1671 = vmatprep.subr.mxu0 0.0
      %1672 = vmatpush1.msra.mxu0 0.0
      %1673 = vmatprep.subr.mxu0 0.0
      %1674 = vmatpush1.msra.mxu0 0.0
      %1675 = vmatprep.subr.mxu0 0.0
      %1676 = vmatpush1.msra.mxu0 0.0
      %1677 = vmatprep.subr.mxu0 0.0
      %1678 = vmatpush1.msra.mxu0 0.0
      %1679 = vmatprep.subr.mxu0 0.0
      %1680 = vmatpush1.msra.mxu0 0.0
      %1681 = vmatprep.subr.mxu0 0.0
      %1682 = vmatpush1.msra.mxu0 0.0
      %1683 = vmatprep.subr.mxu0 0.0
      %1684 = vmatpush1.msra.mxu0 0.0
      %1685 = vmatprep.subr.mxu0 0.0
      %1686 = vmatpush1.msra.mxu0 0.0
      %1687 = vmatprep.mubr.f32.mxu0 0.0
      %1688 = vmatmul.mubr.f32.gmra.mrb[0].mxu0 %v1620
      %v1689 = vpop.f32.mrb[0].mxu0
      %v1690 = vadd.f32 0.0, %v1689
      %v1691 = vpop.f32.mrb[0].mxu0
      %v1692 = vadd.f32 0.0, %v1691
      %1693 = vdwg.mxu0
      %1694 = vmatprep.subr.mxu0 %v175
      %1695 = vmatpush1.msra.mxu0 %v174
      %1696 = vmatprep.subr.mxu0 %v179
      %1697 = vmatpush1.msra.mxu0 %v178
      %1698 = vmatprep.subr.mxu0 %v183
      %1699 = vmatpush1.msra.mxu0 %v182
      %1700 = vmatprep.subr.mxu0 %v187
      %1701 = vmatpush1.msra.mxu0 %v186
      %1702 = vmatprep.subr.mxu0 %v191
      %1703 = vmatpush1.msra.mxu0 %v190
      %1704 = vmatprep.subr.mxu0 %v195
      %1705 = vmatpush1.msra.mxu0 %v194
      %1706 = vmatprep.subr.mxu0 %v199
      %1707 = vmatpush1.msra.mxu0 %v198
      %1708 = vmatprep.subr.mxu0 %v203
      %1709 = vmatpush1.msra.mxu0 %v202
      %1710 = vmatprep.subr.mxu0 %v207
      %1711 = vmatpush1.msra.mxu0 %v206
      %1712 = vmatprep.subr.mxu0 %v211
      %1713 = vmatpush1.msra.mxu0 %v210
      %1714 = vmatprep.subr.mxu0 %v215
      %1715 = vmatpush1.msra.mxu0 %v214
      %1716 = vmatprep.subr.mxu0 %v219
      %1717 = vmatpush1.msra.mxu0 %v218
      %1718 = vmatprep.subr.mxu0 %v223
      %1719 = vmatpush1.msra.mxu0 %v222
      %1720 = vmatprep.subr.mxu0 %v227
      %1721 = vmatpush1.msra.mxu0 %v226
      %1722 = vmatprep.subr.mxu0 %v231
      %1723 = vmatpush1.msra.mxu0 %v230
      %1724 = vmatprep.subr.mxu0 %v235
      %1725 = vmatpush1.msra.mxu0 %v234
      %1726 = vmatprep.subr.mxu0 0.0
      %1727 = vmatpush1.msra.mxu0 0.0
      %1728 = vmatprep.subr.mxu0 0.0
      %1729 = vmatpush1.msra.mxu0 0.0
      %1730 = vmatprep.subr.mxu0 0.0
      %1731 = vmatpush1.msra.mxu0 0.0
      %1732 = vmatprep.subr.mxu0 0.0
      %1733 = vmatpush1.msra.mxu0 0.0
      %1734 = vmatprep.subr.mxu0 0.0
      %1735 = vmatpush1.msra.mxu0 0.0
      %1736 = vmatprep.subr.mxu0 0.0
      %1737 = vmatpush1.msra.mxu0 0.0
      %1738 = vmatprep.subr.mxu0 0.0
      %1739 = vmatpush1.msra.mxu0 0.0
      %1740 = vmatprep.subr.mxu0 0.0
      %1741 = vmatpush1.msra.mxu0 0.0
      %1742 = vmatprep.subr.mxu0 0.0
      %1743 = vmatpush1.msra.mxu0 0.0
      %1744 = vmatprep.subr.mxu0 0.0
      %1745 = vmatpush1.msra.mxu0 0.0
      %1746 = vmatprep.subr.mxu0 0.0
      %1747 = vmatpush1.msra.mxu0 0.0
      %1748 = vmatprep.subr.mxu0 0.0
      %1749 = vmatpush1.msra.mxu0 0.0
      %1750 = vmatprep.subr.mxu0 0.0
      %1751 = vmatpush1.msra.mxu0 0.0
      %1752 = vmatprep.subr.mxu0 0.0
      %1753 = vmatpush1.msra.mxu0 0.0
      %1754 = vmatprep.subr.mxu0 0.0
      %1755 = vmatpush1.msra.mxu0 0.0
      %1756 = vmatprep.subr.mxu0 0.0
      %1757 = vmatpush1.msra.mxu0 0.0
      %1758 = vmatprep.mubr.f32.mxu0 0.0
      %1759 = vmatmul.mubr.f32.gmra.mrb[0].mxu0 %v1620
      %v1760 = vpop.f32.mrb[0].mxu0
      %v1761 = vadd.f32 0.0, %v1760
      %v1762 = vpop.f32.mrb[0].mxu0
      %v1763 = vadd.f32 0.0, %v1762
      %1764 = vdwg.mxu0
      %v1769 = vcombine.low %v1690, %v1692
      %v1770 = vcombine.low %v1761, %v1763
      %v1772 = vunpack.c.l.s4 1983009808
      %v1773 = vunpack.c.0.s8 %v1772
      %v1774 = vlaneseq
      %v1775 = vshrl.u32 %v1774, 7
      %v1776 = vsub.s32 %v1773, %v1775
      %v1777 = vrot.slane %v1769, %v1776
      %v1779 = vunpack.c.l.s4 1983009808
      %v1780 = vunpack.c.0.s8 %v1779
      %v1781 = vlaneseq
      %v1782 = vshrl.u32 %v1781, 7
      %v1783 = vsub.s32 %v1780, %v1782
      %v1784 = vrot.slane %v1770, %v1783
      %v1785 = vcombine.low %v1777, %v1784
      %v1787 = vadd.f32 %v1622, %v1785
      %v1788 = vxor.u32 %v1787, 2147483648
      %v1789 = vmul.f32 %v1788, 1.442695
      %v1790 = vpow.pop %v1789
      %v1791 = vadd.f32 %v1790, 1.0
      %v1792 = vrcp.pop %v1791
      %v1793 = vmul.f32 1.0, %v1792
      %v1795 = vrot.slane %v1787, 2
      %v1797 = vxor.u32 %v1795, 2147483648
      %v1798 = vmul.f32 %v1797, 1.442695
      %v1799 = vpow.pop %v1798
      %v1800 = vadd.f32 %v1799, 1.0
      %v1801 = vrcp.pop %v1800
      %v1802 = vmul.f32 1.0, %v1801
      %v1803 = vrot.slane %v1787, 4
      %v1805 = vtanh.pop %v1803
      %v1806 = vrot.slane %v1787, 6
      %v1808 = vxor.u32 %v1806, 2147483648
      %v1809 = vmul.f32 %v1808, 1.442695
      %v1810 = vpow.pop %v1809
      %v1811 = vadd.f32 %v1810, 1.0
      %v1812 = vrcp.pop %v1811
      %v1813 = vmul.f32 1.0, %v1812
      %v1814 = vmul.f32 %v1802, %v1618
      %v1815 = vmul.f32 %v1793, %v1805
      %v1816 = vadd.f32 %v1814, %v1815
      %v1817 = vtanh.pop %v1816
      %v1818 = vmul.f32 %v1813, %v1817
      %s1819 = scalar_lea.vmem %s159, 64
      %v1820 = vld [vmem:[%s1819] sm:$0xff]
      %1821 = vmatprep.subr.mxu0 %v173
      %1822 = vmatpush1.msra.mxu0 %v172
      %1823 = vmatprep.subr.mxu0 %v177
      %1824 = vmatpush1.msra.mxu0 %v176
      %1825 = vmatprep.subr.mxu0 %v181
      %1826 = vmatpush1.msra.mxu0 %v180
      %1827 = vmatprep.subr.mxu0 %v185
      %1828 = vmatpush1.msra.mxu0 %v184
      %1829 = vmatprep.subr.mxu0 %v189
      %1830 = vmatpush1.msra.mxu0 %v188
      %1831 = vmatprep.subr.mxu0 %v193
      %1832 = vmatpush1.msra.mxu0 %v192
      %1833 = vmatprep.subr.mxu0 %v197
      %1834 = vmatpush1.msra.mxu0 %v196
      %1835 = vmatprep.subr.mxu0 %v201
      %1836 = vmatpush1.msra.mxu0 %v200
      %1837 = vmatprep.subr.mxu0 %v205
      %1838 = vmatpush1.msra.mxu0 %v204
      %1839 = vmatprep.subr.mxu0 %v209
      %1840 = vmatpush1.msra.mxu0 %v208
      %1841 = vmatprep.subr.mxu0 %v213
      %1842 = vmatpush1.msra.mxu0 %v212
      %1843 = vmatprep.subr.mxu0 %v217
      %1844 = vmatpush1.msra.mxu0 %v216
      %1845 = vmatprep.subr.mxu0 %v221
      %1846 = vmatpush1.msra.mxu0 %v220
      %1847 = vmatprep.subr.mxu0 %v225
      %1848 = vmatpush1.msra.mxu0 %v224
      %1849 = vmatprep.subr.mxu0 %v229
      %1850 = vmatpush1.msra.mxu0 %v228
      %1851 = vmatprep.subr.mxu0 %v233
      %1852 = vmatpush1.msra.mxu0 %v232
      %1853 = vmatprep.subr.mxu0 0.0
      %1854 = vmatpush1.msra.mxu0 0.0
      %1855 = vmatprep.subr.mxu0 0.0
      %1856 = vmatpush1.msra.mxu0 0.0
      %1857 = vmatprep.subr.mxu0 0.0
      %1858 = vmatpush1.msra.mxu0 0.0
      %1859 = vmatprep.subr.mxu0 0.0
      %1860 = vmatpush1.msra.mxu0 0.0
      %1861 = vmatprep.subr.mxu0 0.0
      %1862 = vmatpush1.msra.mxu0 0.0
      %1863 = vmatprep.subr.mxu0 0.0
      %1864 = vmatpush1.msra.mxu0 0.0
      %1865 = vmatprep.subr.mxu0 0.0
      %1866 = vmatpush1.msra.mxu0 0.0
      %1867 = vmatprep.subr.mxu0 0.0
      %1868 = vmatpush1.msra.mxu0 0.0
      %1869 = vmatprep.subr.mxu0 0.0
      %1870 = vmatpush1.msra.mxu0 0.0
      %1871 = vmatprep.subr.mxu0 0.0
      %1872 = vmatpush1.msra.mxu0 0.0
      %1873 = vmatprep.subr.mxu0 0.0
      %1874 = vmatpush1.msra.mxu0 0.0
      %1875 = vmatprep.subr.mxu0 0.0
      %1876 = vmatpush1.msra.mxu0 0.0
      %1877 = vmatprep.subr.mxu0 0.0
      %1878 = vmatpush1.msra.mxu0 0.0
      %1879 = vmatprep.subr.mxu0 0.0
      %1880 = vmatpush1.msra.mxu0 0.0
      %1881 = vmatprep.subr.mxu0 0.0
      %1882 = vmatpush1.msra.mxu0 0.0
      %1883 = vmatprep.subr.mxu0 0.0
      %1884 = vmatpush1.msra.mxu0 0.0
      %1885 = vmatprep.mubr.f32.mxu0 0.0
      %1886 = vmatmul.mubr.f32.gmra.mrb[0].mxu0 %v1818
      %v1887 = vpop.f32.mrb[0].mxu0
      %v1888 = vadd.f32 0.0, %v1887
      %v1889 = vpop.f32.mrb[0].mxu0
      %v1890 = vadd.f32 0.0, %v1889
      %1891 = vdwg.mxu0
      %1892 = vmatprep.subr.mxu0 %v175
      %1893 = vmatpush1.msra.mxu0 %v174
      %1894 = vmatprep.subr.mxu0 %v179
      %1895 = vmatpush1.msra.mxu0 %v178
      %1896 = vmatprep.subr.mxu0 %v183
      %1897 = vmatpush1.msra.mxu0 %v182
      %1898 = vmatprep.subr.mxu0 %v187
      %1899 = vmatpush1.msra.mxu0 %v186
      %1900 = vmatprep.subr.mxu0 %v191
      %1901 = vmatpush1.msra.mxu0 %v190
      %1902 = vmatprep.subr.mxu0 %v195
      %1903 = vmatpush1.msra.mxu0 %v194
      %1904 = vmatprep.subr.mxu0 %v199
      %1905 = vmatpush1.msra.mxu0 %v198
      %1906 = vmatprep.subr.mxu0 %v203
      %1907 = vmatpush1.msra.mxu0 %v202
      %1908 = vmatprep.subr.mxu0 %v207
      %1909 = vmatpush1.msra.mxu0 %v206
      %1910 = vmatprep.subr.mxu0 %v211
      %1911 = vmatpush1.msra.mxu0 %v210
      %1912 = vmatprep.subr.mxu0 %v215
      %1913 = vmatpush1.msra.mxu0 %v214
      %1914 = vmatprep.subr.mxu0 %v219
      %1915 = vmatpush1.msra.mxu0 %v218
      %1916 = vmatprep.subr.mxu0 %v223
      %1917 = vmatpush1.msra.mxu0 %v222
      %1918 = vmatprep.subr.mxu0 %v227
      %1919 = vmatpush1.msra.mxu0 %v226
      %1920 = vmatprep.subr.mxu0 %v231
      %1921 = vmatpush1.msra.mxu0 %v230
      %1922 = vmatprep.subr.mxu0 %v235
      %1923 = vmatpush1.msra.mxu0 %v234
      %1924 = vmatprep.subr.mxu0 0.0
      %1925 = vmatpush1.msra.mxu0 0.0
      %1926 = vmatprep.subr.mxu0 0.0
      %1927 = vmatpush1.msra.mxu0 0.0
      %1928 = vmatprep.subr.mxu0 0.0
      %1929 = vmatpush1.msra.mxu0 0.0
      %1930 = vmatprep.subr.mxu0 0.0
      %1931 = vmatpush1.msra.mxu0 0.0
      %1932 = vmatprep.subr.mxu0 0.0
      %1933 = vmatpush1.msra.mxu0 0.0
      %1934 = vmatprep.subr.mxu0 0.0
      %1935 = vmatpush1.msra.mxu0 0.0
      %1936 = vmatprep.subr.mxu0 0.0
      %1937 = vmatpush1.msra.mxu0 0.0
      %1938 = vmatprep.subr.mxu0 0.0
      %1939 = vmatpush1.msra.mxu0 0.0
      %1940 = vmatprep.subr.mxu0 0.0
      %1941 = vmatpush1.msra.mxu0 0.0
      %1942 = vmatprep.subr.mxu0 0.0
      %1943 = vmatpush1.msra.mxu0 0.0
      %1944 = vmatprep.subr.mxu0 0.0
      %1945 = vmatpush1.msra.mxu0 0.0
      %1946 = vmatprep.subr.mxu0 0.0
      %1947 = vmatpush1.msra.mxu0 0.0
      %1948 = vmatprep.subr.mxu0 0.0
      %1949 = vmatpush1.msra.mxu0 0.0
      %1950 = vmatprep.subr.mxu0 0.0
      %1951 = vmatpush1.msra.mxu0 0.0
      %1952 = vmatprep.subr.mxu0 0.0
      %1953 = vmatpush1.msra.mxu0 0.0
      %1954 = vmatprep.subr.mxu0 0.0
      %1955 = vmatpush1.msra.mxu0 0.0
      %1956 = vmatprep.mubr.f32.mxu0 0.0
      %1957 = vmatmul.mubr.f32.gmra.mrb[0].mxu0 %v1818
      %v1958 = vpop.f32.mrb[0].mxu0
      %v1959 = vadd.f32 0.0, %v1958
      %v1960 = vpop.f32.mrb[0].mxu0
      %v1961 = vadd.f32 0.0, %v1960
      %1962 = vdwg.mxu0
      %v1967 = vcombine.low %v1888, %v1890
      %v1968 = vcombine.low %v1959, %v1961
      %v1970 = vunpack.c.l.s4 1983009808
      %v1971 = vunpack.c.0.s8 %v1970
      %v1972 = vlaneseq
      %v1973 = vshrl.u32 %v1972, 7
      %v1974 = vsub.s32 %v1971, %v1973
      %v1975 = vrot.slane %v1967, %v1974
      %v1977 = vunpack.c.l.s4 1983009808
      %v1978 = vunpack.c.0.s8 %v1977
      %v1979 = vlaneseq
      %v1980 = vshrl.u32 %v1979, 7
      %v1981 = vsub.s32 %v1978, %v1980
      %v1982 = vrot.slane %v1968, %v1981
      %v1983 = vcombine.low %v1975, %v1982
      %v1985 = vadd.f32 %v1820, %v1983
      %v1986 = vxor.u32 %v1985, 2147483648
      %v1987 = vmul.f32 %v1986, 1.442695
      %v1988 = vpow.pop %v1987
      %v1989 = vadd.f32 %v1988, 1.0
      %v1990 = vrcp.pop %v1989
      %v1991 = vmul.f32 1.0, %v1990
      %v1993 = vrot.slane %v1985, 2
      %v1995 = vxor.u32 %v1993, 2147483648
      %v1996 = vmul.f32 %v1995, 1.442695
      %v1997 = vpow.pop %v1996
      %v1998 = vadd.f32 %v1997, 1.0
      %v1999 = vrcp.pop %v1998
      %v2000 = vmul.f32 1.0, %v1999
      %v2001 = vrot.slane %v1985, 4
      %v2003 = vtanh.pop %v2001
      %v2004 = vrot.slane %v1985, 6
      %v2006 = vxor.u32 %v2004, 2147483648
      %v2007 = vmul.f32 %v2006, 1.442695
      %v2008 = vpow.pop %v2007
      %v2009 = vadd.f32 %v2008, 1.0
      %v2010 = vrcp.pop %v2009
      %v2011 = vmul.f32 1.0, %v2010
      %v2012 = vmul.f32 %v2000, %v1816
      %v2013 = vmul.f32 %v1991, %v2003
      %v2014 = vadd.f32 %v2012, %v2013
      %v2015 = vtanh.pop %v2014
      %v2016 = vmul.f32 %v2011, %v2015
      %s2017 = scalar_lea.vmem %s159, 72
      %v2018 = vld [vmem:[%s2017] sm:$0xff]
      %2019 = vmatprep.subr.mxu0 %v173
      %2020 = vmatpush1.msra.mxu0 %v172
      %2021 = vmatprep.subr.mxu0 %v177
      %2022 = vmatpush1.msra.mxu0 %v176
      %2023 = vmatprep.subr.mxu0 %v181
      %2024 = vmatpush1.msra.mxu0 %v180
      %2025 = vmatprep.subr.mxu0 %v185
      %2026 = vmatpush1.msra.mxu0 %v184
      %2027 = vmatprep.subr.mxu0 %v189
      %2028 = vmatpush1.msra.mxu0 %v188
      %2029 = vmatprep.subr.mxu0 %v193
      %2030 = vmatpush1.msra.mxu0 %v192
      %2031 = vmatprep.subr.mxu0 %v197
      %2032 = vmatpush1.msra.mxu0 %v196
      %2033 = vmatprep.subr.mxu0 %v201
      %2034 = vmatpush1.msra.mxu0 %v200
      %2035 = vmatprep.subr.mxu0 %v205
      %2036 = vmatpush1.msra.mxu0 %v204
      %2037 = vmatprep.subr.mxu0 %v209
      %2038 = vmatpush1.msra.mxu0 %v208
      %2039 = vmatprep.subr.mxu0 %v213
      %2040 = vmatpush1.msra.mxu0 %v212
      %2041 = vmatprep.subr.mxu0 %v217
      %2042 = vmatpush1.msra.mxu0 %v216
      %2043 = vmatprep.subr.mxu0 %v221
      %2044 = vmatpush1.msra.mxu0 %v220
      %2045 = vmatprep.subr.mxu0 %v225
      %2046 = vmatpush1.msra.mxu0 %v224
      %2047 = vmatprep.subr.mxu0 %v229
      %2048 = vmatpush1.msra.mxu0 %v228
      %2049 = vmatprep.subr.mxu0 %v233
      %2050 = vmatpush1.msra.mxu0 %v232
      %2051 = vmatprep.subr.mxu0 0.0
      %2052 = vmatpush1.msra.mxu0 0.0
      %2053 = vmatprep.subr.mxu0 0.0
      %2054 = vmatpush1.msra.mxu0 0.0
      %2055 = vmatprep.subr.mxu0 0.0
      %2056 = vmatpush1.msra.mxu0 0.0
      %2057 = vmatprep.subr.mxu0 0.0
      %2058 = vmatpush1.msra.mxu0 0.0
      %2059 = vmatprep.subr.mxu0 0.0
      %2060 = vmatpush1.msra.mxu0 0.0
      %2061 = vmatprep.subr.mxu0 0.0
      %2062 = vmatpush1.msra.mxu0 0.0
      %2063 = vmatprep.subr.mxu0 0.0
      %2064 = vmatpush1.msra.mxu0 0.0
      %2065 = vmatprep.subr.mxu0 0.0
      %2066 = vmatpush1.msra.mxu0 0.0
      %2067 = vmatprep.subr.mxu0 0.0
      %2068 = vmatpush1.msra.mxu0 0.0
      %2069 = vmatprep.subr.mxu0 0.0
      %2070 = vmatpush1.msra.mxu0 0.0
      %2071 = vmatprep.subr.mxu0 0.0
      %2072 = vmatpush1.msra.mxu0 0.0
      %2073 = vmatprep.subr.mxu0 0.0
      %2074 = vmatpush1.msra.mxu0 0.0
      %2075 = vmatprep.subr.mxu0 0.0
      %2076 = vmatpush1.msra.mxu0 0.0
      %2077 = vmatprep.subr.mxu0 0.0
      %2078 = vmatpush1.msra.mxu0 0.0
      %2079 = vmatprep.subr.mxu0 0.0
      %2080 = vmatpush1.msra.mxu0 0.0
      %2081 = vmatprep.subr.mxu0 0.0
      %2082 = vmatpush1.msra.mxu0 0.0
      %2083 = vmatprep.mubr.f32.mxu0 0.0
      %2084 = vmatmul.mubr.f32.gmra.mrb[0].mxu0 %v2016
      %v2085 = vpop.f32.mrb[0].mxu0
      %v2086 = vadd.f32 0.0, %v2085
      %v2087 = vpop.f32.mrb[0].mxu0
      %v2088 = vadd.f32 0.0, %v2087
      %2089 = vdwg.mxu0
      %2090 = vmatprep.subr.mxu0 %v175
      %2091 = vmatpush1.msra.mxu0 %v174
      %2092 = vmatprep.subr.mxu0 %v179
      %2093 = vmatpush1.msra.mxu0 %v178
      %2094 = vmatprep.subr.mxu0 %v183
      %2095 = vmatpush1.msra.mxu0 %v182
      %2096 = vmatprep.subr.mxu0 %v187
      %2097 = vmatpush1.msra.mxu0 %v186
      %2098 = vmatprep.subr.mxu0 %v191
      %2099 = vmatpush1.msra.mxu0 %v190
      %2100 = vmatprep.subr.mxu0 %v195
      %2101 = vmatpush1.msra.mxu0 %v194
      %2102 = vmatprep.subr.mxu0 %v199
      %2103 = vmatpush1.msra.mxu0 %v198
      %2104 = vmatprep.subr.mxu0 %v203
      %2105 = vmatpush1.msra.mxu0 %v202
      %2106 = vmatprep.subr.mxu0 %v207
      %2107 = vmatpush1.msra.mxu0 %v206
      %2108 = vmatprep.subr.mxu0 %v211
      %2109 = vmatpush1.msra.mxu0 %v210
      %2110 = vmatprep.subr.mxu0 %v215
      %2111 = vmatpush1.msra.mxu0 %v214
      %2112 = vmatprep.subr.mxu0 %v219
      %2113 = vmatpush1.msra.mxu0 %v218
      %2114 = vmatprep.subr.mxu0 %v223
      %2115 = vmatpush1.msra.mxu0 %v222
      %2116 = vmatprep.subr.mxu0 %v227
      %2117 = vmatpush1.msra.mxu0 %v226
      %2118 = vmatprep.subr.mxu0 %v231
      %2119 = vmatpush1.msra.mxu0 %v230
      %2120 = vmatprep.subr.mxu0 %v235
      %2121 = vmatpush1.msra.mxu0 %v234
      %2122 = vmatprep.subr.mxu0 0.0
      %2123 = vmatpush1.msra.mxu0 0.0
      %2124 = vmatprep.subr.mxu0 0.0
      %2125 = vmatpush1.msra.mxu0 0.0
      %2126 = vmatprep.subr.mxu0 0.0
      %2127 = vmatpush1.msra.mxu0 0.0
      %2128 = vmatprep.subr.mxu0 0.0
      %2129 = vmatpush1.msra.mxu0 0.0
      %2130 = vmatprep.subr.mxu0 0.0
      %2131 = vmatpush1.msra.mxu0 0.0
      %2132 = vmatprep.subr.mxu0 0.0
      %2133 = vmatpush1.msra.mxu0 0.0
      %2134 = vmatprep.subr.mxu0 0.0
      %2135 = vmatpush1.msra.mxu0 0.0
      %2136 = vmatprep.subr.mxu0 0.0
      %2137 = vmatpush1.msra.mxu0 0.0
      %2138 = vmatprep.subr.mxu0 0.0
      %2139 = vmatpush1.msra.mxu0 0.0
      %2140 = vmatprep.subr.mxu0 0.0
      %2141 = vmatpush1.msra.mxu0 0.0
      %2142 = vmatprep.subr.mxu0 0.0
      %2143 = vmatpush1.msra.mxu0 0.0
      %2144 = vmatprep.subr.mxu0 0.0
      %2145 = vmatpush1.msra.mxu0 0.0
      %2146 = vmatprep.subr.mxu0 0.0
      %2147 = vmatpush1.msra.mxu0 0.0
      %2148 = vmatprep.subr.mxu0 0.0
      %2149 = vmatpush1.msra.mxu0 0.0
      %2150 = vmatprep.subr.mxu0 0.0
      %2151 = vmatpush1.msra.mxu0 0.0
      %2152 = vmatprep.subr.mxu0 0.0
      %2153 = vmatpush1.msra.mxu0 0.0
      %2154 = vmatprep.mubr.f32.mxu0 0.0
      %2155 = vmatmul.mubr.f32.gmra.mrb[0].mxu0 %v2016
      %v2156 = vpop.f32.mrb[0].mxu0
      %v2157 = vadd.f32 0.0, %v2156
      %v2158 = vpop.f32.mrb[0].mxu0
      %v2159 = vadd.f32 0.0, %v2158
      %2160 = vdwg.mxu0
      %v2165 = vcombine.low %v2086, %v2088
      %v2166 = vcombine.low %v2157, %v2159
      %v2168 = vunpack.c.l.s4 1983009808
      %v2169 = vunpack.c.0.s8 %v2168
      %v2170 = vlaneseq
      %v2171 = vshrl.u32 %v2170, 7
      %v2172 = vsub.s32 %v2169, %v2171
      %v2173 = vrot.slane %v2165, %v2172
      %v2175 = vunpack.c.l.s4 1983009808
      %v2176 = vunpack.c.0.s8 %v2175
      %v2177 = vlaneseq
      %v2178 = vshrl.u32 %v2177, 7
      %v2179 = vsub.s32 %v2176, %v2178
      %v2180 = vrot.slane %v2166, %v2179
      %v2181 = vcombine.low %v2173, %v2180
      %v2183 = vadd.f32 %v2018, %v2181
      %v2184 = vxor.u32 %v2183, 2147483648
      %v2185 = vmul.f32 %v2184, 1.442695
      %v2186 = vpow.pop %v2185
      %v2187 = vadd.f32 %v2186, 1.0
      %v2188 = vrcp.pop %v2187
      %v2189 = vmul.f32 1.0, %v2188
      %v2191 = vrot.slane %v2183, 2
      %v2193 = vxor.u32 %v2191, 2147483648
      %v2194 = vmul.f32 %v2193, 1.442695
      %v2195 = vpow.pop %v2194
      %v2196 = vadd.f32 %v2195, 1.0
      %v2197 = vrcp.pop %v2196
      %v2198 = vmul.f32 1.0, %v2197
      %v2199 = vrot.slane %v2183, 4
      %v2201 = vtanh.pop %v2199
      %v2202 = vrot.slane %v2183, 6
      %v2204 = vxor.u32 %v2202, 2147483648
      %v2205 = vmul.f32 %v2204, 1.442695
      %v2206 = vpow.pop %v2205
      %v2207 = vadd.f32 %v2206, 1.0
      %v2208 = vrcp.pop %v2207
      %v2209 = vmul.f32 1.0, %v2208
      %v2210 = vmul.f32 %v2198, %v2014
      %v2211 = vmul.f32 %v2189, %v2201
      %v2212 = vadd.f32 %v2210, %v2211
      %v2213 = vtanh.pop %v2212
      %v2214 = vmul.f32 %v2209, %v2213
      %2215 = vst [vmem:[%s171] sm:$0x3] %v2214
      %p2216 = scmp.lt.s32.totalorder %s13, 1
      %s2217 = scalar_select %p2216, %s13, 1
      %s2218 = smul.addr %s2217, 2
      %s2219 = scalar_lea.vmem %s2, %s2218
      // Predicated region
      $region29: #{nature_cnn_forward.12} parent=27 // pred_check
        %p2220 = pneg %p83
      $region30: #{nature_cnn_forward.12} parent=27 // pred_check_branch
        %2222 = sbr.rel (%p2220) target = $region32
      $region31: #{nature_cnn_forward.12} parent=27 // pred_region
        _
      $region32: #{nature_cnn_forward.12} parent=27 // pred_fallthru
        _
    $region28: #{nature_cnn_forward.12} parent=5 // pred_fallthru
      _
    %p2223 = scmp.le.s32.totalorder 2, %s8
    // Predicated region
    $region33: #{nature_cnn_forward.12} parent=5 // pred_check
      %p2224 = pneg %p2223
    $region34: #{nature_cnn_forward.12} parent=5 // pred_check_branch
      %2226 = sbr.rel (%p2224) target = $region36
    $region35: #{nature_cnn_forward.12} parent=5 // pred_region
      %s2227 = ssub.s32 %s8, 2
      // Predicated region
      $region37: #{nature_cnn_forward.12} parent=35 // pred_check
        %p2228 = pneg %p89
      $region38: #{nature_cnn_forward.12} parent=35 // pred_check_branch
        %2230 = sbr.rel (%p2228) target = $region40
      $region39: #{nature_cnn_forward.12} parent=35 // pred_region
        %p2231 = scmp.lt.s32.totalorder %s14, 1
        %s2232 = scalar_select %p2231, %s14, 1
        %s2233 = smul.addr %s2232, 2
        %s2234 = scalar_lea.vmem %s2, %s2233
      $region40: #{nature_cnn_forward.12} parent=35 // pred_fallthru
        _
    $region36: #{nature_cnn_forward.12} parent=5 // pred_fallthru
      _
  $region6: #{nature_cnn_forward.12} parent=0 // loop_footer
    %s12 = sadd.s32 1, %s8
  $region7: #{nature_cnn_forward.12} parent=0 // loop_footer_branch
    %7 = sbr.rel target = $region3
  $region8: #{nature_cnn_forward.12} parent=0 // loop_exit
    _

// kernel: nature_cnn_forward.13
$region0: #{nature_cnn_forward.13}
  #allocation0 [shape = 'u32[]', space=smem, size = 0x4, offset = 0x4, fixed_abs, tag = 'smem constant byte address 0x4 - core index']
  #allocation1 [shape = 'u32[144,128]{1,0:T(1,128)}', space=vmem, size = 0x12000, scoped, tag = 'internal scratch']
  %s0 = inlined_call_operand.vmem [shape: bf16[2,256], index: 0, kind: input, shape index: {}]
  %s1 = inlined_call_operand.vmem [shape: bf16[256,512], index: 1, kind: input, shape index: {}]
  %s2 = inlined_call_operand.vmem [shape: f32[1,512], index: 2, kind: input, shape index: {}]
  %s3 = inlined_call_operand.vmem [shape: bf16[512,128], index: 3, kind: input, shape index: {}]
  %s4 = inlined_call_operand.vmem [shape: f32[1,128], index: 4, kind: input, shape index: {}]
  %s5 = inlined_call_operand.hbm [shape: f32[2,128], index: 5, kind: output, shape index: {}]
  %s6 = sld [smem:[#allocation0]]
  $region30: #{nature_cnn_forward.13} parent=0
    _
  %s8 = ssub.s32 1, %s6
  %s9 = scalar_select 0, %s8, %s6
  $region1: #{nature_cnn_forward.13} parent=0
    #allocation2 [shape = 'u8[1024]{0}', space=vmem, size = 0x400, scoped, tag = 'output window, operand 0, single buffered']
    #allocation3 [shape = 's32[1]{0}', space=sflag, size = 0x4, scoped, tag = 'scoped memory for nature_cnn_forward.13']
    %10 = vsyncpa [#allocation3], 0
    // Predicated region
    $region2: #{nature_cnn_forward.13} parent=1 // pred_check
      _
    $region3: #{nature_cnn_forward.13} parent=1 // pred_check_branch
      %12 = sbr.rel (0) target = $region5
    $region4: #{nature_cnn_forward.13} parent=1 // pred_region
      _
    $region5: #{nature_cnn_forward.13} parent=1 // pred_fallthru
      _
    // Predicated region
    $region6: #{nature_cnn_forward.13} parent=1 // pred_check
      _
    $region7: #{nature_cnn_forward.13} parent=1 // pred_check_branch
      %14 = sbr.rel (0) target = $region9
    $region8: #{nature_cnn_forward.13} parent=1 // pred_region
      _
    $region9: #{nature_cnn_forward.13} parent=1 // pred_fallthru
      _
    // Predicated region
    $region10: #{nature_cnn_forward.13} parent=1 // pred_check
      _
    $region11: #{nature_cnn_forward.13} parent=1 // pred_check_branch
      %16 = sbr.rel (0) target = $region13
    $region12: #{nature_cnn_forward.13} parent=1 // pred_region
      _
    $region13: #{nature_cnn_forward.13} parent=1 // pred_fallthru
      _
    // Predicated region
    $region14: #{nature_cnn_forward.13} parent=1 // pred_check
      _
    $region15: #{nature_cnn_forward.13} parent=1 // pred_check_branch
      %18 = sbr.rel (0) target = $region17
    $region16: #{nature_cnn_forward.13} parent=1 // pred_region
      _
    $region17: #{nature_cnn_forward.13} parent=1 // pred_fallthru
      _
    // Predicated region
    $region18: #{nature_cnn_forward.13} parent=1 // pred_check
      _
    $region19: #{nature_cnn_forward.13} parent=1 // pred_check_branch
      %20 = sbr.rel (0) target = $region21
    $region20: #{nature_cnn_forward.13} parent=1 // pred_region
      _
    $region21: #{nature_cnn_forward.13} parent=1 // pred_fallthru
      _
    %v22 = vld [vmem:[%s0] sm:$0x3]
    %v23 = vld [vmem:[%s1] sm:$0xff]
    %v24 = vld [vmem:[%s1 + $0x8] sm:$0xff]
    %v25 = vld [vmem:[%s1 + $0x10] sm:$0xff]
    %v26 = vld [vmem:[%s1 + $0x18] sm:$0xff]
    %v27 = vld [vmem:[%s1 + $0x20] sm:$0xff]
    %v28 = vld [vmem:[%s1 + $0x28] sm:$0xff]
    %v29 = vld [vmem:[%s1 + $0x30] sm:$0xff]
    %v30 = vld [vmem:[%s1 + $0x38] sm:$0xff]
    %v31 = vld [vmem:[%s1 + $0x40] sm:$0xff]
    %v32 = vld [vmem:[%s1 + $0x48] sm:$0xff]
    %v33 = vld [vmem:[%s1 + $0x50] sm:$0xff]
    %v34 = vld [vmem:[%s1 + $0x58] sm:$0xff]
    %v35 = vld [vmem:[%s1 + $0x60] sm:$0xff]
    %v36 = vld [vmem:[%s1 + $0x68] sm:$0xff]
    %v37 = vld [vmem:[%s1 + $0x70] sm:$0xff]
    %v38 = vld [vmem:[%s1 + $0x78] sm:$0xff]
    %v39 = vld [vmem:[%s1 + $0x80] sm:$0xff]
    %v40 = vld [vmem:[%s1 + $0x88] sm:$0xff]
    %v41 = vld [vmem:[%s1 + $0x90] sm:$0xff]
    %v42 = vld [vmem:[%s1 + $0x98] sm:$0xff]
    %v43 = vld [vmem:[%s1 + $0xa0] sm:$0xff]
    %v44 = vld [vmem:[%s1 + $0xa8] sm:$0xff]
    %v45 = vld [vmem:[%s1 + $0xb0] sm:$0xff]
    %v46 = vld [vmem:[%s1 + $0xb8] sm:$0xff]
    %v47 = vld [vmem:[%s1 + $0xc0] sm:$0xff]
    %v48 = vld [vmem:[%s1 + $0xc8] sm:$0xff]
    %v49 = vld [vmem:[%s1 + $0xd0] sm:$0xff]
    %v50 = vld [vmem:[%s1 + $0xd8] sm:$0xff]
    %v51 = vld [vmem:[%s1 + $0xe0] sm:$0xff]
    %v52 = vld [vmem:[%s1 + $0xe8] sm:$0xff]
    %v53 = vld [vmem:[%s1 + $0xf0] sm:$0xff]
    %v54 = vld [vmem:[%s1 + $0xf8] sm:$0xff]
    %v55 = vld [vmem:[%s1 + $0x100] sm:$0xff]
    %v56 = vld [vmem:[%s1 + $0x108] sm:$0xff]
    %v57 = vld [vmem:[%s1 + $0x110] sm:$0xff]
    %v58 = vld [vmem:[%s1 + $0x118] sm:$0xff]
    %v59 = vld [vmem:[%s1 + $0x120] sm:$0xff]
    %v60 = vld [vmem:[%s1 + $0x128] sm:$0xff]
    %v61 = vld [vmem:[%s1 + $0x130] sm:$0xff]
    %v62 = vld [vmem:[%s1 + $0x138] sm:$0xff]
    %v63 = vld [vmem:[%s1 + $0x140] sm:$0xff]
    %v64 = vld [vmem:[%s1 + $0x148] sm:$0xff]
    %v65 = vld [vmem:[%s1 + $0x150] sm:$0xff]
    %v66 = vld [vmem:[%s1 + $0x158] sm:$0xff]
    %v67 = vld [vmem:[%s1 + $0x160] sm:$0xff]
    %v68 = vld [vmem:[%s1 + $0x168] sm:$0xff]
    %v69 = vld [vmem:[%s1 + $0x170] sm:$0xff]
    %v70 = vld [vmem:[%s1 + $0x178] sm:$0xff]
    %v71 = vld [vmem:[%s1 + $0x180] sm:$0xff]
    %v72 = vld [vmem:[%s1 + $0x188] sm:$0xff]
    %v73 = vld [vmem:[%s1 + $0x190] sm:$0xff]
    %v74 = vld [vmem:[%s1 + $0x198] sm:$0xff]
    %v75 = vld [vmem:[%s1 + $0x1a0] sm:$0xff]
    %v76 = vld [vmem:[%s1 + $0x1a8] sm:$0xff]
    %v77 = vld [vmem:[%s1 + $0x1b0] sm:$0xff]
    %v78 = vld [vmem:[%s1 + $0x1b8] sm:$0xff]
    %v79 = vld [vmem:[%s1 + $0x1c0] sm:$0xff]
    %v80 = vld [vmem:[%s1 + $0x1c8] sm:$0xff]
    %v81 = vld [vmem:[%s1 + $0x1d0] sm:$0xff]
    %v82 = vld [vmem:[%s1 + $0x1d8] sm:$0xff]
    %v83 = vld [vmem:[%s1 + $0x1e0] sm:$0xff]
    %v84 = vld [vmem:[%s1 + $0x1e8] sm:$0xff]
    %v85 = vld [vmem:[%s1 + $0x1f0] sm:$0xff]
    %v86 = vld [vmem:[%s1 + $0x1f8] sm:$0xff]
    %v87 = vld [vmem:[%s2] sm:$0xf]
    %v89 = vlaneseq
    %v90 = vshrl.u32 %v89, 7
    %v91 = vsub.s32 0, %v90
    %v92 = vrot.slane %v87, %v91
    %v93 = vlaneseq
    %v94 = vshrl.u32 %v93, 7
    %v95 = vsub.s32 1, %v94
    %v96 = vrot.slane %v87, %v95
    %v97 = vlaneseq
    %v98 = vshrl.u32 %v97, 7
    %v99 = vsub.s32 2, %v98
    %v100 = vrot.slane %v87, %v99
    %v101 = vlaneseq
    %v102 = vshrl.u32 %v101, 7
    %v103 = vsub.s32 3, %v102
    %v104 = vrot.slane %v87, %v103
    %v111 = vunpack.c.l.s4 1966171168
    %v112 = vunpack.c.0.s8 %v111
    %v113 = vlaneseq
    %v114 = vshrl.u32 %v113, 7
    %v115 = vsub.s32 %v112, %v114
    %v116 = vrot.slane %v22, %v115
    %v117 = vcombine.high %v116, %v116
    %v119 = vunpack.c.l.s4 1966171168
    %v120 = vunpack.c.0.s8 %v119
    %v121 = vlaneseq
    %v122 = vshrl.u32 %v121, 7
    %v123 = vsub.s32 %v120, %v122
    %v124 = vrot.slane %v116, %v123
    %v126 = vunpack.c.l.s4 1966171168
    %v127 = vunpack.c.0.s8 %v126
    %v128 = vlaneseq
    %v129 = vshrl.u32 %v128, 7
    %v130 = vsub.s32 %v127, %v129
    %v131 = vrot.slane %v117, %v130
    %v198 = vunpack.c.l.b16 %v23
    %v199 = vunpack.c.h.b16 %v23
    %v200 = vunpack.c.l.b16 %v24
    %v201 = vunpack.c.h.b16 %v24
    %v202 = vunpack.c.l.b16 %v25
    %v203 = vunpack.c.h.b16 %v25
    %v204 = vunpack.c.l.b16 %v26
    %v205 = vunpack.c.h.b16 %v26
    %v206 = vunpack.c.l.b16 %v27
    %v207 = vunpack.c.h.b16 %v27
    %v208 = vunpack.c.l.b16 %v28
    %v209 = vunpack.c.h.b16 %v28
    %v210 = vunpack.c.l.b16 %v29
    %v211 = vunpack.c.h.b16 %v29
    %v212 = vunpack.c.l.b16 %v30
    %v213 = vunpack.c.h.b16 %v30
    %v214 = vunpack.c.l.b16 %v31
    %v215 = vunpack.c.h.b16 %v31
    %v216 = vunpack.c.l.b16 %v32
    %v217 = vunpack.c.h.b16 %v32
    %v218 = vunpack.c.l.b16 %v33
    %v219 = vunpack.c.h.b16 %v33
    %v220 = vunpack.c.l.b16 %v34
    %v221 = vunpack.c.h.b16 %v34
    %v222 = vunpack.c.l.b16 %v35
    %v223 = vunpack.c.h.b16 %v35
    %v224 = vunpack.c.l.b16 %v36
    %v225 = vunpack.c.h.b16 %v36
    %v226 = vunpack.c.l.b16 %v37
    %v227 = vunpack.c.h.b16 %v37
    %v228 = vunpack.c.l.b16 %v38
    %v229 = vunpack.c.h.b16 %v38
    %v230 = vunpack.c.l.b16 %v39
    %v231 = vunpack.c.h.b16 %v39
    %v232 = vunpack.c.l.b16 %v40
    %v233 = vunpack.c.h.b16 %v40
    %v234 = vunpack.c.l.b16 %v41
    %v235 = vunpack.c.h.b16 %v41
    %v236 = vunpack.c.l.b16 %v42
    %v237 = vunpack.c.h.b16 %v42
    %v238 = vunpack.c.l.b16 %v43
    %v239 = vunpack.c.h.b16 %v43
    %v240 = vunpack.c.l.b16 %v44
    %v241 = vunpack.c.h.b16 %v44
    %v242 = vunpack.c.l.b16 %v45
    %v243 = vunpack.c.h.b16 %v45
    %v244 = vunpack.c.l.b16 %v46
    %v245 = vunpack.c.h.b16 %v46
    %v246 = vunpack.c.l.b16 %v47
    %v247 = vunpack.c.h.b16 %v47
    %v248 = vunpack.c.l.b16 %v48
    %v249 = vunpack.c.h.b16 %v48
    %v250 = vunpack.c.l.b16 %v49
    %v251 = vunpack.c.h.b16 %v49
    %v252 = vunpack.c.l.b16 %v50
    %v253 = vunpack.c.h.b16 %v50
    %v254 = vunpack.c.l.b16 %v51
    %v255 = vunpack.c.h.b16 %v51
    %v256 = vunpack.c.l.b16 %v52
    %v257 = vunpack.c.h.b16 %v52
    %v258 = vunpack.c.l.b16 %v53
    %v259 = vunpack.c.h.b16 %v53
    %v260 = vunpack.c.l.b16 %v54
    %v261 = vunpack.c.h.b16 %v54
    %v262 = vunpack.c.l.b16 %v55
    %v263 = vunpack.c.h.b16 %v55
    %v264 = vunpack.c.l.b16 %v56
    %v265 = vunpack.c.h.b16 %v56
    %v266 = vunpack.c.l.b16 %v57
    %v267 = vunpack.c.h.b16 %v57
    %v268 = vunpack.c.l.b16 %v58
    %v269 = vunpack.c.h.b16 %v58
    %v270 = vunpack.c.l.b16 %v59
    %v271 = vunpack.c.h.b16 %v59
    %v272 = vunpack.c.l.b16 %v60
    %v273 = vunpack.c.h.b16 %v60
    %v274 = vunpack.c.l.b16 %v61
    %v275 = vunpack.c.h.b16 %v61
    %v276 = vunpack.c.l.b16 %v62
    %v277 = vunpack.c.h.b16 %v62
    %v278 = vunpack.c.l.b16 %v63
    %v279 = vunpack.c.h.b16 %v63
    %v280 = vunpack.c.l.b16 %v64
    %v281 = vunpack.c.h.b16 %v64
    %v282 = vunpack.c.l.b16 %v65
    %v283 = vunpack.c.h.b16 %v65
    %v284 = vunpack.c.l.b16 %v66
    %v285 = vunpack.c.h.b16 %v66
    %v286 = vunpack.c.l.b16 %v67
    %v287 = vunpack.c.h.b16 %v67
    %v288 = vunpack.c.l.b16 %v68
    %v289 = vunpack.c.h.b16 %v68
    %v290 = vunpack.c.l.b16 %v69
    %v291 = vunpack.c.h.b16 %v69
    %v292 = vunpack.c.l.b16 %v70
    %v293 = vunpack.c.h.b16 %v70
    %v294 = vunpack.c.l.b16 %v71
    %v295 = vunpack.c.h.b16 %v71
    %v296 = vunpack.c.l.b16 %v72
    %v297 = vunpack.c.h.b16 %v72
    %v298 = vunpack.c.l.b16 %v73
    %v299 = vunpack.c.h.b16 %v73
    %v300 = vunpack.c.l.b16 %v74
    %v301 = vunpack.c.h.b16 %v74
    %v302 = vunpack.c.l.b16 %v75
    %v303 = vunpack.c.h.b16 %v75
    %v304 = vunpack.c.l.b16 %v76
    %v305 = vunpack.c.h.b16 %v76
    %v306 = vunpack.c.l.b16 %v77
    %v307 = vunpack.c.h.b16 %v77
    %v308 = vunpack.c.l.b16 %v78
    %v309 = vunpack.c.h.b16 %v78
    %v310 = vunpack.c.l.b16 %v79
    %v311 = vunpack.c.h.b16 %v79
    %v312 = vunpack.c.l.b16 %v80
    %v313 = vunpack.c.h.b16 %v80
    %v314 = vunpack.c.l.b16 %v81
    %v315 = vunpack.c.h.b16 %v81
    %v316 = vunpack.c.l.b16 %v82
    %v317 = vunpack.c.h.b16 %v82
    %v318 = vunpack.c.l.b16 %v83
    %v319 = vunpack.c.h.b16 %v83
    %v320 = vunpack.c.l.b16 %v84
    %v321 = vunpack.c.h.b16 %v84
    %v322 = vunpack.c.l.b16 %v85
    %v323 = vunpack.c.h.b16 %v85
    %v324 = vunpack.c.l.b16 %v86
    %v325 = vunpack.c.h.b16 %v86
    %v326 = vpack.c.b16 %v202, %v198
    %v327 = vpack.c.b16 %v203, %v199
    %v328 = vpack.c.b16 %v204, %v200
    %v329 = vpack.c.b16 %v205, %v201
    %v330 = vpack.c.b16 %v210, %v206
    %v331 = vpack.c.b16 %v211, %v207
    %v332 = vpack.c.b16 %v212, %v208
    %v333 = vpack.c.b16 %v213, %v209
    %v334 = vpack.c.b16 %v218, %v214
    %v335 = vpack.c.b16 %v219, %v215
    %v336 = vpack.c.b16 %v220, %v216
    %v337 = vpack.c.b16 %v221, %v217
    %v338 = vpack.c.b16 %v226, %v222
    %v339 = vpack.c.b16 %v227, %v223
    %v340 = vpack.c.b16 %v228, %v224
    %v341 = vpack.c.b16 %v229, %v225
    %v342 = vpack.c.b16 %v234, %v230
    %v343 = vpack.c.b16 %v235, %v231
    %v344 = vpack.c.b16 %v236, %v232
    %v345 = vpack.c.b16 %v237, %v233
    %v346 = vpack.c.b16 %v242, %v238
    %v347 = vpack.c.b16 %v243, %v239
    %v348 = vpack.c.b16 %v244, %v240
    %v349 = vpack.c.b16 %v245, %v241
    %v350 = vpack.c.b16 %v250, %v246
    %v351 = vpack.c.b16 %v251, %v247
    %v352 = vpack.c.b16 %v252, %v248
    %v353 = vpack.c.b16 %v253, %v249
    %v354 = vpack.c.b16 %v258, %v254
    %v355 = vpack.c.b16 %v259, %v255
    %v356 = vpack.c.b16 %v260, %v256
    %v357 = vpack.c.b16 %v261, %v257
    %v358 = vpack.c.b16 %v266, %v262
    %v359 = vpack.c.b16 %v267, %v263
    %v360 = vpack.c.b16 %v268, %v264
    %v361 = vpack.c.b16 %v269, %v265
    %v362 = vpack.c.b16 %v274, %v270
    %v363 = vpack.c.b16 %v275, %v271
    %v364 = vpack.c.b16 %v276, %v272
    %v365 = vpack.c.b16 %v277, %v273
    %v366 = vpack.c.b16 %v282, %v278
    %v367 = vpack.c.b16 %v283, %v279
    %v368 = vpack.c.b16 %v284, %v280
    %v369 = vpack.c.b16 %v285, %v281
    %v370 = vpack.c.b16 %v290, %v286
    %v371 = vpack.c.b16 %v291, %v287
    %v372 = vpack.c.b16 %v292, %v288
    %v373 = vpack.c.b16 %v293, %v289
    %v374 = vpack.c.b16 %v298, %v294
    %v375 = vpack.c.b16 %v299, %v295
    %v376 = vpack.c.b16 %v300, %v296
    %v377 = vpack.c.b16 %v301, %v297
    %v378 = vpack.c.b16 %v306, %v302
    %v379 = vpack.c.b16 %v307, %v303
    %v380 = vpack.c.b16 %v308, %v304
    %v381 = vpack.c.b16 %v309, %v305
    %v382 = vpack.c.b16 %v314, %v310
    %v383 = vpack.c.b16 %v315, %v311
    %v384 = vpack.c.b16 %v316, %v312
    %v385 = vpack.c.b16 %v317, %v313
    %v386 = vpack.c.b16 %v322, %v318
    %v387 = vpack.c.b16 %v323, %v319
    %v388 = vpack.c.b16 %v324, %v320
    %v389 = vpack.c.b16 %v325, %v321
    %454 = vmatprep.subr.bf16.mxu0 %v327
    %455 = vmatpush1.bf16.msra.mxu0 %v326
    %456 = vmatprep.subr.bf16.mxu0 %v331
    %457 = vmatpush1.bf16.msra.mxu0 %v330
    %458 = vmatprep.subr.bf16.mxu0 %v335
    %459 = vmatpush1.bf16.msra.mxu0 %v334
    %460 = vmatprep.subr.bf16.mxu0 %v339
    %461 = vmatpush1.bf16.msra.mxu0 %v338
    %462 = vmatprep.subr.bf16.mxu0 %v343
    %463 = vmatpush1.bf16.msra.mxu0 %v342
    %464 = vmatprep.subr.bf16.mxu0 %v347
    %465 = vmatpush1.bf16.msra.mxu0 %v346
    %466 = vmatprep.subr.bf16.mxu0 %v351
    %467 = vmatpush1.bf16.msra.mxu0 %v350
    %468 = vmatprep.subr.bf16.mxu0 %v355
    %469 = vmatpush1.bf16.msra.mxu0 %v354
    %470 = vmatprep.subr.bf16.mxu0 %v359
    %471 = vmatpush1.bf16.msra.mxu0 %v358
    %472 = vmatprep.subr.bf16.mxu0 %v363
    %473 = vmatpush1.bf16.msra.mxu0 %v362
    %474 = vmatprep.subr.bf16.mxu0 %v367
    %475 = vmatpush1.bf16.msra.mxu0 %v366
    %476 = vmatprep.subr.bf16.mxu0 %v371
    %477 = vmatpush1.bf16.msra.mxu0 %v370
    %478 = vmatprep.subr.bf16.mxu0 %v375
    %479 = vmatpush1.bf16.msra.mxu0 %v374
    %480 = vmatprep.subr.bf16.mxu0 %v379
    %481 = vmatpush1.bf16.msra.mxu0 %v378
    %482 = vmatprep.subr.bf16.mxu0 %v383
    %483 = vmatpush1.bf16.msra.mxu0 %v382
    %484 = vmatprep.subr.bf16.mxu0 %v387
    %485 = vmatpush1.bf16.msra.mxu0 %v386
    %486 = vmatprep.mubr.bf16.mxu0 %v131
    %487 = vmatmul.mubr.bf16.gmra.mrb[0].mxu0 %v124
    %v488 = vpop.f32.mrb[0].mxu0
    %v489 = vadd.f32 %v92, %v488
    %v490 = vpop.f32.mrb[0].mxu0
    %v491 = vadd.f32 %v96, %v490
    %v492 = vpop.f32.mrb[0].mxu0
    %v493 = vpop.f32.mrb[0].mxu0
    %494 = vdwg.mxu0
    %495 = vmatprep.subr.bf16.mxu0 %v329
    %496 = vmatpush1.bf16.msra.mxu0 %v328
    %497 = vmatprep.subr.bf16.mxu0 %v333
    %498 = vmatpush1.bf16.msra.mxu0 %v332
    %499 = vmatprep.subr.bf16.mxu0 %v337
    %500 = vmatpush1.bf16.msra.mxu0 %v336
    %501 = vmatprep.subr.bf16.mxu0 %v341
    %502 = vmatpush1.bf16.msra.mxu0 %v340
    %503 = vmatprep.subr.bf16.mxu0 %v345
    %504 = vmatpush1.bf16.msra.mxu0 %v344
    %505 = vmatprep.subr.bf16.mxu0 %v349
    %506 = vmatpush1.bf16.msra.mxu0 %v348
    %507 = vmatprep.subr.bf16.mxu0 %v353
    %508 = vmatpush1.bf16.msra.mxu0 %v352
    %509 = vmatprep.subr.bf16.mxu0 %v357
    %510 = vmatpush1.bf16.msra.mxu0 %v356
    %511 = vmatprep.subr.bf16.mxu0 %v361
    %512 = vmatpush1.bf16.msra.mxu0 %v360
    %513 = vmatprep.subr.bf16.mxu0 %v365
    %514 = vmatpush1.bf16.msra.mxu0 %v364
    %515 = vmatprep.subr.bf16.mxu0 %v369
    %516 = vmatpush1.bf16.msra.mxu0 %v368
    %517 = vmatprep.subr.bf16.mxu0 %v373
    %518 = vmatpush1.bf16.msra.mxu0 %v372
    %519 = vmatprep.subr.bf16.mxu0 %v377
    %520 = vmatpush1.bf16.msra.mxu0 %v376
    %521 = vmatprep.subr.bf16.mxu0 %v381
    %522 = vmatpush1.bf16.msra.mxu0 %v380
    %523 = vmatprep.subr.bf16.mxu0 %v385
    %524 = vmatpush1.bf16.msra.mxu0 %v384
    %525 = vmatprep.subr.bf16.mxu0 %v389
    %526 = vmatpush1.bf16.msra.mxu0 %v388
    %527 = vmatprep.mubr.bf16.mxu0 %v131
    %528 = vmatmul.mubr.bf16.gmra.mrb[0].mxu0 %v124
    %v529 = vpop.f32.mrb[0].mxu0
    %v530 = vadd.f32 %v100, %v529
    %v531 = vpop.f32.mrb[0].mxu0
    %v532 = vadd.f32 %v104, %v531
    %v533 = vpop.f32.mrb[0].mxu0
    %v534 = vpop.f32.mrb[0].mxu0
    %535 = vdwg.mxu0
    %v536 = vmax.f32 %v489, 0.0
    %v537 = vmax.f32 %v491, 0.0
    %v538 = vmax.f32 %v530, 0.0
    %v539 = vmax.f32 %v532, 0.0
    %v540 = vpack.c.bf16 %v536, %v536
    %v541 = vpack.c.bf16 %v537, %v537
    %v542 = vpack.c.bf16 %v538, %v538
    %v543 = vpack.c.bf16 %v539, %v539
    %v544 = vld [vmem:[%s3] sm:$0xf]
    %v545 = vld [vmem:[%s3 + $0x4] sm:$0xf]
    %v546 = vld [vmem:[%s3 + $0x8] sm:$0xf]
    %v547 = vld [vmem:[%s3 + $0xc] sm:$0xf]
    %v548 = vld [vmem:[%s3 + $0x10] sm:$0xf]
    %v549 = vld [vmem:[%s3 + $0x14] sm:$0xf]
    %v550 = vld [vmem:[%s3 + $0x18] sm:$0xf]
    %v551 = vld [vmem:[%s3 + $0x1c] sm:$0xf]
    %v552 = vld [vmem:[%s3 + $0x20] sm:$0xf]
    %v553 = vld [vmem:[%s3 + $0x24] sm:$0xf]
    %v554 = vld [vmem:[%s3 + $0x28] sm:$0xf]
    %v555 = vld [vmem:[%s3 + $0x2c] sm:$0xf]
    %v556 = vld [vmem:[%s3 + $0x30] sm:$0xf]
    %v557 = vld [vmem:[%s3 + $0x34] sm:$0xf]
    %v558 = vld [vmem:[%s3 + $0x38] sm:$0xf]
    %v559 = vld [vmem:[%s3 + $0x3c] sm:$0xf]
    %v560 = vld [vmem:[%s3 + $0x40] sm:$0xf]
    %v561 = vld [vmem:[%s3 + $0x44] sm:$0xf]
    %v562 = vld [vmem:[%s3 + $0x48] sm:$0xf]
    %v563 = vld [vmem:[%s3 + $0x4c] sm:$0xf]
    %v564 = vld [vmem:[%s3 + $0x50] sm:$0xf]
    %v565 = vld [vmem:[%s3 + $0x54] sm:$0xf]
    %v566 = vld [vmem:[%s3 + $0x58] sm:$0xf]
    %v567 = vld [vmem:[%s3 + $0x5c] sm:$0xf]
    %v568 = vld [vmem:[%s3 + $0x60] sm:$0xf]
    %v569 = vld [vmem:[%s3 + $0x64] sm:$0xf]
    %v570 = vld [vmem:[%s3 + $0x68] sm:$0xf]
    %v571 = vld [vmem:[%s3 + $0x6c] sm:$0xf]
    %v572 = vld [vmem:[%s3 + $0x70] sm:$0xf]
    %v573 = vld [vmem:[%s3 + $0x74] sm:$0xf]
    %v574 = vld [vmem:[%s3 + $0x78] sm:$0xf]
    %v575 = vld [vmem:[%s3 + $0x7c] sm:$0xf]
    %v576 = vld [vmem:[%s3 + $0x80] sm:$0xf]
    %v577 = vld [vmem:[%s3 + $0x84] sm:$0xf]
    %v578 = vld [vmem:[%s3 + $0x88] sm:$0xf]
    %v579 = vld [vmem:[%s3 + $0x8c] sm:$0xf]
    %v580 = vld [vmem:[%s3 + $0x90] sm:$0xf]
    %v581 = vld [vmem:[%s3 + $0x94] sm:$0xf]
    %v582 = vld [vmem:[%s3 + $0x98] sm:$0xf]
    %v583 = vld [vmem:[%s3 + $0x9c] sm:$0xf]
    %v584 = vld [vmem:[%s3 + $0xa0] sm:$0xf]
    %v585 = vld [vmem:[%s3 + $0xa4] sm:$0xf]
    %v586 = vld [vmem:[%s3 + $0xa8] sm:$0xf]
    %v587 = vld [vmem:[%s3 + $0xac] sm:$0xf]
    %v588 = vld [vmem:[%s3 + $0xb0] sm:$0xf]
    %v589 = vld [vmem:[%s3 + $0xb4] sm:$0xf]
    %v590 = vld [vmem:[%s3 + $0xb8] sm:$0xf]
    %v591 = vld [vmem:[%s3 + $0xbc] sm:$0xf]
    %v592 = vld [vmem:[%s3 + $0xc0] sm:$0xf]
    %v593 = vld [vmem:[%s3 + $0xc4] sm:$0xf]
    %v594 = vld [vmem:[%s3 + $0xc8] sm:$0xf]
    %v595 = vld [vmem:[%s3 + $0xcc] sm:$0xf]
    %v596 = vld [vmem:[%s3 + $0xd0] sm:$0xf]
    %v597 = vld [vmem:[%s3 + $0xd4] sm:$0xf]
    %v598 = vld [vmem:[%s3 + $0xd8] sm:$0xf]
    %v599 = vld [vmem:[%s3 + $0xdc] sm:$0xf]
    %v600 = vld [vmem:[%s3 + $0xe0] sm:$0xf]
    %v601 = vld [vmem:[%s3 + $0xe4] sm:$0xf]
    %v602 = vld [vmem:[%s3 + $0xe8] sm:$0xf]
    %v603 = vld [vmem:[%s3 + $0xec] sm:$0xf]
    %v604 = vld [vmem:[%s3 + $0xf0] sm:$0xf]
    %v605 = vld [vmem:[%s3 + $0xf4] sm:$0xf]
    %v606 = vld [vmem:[%s3 + $0xf8] sm:$0xf]
    %v607 = vld [vmem:[%s3 + $0xfc] sm:$0xf]
    %v608 = vld [vmem:[%s4] sm:$0x1]
    %v610 = vlaneseq
    %v611 = vshrl.u32 %v610, 7
    %v612 = vsub.s32 0, %v611
    %v613 = vrot.slane %v608, %v612
    %v679 = vunpack.c.l.b16 %v544
    %v680 = vunpack.c.l.b16 %v545
    %v681 = vunpack.c.l.b16 %v546
    %v682 = vunpack.c.l.b16 %v547
    %v683 = vunpack.c.l.b16 %v548
    %v684 = vunpack.c.l.b16 %v549
    %v685 = vunpack.c.l.b16 %v550
    %v686 = vunpack.c.l.b16 %v551
    %v687 = vunpack.c.l.b16 %v552
    %v688 = vunpack.c.l.b16 %v553
    %v689 = vunpack.c.l.b16 %v554
    %v690 = vunpack.c.l.b16 %v555
    %v691 = vunpack.c.l.b16 %v556
    %v692 = vunpack.c.l.b16 %v557
    %v693 = vunpack.c.l.b16 %v558
    %v694 = vunpack.c.l.b16 %v559
    %v695 = vunpack.c.l.b16 %v560
    %v696 = vunpack.c.l.b16 %v561
    %v697 = vunpack.c.l.b16 %v562
    %v698 = vunpack.c.l.b16 %v563
    %v699 = vunpack.c.l.b16 %v564
    %v700 = vunpack.c.l.b16 %v565
    %v701 = vunpack.c.l.b16 %v566
    %v702 = vunpack.c.l.b16 %v567
    %v703 = vunpack.c.l.b16 %v568
    %v704 = vunpack.c.l.b16 %v569
    %v705 = vunpack.c.l.b16 %v570
    %v706 = vunpack.c.l.b16 %v571
    %v707 = vunpack.c.l.b16 %v572
    %v708 = vunpack.c.l.b16 %v573
    %v709 = vunpack.c.l.b16 %v574
    %v710 = vunpack.c.l.b16 %v575
    %v711 = vunpack.c.l.b16 %v576
    %v712 = vunpack.c.l.b16 %v577
    %v713 = vunpack.c.l.b16 %v578
    %v714 = vunpack.c.l.b16 %v579
    %v715 = vunpack.c.l.b16 %v580
    %v716 = vunpack.c.l.b16 %v581
    %v717 = vunpack.c.l.b16 %v582
    %v718 = vunpack.c.l.b16 %v583
    %v719 = vunpack.c.l.b16 %v584
    %v720 = vunpack.c.l.b16 %v585
    %v721 = vunpack.c.l.b16 %v586
    %v722 = vunpack.c.l.b16 %v587
    %v723 = vunpack.c.l.b16 %v588
    %v724 = vunpack.c.l.b16 %v589
    %v725 = vunpack.c.l.b16 %v590
    %v726 = vunpack.c.l.b16 %v591
    %v727 = vunpack.c.l.b16 %v592
    %v728 = vunpack.c.l.b16 %v593
    %v729 = vunpack.c.l.b16 %v594
    %v730 = vunpack.c.l.b16 %v595
    %v731 = vunpack.c.l.b16 %v596
    %v732 = vunpack.c.l.b16 %v597
    %v733 = vunpack.c.l.b16 %v598
    %v734 = vunpack.c.l.b16 %v599
    %v735 = vunpack.c.l.b16 %v600
    %v736 = vunpack.c.l.b16 %v601
    %v737 = vunpack.c.l.b16 %v602
    %v738 = vunpack.c.l.b16 %v603
    %v739 = vunpack.c.l.b16 %v604
    %v740 = vunpack.c.l.b16 %v605
    %v741 = vunpack.c.l.b16 %v606
    %v742 = vunpack.c.l.b16 %v607
    %v743 = vpack.c.b16 %v680, %v679
    %v744 = vpack.c.b16 %v682, %v681
    %v745 = vpack.c.b16 %v684, %v683
    %v746 = vpack.c.b16 %v686, %v685
    %v747 = vpack.c.b16 %v688, %v687
    %v748 = vpack.c.b16 %v690, %v689
    %v749 = vpack.c.b16 %v692, %v691
    %v750 = vpack.c.b16 %v694, %v693
    %v751 = vpack.c.b16 %v696, %v695
    %v752 = vpack.c.b16 %v698, %v697
    %v753 = vpack.c.b16 %v700, %v699
    %v754 = vpack.c.b16 %v702, %v701
    %v755 = vpack.c.b16 %v704, %v703
    %v756 = vpack.c.b16 %v706, %v705
    %v757 = vpack.c.b16 %v708, %v707
    %v758 = vpack.c.b16 %v710, %v709
    %v759 = vpack.c.b16 %v712, %v711
    %v760 = vpack.c.b16 %v714, %v713
    %v761 = vpack.c.b16 %v716, %v715
    %v762 = vpack.c.b16 %v718, %v717
    %v763 = vpack.c.b16 %v720, %v719
    %v764 = vpack.c.b16 %v722, %v721
    %v765 = vpack.c.b16 %v724, %v723
    %v766 = vpack.c.b16 %v726, %v725
    %v767 = vpack.c.b16 %v728, %v727
    %v768 = vpack.c.b16 %v730, %v729
    %v769 = vpack.c.b16 %v732, %v731
    %v770 = vpack.c.b16 %v734, %v733
    %v771 = vpack.c.b16 %v736, %v735
    %v772 = vpack.c.b16 %v738, %v737
    %v773 = vpack.c.b16 %v740, %v739
    %v774 = vpack.c.b16 %v742, %v741
    %807 = vmatprep.subr.bf16.mxu0 0
    %808 = vmatpush1.bf16.msra.mxu0 %v743
    %809 = vmatprep.subr.bf16.mxu0 0
    %810 = vmatpush1.bf16.msra.mxu0 %v744
    %811 = vmatprep.subr.bf16.mxu0 0
    %812 = vmatpush1.bf16.msra.mxu0 %v745
    %813 = vmatprep.subr.bf16.mxu0 0
    %814 = vmatpush1.bf16.msra.mxu0 %v746
    %815 = vmatprep.subr.bf16.mxu0 0
    %816 = vmatpush1.bf16.msra.mxu0 %v747
    %817 = vmatprep.subr.bf16.mxu0 0
    %818 = vmatpush1.bf16.msra.mxu0 %v748
    %819 = vmatprep.subr.bf16.mxu0 0
    %820 = vmatpush1.bf16.msra.mxu0 %v749
    %821 = vmatprep.subr.bf16.mxu0 0
    %822 = vmatpush1.bf16.msra.mxu0 %v750
    %823 = vmatprep.subr.bf16.mxu0 0
    %824 = vmatpush1.bf16.msra.mxu0 %v751
    %825 = vmatprep.subr.bf16.mxu0 0
    %826 = vmatpush1.bf16.msra.mxu0 %v752
    %827 = vmatprep.subr.bf16.mxu0 0
    %828 = vmatpush1.bf16.msra.mxu0 %v753
    %829 = vmatprep.subr.bf16.mxu0 0
    %830 = vmatpush1.bf16.msra.mxu0 %v754
    %831 = vmatprep.subr.bf16.mxu0 0
    %832 = vmatpush1.bf16.msra.mxu0 %v755
    %833 = vmatprep.subr.bf16.mxu0 0
    %834 = vmatpush1.bf16.msra.mxu0 %v756
    %835 = vmatprep.subr.bf16.mxu0 0
    %836 = vmatpush1.bf16.msra.mxu0 %v757
    %837 = vmatprep.subr.bf16.mxu0 0
    %838 = vmatpush1.bf16.msra.mxu0 %v758
    %839 = vmatprep.mubr.bf16.mxu0 %v541
    %840 = vmatmul.mubr.bf16.gmra.mrb[0].mxu0 %v540
    %v841 = vpop.f32.mrb[0].mxu0
    %v842 = vadd.f32 %v613, %v841
    %v843 = vpop.f32.mrb[0].mxu0
    %v844 = vpop.f32.mrb[0].mxu0
    %v845 = vpop.f32.mrb[0].mxu0
    %846 = vdwg.mxu0
    %847 = vmatprep.subr.bf16.mxu0 0
    %848 = vmatpush1.bf16.msra.mxu0 %v759
    %849 = vmatprep.subr.bf16.mxu0 0
    %850 = vmatpush1.bf16.msra.mxu0 %v760
    %851 = vmatprep.subr.bf16.mxu0 0
    %852 = vmatpush1.bf16.msra.mxu0 %v761
    %853 = vmatprep.subr.bf16.mxu0 0
    %854 = vmatpush1.bf16.msra.mxu0 %v762
    %855 = vmatprep.subr.bf16.mxu0 0
    %856 = vmatpush1.bf16.msra.mxu0 %v763
    %857 = vmatprep.subr.bf16.mxu0 0
    %858 = vmatpush1.bf16.msra.mxu0 %v764
    %859 = vmatprep.subr.bf16.mxu0 0
    %860 = vmatpush1.bf16.msra.mxu0 %v765
    %861 = vmatprep.subr.bf16.mxu0 0
    %862 = vmatpush1.bf16.msra.mxu0 %v766
    %863 = vmatprep.subr.bf16.mxu0 0
    %864 = vmatpush1.bf16.msra.mxu0 %v767
    %865 = vmatprep.subr.bf16.mxu0 0
    %866 = vmatpush1.bf16.msra.mxu0 %v768
    %867 = vmatprep.subr.bf16.mxu0 0
    %868 = vmatpush1.bf16.msra.mxu0 %v769
    %869 = vmatprep.subr.bf16.mxu0 0
    %870 = vmatpush1.bf16.msra.mxu0 %v770
    %871 = vmatprep.subr.bf16.mxu0 0
    %872 = vmatpush1.bf16.msra.mxu0 %v771
    %873 = vmatprep.subr.bf16.mxu0 0
    %874 = vmatpush1.bf16.msra.mxu0 %v772
    %875 = vmatprep.subr.bf16.mxu0 0
    %876 = vmatpush1.bf16.msra.mxu0 %v773
    %877 = vmatprep.subr.bf16.mxu0 0
    %878 = vmatpush1.bf16.msra.mxu0 %v774
    %879 = vmatprep.mubr.bf16.mxu0 %v543
    %880 = vmatmul.mubr.bf16.gmra.mrb[0].mxu0 %v542
    %v881 = vpop.f32.mrb[0].mxu0
    %v882 = vadd.f32 %v842, %v881
    %v883 = vpop.f32.mrb[0].mxu0
    %v884 = vpop.f32.mrb[0].mxu0
    %v885 = vpop.f32.mrb[0].mxu0
    %886 = vdwg.mxu0
    %887 = vst [vmem:[#allocation2] sm:$0x3] %v882
    // Predicated region
    $region22: #{nature_cnn_forward.13} parent=1 // pred_check
      _
    $region23: #{nature_cnn_forward.13} parent=1 // pred_check_branch
      %889 = sbr.rel (0) target = $region25
    $region24: #{nature_cnn_forward.13} parent=1 // pred_region
      %s891 = ssub.s32 32, 32
      %892 = vsyncadd [#allocation3], %s891
      %s894 = sshll.u32 [#allocation2], 4
      %s895 = int_to_ptr.vmem [resolvable:$true] %s894
      %897 = dma.vmem_to_hbm [thread:$0]  %s895, 32, %s5, [#allocation3]
    $region25: #{nature_cnn_forward.13} parent=1 // pred_fallthru
      _
    // Predicated region
    $region26: #{nature_cnn_forward.13} parent=1 // pred_check
      _
    $region27: #{nature_cnn_forward.13} parent=1 // pred_check_branch
      %899 = sbr.rel (0) target = $region29
    $region28: #{nature_cnn_forward.13} parent=1 // pred_region
      %900 = dma.done [#allocation3], 32
    $region29: #{nature_cnn_forward.13} parent=1 // pred_fallthru
      _
    %901 = vsyncpa [#allocation3], 1

</llo_original>
